<compile_context>
chip_gen: v6e
topology: v6e:2x2x1
jax: 0.10.0
libtpu: 0.0.40
codegen_flags: <defaults>
</compile_context>

<pallas_src>
import functools

import jax
import jax.numpy as jnp
from jax.experimental import pallas as pl
from jax.experimental.pallas import tpu as pltpu


def _round_up(n, m):
    return ((n + m - 1) // m) * m


def _device_vmem_bytes():
    """Per-core VMEM capacity; conservative fallback if the query fails."""
    try:
        cap = int(getattr(pltpu.get_tpu_info(), "vmem_capacity_bytes", 0))
        if cap > 0:
            return cap
    except Exception:
        pass
    return 64 << 20          # v7x per-TensorCore VMEM (smallest current part)


def _vmem_block_bytes(shape, dtype):
    """Approximate VMEM footprint of one block ((8,128)-tiled last two dims)."""
    isz = jnp.dtype(dtype).itemsize
    s = list(shape)
    if len(s) >= 1:
        s[-1] = _round_up(s[-1], 128)
    if len(s) >= 2:
        s[-2] = _round_up(s[-2], max(8, 32 // isz))
    n = 1
    for d in s:
        n *= d
    return n * isz


def _lstm_kernel(x_ref, hx_ref, cx_ref, w_ih_t_ref, w_hh_t_ref, bias_ref,
                 out_ref, cy_ref, gx_sc, h_sc, c_sc,
                 *, hidden_pad, time_block, seq_len, unroll):
    """One grid step == `time_block` time steps of one batch tile.

    Gate order along the padded 4*Hp axis is [i, f, o, g] (reordered in the
    wrapper) so one sigmoid covers the first 3*Hp lanes and one tanh the rest.
    h lives in compute-dtype VMEM scratch, c in f32 scratch, across the
    (sequential) time-block grid axis.
    """
    ti = pl.program_id(1)
    Hp = hidden_pad
    tb, bt, d_in = x_ref.shape

    @pl.when(ti == 0)
    def _():
        h_sc[...] = hx_ref[0].astype(h_sc.dtype)
        c_sc[...] = cx_ref[0].astype(c_sc.dtype)

    # Fused input projection for the whole time block (no serial dependence):
    #   gates_x = x @ W_ih^T + (b_ih + b_hh), one MXU matmul per grid step.
    x2d = x_ref[...].astype(w_ih_t_ref.dtype).reshape(tb * bt, d_in)
    gx = jnp.dot(x2d, w_ih_t_ref[...], preferred_element_type=jnp.float32)
    gx = gx + bias_ref[...]                                   # (tb*bt, 4Hp) f32
    gx_sc[...] = gx.reshape(tb, bt, 4 * Hp).astype(gx_sc.dtype)

    def _step_body(t):
        h_prev = h_sc[...]                                    # (bt, Hp) cd
        c_prev = c_sc[...]                                    # (bt, Hp) f32
        gates = gx_sc[t].astype(jnp.float32) + jnp.dot(
            h_prev, w_hh_t_ref[...], preferred_element_type=jnp.float32)
        sig = jax.nn.sigmoid(gates[:, :3 * Hp])               # [ i | f | o ]
        i_g = sig[:, 0 * Hp:1 * Hp]
        f_g = sig[:, 1 * Hp:2 * Hp]
        o_g = sig[:, 2 * Hp:3 * Hp]
        g_g = jnp.tanh(gates[:, 3 * Hp:])                     # [ g ]
        c_new = f_g * c_prev + i_g * g_g
        h_new = o_g * jnp.tanh(c_new)
        h_sc[...] = h_new.astype(h_sc.dtype)
        c_sc[...] = c_new
        out_ref[t] = h_new.astype(out_ref.dtype)

    def _full_step(t, carry):
        _step_body(t)
        return carry

    def _masked_step(t, carry):
        @pl.when(ti * time_block + t < seq_len)
        def _():
            _step_body(t)
        return carry

    block_full = (ti + 1) * time_block <= seq_len

    @pl.when(block_full)
    def _():
        jax.lax.fori_loop(0, time_block, _full_step, 0, unroll=unroll)

    @pl.when(jnp.logical_not(block_full))
    def _():
        # Only the (single) remainder block takes this path. Zero the padded
        # rows so the padded output buffer is fully deterministic.
        out_ref[...] = jnp.zeros(out_ref.shape, out_ref.dtype)
        jax.lax.fori_loop(0, time_block, _masked_step, 0, unroll=unroll)

    @pl.when(ti == pl.num_programs(1) - 1)
    def _():
        cy_ref[0] = c_sc[...].astype(cy_ref.dtype)


def cudnn_lstm_forward(x, w_ih, w_hh, b_ih, b_hh, hx=None, cx=None, *,
                       compute_dtype=jnp.bfloat16, time_block=None,
                       batch_tile=None):
    """Pallas equivalent of CudnnLstm.forward (eval mode / no dropout).

    Args:
      x:    (T, B, inputSize) time-major input.
      w_ih: (4H, inputSize), w_hh: (4H, H), b_ih/b_hh: (4H,) -- cuDNN gate
            order [i, f, g, o] along the 4H axis.
      hx, cx: optional (1, B, H) initial states (default zeros).
      compute_dtype: dtype fed to the MXU matmuls and the h state (bf16 by
            default; accumulation and the c state stay float32). float32 is a
            verification path (slow in production, especially on v5e).
      time_block: time steps per grid iteration (auto-sized to VMEM if None).
      batch_tile: batch rows per grid iteration (parallel axis; auto if None).

    Returns:
      output (T, B, H), (hy (1, B, H), cy (1, B, H)).
    """
    T, B, D = x.shape
    H = w_ih.shape[0] // 4
    out_dtype = x.dtype

    # ---- padded sizes -------------------------------------------------------
    Hp = _round_up(H, 128)             # lane-align each gate slab
    # TODO(synk): for H far from a multiple of 128, a jointly padded 4H axis
    # with a lane mask would shrink MXU/EUP work further.
    B16 = _round_up(B, 16)             # sublane-align (bf16-safe)

    vmem_cap = _device_vmem_bytes()
    budget = int(0.80 * vmem_cap)

    def _vmem_usage(tb, bt):
        use = 0
        # double-buffered pipelined blocks
        use += 2 * _vmem_block_bytes((tb, bt, D), x.dtype)           # x
        use += 2 * _vmem_block_bytes((tb, bt, Hp), out_dtype)        # output
        use += 4 * _vmem_block_bytes((1, bt, Hp), jnp.float32)       # hx, cx
        use += 2 * _vmem_block_bytes((1, bt, Hp), out_dtype)         # cy
        use += 2 * _vmem_block_bytes((1, 4 * Hp), jnp.float32)       # bias
        # constant weights (index_map constant -> DMA'd once, but the default
        # pipeline still allocates two buffers each)
        use += 2 * _vmem_block_bytes((D, 4 * Hp), compute_dtype)
        use += 2 * _vmem_block_bytes((Hp, 4 * Hp), compute_dtype)
        # scratch
        use += _vmem_block_bytes((tb, bt, 4 * Hp), compute_dtype)    # gx_sc
        use += _vmem_block_bytes((bt, Hp), compute_dtype)            # h_sc
        use += _vmem_block_bytes((bt, Hp), jnp.float32)              # c_sc
        # transient f32 projection result before the gx_sc store
        use += _vmem_block_bytes((tb * bt, 4 * Hp), jnp.float32)
        return use

    # ---- device-aware tile selection ---------------------------------------
    auto_bt = batch_tile is None
    auto_tb = time_block is None
    if auto_bt:
        if B16 <= 256:
            # Split in half when that costs no padding, so the 'parallel'
            # batch axis has >= 2 grid points (keeps both v7x TCs busy; the
            # extra ~0.35us/grid-step on single-TC parts is negligible).
            batch_tile = B16 // 2 if (B16 >= 32 and B16 % 32 == 0) else B16
        else:
            n_tiles = -(-B16 // 256)
            batch_tile = _round_up(-(-B16 // n_tiles), 16)
    if auto_tb:
        time_block = max(1, min(T, 32))

    # Shrink auto-chosen tiles until the VMEM estimate fits the budget.
    while _vmem_usage(time_block, batch_tile) > budget:
        if auto_tb and time_block > 4:
            time_block = max(4, time_block // 2)
        elif auto_bt and batch_tile > 16:
            batch_tile = max(16, _round_up(batch_tile // 2, 16))
        else:
            break

    B_pad = _round_up(B16, batch_tile)
    n_b = B_pad // batch_tile
    T_pad = _round_up(T, time_block)
    n_t = T_pad // time_block
    unroll = int(max(1, min(time_block, 8)))

    # ---- gate reorder [i,f,g,o] -> [i,f,o,g] + zero-pad each gate to Hp -----
    perm = jnp.array([0, 1, 3, 2])

    def _gate_rows(w):                                 # (4H, K) -> (4, Hp, K)
        w4 = w.reshape(4, H, -1)[perm]
        return jnp.pad(w4, ((0, 0), (0, Hp - H), (0, 0)))

    w_ih_t = _gate_rows(w_ih).reshape(4 * Hp, D).T.astype(compute_dtype)  # (D,4Hp)
    w_hh_p = jnp.pad(_gate_rows(w_hh), ((0, 0), (0, 0), (0, Hp - H)))     # (4,Hp,Hp)
    w_hh_t = w_hh_p.reshape(4 * Hp, Hp).T.astype(compute_dtype)           # (Hp,4Hp)
    bias = (b_ih + b_hh).reshape(4, H)[perm]
    bias = jnp.pad(bias, ((0, 0), (0, Hp - H))).reshape(1, 4 * Hp)
    bias = bias.astype(jnp.float32)

    # ---- padded inputs (x stays in its original dtype; cast in-kernel) ------
    x_p = jnp.pad(x, ((0, T_pad - T), (0, B_pad - B), (0, 0)))

    def _state(s):
        if s is None:
            return jnp.zeros((1, B_pad, Hp), jnp.float32)
        s = jnp.asarray(s, jnp.float32)
        return jnp.pad(s, ((0, 0), (0, B_pad - B), (0, Hp - H)))

    hx_p = _state(hx)
    cx_p = _state(cx)

    kernel = functools.partial(_lstm_kernel, hidden_pad=Hp,
                               time_block=time_block, seq_len=T, unroll=unroll)

    out_shapes = (
        jax.ShapeDtypeStruct((T_pad, B_pad, Hp), out_dtype),    # output
        jax.ShapeDtypeStruct((1, B_pad, Hp), out_dtype),        # cy
    )

    grid_spec = pltpu.PrefetchScalarGridSpec(
        num_scalar_prefetch=0,
        grid=(n_b, n_t),
        in_specs=[
            pl.BlockSpec((time_block, batch_tile, D),
                         lambda bi, ti: (ti, bi, 0)),                      # x
            pl.BlockSpec((1, batch_tile, Hp), lambda bi, ti: (0, bi, 0)),  # hx
            pl.BlockSpec((1, batch_tile, Hp), lambda bi, ti: (0, bi, 0)),  # cx
            pl.BlockSpec((D, 4 * Hp), lambda bi, ti: (0, 0)),        # W_ih^T
            pl.BlockSpec((Hp, 4 * Hp), lambda bi, ti: (0, 0)),       # W_hh^T
            pl.BlockSpec((1, 4 * Hp), lambda bi, ti: (0, 0)),        # bias
        ],
        out_specs=[
            pl.BlockSpec((time_block, batch_tile, Hp),
                         lambda bi, ti: (ti, bi, 0)),                      # out
            pl.BlockSpec((1, batch_tile, Hp), lambda bi, ti: (0, bi, 0)),  # cy
        ],
        scratch_shapes=[
            pltpu.VMEM((time_block, batch_tile, 4 * Hp), compute_dtype),  # gx
            pltpu.VMEM((batch_tile, Hp), compute_dtype),                  # h
            pltpu.VMEM((batch_tile, Hp), jnp.float32),                    # c
        ],
    )

    usage = _vmem_usage(time_block, batch_tile)
    vmem_limit = int(min(max(1.25 * usage, 32 << 20), 0.9 * vmem_cap))

    out_pad, cy_pad = pl.pallas_call(
        kernel,
        out_shape=out_shapes,
        grid_spec=grid_spec,
        compiler_params=pltpu.CompilerParams(
            dimension_semantics=("parallel", "arbitrary"),
            vmem_limit_bytes=vmem_limit),
    )(x_p, hx_p, cx_p, w_ih_t, w_hh_t, bias)

    output = out_pad[:T, :B, :H]
    hy = output[T - 1:T]            # hy duplicates output[-1]; no extra output
    cy = cy_pad[:, :B, :H]
    return output, (hy, cy)


def _reference_lstm(x, w_ih, w_hh, b_ih, b_hh, hx, cx):
    """Pure-JAX reference (same gate math as cuDNN) for verification."""
    H = w_hh.shape[1]

    def step(carry, x_t):
        h, c = carry
        gates = x_t @ w_ih.T + h @ w_hh.T + b_ih + b_hh
        i = jax.nn.sigmoid(gates[:, 0 * H:1 * H])
        f = jax.nn.sigmoid(gates[:, 1 * H:2 * H])
        g = jnp.tanh(gates[:, 2 * H:3 * H])
        o = jax.nn.sigmoid(gates[:, 3 * H:4 * H])
        c_new = f * c + i * g
        h_new = o * jnp.tanh(c_new)
        return (h_new, c_new), h_new

    (h_fin, c_fin), out = jax.lax.scan(step, (hx[0], cx[0]), x)
    return out, (h_fin[None], c_fin[None])


if __name__ == "__main__":
    # Module config (synthetic, deterministic init mirroring reset_parameters).
    inputSize, hiddenSize = 16, 32
    T, B = 8, 4

    key = jax.random.PRNGKey(0)
    k_x, k_x2, k_h2, k_c2, k_wih, k_whh, k_bih, k_bhh = jax.random.split(key, 8)

    stdv = 1.0 / (hiddenSize ** 0.5)
    w_ih = jax.random.uniform(k_wih, (4 * hiddenSize, inputSize),
                              jnp.float32, -stdv, stdv)
    w_hh = jax.random.uniform(k_whh, (4 * hiddenSize, hiddenSize),
                              jnp.float32, -stdv, stdv)
    b_ih = jax.random.uniform(k_bih, (4 * hiddenSize,), jnp.float32, -stdv, stdv)
    b_hh = jax.random.uniform(k_bhh, (4 * hiddenSize,), jnp.float32, -stdv, stdv)
    x = jax.random.normal(k_x, (T, B, inputSize), jnp.float32)

    hx0 = jnp.zeros((1, B, hiddenSize), jnp.float32)
    cx0 = jnp.zeros((1, B, hiddenSize), jnp.float32)
    ref_out, (ref_hy, ref_cy) = _reference_lstm(x, w_ih, w_hh, b_ih, b_hh,
                                                hx0, cx0)

    # 1) float32 compute path: strict check against the pure-JAX reference.
    out_f32, (hy_f32, cy_f32) = cudnn_lstm_forward(
        x, w_ih, w_hh, b_ih, b_hh, compute_dtype=jnp.float32)
    jax.block_until_ready((out_f32, hy_f32, cy_f32))
    assert out_f32.shape == (T, B, hiddenSize)
    assert hy_f32.shape == (1, B, hiddenSize)
    assert cy_f32.shape == (1, B, hiddenSize)
    assert jnp.allclose(out_f32, ref_out, atol=1e-5, rtol=1e-5)
    assert jnp.allclose(hy_f32, ref_hy, atol=1e-5, rtol=1e-5)
    assert jnp.allclose(cy_f32, ref_cy, atol=1e-5, rtol=1e-5)

    # 2) time block that does not divide T (exercises the masked remainder
    #    block and the zeroing of padded output rows).
    out_tb, (hy_tb, cy_tb) = cudnn_lstm_forward(
        x, w_ih, w_hh, b_ih, b_hh, compute_dtype=jnp.float32, time_block=5)
    jax.block_until_ready((out_tb, hy_tb, cy_tb))
    assert jnp.allclose(out_tb, ref_out, atol=1e-5, rtol=1e-5)
    assert jnp.allclose(cy_tb, ref_cy, atol=1e-5, rtol=1e-5)

    # 3) batch large enough to split into two 'parallel' tiles (n_b == 2),
    #    with non-zero initial states (exercises per-tile state init and the
    #    megacore-friendly batch split).
    B2 = 32
    x2 = jax.random.normal(k_x2, (T, B2, inputSize), jnp.float32)
    hx2 = 0.1 * jax.random.normal(k_h2, (1, B2, hiddenSize), jnp.float32)
    cx2 = 0.1 * jax.random.normal(k_c2, (1, B2, hiddenSize), jnp.float32)
    ref_out2, (_, ref_cy2) = _reference_lstm(x2, w_ih, w_hh, b_ih, b_hh,
                                             hx2, cx2)
    out2, (hy2, cy2) = cudnn_lstm_forward(
        x2, w_ih, w_hh, b_ih, b_hh, hx=hx2, cx=cx2,
        compute_dtype=jnp.float32)
    jax.block_until_ready((out2, hy2, cy2))
    assert jnp.allclose(out2, ref_out2, atol=1e-5, rtol=1e-5)
    assert jnp.allclose(cy2, ref_cy2, atol=1e-5, rtol=1e-5)

    # 4) default bf16 compute path (MXU-native weights/activations, f32
    #    accumulation and c state): loose check against the f32 reference.
    out_bf, (hy_bf, cy_bf) = cudnn_lstm_forward(x, w_ih, w_hh, b_ih, b_hh)
    jax.block_until_ready((out_bf, hy_bf, cy_bf))
    assert out_bf.shape == (T, B, hiddenSize)
    assert jnp.allclose(out_bf, ref_out, atol=5e-2, rtol=5e-2)
    assert jnp.allclose(cy_bf, ref_cy, atol=5e-2, rtol=5e-2)

    print("KERNEL_OK")
</pallas_src>

<mosaic_0001>
module attributes {stable_mosaic.version = 11 : i64} {
  func.func @_lstm_kernel(%arg0: i32, %arg1: i32, %arg2: memref<8x16x16xf32, #tpu.memory_space<vmem>>, %arg3: memref<1x16x128xf32, #tpu.memory_space<vmem>>, %arg4: memref<1x16x128xf32, #tpu.memory_space<vmem>>, %arg5: memref<16x512xf32, #tpu.memory_space<vmem>>, %arg6: memref<128x512xf32, #tpu.memory_space<vmem>>, %arg7: memref<1x512xf32, #tpu.memory_space<vmem>>, %arg8: memref<8x16x128xf32, #tpu.memory_space<vmem>>, %arg9: memref<1x16x128xf32, #tpu.memory_space<vmem>>, %arg10: memref<8x16x512xf32, #tpu.memory_space<vmem>>, %arg11: memref<16x128xf32, #tpu.memory_space<vmem>>, %arg12: memref<16x128xf32, #tpu.memory_space<vmem>>) attributes {dimension_semantics = [#tpu.dimension_semantics<parallel>, #tpu.dimension_semantics<arbitrary>], iteration_bounds = array<i64: 1, 1>, scalar_prefetch = 0 : i64, scratch_operands = 3 : i64, tpu.core_type = #tpu.core_type<tc>, window_params = [{transform_indices = @transform_0, window_bounds = array<i64: 8, 16, 16>}, {transform_indices = @transform_1, window_bounds = array<i64: 1, 16, 128>}, {transform_indices = @transform_2, window_bounds = array<i64: 1, 16, 128>}, {pipeline_mode = #tpu.pipeline_mode<synchronous>, transform_indices = @transform_3, window_bounds = array<i64: 16, 512>}, {pipeline_mode = #tpu.pipeline_mode<synchronous>, transform_indices = @transform_4, window_bounds = array<i64: 128, 512>}, {pipeline_mode = #tpu.pipeline_mode<synchronous>, transform_indices = @transform_5, window_bounds = array<i64: 1, 512>}, {transform_indices = @transform_6, window_bounds = array<i64: 8, 16, 128>}, {transform_indices = @transform_7, window_bounds = array<i64: 1, 16, 128>}]} {
    %c0_i32 = arith.constant 0 : i32
    %0 = arith.cmpi eq, %arg1, %c0_i32 : i32
    %1 = arith.extui %0 : i1 to i32
    %c0_i32_0 = arith.constant 0 : i32
    %2 = arith.cmpi ne, %1, %c0_i32_0 : i32
    scf.if %2 {
      %c0_15 = arith.constant 0 : index
      %c0_16 = arith.constant 0 : index
      %c0_17 = arith.constant 0 : index
      %23 = vector.load %arg3[%c0_15, %c0_16, %c0_17] : memref<1x16x128xf32, #tpu.memory_space<vmem>>, vector<1x16x128xf32>
      %24 = vector.shape_cast %23 : vector<1x16x128xf32> to vector<16x128xf32>
      %c0_18 = arith.constant 0 : index
      %c0_19 = arith.constant 0 : index
      %25 = vector.load %arg11[%c0_18, %c0_19] : memref<16x128xf32, #tpu.memory_space<vmem>>, vector<16x128xf32>
      tpu.vector_store %arg11[%c0_18, %c0_19], %24 {strides = array<i32>} : memref<16x128xf32, #tpu.memory_space<vmem>>, vector<16x128xf32>,
      %c0_20 = arith.constant 0 : index
      %c0_21 = arith.constant 0 : index
      %c0_22 = arith.constant 0 : index
      %26 = vector.load %arg4[%c0_20, %c0_21, %c0_22] : memref<1x16x128xf32, #tpu.memory_space<vmem>>, vector<1x16x128xf32>
      %27 = vector.shape_cast %26 : vector<1x16x128xf32> to vector<16x128xf32>
      %c0_23 = arith.constant 0 : index
      %c0_24 = arith.constant 0 : index
      %28 = vector.load %arg12[%c0_23, %c0_24] : memref<16x128xf32, #tpu.memory_space<vmem>>, vector<16x128xf32>
      tpu.vector_store %arg12[%c0_23, %c0_24], %27 {strides = array<i32>} : memref<16x128xf32, #tpu.memory_space<vmem>>, vector<16x128xf32>,
    } else {
    }
    %c0 = arith.constant 0 : index
    %c0_1 = arith.constant 0 : index
    %c0_2 = arith.constant 0 : index
    %3 = vector.load %arg2[%c0, %c0_1, %c0_2] : memref<8x16x16xf32, #tpu.memory_space<vmem>>, vector<8x16x16xf32>
    %4 = vector.shape_cast %3 : vector<8x16x16xf32> to vector<128x16xf32>
    %c0_3 = arith.constant 0 : index
    %c0_4 = arith.constant 0 : index
    %5 = vector.load %arg5[%c0_3, %c0_4] : memref<16x512xf32, #tpu.memory_space<vmem>>, vector<16x512xf32>
    %cst = arith.constant dense<0.000000e+00> : vector<128x512xf32>
    %6 = tpu.matmul %4, %5, %cst {dimension_numbers = #tpu.dot_dimension_numbers<[1], [0], [0], [1], [0, 0, 1, 1], [], []>} : vector<128x16xf32>, vector<16x512xf32>, vector<128x512xf32> -> vector<128x512xf32>
    %c0_5 = arith.constant 0 : index
    %c0_6 = arith.constant 0 : index
    %7 = vector.load %arg7[%c0_5, %c0_6] : memref<1x512xf32, #tpu.memory_space<vmem>>, vector<1x512xf32>
    %8 = vector.broadcast %7 : vector<1x512xf32> to vector<128x512xf32>
    %9 = arith.addf %6, %8 : vector<128x512xf32>
    %10 = vector.shape_cast %9 : vector<128x512xf32> to vector<8x16x512xf32>
    %c0_7 = arith.constant 0 : index
    %c0_8 = arith.constant 0 : index
    %c0_9 = arith.constant 0 : index
    %11 = vector.load %arg10[%c0_7, %c0_8, %c0_9] : memref<8x16x512xf32, #tpu.memory_space<vmem>>, vector<8x16x512xf32>
    tpu.vector_store %arg10[%c0_7, %c0_8, %c0_9], %10 {strides = array<i32>} : memref<8x16x512xf32, #tpu.memory_space<vmem>>, vector<8x16x512xf32>,
    %c1_i32 = arith.constant 1 : i32
    %12 = arith.addi %arg1, %c1_i32 : i32
    %c8_i32 = arith.constant 8 : i32
    %13 = arith.muli %12, %c8_i32 : i32
    %c8_i32_10 = arith.constant 8 : i32
    %14 = arith.cmpi sle, %13, %c8_i32_10 : i32
    %15 = arith.extui %14 : i1 to i32
    %c0_i32_11 = arith.constant 0 : i32
    %16 = arith.cmpi ne, %15, %c0_i32_11 : i32
    scf.if %16 {
      %c0_i32_15 = arith.constant 0 : i32
      %c0_16 = arith.constant 0 : index
      %c0_17 = arith.constant 0 : index
      %23 = vector.load %arg11[%c0_16, %c0_17] : memref<16x128xf32, #tpu.memory_space<vmem>>, vector<16x128xf32>
      %c0_18 = arith.constant 0 : index
      %c0_19 = arith.constant 0 : index
      %24 = vector.load %arg12[%c0_18, %c0_19] : memref<16x128xf32, #tpu.memory_space<vmem>>, vector<16x128xf32>
      %25 = arith.index_cast %c0_i32_15 : i32 to index
      %c0_20 = arith.constant 0 : index
      %c0_21 = arith.constant 0 : index
      %26 = vector.load %arg10[%25, %c0_20, %c0_21] : memref<8x16x512xf32, #tpu.memory_space<vmem>>, vector<1x16x512xf32>
      %27 = vector.shape_cast %26 : vector<1x16x512xf32> to vector<16x512xf32>
      %c0_22 = arith.constant 0 : index
      %c0_23 = arith.constant 0 : index
      %28 = vector.load %arg6[%c0_22, %c0_23] : memref<128x512xf32, #tpu.memory_space<vmem>>, vector<128x512xf32>
      %cst_24 = arith.constant dense<0.000000e+00> : vector<16x512xf32>
      %29 = tpu.matmul %23, %28, %cst_24 {dimension_numbers = #tpu.dot_dimension_numbers<[1], [0], [0], [1], [0, 0, 1, 1], [], []>} : vector<16x128xf32>, vector<128x512xf32>, vector<16x512xf32> -> vector<16x512xf32>
      %30 = arith.addf %27, %29 : vector<16x512xf32>
      %31 = vector.extract_strided_slice %30 {offsets = [0, 0], sizes = [16, 384], strides = [1, 1]} : vector<16x512xf32> to vector<16x384xf32>
      %32 = arith.negf %31 : vector<16x384xf32>
      %33 = math.exp %32 : vector<16x384xf32>
      %cst_25 = arith.constant 1.000000e+00 : f32
      %34 = vector.broadcast %cst_25 : f32 to vector<16x384xf32>
      %35 = arith.addf %34, %33 : vector<16x384xf32>
      %36 = arith.divf %34, %35 : vector<16x384xf32>
      %37 = vector.extract_strided_slice %36 {offsets = [0, 0], sizes = [16, 128], strides = [1, 1]} : vector<16x384xf32> to vector<16x128xf32>
      %38 = vector.extract_strided_slice %36 {offsets = [0, 128], sizes = [16, 128], strides = [1, 1]} : vector<16x384xf32> to vector<16x128xf32>
      %39 = vector.extract_strided_slice %36 {offsets = [0, 256], sizes = [16, 128], strides = [1, 1]} : vector<16x384xf32> to vector<16x128xf32>
      %40 = vector.extract_strided_slice %30 {offsets = [0, 384], sizes = [16, 128], strides = [1, 1]} : vector<16x512xf32> to vector<16x128xf32>
      %41 = math.tanh %40 : vector<16x128xf32>
      %42 = arith.mulf %38, %24 : vector<16x128xf32>
      %43 = arith.mulf %37, %41 : vector<16x128xf32>
      %44 = arith.addf %42, %43 : vector<16x128xf32>
      %45 = math.tanh %44 : vector<16x128xf32>
      %46 = arith.mulf %39, %45 : vector<16x128xf32>
      %c0_26 = arith.constant 0 : index
      %c0_27 = arith.constant 0 : index
      %47 = vector.load %arg11[%c0_26, %c0_27] : memref<16x128xf32, #tpu.memory_space<vmem>>, vector<16x128xf32>
      tpu.vector_store %arg11[%c0_26, %c0_27], %46 {strides = array<i32>} : memref<16x128xf32, #tpu.memory_space<vmem>>, vector<16x128xf32>,
      %c0_28 = arith.constant 0 : index
      %c0_29 = arith.constant 0 : index
      %48 = vector.load %arg12[%c0_28, %c0_29] : memref<16x128xf32, #tpu.memory_space<vmem>>, vector<16x128xf32>
      tpu.vector_store %arg12[%c0_28, %c0_29], %44 {strides = array<i32>} : memref<16x128xf32, #tpu.memory_space<vmem>>, vector<16x128xf32>,
      %49 = arith.index_cast %c0_i32_15 : i32 to index
      %c0_30 = arith.constant 0 : index
      %c0_31 = arith.constant 0 : index
      %50 = vector.load %arg8[%49, %c0_30, %c0_31] : memref<8x16x128xf32, #tpu.memory_space<vmem>>, vector<1x16x128xf32>
      %51 = vector.shape_cast %50 : vector<1x16x128xf32> to vector<16x128xf32>
      %52 = vector.shape_cast %46 : vector<16x128xf32> to vector<1x16x128xf32>
      tpu.vector_store %arg8[%49, %c0_30, %c0_31], %52 {strides = array<i32>} : memref<8x16x128xf32, #tpu.memory_space<vmem>>, vector<1x16x128xf32>,
      %c1_i32_32 = arith.constant 1 : i32
      %c0_33 = arith.constant 0 : index
      %c0_34 = arith.constant 0 : index
      %53 = vector.load %arg11[%c0_33, %c0_34] : memref<16x128xf32, #tpu.memory_space<vmem>>, vector<16x128xf32>
      %c0_35 = arith.constant 0 : index
      %c0_36 = arith.constant 0 : index
      %54 = vector.load %arg12[%c0_35, %c0_36] : memref<16x128xf32, #tpu.memory_space<vmem>>, vector<16x128xf32>
      %55 = arith.index_cast %c1_i32_32 : i32 to index
      %c0_37 = arith.constant 0 : index
      %c0_38 = arith.constant 0 : index
      %56 = vector.load %arg10[%55, %c0_37, %c0_38] : memref<8x16x512xf32, #tpu.memory_space<vmem>>, vector<1x16x512xf32>
      %57 = vector.shape_cast %56 : vector<1x16x512xf32> to vector<16x512xf32>
      %c0_39 = arith.constant 0 : index
      %c0_40 = arith.constant 0 : index
      %58 = vector.load %arg6[%c0_39, %c0_40] : memref<128x512xf32, #tpu.memory_space<vmem>>, vector<128x512xf32>
      %cst_41 = arith.constant dense<0.000000e+00> : vector<16x512xf32>
      %59 = tpu.matmul %53, %58, %cst_41 {dimension_numbers = #tpu.dot_dimension_numbers<[1], [0], [0], [1], [0, 0, 1, 1], [], []>} : vector<16x128xf32>, vector<128x512xf32>, vector<16x512xf32> -> vector<16x512xf32>
      %60 = arith.addf %57, %59 : vector<16x512xf32>
      %61 = vector.extract_strided_slice %60 {offsets = [0, 0], sizes = [16, 384], strides = [1, 1]} : vector<16x512xf32> to vector<16x384xf32>
      %62 = arith.negf %61 : vector<16x384xf32>
      %63 = math.exp %62 : vector<16x384xf32>
      %cst_42 = arith.constant 1.000000e+00 : f32
      %64 = vector.broadcast %cst_42 : f32 to vector<16x384xf32>
      %65 = arith.addf %64, %63 : vector<16x384xf32>
      %66 = arith.divf %64, %65 : vector<16x384xf32>
      %67 = vector.extract_strided_slice %66 {offsets = [0, 0], sizes = [16, 128], strides = [1, 1]} : vector<16x384xf32> to vector<16x128xf32>
      %68 = vector.extract_strided_slice %66 {offsets = [0, 128], sizes = [16, 128], strides = [1, 1]} : vector<16x384xf32> to vector<16x128xf32>
      %69 = vector.extract_strided_slice %66 {offsets = [0, 256], sizes = [16, 128], strides = [1, 1]} : vector<16x384xf32> to vector<16x128xf32>
      %70 = vector.extract_strided_slice %60 {offsets = [0, 384], sizes = [16, 128], strides = [1, 1]} : vector<16x512xf32> to vector<16x128xf32>
      %71 = math.tanh %70 : vector<16x128xf32>
      %72 = arith.mulf %68, %54 : vector<16x128xf32>
      %73 = arith.mulf %67, %71 : vector<16x128xf32>
      %74 = arith.addf %72, %73 : vector<16x128xf32>
      %75 = math.tanh %74 : vector<16x128xf32>
      %76 = arith.mulf %69, %75 : vector<16x128xf32>
      %c0_43 = arith.constant 0 : index
      %c0_44 = arith.constant 0 : index
      %77 = vector.load %arg11[%c0_43, %c0_44] : memref<16x128xf32, #tpu.memory_space<vmem>>, vector<16x128xf32>
      tpu.vector_store %arg11[%c0_43, %c0_44], %76 {strides = array<i32>} : memref<16x128xf32, #tpu.memory_space<vmem>>, vector<16x128xf32>,
      %c0_45 = arith.constant 0 : index
      %c0_46 = arith.constant 0 : index
      %78 = vector.load %arg12[%c0_45, %c0_46] : memref<16x128xf32, #tpu.memory_space<vmem>>, vector<16x128xf32>
      tpu.vector_store %arg12[%c0_45, %c0_46], %74 {strides = array<i32>} : memref<16x128xf32, #tpu.memory_space<vmem>>, vector<16x128xf32>,
      %79 = arith.index_cast %c1_i32_32 : i32 to index
      %c0_47 = arith.constant 0 : index
      %c0_48 = arith.constant 0 : index
      %80 = vector.load %arg8[%79, %c0_47, %c0_48] : memref<8x16x128xf32, #tpu.memory_space<vmem>>, vector<1x16x128xf32>
      %81 = vector.shape_cast %80 : vector<1x16x128xf32> to vector<16x128xf32>
      %82 = vector.shape_cast %76 : vector<16x128xf32> to vector<1x16x128xf32>
      tpu.vector_store %arg8[%79, %c0_47, %c0_48], %82 {strides = array<i32>} : memref<8x16x128xf32, #tpu.memory_space<vmem>>, vector<1x16x128xf32>,
      %c2_i32 = arith.constant 2 : i32
      %c0_49 = arith.constant 0 : index
      %c0_50 = arith.constant 0 : index
      %83 = vector.load %arg11[%c0_49, %c0_50] : memref<16x128xf32, #tpu.memory_space<vmem>>, vector<16x128xf32>
      %c0_51 = arith.constant 0 : index
      %c0_52 = arith.constant 0 : index
      %84 = vector.load %arg12[%c0_51, %c0_52] : memref<16x128xf32, #tpu.memory_space<vmem>>, vector<16x128xf32>
      %85 = arith.index_cast %c2_i32 : i32 to index
      %c0_53 = arith.constant 0 : index
      %c0_54 = arith.constant 0 : index
      %86 = vector.load %arg10[%85, %c0_53, %c0_54] : memref<8x16x512xf32, #tpu.memory_space<vmem>>, vector<1x16x512xf32>
      %87 = vector.shape_cast %86 : vector<1x16x512xf32> to vector<16x512xf32>
      %c0_55 = arith.constant 0 : index
      %c0_56 = arith.constant 0 : index
      %88 = vector.load %arg6[%c0_55, %c0_56] : memref<128x512xf32, #tpu.memory_space<vmem>>, vector<128x512xf32>
      %cst_57 = arith.constant dense<0.000000e+00> : vector<16x512xf32>
      %89 = tpu.matmul %83, %88, %cst_57 {dimension_numbers = #tpu.dot_dimension_numbers<[1], [0], [0], [1], [0, 0, 1, 1], [], []>} : vector<16x128xf32>, vector<128x512xf32>, vector<16x512xf32> -> vector<16x512xf32>
      %90 = arith.addf %87, %89 : vector<16x512xf32>
      %91 = vector.extract_strided_slice %90 {offsets = [0, 0], sizes = [16, 384], strides = [1, 1]} : vector<16x512xf32> to vector<16x384xf32>
      %92 = arith.negf %91 : vector<16x384xf32>
      %93 = math.exp %92 : vector<16x384xf32>
      %cst_58 = arith.constant 1.000000e+00 : f32
      %94 = vector.broadcast %cst_58 : f32 to vector<16x384xf32>
      %95 = arith.addf %94, %93 : vector<16x384xf32>
      %96 = arith.divf %94, %95 : vector<16x384xf32>
      %97 = vector.extract_strided_slice %96 {offsets = [0, 0], sizes = [16, 128], strides = [1, 1]} : vector<16x384xf32> to vector<16x128xf32>
      %98 = vector.extract_strided_slice %96 {offsets = [0, 128], sizes = [16, 128], strides = [1, 1]} : vector<16x384xf32> to vector<16x128xf32>
      %99 = vector.extract_strided_slice %96 {offsets = [0, 256], sizes = [16, 128], strides = [1, 1]} : vector<16x384xf32> to vector<16x128xf32>
      %100 = vector.extract_strided_slice %90 {offsets = [0, 384], sizes = [16, 128], strides = [1, 1]} : vector<16x512xf32> to vector<16x128xf32>
      %101 = math.tanh %100 : vector<16x128xf32>
      %102 = arith.mulf %98, %84 : vector<16x128xf32>
      %103 = arith.mulf %97, %101 : vector<16x128xf32>
      %104 = arith.addf %102, %103 : vector<16x128xf32>
      %105 = math.tanh %104 : vector<16x128xf32>
      %106 = arith.mulf %99, %105 : vector<16x128xf32>
      %c0_59 = arith.constant 0 : index
      %c0_60 = arith.constant 0 : index
      %107 = vector.load %arg11[%c0_59, %c0_60] : memref<16x128xf32, #tpu.memory_space<vmem>>, vector<16x128xf32>
      tpu.vector_store %arg11[%c0_59, %c0_60], %106 {strides = array<i32>} : memref<16x128xf32, #tpu.memory_space<vmem>>, vector<16x128xf32>,
      %c0_61 = arith.constant 0 : index
      %c0_62 = arith.constant 0 : index
      %108 = vector.load %arg12[%c0_61, %c0_62] : memref<16x128xf32, #tpu.memory_space<vmem>>, vector<16x128xf32>
      tpu.vector_store %arg12[%c0_61, %c0_62], %104 {strides = array<i32>} : memref<16x128xf32, #tpu.memory_space<vmem>>, vector<16x128xf32>,
      %109 = arith.index_cast %c2_i32 : i32 to index
      %c0_63 = arith.constant 0 : index
      %c0_64 = arith.constant 0 : index
      %110 = vector.load %arg8[%109, %c0_63, %c0_64] : memref<8x16x128xf32, #tpu.memory_space<vmem>>, vector<1x16x128xf32>
      %111 = vector.shape_cast %110 : vector<1x16x128xf32> to vector<16x128xf32>
      %112 = vector.shape_cast %106 : vector<16x128xf32> to vector<1x16x128xf32>
      tpu.vector_store %arg8[%109, %c0_63, %c0_64], %112 {strides = array<i32>} : memref<8x16x128xf32, #tpu.memory_space<vmem>>, vector<1x16x128xf32>,
      %c3_i32 = arith.constant 3 : i32
      %c0_65 = arith.constant 0 : index
      %c0_66 = arith.constant 0 : index
      %113 = vector.load %arg11[%c0_65, %c0_66] : memref<16x128xf32, #tpu.memory_space<vmem>>, vector<16x128xf32>
      %c0_67 = arith.constant 0 : index
      %c0_68 = arith.constant 0 : index
      %114 = vector.load %arg12[%c0_67, %c0_68] : memref<16x128xf32, #tpu.memory_space<vmem>>, vector<16x128xf32>
      %115 = arith.index_cast %c3_i32 : i32 to index
      %c0_69 = arith.constant 0 : index
      %c0_70 = arith.constant 0 : index
      %116 = vector.load %arg10[%115, %c0_69, %c0_70] : memref<8x16x512xf32, #tpu.memory_space<vmem>>, vector<1x16x512xf32>
      %117 = vector.shape_cast %116 : vector<1x16x512xf32> to vector<16x512xf32>
      %c0_71 = arith.constant 0 : index
      %c0_72 = arith.constant 0 : index
      %118 = vector.load %arg6[%c0_71, %c0_72] : memref<128x512xf32, #tpu.memory_space<vmem>>, vector<128x512xf32>
      %cst_73 = arith.constant dense<0.000000e+00> : vector<16x512xf32>
      %119 = tpu.matmul %113, %118, %cst_73 {dimension_numbers = #tpu.dot_dimension_numbers<[1], [0], [0], [1], [0, 0, 1, 1], [], []>} : vector<16x128xf32>, vector<128x512xf32>, vector<16x512xf32> -> vector<16x512xf32>
      %120 = arith.addf %117, %119 : vector<16x512xf32>
      %121 = vector.extract_strided_slice %120 {offsets = [0, 0], sizes = [16, 384], strides = [1, 1]} : vector<16x512xf32> to vector<16x384xf32>
      %122 = arith.negf %121 : vector<16x384xf32>
      %123 = math.exp %122 : vector<16x384xf32>
      %cst_74 = arith.constant 1.000000e+00 : f32
      %124 = vector.broadcast %cst_74 : f32 to vector<16x384xf32>
      %125 = arith.addf %124, %123 : vector<16x384xf32>
      %126 = arith.divf %124, %125 : vector<16x384xf32>
      %127 = vector.extract_strided_slice %126 {offsets = [0, 0], sizes = [16, 128], strides = [1, 1]} : vector<16x384xf32> to vector<16x128xf32>
      %128 = vector.extract_strided_slice %126 {offsets = [0, 128], sizes = [16, 128], strides = [1, 1]} : vector<16x384xf32> to vector<16x128xf32>
      %129 = vector.extract_strided_slice %126 {offsets = [0, 256], sizes = [16, 128], strides = [1, 1]} : vector<16x384xf32> to vector<16x128xf32>
      %130 = vector.extract_strided_slice %120 {offsets = [0, 384], sizes = [16, 128], strides = [1, 1]} : vector<16x512xf32> to vector<16x128xf32>
      %131 = math.tanh %130 : vector<16x128xf32>
      %132 = arith.mulf %128, %114 : vector<16x128xf32>
      %133 = arith.mulf %127, %131 : vector<16x128xf32>
      %134 = arith.addf %132, %133 : vector<16x128xf32>
      %135 = math.tanh %134 : vector<16x128xf32>
      %136 = arith.mulf %129, %135 : vector<16x128xf32>
      %c0_75 = arith.constant 0 : index
      %c0_76 = arith.constant 0 : index
      %137 = vector.load %arg11[%c0_75, %c0_76] : memref<16x128xf32, #tpu.memory_space<vmem>>, vector<16x128xf32>
      tpu.vector_store %arg11[%c0_75, %c0_76], %136 {strides = array<i32>} : memref<16x128xf32, #tpu.memory_space<vmem>>, vector<16x128xf32>,
      %c0_77 = arith.constant 0 : index
      %c0_78 = arith.constant 0 : index
      %138 = vector.load %arg12[%c0_77, %c0_78] : memref<16x128xf32, #tpu.memory_space<vmem>>, vector<16x128xf32>
      tpu.vector_store %arg12[%c0_77, %c0_78], %134 {strides = array<i32>} : memref<16x128xf32, #tpu.memory_space<vmem>>, vector<16x128xf32>,
      %139 = arith.index_cast %c3_i32 : i32 to index
      %c0_79 = arith.constant 0 : index
      %c0_80 = arith.constant 0 : index
      %140 = vector.load %arg8[%139, %c0_79, %c0_80] : memref<8x16x128xf32, #tpu.memory_space<vmem>>, vector<1x16x128xf32>
      %141 = vector.shape_cast %140 : vector<1x16x128xf32> to vector<16x128xf32>
      %142 = vector.shape_cast %136 : vector<16x128xf32> to vector<1x16x128xf32>
      tpu.vector_store %arg8[%139, %c0_79, %c0_80], %142 {strides = array<i32>} : memref<8x16x128xf32, #tpu.memory_space<vmem>>, vector<1x16x128xf32>,
      %c4_i32 = arith.constant 4 : i32
      %c0_81 = arith.constant 0 : index
      %c0_82 = arith.constant 0 : index
      %143 = vector.load %arg11[%c0_81, %c0_82] : memref<16x128xf32, #tpu.memory_space<vmem>>, vector<16x128xf32>
      %c0_83 = arith.constant 0 : index
      %c0_84 = arith.constant 0 : index
      %144 = vector.load %arg12[%c0_83, %c0_84] : memref<16x128xf32, #tpu.memory_space<vmem>>, vector<16x128xf32>
      %145 = arith.index_cast %c4_i32 : i32 to index
      %c0_85 = arith.constant 0 : index
      %c0_86 = arith.constant 0 : index
      %146 = vector.load %arg10[%145, %c0_85, %c0_86] : memref<8x16x512xf32, #tpu.memory_space<vmem>>, vector<1x16x512xf32>
      %147 = vector.shape_cast %146 : vector<1x16x512xf32> to vector<16x512xf32>
      %c0_87 = arith.constant 0 : index
      %c0_88 = arith.constant 0 : index
      %148 = vector.load %arg6[%c0_87, %c0_88] : memref<128x512xf32, #tpu.memory_space<vmem>>, vector<128x512xf32>
      %cst_89 = arith.constant dense<0.000000e+00> : vector<16x512xf32>
      %149 = tpu.matmul %143, %148, %cst_89 {dimension_numbers = #tpu.dot_dimension_numbers<[1], [0], [0], [1], [0, 0, 1, 1], [], []>} : vector<16x128xf32>, vector<128x512xf32>, vector<16x512xf32> -> vector<16x512xf32>
      %150 = arith.addf %147, %149 : vector<16x512xf32>
      %151 = vector.extract_strided_slice %150 {offsets = [0, 0], sizes = [16, 384], strides = [1, 1]} : vector<16x512xf32> to vector<16x384xf32>
      %152 = arith.negf %151 : vector<16x384xf32>
      %153 = math.exp %152 : vector<16x384xf32>
      %cst_90 = arith.constant 1.000000e+00 : f32
      %154 = vector.broadcast %cst_90 : f32 to vector<16x384xf32>
      %155 = arith.addf %154, %153 : vector<16x384xf32>
      %156 = arith.divf %154, %155 : vector<16x384xf32>
      %157 = vector.extract_strided_slice %156 {offsets = [0, 0], sizes = [16, 128], strides = [1, 1]} : vector<16x384xf32> to vector<16x128xf32>
      %158 = vector.extract_strided_slice %156 {offsets = [0, 128], sizes = [16, 128], strides = [1, 1]} : vector<16x384xf32> to vector<16x128xf32>
      %159 = vector.extract_strided_slice %156 {offsets = [0, 256], sizes = [16, 128], strides = [1, 1]} : vector<16x384xf32> to vector<16x128xf32>
      %160 = vector.extract_strided_slice %150 {offsets = [0, 384], sizes = [16, 128], strides = [1, 1]} : vector<16x512xf32> to vector<16x128xf32>
      %161 = math.tanh %160 : vector<16x128xf32>
      %162 = arith.mulf %158, %144 : vector<16x128xf32>
      %163 = arith.mulf %157, %161 : vector<16x128xf32>
      %164 = arith.addf %162, %163 : vector<16x128xf32>
      %165 = math.tanh %164 : vector<16x128xf32>
      %166 = arith.mulf %159, %165 : vector<16x128xf32>
      %c0_91 = arith.constant 0 : index
      %c0_92 = arith.constant 0 : index
      %167 = vector.load %arg11[%c0_91, %c0_92] : memref<16x128xf32, #tpu.memory_space<vmem>>, vector<16x128xf32>
      tpu.vector_store %arg11[%c0_91, %c0_92], %166 {strides = array<i32>} : memref<16x128xf32, #tpu.memory_space<vmem>>, vector<16x128xf32>,
      %c0_93 = arith.constant 0 : index
      %c0_94 = arith.constant 0 : index
      %168 = vector.load %arg12[%c0_93, %c0_94] : memref<16x128xf32, #tpu.memory_space<vmem>>, vector<16x128xf32>
      tpu.vector_store %arg12[%c0_93, %c0_94], %164 {strides = array<i32>} : memref<16x128xf32, #tpu.memory_space<vmem>>, vector<16x128xf32>,
      %169 = arith.index_cast %c4_i32 : i32 to index
      %c0_95 = arith.constant 0 : index
      %c0_96 = arith.constant 0 : index
      %170 = vector.load %arg8[%169, %c0_95, %c0_96] : memref<8x16x128xf32, #tpu.memory_space<vmem>>, vector<1x16x128xf32>
      %171 = vector.shape_cast %170 : vector<1x16x128xf32> to vector<16x128xf32>
      %172 = vector.shape_cast %166 : vector<16x128xf32> to vector<1x16x128xf32>
      tpu.vector_store %arg8[%169, %c0_95, %c0_96], %172 {strides = array<i32>} : memref<8x16x128xf32, #tpu.memory_space<vmem>>, vector<1x16x128xf32>,
      %c5_i32 = arith.constant 5 : i32
      %c0_97 = arith.constant 0 : index
      %c0_98 = arith.constant 0 : index
      %173 = vector.load %arg11[%c0_97, %c0_98] : memref<16x128xf32, #tpu.memory_space<vmem>>, vector<16x128xf32>
      %c0_99 = arith.constant 0 : index
      %c0_100 = arith.constant 0 : index
      %174 = vector.load %arg12[%c0_99, %c0_100] : memref<16x128xf32, #tpu.memory_space<vmem>>, vector<16x128xf32>
      %175 = arith.index_cast %c5_i32 : i32 to index
      %c0_101 = arith.constant 0 : index
      %c0_102 = arith.constant 0 : index
      %176 = vector.load %arg10[%175, %c0_101, %c0_102] : memref<8x16x512xf32, #tpu.memory_space<vmem>>, vector<1x16x512xf32>
      %177 = vector.shape_cast %176 : vector<1x16x512xf32> to vector<16x512xf32>
      %c0_103 = arith.constant 0 : index
      %c0_104 = arith.constant 0 : index
      %178 = vector.load %arg6[%c0_103, %c0_104] : memref<128x512xf32, #tpu.memory_space<vmem>>, vector<128x512xf32>
      %cst_105 = arith.constant dense<0.000000e+00> : vector<16x512xf32>
      %179 = tpu.matmul %173, %178, %cst_105 {dimension_numbers = #tpu.dot_dimension_numbers<[1], [0], [0], [1], [0, 0, 1, 1], [], []>} : vector<16x128xf32>, vector<128x512xf32>, vector<16x512xf32> -> vector<16x512xf32>
      %180 = arith.addf %177, %179 : vector<16x512xf32>
      %181 = vector.extract_strided_slice %180 {offsets = [0, 0], sizes = [16, 384], strides = [1, 1]} : vector<16x512xf32> to vector<16x384xf32>
      %182 = arith.negf %181 : vector<16x384xf32>
      %183 = math.exp %182 : vector<16x384xf32>
      %cst_106 = arith.constant 1.000000e+00 : f32
      %184 = vector.broadcast %cst_106 : f32 to vector<16x384xf32>
      %185 = arith.addf %184, %183 : vector<16x384xf32>
      %186 = arith.divf %184, %185 : vector<16x384xf32>
      %187 = vector.extract_strided_slice %186 {offsets = [0, 0], sizes = [16, 128], strides = [1, 1]} : vector<16x384xf32> to vector<16x128xf32>
      %188 = vector.extract_strided_slice %186 {offsets = [0, 128], sizes = [16, 128], strides = [1, 1]} : vector<16x384xf32> to vector<16x128xf32>
      %189 = vector.extract_strided_slice %186 {offsets = [0, 256], sizes = [16, 128], strides = [1, 1]} : vector<16x384xf32> to vector<16x128xf32>
      %190 = vector.extract_strided_slice %180 {offsets = [0, 384], sizes = [16, 128], strides = [1, 1]} : vector<16x512xf32> to vector<16x128xf32>
      %191 = math.tanh %190 : vector<16x128xf32>
      %192 = arith.mulf %188, %174 : vector<16x128xf32>
      %193 = arith.mulf %187, %191 : vector<16x128xf32>
      %194 = arith.addf %192, %193 : vector<16x128xf32>
      %195 = math.tanh %194 : vector<16x128xf32>
      %196 = arith.mulf %189, %195 : vector<16x128xf32>
      %c0_107 = arith.constant 0 : index
      %c0_108 = arith.constant 0 : index
      %197 = vector.load %arg11[%c0_107, %c0_108] : memref<16x128xf32, #tpu.memory_space<vmem>>, vector<16x128xf32>
      tpu.vector_store %arg11[%c0_107, %c0_108], %196 {strides = array<i32>} : memref<16x128xf32, #tpu.memory_space<vmem>>, vector<16x128xf32>,
      %c0_109 = arith.constant 0 : index
      %c0_110 = arith.constant 0 : index
      %198 = vector.load %arg12[%c0_109, %c0_110] : memref<16x128xf32, #tpu.memory_space<vmem>>, vector<16x128xf32>
      tpu.vector_store %arg12[%c0_109, %c0_110], %194 {strides = array<i32>} : memref<16x128xf32, #tpu.memory_space<vmem>>, vector<16x128xf32>,
      %199 = arith.index_cast %c5_i32 : i32 to index
      %c0_111 = arith.constant 0 : index
      %c0_112 = arith.constant 0 : index
      %200 = vector.load %arg8[%199, %c0_111, %c0_112] : memref<8x16x128xf32, #tpu.memory_space<vmem>>, vector<1x16x128xf32>
      %201 = vector.shape_cast %200 : vector<1x16x128xf32> to vector<16x128xf32>
      %202 = vector.shape_cast %196 : vector<16x128xf32> to vector<1x16x128xf32>
      tpu.vector_store %arg8[%199, %c0_111, %c0_112], %202 {strides = array<i32>} : memref<8x16x128xf32, #tpu.memory_space<vmem>>, vector<1x16x128xf32>,
      %c6_i32 = arith.constant 6 : i32
      %c0_113 = arith.constant 0 : index
      %c0_114 = arith.constant 0 : index
      %203 = vector.load %arg11[%c0_113, %c0_114] : memref<16x128xf32, #tpu.memory_space<vmem>>, vector<16x128xf32>
      %c0_115 = arith.constant 0 : index
      %c0_116 = arith.constant 0 : index
      %204 = vector.load %arg12[%c0_115, %c0_116] : memref<16x128xf32, #tpu.memory_space<vmem>>, vector<16x128xf32>
      %205 = arith.index_cast %c6_i32 : i32 to index
      %c0_117 = arith.constant 0 : index
      %c0_118 = arith.constant 0 : index
      %206 = vector.load %arg10[%205, %c0_117, %c0_118] : memref<8x16x512xf32, #tpu.memory_space<vmem>>, vector<1x16x512xf32>
      %207 = vector.shape_cast %206 : vector<1x16x512xf32> to vector<16x512xf32>
      %c0_119 = arith.constant 0 : index
      %c0_120 = arith.constant 0 : index
      %208 = vector.load %arg6[%c0_119, %c0_120] : memref<128x512xf32, #tpu.memory_space<vmem>>, vector<128x512xf32>
      %cst_121 = arith.constant dense<0.000000e+00> : vector<16x512xf32>
      %209 = tpu.matmul %203, %208, %cst_121 {dimension_numbers = #tpu.dot_dimension_numbers<[1], [0], [0], [1], [0, 0, 1, 1], [], []>} : vector<16x128xf32>, vector<128x512xf32>, vector<16x512xf32> -> vector<16x512xf32>
      %210 = arith.addf %207, %209 : vector<16x512xf32>
      %211 = vector.extract_strided_slice %210 {offsets = [0, 0], sizes = [16, 384], strides = [1, 1]} : vector<16x512xf32> to vector<16x384xf32>
      %212 = arith.negf %211 : vector<16x384xf32>
      %213 = math.exp %212 : vector<16x384xf32>
      %cst_122 = arith.constant 1.000000e+00 : f32
      %214 = vector.broadcast %cst_122 : f32 to vector<16x384xf32>
      %215 = arith.addf %214, %213 : vector<16x384xf32>
      %216 = arith.divf %214, %215 : vector<16x384xf32>
      %217 = vector.extract_strided_slice %216 {offsets = [0, 0], sizes = [16, 128], strides = [1, 1]} : vector<16x384xf32> to vector<16x128xf32>
      %218 = vector.extract_strided_slice %216 {offsets = [0, 128], sizes = [16, 128], strides = [1, 1]} : vector<16x384xf32> to vector<16x128xf32>
      %219 = vector.extract_strided_slice %216 {offsets = [0, 256], sizes = [16, 128], strides = [1, 1]} : vector<16x384xf32> to vector<16x128xf32>
      %220 = vector.extract_strided_slice %210 {offsets = [0, 384], sizes = [16, 128], strides = [1, 1]} : vector<16x512xf32> to vector<16x128xf32>
      %221 = math.tanh %220 : vector<16x128xf32>
      %222 = arith.mulf %218, %204 : vector<16x128xf32>
      %223 = arith.mulf %217, %221 : vector<16x128xf32>
      %224 = arith.addf %222, %223 : vector<16x128xf32>
      %225 = math.tanh %224 : vector<16x128xf32>
      %226 = arith.mulf %219, %225 : vector<16x128xf32>
      %c0_123 = arith.constant 0 : index
      %c0_124 = arith.constant 0 : index
      %227 = vector.load %arg11[%c0_123, %c0_124] : memref<16x128xf32, #tpu.memory_space<vmem>>, vector<16x128xf32>
      tpu.vector_store %arg11[%c0_123, %c0_124], %226 {strides = array<i32>} : memref<16x128xf32, #tpu.memory_space<vmem>>, vector<16x128xf32>,
      %c0_125 = arith.constant 0 : index
      %c0_126 = arith.constant 0 : index
      %228 = vector.load %arg12[%c0_125, %c0_126] : memref<16x128xf32, #tpu.memory_space<vmem>>, vector<16x128xf32>
      tpu.vector_store %arg12[%c0_125, %c0_126], %224 {strides = array<i32>} : memref<16x128xf32, #tpu.memory_space<vmem>>, vector<16x128xf32>,
      %229 = arith.index_cast %c6_i32 : i32 to index
      %c0_127 = arith.constant 0 : index
      %c0_128 = arith.constant 0 : index
      %230 = vector.load %arg8[%229, %c0_127, %c0_128] : memref<8x16x128xf32, #tpu.memory_space<vmem>>, vector<1x16x128xf32>
      %231 = vector.shape_cast %230 : vector<1x16x128xf32> to vector<16x128xf32>
      %232 = vector.shape_cast %226 : vector<16x128xf32> to vector<1x16x128xf32>
      tpu.vector_store %arg8[%229, %c0_127, %c0_128], %232 {strides = array<i32>} : memref<8x16x128xf32, #tpu.memory_space<vmem>>, vector<1x16x128xf32>,
      %c7_i32 = arith.constant 7 : i32
      %c0_129 = arith.constant 0 : index
      %c0_130 = arith.constant 0 : index
      %233 = vector.load %arg11[%c0_129, %c0_130] : memref<16x128xf32, #tpu.memory_space<vmem>>, vector<16x128xf32>
      %c0_131 = arith.constant 0 : index
      %c0_132 = arith.constant 0 : index
      %234 = vector.load %arg12[%c0_131, %c0_132] : memref<16x128xf32, #tpu.memory_space<vmem>>, vector<16x128xf32>
      %235 = arith.index_cast %c7_i32 : i32 to index
      %c0_133 = arith.constant 0 : index
      %c0_134 = arith.constant 0 : index
      %236 = vector.load %arg10[%235, %c0_133, %c0_134] : memref<8x16x512xf32, #tpu.memory_space<vmem>>, vector<1x16x512xf32>
      %237 = vector.shape_cast %236 : vector<1x16x512xf32> to vector<16x512xf32>
      %c0_135 = arith.constant 0 : index
      %c0_136 = arith.constant 0 : index
      %238 = vector.load %arg6[%c0_135, %c0_136] : memref<128x512xf32, #tpu.memory_space<vmem>>, vector<128x512xf32>
      %cst_137 = arith.constant dense<0.000000e+00> : vector<16x512xf32>
      %239 = tpu.matmul %233, %238, %cst_137 {dimension_numbers = #tpu.dot_dimension_numbers<[1], [0], [0], [1], [0, 0, 1, 1], [], []>} : vector<16x128xf32>, vector<128x512xf32>, vector<16x512xf32> -> vector<16x512xf32>
      %240 = arith.addf %237, %239 : vector<16x512xf32>
      %241 = vector.extract_strided_slice %240 {offsets = [0, 0], sizes = [16, 384], strides = [1, 1]} : vector<16x512xf32> to vector<16x384xf32>
      %242 = arith.negf %241 : vector<16x384xf32>
      %243 = math.exp %242 : vector<16x384xf32>
      %cst_138 = arith.constant 1.000000e+00 : f32
      %244 = vector.broadcast %cst_138 : f32 to vector<16x384xf32>
      %245 = arith.addf %244, %243 : vector<16x384xf32>
      %246 = arith.divf %244, %245 : vector<16x384xf32>
      %247 = vector.extract_strided_slice %246 {offsets = [0, 0], sizes = [16, 128], strides = [1, 1]} : vector<16x384xf32> to vector<16x128xf32>
      %248 = vector.extract_strided_slice %246 {offsets = [0, 128], sizes = [16, 128], strides = [1, 1]} : vector<16x384xf32> to vector<16x128xf32>
      %249 = vector.extract_strided_slice %246 {offsets = [0, 256], sizes = [16, 128], strides = [1, 1]} : vector<16x384xf32> to vector<16x128xf32>
      %250 = vector.extract_strided_slice %240 {offsets = [0, 384], sizes = [16, 128], strides = [1, 1]} : vector<16x512xf32> to vector<16x128xf32>
      %251 = math.tanh %250 : vector<16x128xf32>
      %252 = arith.mulf %248, %234 : vector<16x128xf32>
      %253 = arith.mulf %247, %251 : vector<16x128xf32>
      %254 = arith.addf %252, %253 : vector<16x128xf32>
      %255 = math.tanh %254 : vector<16x128xf32>
      %256 = arith.mulf %249, %255 : vector<16x128xf32>
      %c0_139 = arith.constant 0 : index
      %c0_140 = arith.constant 0 : index
      %257 = vector.load %arg11[%c0_139, %c0_140] : memref<16x128xf32, #tpu.memory_space<vmem>>, vector<16x128xf32>
      tpu.vector_store %arg11[%c0_139, %c0_140], %256 {strides = array<i32>} : memref<16x128xf32, #tpu.memory_space<vmem>>, vector<16x128xf32>,
      %c0_141 = arith.constant 0 : index
      %c0_142 = arith.constant 0 : index
      %258 = vector.load %arg12[%c0_141, %c0_142] : memref<16x128xf32, #tpu.memory_space<vmem>>, vector<16x128xf32>
      tpu.vector_store %arg12[%c0_141, %c0_142], %254 {strides = array<i32>} : memref<16x128xf32, #tpu.memory_space<vmem>>, vector<16x128xf32>,
      %259 = arith.index_cast %c7_i32 : i32 to index
      %c0_143 = arith.constant 0 : index
      %c0_144 = arith.constant 0 : index
      %260 = vector.load %arg8[%259, %c0_143, %c0_144] : memref<8x16x128xf32, #tpu.memory_space<vmem>>, vector<1x16x128xf32>
      %261 = vector.shape_cast %260 : vector<1x16x128xf32> to vector<16x128xf32>
      %262 = vector.shape_cast %256 : vector<16x128xf32> to vector<1x16x128xf32>
      tpu.vector_store %arg8[%259, %c0_143, %c0_144], %262 {strides = array<i32>} : memref<8x16x128xf32, #tpu.memory_space<vmem>>, vector<1x16x128xf32>,
      %c8_i32_145 = arith.constant 8 : i32
    } else {
    }
    %true = arith.constant true
    %17 = arith.xori %14, %true : i1
    %18 = arith.extui %17 : i1 to i32
    %c0_i32_12 = arith.constant 0 : i32
    %19 = arith.cmpi ne, %18, %c0_i32_12 : i32
    scf.if %19 {
      %cst_15 = arith.constant 0.000000e+00 : f32
      %23 = vector.broadcast %cst_15 : f32 to vector<8x16x128xf32>
      %c0_16 = arith.constant 0 : index
      %c0_17 = arith.constant 0 : index
      %c0_18 = arith.constant 0 : index
      %24 = vector.load %arg8[%c0_16, %c0_17, %c0_18] : memref<8x16x128xf32, #tpu.memory_space<vmem>>, vector<8x16x128xf32>
      tpu.vector_store %arg8[%c0_16, %c0_17, %c0_18], %23 {strides = array<i32>} : memref<8x16x128xf32, #tpu.memory_space<vmem>>, vector<8x16x128xf32>,
      %c0_i32_19 = arith.constant 0 : i32
      %c8_i32_20 = arith.constant 8 : i32
      %25 = arith.muli %arg1, %c8_i32_20 : i32
      %26 = arith.addi %25, %c0_i32_19 : i32
      %c8_i32_21 = arith.constant 8 : i32
      %27 = arith.cmpi slt, %26, %c8_i32_21 : i32
      %28 = arith.extui %27 : i1 to i32
      %c0_i32_22 = arith.constant 0 : i32
      %29 = arith.cmpi ne, %28, %c0_i32_22 : i32
      scf.if %29 {
        %c0_46 = arith.constant 0 : index
        %c0_47 = arith.constant 0 : index
        %65 = vector.load %arg11[%c0_46, %c0_47] : memref<16x128xf32, #tpu.memory_space<vmem>>, vector<16x128xf32>
        %c0_48 = arith.constant 0 : index
        %c0_49 = arith.constant 0 : index
        %66 = vector.load %arg12[%c0_48, %c0_49] : memref<16x128xf32, #tpu.memory_space<vmem>>, vector<16x128xf32>
        %67 = arith.index_cast %c0_i32_19 : i32 to index
        %c0_50 = arith.constant 0 : index
        %c0_51 = arith.constant 0 : index
        %68 = vector.load %arg10[%67, %c0_50, %c0_51] : memref<8x16x512xf32, #tpu.memory_space<vmem>>, vector<1x16x512xf32>
        %69 = vector.shape_cast %68 : vector<1x16x512xf32> to vector<16x512xf32>
        %c0_52 = arith.constant 0 : index
        %c0_53 = arith.constant 0 : index
        %70 = vector.load %arg6[%c0_52, %c0_53] : memref<128x512xf32, #tpu.memory_space<vmem>>, vector<128x512xf32>
        %cst_54 = arith.constant dense<0.000000e+00> : vector<16x512xf32>
        %71 = tpu.matmul %65, %70, %cst_54 {dimension_numbers = #tpu.dot_dimension_numbers<[1], [0], [0], [1], [0, 0, 1, 1], [], []>} : vector<16x128xf32>, vector<128x512xf32>, vector<16x512xf32> -> vector<16x512xf32>
        %72 = arith.addf %69, %71 : vector<16x512xf32>
        %73 = vector.extract_strided_slice %72 {offsets = [0, 0], sizes = [16, 384], strides = [1, 1]} : vector<16x512xf32> to vector<16x384xf32>
        %74 = arith.negf %73 : vector<16x384xf32>
        %75 = math.exp %74 : vector<16x384xf32>
        %cst_55 = arith.constant 1.000000e+00 : f32
        %76 = vector.broadcast %cst_55 : f32 to vector<16x384xf32>
        %77 = arith.addf %76, %75 : vector<16x384xf32>
        %78 = arith.divf %76, %77 : vector<16x384xf32>
        %79 = vector.extract_strided_slice %78 {offsets = [0, 0], sizes = [16, 128], strides = [1, 1]} : vector<16x384xf32> to vector<16x128xf32>
        %80 = vector.extract_strided_slice %78 {offsets = [0, 128], sizes = [16, 128], strides = [1, 1]} : vector<16x384xf32> to vector<16x128xf32>
        %81 = vector.extract_strided_slice %78 {offsets = [0, 256], sizes = [16, 128], strides = [1, 1]} : vector<16x384xf32> to vector<16x128xf32>
        %82 = vector.extract_strided_slice %72 {offsets = [0, 384], sizes = [16, 128], strides = [1, 1]} : vector<16x512xf32> to vector<16x128xf32>
        %83 = math.tanh %82 : vector<16x128xf32>
        %84 = arith.mulf %80, %66 : vector<16x128xf32>
        %85 = arith.mulf %79, %83 : vector<16x128xf32>
        %86 = arith.addf %84, %85 : vector<16x128xf32>
        %87 = math.tanh %86 : vector<16x128xf32>
        %88 = arith.mulf %81, %87 : vector<16x128xf32>
        %c0_56 = arith.constant 0 : index
        %c0_57 = arith.constant 0 : index
        %89 = vector.load %arg11[%c0_56, %c0_57] : memref<16x128xf32, #tpu.memory_space<vmem>>, vector<16x128xf32>
        tpu.vector_store %arg11[%c0_56, %c0_57], %88 {strides = array<i32>} : memref<16x128xf32, #tpu.memory_space<vmem>>, vector<16x128xf32>,
        %c0_58 = arith.constant 0 : index
        %c0_59 = arith.constant 0 : index
        %90 = vector.load %arg12[%c0_58, %c0_59] : memref<16x128xf32, #tpu.memory_space<vmem>>, vector<16x128xf32>
        tpu.vector_store %arg12[%c0_58, %c0_59], %86 {strides = array<i32>} : memref<16x128xf32, #tpu.memory_space<vmem>>, vector<16x128xf32>,
        %91 = arith.index_cast %c0_i32_19 : i32 to index
        %c0_60 = arith.constant 0 : index
        %c0_61 = arith.constant 0 : index
        %92 = vector.load %arg8[%91, %c0_60, %c0_61] : memref<8x16x128xf32, #tpu.memory_space<vmem>>, vector<1x16x128xf32>
        %93 = vector.shape_cast %92 : vector<1x16x128xf32> to vector<16x128xf32>
        %94 = vector.shape_cast %88 : vector<16x128xf32> to vector<1x16x128xf32>
        tpu.vector_store %arg8[%91, %c0_60, %c0_61], %94 {strides = array<i32>} : memref<8x16x128xf32, #tpu.memory_space<vmem>>, vector<1x16x128xf32>,
      } else {
      }
      %c1_i32_23 = arith.constant 1 : i32
      %c8_i32_24 = arith.constant 8 : i32
      %30 = arith.muli %arg1, %c8_i32_24 : i32
      %31 = arith.addi %30, %c1_i32_23 : i32
      %c8_i32_25 = arith.constant 8 : i32
      %32 = arith.cmpi slt, %31, %c8_i32_25 : i32
      %33 = arith.extui %32 : i1 to i32
      %c0_i32_26 = arith.constant 0 : i32
      %34 = arith.cmpi ne, %33, %c0_i32_26 : i32
      scf.if %34 {
        %c0_46 = arith.constant 0 : index
        %c0_47 = arith.constant 0 : index
        %65 = vector.load %arg11[%c0_46, %c0_47] : memref<16x128xf32, #tpu.memory_space<vmem>>, vector<16x128xf32>
        %c0_48 = arith.constant 0 : index
        %c0_49 = arith.constant 0 : index
        %66 = vector.load %arg12[%c0_48, %c0_49] : memref<16x128xf32, #tpu.memory_space<vmem>>, vector<16x128xf32>
        %67 = arith.index_cast %c1_i32_23 : i32 to index
        %c0_50 = arith.constant 0 : index
        %c0_51 = arith.constant 0 : index
        %68 = vector.load %arg10[%67, %c0_50, %c0_51] : memref<8x16x512xf32, #tpu.memory_space<vmem>>, vector<1x16x512xf32>
        %69 = vector.shape_cast %68 : vector<1x16x512xf32> to vector<16x512xf32>
        %c0_52 = arith.constant 0 : index
        %c0_53 = arith.constant 0 : index
        %70 = vector.load %arg6[%c0_52, %c0_53] : memref<128x512xf32, #tpu.memory_space<vmem>>, vector<128x512xf32>
        %cst_54 = arith.constant dense<0.000000e+00> : vector<16x512xf32>
        %71 = tpu.matmul %65, %70, %cst_54 {dimension_numbers = #tpu.dot_dimension_numbers<[1], [0], [0], [1], [0, 0, 1, 1], [], []>} : vector<16x128xf32>, vector<128x512xf32>, vector<16x512xf32> -> vector<16x512xf32>
        %72 = arith.addf %69, %71 : vector<16x512xf32>
        %73 = vector.extract_strided_slice %72 {offsets = [0, 0], sizes = [16, 384], strides = [1, 1]} : vector<16x512xf32> to vector<16x384xf32>
        %74 = arith.negf %73 : vector<16x384xf32>
        %75 = math.exp %74 : vector<16x384xf32>
        %cst_55 = arith.constant 1.000000e+00 : f32
        %76 = vector.broadcast %cst_55 : f32 to vector<16x384xf32>
        %77 = arith.addf %76, %75 : vector<16x384xf32>
        %78 = arith.divf %76, %77 : vector<16x384xf32>
        %79 = vector.extract_strided_slice %78 {offsets = [0, 0], sizes = [16, 128], strides = [1, 1]} : vector<16x384xf32> to vector<16x128xf32>
        %80 = vector.extract_strided_slice %78 {offsets = [0, 128], sizes = [16, 128], strides = [1, 1]} : vector<16x384xf32> to vector<16x128xf32>
        %81 = vector.extract_strided_slice %78 {offsets = [0, 256], sizes = [16, 128], strides = [1, 1]} : vector<16x384xf32> to vector<16x128xf32>
        %82 = vector.extract_strided_slice %72 {offsets = [0, 384], sizes = [16, 128], strides = [1, 1]} : vector<16x512xf32> to vector<16x128xf32>
        %83 = math.tanh %82 : vector<16x128xf32>
        %84 = arith.mulf %80, %66 : vector<16x128xf32>
        %85 = arith.mulf %79, %83 : vector<16x128xf32>
        %86 = arith.addf %84, %85 : vector<16x128xf32>
        %87 = math.tanh %86 : vector<16x128xf32>
        %88 = arith.mulf %81, %87 : vector<16x128xf32>
        %c0_56 = arith.constant 0 : index
        %c0_57 = arith.constant 0 : index
        %89 = vector.load %arg11[%c0_56, %c0_57] : memref<16x128xf32, #tpu.memory_space<vmem>>, vector<16x128xf32>
        tpu.vector_store %arg11[%c0_56, %c0_57], %88 {strides = array<i32>} : memref<16x128xf32, #tpu.memory_space<vmem>>, vector<16x128xf32>,
        %c0_58 = arith.constant 0 : index
        %c0_59 = arith.constant 0 : index
        %90 = vector.load %arg12[%c0_58, %c0_59] : memref<16x128xf32, #tpu.memory_space<vmem>>, vector<16x128xf32>
        tpu.vector_store %arg12[%c0_58, %c0_59], %86 {strides = array<i32>} : memref<16x128xf32, #tpu.memory_space<vmem>>, vector<16x128xf32>,
        %91 = arith.index_cast %c1_i32_23 : i32 to index
        %c0_60 = arith.constant 0 : index
        %c0_61 = arith.constant 0 : index
        %92 = vector.load %arg8[%91, %c0_60, %c0_61] : memref<8x16x128xf32, #tpu.memory_space<vmem>>, vector<1x16x128xf32>
        %93 = vector.shape_cast %92 : vector<1x16x128xf32> to vector<16x128xf32>
        %94 = vector.shape_cast %88 : vector<16x128xf32> to vector<1x16x128xf32>
        tpu.vector_store %arg8[%91, %c0_60, %c0_61], %94 {strides = array<i32>} : memref<8x16x128xf32, #tpu.memory_space<vmem>>, vector<1x16x128xf32>,
      } else {
      }
      %c2_i32 = arith.constant 2 : i32
      %c8_i32_27 = arith.constant 8 : i32
      %35 = arith.muli %arg1, %c8_i32_27 : i32
      %36 = arith.addi %35, %c2_i32 : i32
      %c8_i32_28 = arith.constant 8 : i32
      %37 = arith.cmpi slt, %36, %c8_i32_28 : i32
      %38 = arith.extui %37 : i1 to i32
      %c0_i32_29 = arith.constant 0 : i32
      %39 = arith.cmpi ne, %38, %c0_i32_29 : i32
      scf.if %39 {
        %c0_46 = arith.constant 0 : index
        %c0_47 = arith.constant 0 : index
        %65 = vector.load %arg11[%c0_46, %c0_47] : memref<16x128xf32, #tpu.memory_space<vmem>>, vector<16x128xf32>
        %c0_48 = arith.constant 0 : index
        %c0_49 = arith.constant 0 : index
        %66 = vector.load %arg12[%c0_48, %c0_49] : memref<16x128xf32, #tpu.memory_space<vmem>>, vector<16x128xf32>
        %67 = arith.index_cast %c2_i32 : i32 to index
        %c0_50 = arith.constant 0 : index
        %c0_51 = arith.constant 0 : index
        %68 = vector.load %arg10[%67, %c0_50, %c0_51] : memref<8x16x512xf32, #tpu.memory_space<vmem>>, vector<1x16x512xf32>
        %69 = vector.shape_cast %68 : vector<1x16x512xf32> to vector<16x512xf32>
        %c0_52 = arith.constant 0 : index
        %c0_53 = arith.constant 0 : index
        %70 = vector.load %arg6[%c0_52, %c0_53] : memref<128x512xf32, #tpu.memory_space<vmem>>, vector<128x512xf32>
        %cst_54 = arith.constant dense<0.000000e+00> : vector<16x512xf32>
        %71 = tpu.matmul %65, %70, %cst_54 {dimension_numbers = #tpu.dot_dimension_numbers<[1], [0], [0], [1], [0, 0, 1, 1], [], []>} : vector<16x128xf32>, vector<128x512xf32>, vector<16x512xf32> -> vector<16x512xf32>
        %72 = arith.addf %69, %71 : vector<16x512xf32>
        %73 = vector.extract_strided_slice %72 {offsets = [0, 0], sizes = [16, 384], strides = [1, 1]} : vector<16x512xf32> to vector<16x384xf32>
        %74 = arith.negf %73 : vector<16x384xf32>
        %75 = math.exp %74 : vector<16x384xf32>
        %cst_55 = arith.constant 1.000000e+00 : f32
        %76 = vector.broadcast %cst_55 : f32 to vector<16x384xf32>
        %77 = arith.addf %76, %75 : vector<16x384xf32>
        %78 = arith.divf %76, %77 : vector<16x384xf32>
        %79 = vector.extract_strided_slice %78 {offsets = [0, 0], sizes = [16, 128], strides = [1, 1]} : vector<16x384xf32> to vector<16x128xf32>
        %80 = vector.extract_strided_slice %78 {offsets = [0, 128], sizes = [16, 128], strides = [1, 1]} : vector<16x384xf32> to vector<16x128xf32>
        %81 = vector.extract_strided_slice %78 {offsets = [0, 256], sizes = [16, 128], strides = [1, 1]} : vector<16x384xf32> to vector<16x128xf32>
        %82 = vector.extract_strided_slice %72 {offsets = [0, 384], sizes = [16, 128], strides = [1, 1]} : vector<16x512xf32> to vector<16x128xf32>
        %83 = math.tanh %82 : vector<16x128xf32>
        %84 = arith.mulf %80, %66 : vector<16x128xf32>
        %85 = arith.mulf %79, %83 : vector<16x128xf32>
        %86 = arith.addf %84, %85 : vector<16x128xf32>
        %87 = math.tanh %86 : vector<16x128xf32>
        %88 = arith.mulf %81, %87 : vector<16x128xf32>
        %c0_56 = arith.constant 0 : index
        %c0_57 = arith.constant 0 : index
        %89 = vector.load %arg11[%c0_56, %c0_57] : memref<16x128xf32, #tpu.memory_space<vmem>>, vector<16x128xf32>
        tpu.vector_store %arg11[%c0_56, %c0_57], %88 {strides = array<i32>} : memref<16x128xf32, #tpu.memory_space<vmem>>, vector<16x128xf32>,
        %c0_58 = arith.constant 0 : index
        %c0_59 = arith.constant 0 : index
        %90 = vector.load %arg12[%c0_58, %c0_59] : memref<16x128xf32, #tpu.memory_space<vmem>>, vector<16x128xf32>
        tpu.vector_store %arg12[%c0_58, %c0_59], %86 {strides = array<i32>} : memref<16x128xf32, #tpu.memory_space<vmem>>, vector<16x128xf32>,
        %91 = arith.index_cast %c2_i32 : i32 to index
        %c0_60 = arith.constant 0 : index
        %c0_61 = arith.constant 0 : index
        %92 = vector.load %arg8[%91, %c0_60, %c0_61] : memref<8x16x128xf32, #tpu.memory_space<vmem>>, vector<1x16x128xf32>
        %93 = vector.shape_cast %92 : vector<1x16x128xf32> to vector<16x128xf32>
        %94 = vector.shape_cast %88 : vector<16x128xf32> to vector<1x16x128xf32>
        tpu.vector_store %arg8[%91, %c0_60, %c0_61], %94 {strides = array<i32>} : memref<8x16x128xf32, #tpu.memory_space<vmem>>, vector<1x16x128xf32>,
      } else {
      }
      %c3_i32 = arith.constant 3 : i32
      %c8_i32_30 = arith.constant 8 : i32
      %40 = arith.muli %arg1, %c8_i32_30 : i32
      %41 = arith.addi %40, %c3_i32 : i32
      %c8_i32_31 = arith.constant 8 : i32
      %42 = arith.cmpi slt, %41, %c8_i32_31 : i32
      %43 = arith.extui %42 : i1 to i32
      %c0_i32_32 = arith.constant 0 : i32
      %44 = arith.cmpi ne, %43, %c0_i32_32 : i32
      scf.if %44 {
        %c0_46 = arith.constant 0 : index
        %c0_47 = arith.constant 0 : index
        %65 = vector.load %arg11[%c0_46, %c0_47] : memref<16x128xf32, #tpu.memory_space<vmem>>, vector<16x128xf32>
        %c0_48 = arith.constant 0 : index
        %c0_49 = arith.constant 0 : index
        %66 = vector.load %arg12[%c0_48, %c0_49] : memref<16x128xf32, #tpu.memory_space<vmem>>, vector<16x128xf32>
        %67 = arith.index_cast %c3_i32 : i32 to index
        %c0_50 = arith.constant 0 : index
        %c0_51 = arith.constant 0 : index
        %68 = vector.load %arg10[%67, %c0_50, %c0_51] : memref<8x16x512xf32, #tpu.memory_space<vmem>>, vector<1x16x512xf32>
        %69 = vector.shape_cast %68 : vector<1x16x512xf32> to vector<16x512xf32>
        %c0_52 = arith.constant 0 : index
        %c0_53 = arith.constant 0 : index
        %70 = vector.load %arg6[%c0_52, %c0_53] : memref<128x512xf32, #tpu.memory_space<vmem>>, vector<128x512xf32>
        %cst_54 = arith.constant dense<0.000000e+00> : vector<16x512xf32>
        %71 = tpu.matmul %65, %70, %cst_54 {dimension_numbers = #tpu.dot_dimension_numbers<[1], [0], [0], [1], [0, 0, 1, 1], [], []>} : vector<16x128xf32>, vector<128x512xf32>, vector<16x512xf32> -> vector<16x512xf32>
        %72 = arith.addf %69, %71 : vector<16x512xf32>
        %73 = vector.extract_strided_slice %72 {offsets = [0, 0], sizes = [16, 384], strides = [1, 1]} : vector<16x512xf32> to vector<16x384xf32>
        %74 = arith.negf %73 : vector<16x384xf32>
        %75 = math.exp %74 : vector<16x384xf32>
        %cst_55 = arith.constant 1.000000e+00 : f32
        %76 = vector.broadcast %cst_55 : f32 to vector<16x384xf32>
        %77 = arith.addf %76, %75 : vector<16x384xf32>
        %78 = arith.divf %76, %77 : vector<16x384xf32>
        %79 = vector.extract_strided_slice %78 {offsets = [0, 0], sizes = [16, 128], strides = [1, 1]} : vector<16x384xf32> to vector<16x128xf32>
        %80 = vector.extract_strided_slice %78 {offsets = [0, 128], sizes = [16, 128], strides = [1, 1]} : vector<16x384xf32> to vector<16x128xf32>
        %81 = vector.extract_strided_slice %78 {offsets = [0, 256], sizes = [16, 128], strides = [1, 1]} : vector<16x384xf32> to vector<16x128xf32>
        %82 = vector.extract_strided_slice %72 {offsets = [0, 384], sizes = [16, 128], strides = [1, 1]} : vector<16x512xf32> to vector<16x128xf32>
        %83 = math.tanh %82 : vector<16x128xf32>
        %84 = arith.mulf %80, %66 : vector<16x128xf32>
        %85 = arith.mulf %79, %83 : vector<16x128xf32>
        %86 = arith.addf %84, %85 : vector<16x128xf32>
        %87 = math.tanh %86 : vector<16x128xf32>
        %88 = arith.mulf %81, %87 : vector<16x128xf32>
        %c0_56 = arith.constant 0 : index
        %c0_57 = arith.constant 0 : index
        %89 = vector.load %arg11[%c0_56, %c0_57] : memref<16x128xf32, #tpu.memory_space<vmem>>, vector<16x128xf32>
        tpu.vector_store %arg11[%c0_56, %c0_57], %88 {strides = array<i32>} : memref<16x128xf32, #tpu.memory_space<vmem>>, vector<16x128xf32>,
        %c0_58 = arith.constant 0 : index
        %c0_59 = arith.constant 0 : index
        %90 = vector.load %arg12[%c0_58, %c0_59] : memref<16x128xf32, #tpu.memory_space<vmem>>, vector<16x128xf32>
        tpu.vector_store %arg12[%c0_58, %c0_59], %86 {strides = array<i32>} : memref<16x128xf32, #tpu.memory_space<vmem>>, vector<16x128xf32>,
        %91 = arith.index_cast %c3_i32 : i32 to index
        %c0_60 = arith.constant 0 : index
        %c0_61 = arith.constant 0 : index
        %92 = vector.load %arg8[%91, %c0_60, %c0_61] : memref<8x16x128xf32, #tpu.memory_space<vmem>>, vector<1x16x128xf32>
        %93 = vector.shape_cast %92 : vector<1x16x128xf32> to vector<16x128xf32>
        %94 = vector.shape_cast %88 : vector<16x128xf32> to vector<1x16x128xf32>
        tpu.vector_store %arg8[%91, %c0_60, %c0_61], %94 {strides = array<i32>} : memref<8x16x128xf32, #tpu.memory_space<vmem>>, vector<1x16x128xf32>,
      } else {
      }
      %c4_i32 = arith.constant 4 : i32
      %c8_i32_33 = arith.constant 8 : i32
      %45 = arith.muli %arg1, %c8_i32_33 : i32
      %46 = arith.addi %45, %c4_i32 : i32
      %c8_i32_34 = arith.constant 8 : i32
      %47 = arith.cmpi slt, %46, %c8_i32_34 : i32
      %48 = arith.extui %47 : i1 to i32
      %c0_i32_35 = arith.constant 0 : i32
      %49 = arith.cmpi ne, %48, %c0_i32_35 : i32
      scf.if %49 {
        %c0_46 = arith.constant 0 : index
        %c0_47 = arith.constant 0 : index
        %65 = vector.load %arg11[%c0_46, %c0_47] : memref<16x128xf32, #tpu.memory_space<vmem>>, vector<16x128xf32>
        %c0_48 = arith.constant 0 : index
        %c0_49 = arith.constant 0 : index
        %66 = vector.load %arg12[%c0_48, %c0_49] : memref<16x128xf32, #tpu.memory_space<vmem>>, vector<16x128xf32>
        %67 = arith.index_cast %c4_i32 : i32 to index
        %c0_50 = arith.constant 0 : index
        %c0_51 = arith.constant 0 : index
        %68 = vector.load %arg10[%67, %c0_50, %c0_51] : memref<8x16x512xf32, #tpu.memory_space<vmem>>, vector<1x16x512xf32>
        %69 = vector.shape_cast %68 : vector<1x16x512xf32> to vector<16x512xf32>
        %c0_52 = arith.constant 0 : index
        %c0_53 = arith.constant 0 : index
        %70 = vector.load %arg6[%c0_52, %c0_53] : memref<128x512xf32, #tpu.memory_space<vmem>>, vector<128x512xf32>
        %cst_54 = arith.constant dense<0.000000e+00> : vector<16x512xf32>
        %71 = tpu.matmul %65, %70, %cst_54 {dimension_numbers = #tpu.dot_dimension_numbers<[1], [0], [0], [1], [0, 0, 1, 1], [], []>} : vector<16x128xf32>, vector<128x512xf32>, vector<16x512xf32> -> vector<16x512xf32>
        %72 = arith.addf %69, %71 : vector<16x512xf32>
        %73 = vector.extract_strided_slice %72 {offsets = [0, 0], sizes = [16, 384], strides = [1, 1]} : vector<16x512xf32> to vector<16x384xf32>
        %74 = arith.negf %73 : vector<16x384xf32>
        %75 = math.exp %74 : vector<16x384xf32>
        %cst_55 = arith.constant 1.000000e+00 : f32
        %76 = vector.broadcast %cst_55 : f32 to vector<16x384xf32>
        %77 = arith.addf %76, %75 : vector<16x384xf32>
        %78 = arith.divf %76, %77 : vector<16x384xf32>
        %79 = vector.extract_strided_slice %78 {offsets = [0, 0], sizes = [16, 128], strides = [1, 1]} : vector<16x384xf32> to vector<16x128xf32>
        %80 = vector.extract_strided_slice %78 {offsets = [0, 128], sizes = [16, 128], strides = [1, 1]} : vector<16x384xf32> to vector<16x128xf32>
        %81 = vector.extract_strided_slice %78 {offsets = [0, 256], sizes = [16, 128], strides = [1, 1]} : vector<16x384xf32> to vector<16x128xf32>
        %82 = vector.extract_strided_slice %72 {offsets = [0, 384], sizes = [16, 128], strides = [1, 1]} : vector<16x512xf32> to vector<16x128xf32>
        %83 = math.tanh %82 : vector<16x128xf32>
        %84 = arith.mulf %80, %66 : vector<16x128xf32>
        %85 = arith.mulf %79, %83 : vector<16x128xf32>
        %86 = arith.addf %84, %85 : vector<16x128xf32>
        %87 = math.tanh %86 : vector<16x128xf32>
        %88 = arith.mulf %81, %87 : vector<16x128xf32>
        %c0_56 = arith.constant 0 : index
        %c0_57 = arith.constant 0 : index
        %89 = vector.load %arg11[%c0_56, %c0_57] : memref<16x128xf32, #tpu.memory_space<vmem>>, vector<16x128xf32>
        tpu.vector_store %arg11[%c0_56, %c0_57], %88 {strides = array<i32>} : memref<16x128xf32, #tpu.memory_space<vmem>>, vector<16x128xf32>,
        %c0_58 = arith.constant 0 : index
        %c0_59 = arith.constant 0 : index
        %90 = vector.load %arg12[%c0_58, %c0_59] : memref<16x128xf32, #tpu.memory_space<vmem>>, vector<16x128xf32>
        tpu.vector_store %arg12[%c0_58, %c0_59], %86 {strides = array<i32>} : memref<16x128xf32, #tpu.memory_space<vmem>>, vector<16x128xf32>,
        %91 = arith.index_cast %c4_i32 : i32 to index
        %c0_60 = arith.constant 0 : index
        %c0_61 = arith.constant 0 : index
        %92 = vector.load %arg8[%91, %c0_60, %c0_61] : memref<8x16x128xf32, #tpu.memory_space<vmem>>, vector<1x16x128xf32>
        %93 = vector.shape_cast %92 : vector<1x16x128xf32> to vector<16x128xf32>
        %94 = vector.shape_cast %88 : vector<16x128xf32> to vector<1x16x128xf32>
        tpu.vector_store %arg8[%91, %c0_60, %c0_61], %94 {strides = array<i32>} : memref<8x16x128xf32, #tpu.memory_space<vmem>>, vector<1x16x128xf32>,
      } else {
      }
      %c5_i32 = arith.constant 5 : i32
      %c8_i32_36 = arith.constant 8 : i32
      %50 = arith.muli %arg1, %c8_i32_36 : i32
      %51 = arith.addi %50, %c5_i32 : i32
      %c8_i32_37 = arith.constant 8 : i32
      %52 = arith.cmpi slt, %51, %c8_i32_37 : i32
      %53 = arith.extui %52 : i1 to i32
      %c0_i32_38 = arith.constant 0 : i32
      %54 = arith.cmpi ne, %53, %c0_i32_38 : i32
      scf.if %54 {
        %c0_46 = arith.constant 0 : index
        %c0_47 = arith.constant 0 : index
        %65 = vector.load %arg11[%c0_46, %c0_47] : memref<16x128xf32, #tpu.memory_space<vmem>>, vector<16x128xf32>
        %c0_48 = arith.constant 0 : index
        %c0_49 = arith.constant 0 : index
        %66 = vector.load %arg12[%c0_48, %c0_49] : memref<16x128xf32, #tpu.memory_space<vmem>>, vector<16x128xf32>
        %67 = arith.index_cast %c5_i32 : i32 to index
        %c0_50 = arith.constant 0 : index
        %c0_51 = arith.constant 0 : index
        %68 = vector.load %arg10[%67, %c0_50, %c0_51] : memref<8x16x512xf32, #tpu.memory_space<vmem>>, vector<1x16x512xf32>
        %69 = vector.shape_cast %68 : vector<1x16x512xf32> to vector<16x512xf32>
        %c0_52 = arith.constant 0 : index
        %c0_53 = arith.constant 0 : index
        %70 = vector.load %arg6[%c0_52, %c0_53] : memref<128x512xf32, #tpu.memory_space<vmem>>, vector<128x512xf32>
        %cst_54 = arith.constant dense<0.000000e+00> : vector<16x512xf32>
        %71 = tpu.matmul %65, %70, %cst_54 {dimension_numbers = #tpu.dot_dimension_numbers<[1], [0], [0], [1], [0, 0, 1, 1], [], []>} : vector<16x128xf32>, vector<128x512xf32>, vector<16x512xf32> -> vector<16x512xf32>
        %72 = arith.addf %69, %71 : vector<16x512xf32>
        %73 = vector.extract_strided_slice %72 {offsets = [0, 0], sizes = [16, 384], strides = [1, 1]} : vector<16x512xf32> to vector<16x384xf32>
        %74 = arith.negf %73 : vector<16x384xf32>
        %75 = math.exp %74 : vector<16x384xf32>
        %cst_55 = arith.constant 1.000000e+00 : f32
        %76 = vector.broadcast %cst_55 : f32 to vector<16x384xf32>
        %77 = arith.addf %76, %75 : vector<16x384xf32>
        %78 = arith.divf %76, %77 : vector<16x384xf32>
        %79 = vector.extract_strided_slice %78 {offsets = [0, 0], sizes = [16, 128], strides = [1, 1]} : vector<16x384xf32> to vector<16x128xf32>
        %80 = vector.extract_strided_slice %78 {offsets = [0, 128], sizes = [16, 128], strides = [1, 1]} : vector<16x384xf32> to vector<16x128xf32>
        %81 = vector.extract_strided_slice %78 {offsets = [0, 256], sizes = [16, 128], strides = [1, 1]} : vector<16x384xf32> to vector<16x128xf32>
        %82 = vector.extract_strided_slice %72 {offsets = [0, 384], sizes = [16, 128], strides = [1, 1]} : vector<16x512xf32> to vector<16x128xf32>
        %83 = math.tanh %82 : vector<16x128xf32>
        %84 = arith.mulf %80, %66 : vector<16x128xf32>
        %85 = arith.mulf %79, %83 : vector<16x128xf32>
        %86 = arith.addf %84, %85 : vector<16x128xf32>
        %87 = math.tanh %86 : vector<16x128xf32>
        %88 = arith.mulf %81, %87 : vector<16x128xf32>
        %c0_56 = arith.constant 0 : index
        %c0_57 = arith.constant 0 : index
        %89 = vector.load %arg11[%c0_56, %c0_57] : memref<16x128xf32, #tpu.memory_space<vmem>>, vector<16x128xf32>
        tpu.vector_store %arg11[%c0_56, %c0_57], %88 {strides = array<i32>} : memref<16x128xf32, #tpu.memory_space<vmem>>, vector<16x128xf32>,
        %c0_58 = arith.constant 0 : index
        %c0_59 = arith.constant 0 : index
        %90 = vector.load %arg12[%c0_58, %c0_59] : memref<16x128xf32, #tpu.memory_space<vmem>>, vector<16x128xf32>
        tpu.vector_store %arg12[%c0_58, %c0_59], %86 {strides = array<i32>} : memref<16x128xf32, #tpu.memory_space<vmem>>, vector<16x128xf32>,
        %91 = arith.index_cast %c5_i32 : i32 to index
        %c0_60 = arith.constant 0 : index
        %c0_61 = arith.constant 0 : index
        %92 = vector.load %arg8[%91, %c0_60, %c0_61] : memref<8x16x128xf32, #tpu.memory_space<vmem>>, vector<1x16x128xf32>
        %93 = vector.shape_cast %92 : vector<1x16x128xf32> to vector<16x128xf32>
        %94 = vector.shape_cast %88 : vector<16x128xf32> to vector<1x16x128xf32>
        tpu.vector_store %arg8[%91, %c0_60, %c0_61], %94 {strides = array<i32>} : memref<8x16x128xf32, #tpu.memory_space<vmem>>, vector<1x16x128xf32>,
      } else {
      }
      %c6_i32 = arith.constant 6 : i32
      %c8_i32_39 = arith.constant 8 : i32
      %55 = arith.muli %arg1, %c8_i32_39 : i32
      %56 = arith.addi %55, %c6_i32 : i32
      %c8_i32_40 = arith.constant 8 : i32
      %57 = arith.cmpi slt, %56, %c8_i32_40 : i32
      %58 = arith.extui %57 : i1 to i32
      %c0_i32_41 = arith.constant 0 : i32
      %59 = arith.cmpi ne, %58, %c0_i32_41 : i32
      scf.if %59 {
        %c0_46 = arith.constant 0 : index
        %c0_47 = arith.constant 0 : index
        %65 = vector.load %arg11[%c0_46, %c0_47] : memref<16x128xf32, #tpu.memory_space<vmem>>, vector<16x128xf32>
        %c0_48 = arith.constant 0 : index
        %c0_49 = arith.constant 0 : index
        %66 = vector.load %arg12[%c0_48, %c0_49] : memref<16x128xf32, #tpu.memory_space<vmem>>, vector<16x128xf32>
        %67 = arith.index_cast %c6_i32 : i32 to index
        %c0_50 = arith.constant 0 : index
        %c0_51 = arith.constant 0 : index
        %68 = vector.load %arg10[%67, %c0_50, %c0_51] : memref<8x16x512xf32, #tpu.memory_space<vmem>>, vector<1x16x512xf32>
        %69 = vector.shape_cast %68 : vector<1x16x512xf32> to vector<16x512xf32>
        %c0_52 = arith.constant 0 : index
        %c0_53 = arith.constant 0 : index
        %70 = vector.load %arg6[%c0_52, %c0_53] : memref<128x512xf32, #tpu.memory_space<vmem>>, vector<128x512xf32>
        %cst_54 = arith.constant dense<0.000000e+00> : vector<16x512xf32>
        %71 = tpu.matmul %65, %70, %cst_54 {dimension_numbers = #tpu.dot_dimension_numbers<[1], [0], [0], [1], [0, 0, 1, 1], [], []>} : vector<16x128xf32>, vector<128x512xf32>, vector<16x512xf32> -> vector<16x512xf32>
        %72 = arith.addf %69, %71 : vector<16x512xf32>
        %73 = vector.extract_strided_slice %72 {offsets = [0, 0], sizes = [16, 384], strides = [1, 1]} : vector<16x512xf32> to vector<16x384xf32>
        %74 = arith.negf %73 : vector<16x384xf32>
        %75 = math.exp %74 : vector<16x384xf32>
        %cst_55 = arith.constant 1.000000e+00 : f32
        %76 = vector.broadcast %cst_55 : f32 to vector<16x384xf32>
        %77 = arith.addf %76, %75 : vector<16x384xf32>
        %78 = arith.divf %76, %77 : vector<16x384xf32>
        %79 = vector.extract_strided_slice %78 {offsets = [0, 0], sizes = [16, 128], strides = [1, 1]} : vector<16x384xf32> to vector<16x128xf32>
        %80 = vector.extract_strided_slice %78 {offsets = [0, 128], sizes = [16, 128], strides = [1, 1]} : vector<16x384xf32> to vector<16x128xf32>
        %81 = vector.extract_strided_slice %78 {offsets = [0, 256], sizes = [16, 128], strides = [1, 1]} : vector<16x384xf32> to vector<16x128xf32>
        %82 = vector.extract_strided_slice %72 {offsets = [0, 384], sizes = [16, 128], strides = [1, 1]} : vector<16x512xf32> to vector<16x128xf32>
        %83 = math.tanh %82 : vector<16x128xf32>
        %84 = arith.mulf %80, %66 : vector<16x128xf32>
        %85 = arith.mulf %79, %83 : vector<16x128xf32>
        %86 = arith.addf %84, %85 : vector<16x128xf32>
        %87 = math.tanh %86 : vector<16x128xf32>
        %88 = arith.mulf %81, %87 : vector<16x128xf32>
        %c0_56 = arith.constant 0 : index
        %c0_57 = arith.constant 0 : index
        %89 = vector.load %arg11[%c0_56, %c0_57] : memref<16x128xf32, #tpu.memory_space<vmem>>, vector<16x128xf32>
        tpu.vector_store %arg11[%c0_56, %c0_57], %88 {strides = array<i32>} : memref<16x128xf32, #tpu.memory_space<vmem>>, vector<16x128xf32>,
        %c0_58 = arith.constant 0 : index
        %c0_59 = arith.constant 0 : index
        %90 = vector.load %arg12[%c0_58, %c0_59] : memref<16x128xf32, #tpu.memory_space<vmem>>, vector<16x128xf32>
        tpu.vector_store %arg12[%c0_58, %c0_59], %86 {strides = array<i32>} : memref<16x128xf32, #tpu.memory_space<vmem>>, vector<16x128xf32>,
        %91 = arith.index_cast %c6_i32 : i32 to index
        %c0_60 = arith.constant 0 : index
        %c0_61 = arith.constant 0 : index
        %92 = vector.load %arg8[%91, %c0_60, %c0_61] : memref<8x16x128xf32, #tpu.memory_space<vmem>>, vector<1x16x128xf32>
        %93 = vector.shape_cast %92 : vector<1x16x128xf32> to vector<16x128xf32>
        %94 = vector.shape_cast %88 : vector<16x128xf32> to vector<1x16x128xf32>
        tpu.vector_store %arg8[%91, %c0_60, %c0_61], %94 {strides = array<i32>} : memref<8x16x128xf32, #tpu.memory_space<vmem>>, vector<1x16x128xf32>,
      } else {
      }
      %c7_i32 = arith.constant 7 : i32
      %c8_i32_42 = arith.constant 8 : i32
      %60 = arith.muli %arg1, %c8_i32_42 : i32
      %61 = arith.addi %60, %c7_i32 : i32
      %c8_i32_43 = arith.constant 8 : i32
      %62 = arith.cmpi slt, %61, %c8_i32_43 : i32
      %63 = arith.extui %62 : i1 to i32
      %c0_i32_44 = arith.constant 0 : i32
      %64 = arith.cmpi ne, %63, %c0_i32_44 : i32
      scf.if %64 {
        %c0_46 = arith.constant 0 : index
        %c0_47 = arith.constant 0 : index
        %65 = vector.load %arg11[%c0_46, %c0_47] : memref<16x128xf32, #tpu.memory_space<vmem>>, vector<16x128xf32>
        %c0_48 = arith.constant 0 : index
        %c0_49 = arith.constant 0 : index
        %66 = vector.load %arg12[%c0_48, %c0_49] : memref<16x128xf32, #tpu.memory_space<vmem>>, vector<16x128xf32>
        %67 = arith.index_cast %c7_i32 : i32 to index
        %c0_50 = arith.constant 0 : index
        %c0_51 = arith.constant 0 : index
        %68 = vector.load %arg10[%67, %c0_50, %c0_51] : memref<8x16x512xf32, #tpu.memory_space<vmem>>, vector<1x16x512xf32>
        %69 = vector.shape_cast %68 : vector<1x16x512xf32> to vector<16x512xf32>
        %c0_52 = arith.constant 0 : index
        %c0_53 = arith.constant 0 : index
        %70 = vector.load %arg6[%c0_52, %c0_53] : memref<128x512xf32, #tpu.memory_space<vmem>>, vector<128x512xf32>
        %cst_54 = arith.constant dense<0.000000e+00> : vector<16x512xf32>
        %71 = tpu.matmul %65, %70, %cst_54 {dimension_numbers = #tpu.dot_dimension_numbers<[1], [0], [0], [1], [0, 0, 1, 1], [], []>} : vector<16x128xf32>, vector<128x512xf32>, vector<16x512xf32> -> vector<16x512xf32>
        %72 = arith.addf %69, %71 : vector<16x512xf32>
        %73 = vector.extract_strided_slice %72 {offsets = [0, 0], sizes = [16, 384], strides = [1, 1]} : vector<16x512xf32> to vector<16x384xf32>
        %74 = arith.negf %73 : vector<16x384xf32>
        %75 = math.exp %74 : vector<16x384xf32>
        %cst_55 = arith.constant 1.000000e+00 : f32
        %76 = vector.broadcast %cst_55 : f32 to vector<16x384xf32>
        %77 = arith.addf %76, %75 : vector<16x384xf32>
        %78 = arith.divf %76, %77 : vector<16x384xf32>
        %79 = vector.extract_strided_slice %78 {offsets = [0, 0], sizes = [16, 128], strides = [1, 1]} : vector<16x384xf32> to vector<16x128xf32>
        %80 = vector.extract_strided_slice %78 {offsets = [0, 128], sizes = [16, 128], strides = [1, 1]} : vector<16x384xf32> to vector<16x128xf32>
        %81 = vector.extract_strided_slice %78 {offsets = [0, 256], sizes = [16, 128], strides = [1, 1]} : vector<16x384xf32> to vector<16x128xf32>
        %82 = vector.extract_strided_slice %72 {offsets = [0, 384], sizes = [16, 128], strides = [1, 1]} : vector<16x512xf32> to vector<16x128xf32>
        %83 = math.tanh %82 : vector<16x128xf32>
        %84 = arith.mulf %80, %66 : vector<16x128xf32>
        %85 = arith.mulf %79, %83 : vector<16x128xf32>
        %86 = arith.addf %84, %85 : vector<16x128xf32>
        %87 = math.tanh %86 : vector<16x128xf32>
        %88 = arith.mulf %81, %87 : vector<16x128xf32>
        %c0_56 = arith.constant 0 : index
        %c0_57 = arith.constant 0 : index
        %89 = vector.load %arg11[%c0_56, %c0_57] : memref<16x128xf32, #tpu.memory_space<vmem>>, vector<16x128xf32>
        tpu.vector_store %arg11[%c0_56, %c0_57], %88 {strides = array<i32>} : memref<16x128xf32, #tpu.memory_space<vmem>>, vector<16x128xf32>,
        %c0_58 = arith.constant 0 : index
        %c0_59 = arith.constant 0 : index
        %90 = vector.load %arg12[%c0_58, %c0_59] : memref<16x128xf32, #tpu.memory_space<vmem>>, vector<16x128xf32>
        tpu.vector_store %arg12[%c0_58, %c0_59], %86 {strides = array<i32>} : memref<16x128xf32, #tpu.memory_space<vmem>>, vector<16x128xf32>,
        %91 = arith.index_cast %c7_i32 : i32 to index
        %c0_60 = arith.constant 0 : index
        %c0_61 = arith.constant 0 : index
        %92 = vector.load %arg8[%91, %c0_60, %c0_61] : memref<8x16x128xf32, #tpu.memory_space<vmem>>, vector<1x16x128xf32>
        %93 = vector.shape_cast %92 : vector<1x16x128xf32> to vector<16x128xf32>
        %94 = vector.shape_cast %88 : vector<16x128xf32> to vector<1x16x128xf32>
        tpu.vector_store %arg8[%91, %c0_60, %c0_61], %94 {strides = array<i32>} : memref<8x16x128xf32, #tpu.memory_space<vmem>>, vector<1x16x128xf32>,
      } else {
      }
      %c8_i32_45 = arith.constant 8 : i32
    } else {
    }
    %c0_i32_13 = arith.constant 0 : i32
    %20 = arith.cmpi eq, %arg1, %c0_i32_13 : i32
    %21 = arith.extui %20 : i1 to i32
    %c0_i32_14 = arith.constant 0 : i32
    %22 = arith.cmpi ne, %21, %c0_i32_14 : i32
    scf.if %22 {
      %c0_15 = arith.constant 0 : index
      %c0_16 = arith.constant 0 : index
      %23 = vector.load %arg12[%c0_15, %c0_16] : memref<16x128xf32, #tpu.memory_space<vmem>>, vector<16x128xf32>
      %c0_17 = arith.constant 0 : index
      %c0_18 = arith.constant 0 : index
      %c0_19 = arith.constant 0 : index
      %24 = vector.load %arg9[%c0_17, %c0_18, %c0_19] : memref<1x16x128xf32, #tpu.memory_space<vmem>>, vector<1x16x128xf32>
      %25 = vector.shape_cast %24 : vector<1x16x128xf32> to vector<16x128xf32>
      %26 = vector.shape_cast %23 : vector<16x128xf32> to vector<1x16x128xf32>
      tpu.vector_store %arg9[%c0_17, %c0_18, %c0_19], %26 {strides = array<i32>} : memref<1x16x128xf32, #tpu.memory_space<vmem>>, vector<1x16x128xf32>,
    } else {
    }
    return
  }
  func.func @transform_0(%arg0: i32, %arg1: i32) -> (i32, i32, i32) {
    %c0_i32 = arith.constant 0 : i32
    %c0_i32_0 = arith.constant 0 : i32
    return %arg1, %arg0, %c0_i32 : i32, i32, i32
  }
  func.func @transform_1(%arg0: i32, %arg1: i32) -> (i32, i32, i32) {
    %c0_i32 = arith.constant 0 : i32
    %c0_i32_0 = arith.constant 0 : i32
    %c0_i32_1 = arith.constant 0 : i32
    return %c0_i32, %arg0, %c0_i32_0 : i32, i32, i32
  }
  func.func @transform_2(%arg0: i32, %arg1: i32) -> (i32, i32, i32) {
    %c0_i32 = arith.constant 0 : i32
    %c0_i32_0 = arith.constant 0 : i32
    %c0_i32_1 = arith.constant 0 : i32
    return %c0_i32, %arg0, %c0_i32_0 : i32, i32, i32
  }
  func.func @transform_3(%arg0: i32, %arg1: i32) -> (i32, i32) {
    %c0_i32 = arith.constant 0 : i32
    %c0_i32_0 = arith.constant 0 : i32
    %c0_i32_1 = arith.constant 0 : i32
    return %c0_i32, %c0_i32_0 : i32, i32
  }
  func.func @transform_4(%arg0: i32, %arg1: i32) -> (i32, i32) {
    %c0_i32 = arith.constant 0 : i32
    %c0_i32_0 = arith.constant 0 : i32
    %c0_i32_1 = arith.constant 0 : i32
    return %c0_i32, %c0_i32_0 : i32, i32
  }
  func.func @transform_5(%arg0: i32, %arg1: i32) -> (i32, i32) {
    %c0_i32 = arith.constant 0 : i32
    %c0_i32_0 = arith.constant 0 : i32
    %c0_i32_1 = arith.constant 0 : i32
    return %c0_i32, %c0_i32_0 : i32, i32
  }
  func.func @transform_6(%arg0: i32, %arg1: i32) -> (i32, i32, i32) {
    %c0_i32 = arith.constant 0 : i32
    %c0_i32_0 = arith.constant 0 : i32
    return %arg1, %arg0, %c0_i32 : i32, i32, i32
  }
  func.func @transform_7(%arg0: i32, %arg1: i32) -> (i32, i32, i32) {
    %c0_i32 = arith.constant 0 : i32
    %c0_i32_0 = arith.constant 0 : i32
    %c0_i32_1 = arith.constant 0 : i32
    return %c0_i32, %arg0, %c0_i32_0 : i32, i32, i32
  }
}

</mosaic_0001>

<llo_original>
// kernel: tpu_custom_call.1
$region0: #{tpu_custom_call.1}
  #allocation0 [shape = 'u32[]', space=smem, size = 0x4, offset = 0x4, fixed_abs, tag = 'smem constant byte address 0x4 - core index']
  #allocation1 [shape = 'u32[144,128]{1,0:T(1,128)}', space=vmem, size = 0x12000, scoped, tag = 'internal scratch']
  #allocation2 [shape = 'f32[8,16,512]{2,1,0:T(8,128)}', space=vmem, size = 0x40000, scoped, tag = 'scratch operand']
  #allocation3 [shape = 'f32[16,128]{1,0:T(8,128)}', space=vmem, size = 0x2000, scoped, tag = 'scratch operand']
  #allocation4 [shape = 'f32[16,128]{1,0:T(8,128)}', space=vmem, size = 0x2000, scoped, tag = 'scratch operand']
  %s0 = inlined_call_operand.hbm [shape: f32[8,16,16], index: 0, kind: input, shape index: {}]
  %s1 = inlined_call_operand.hbm [shape: f32[1,16,128], index: 1, kind: input, shape index: {}]
  %s2 = inlined_call_operand.hbm [shape: f32[1,16,128], index: 2, kind: input, shape index: {}]
  %s3 = inlined_call_operand.hbm [shape: f32[16,512], index: 3, kind: input, shape index: {}]
  %s4 = inlined_call_operand.hbm [shape: f32[128,512], index: 4, kind: input, shape index: {}]
  %s5 = inlined_call_operand.vmem [shape: f32[1,512], index: 5, kind: input, shape index: {}]
  %s6 = inlined_call_operand.hbm [shape: f32[8,16,128], index: 6, kind: output, shape index: {0}]
  %s7 = inlined_call_operand.hbm [shape: f32[1,16,128], index: 7, kind: output, shape index: {1}]
  %8 = xla_tuple %s6, %s7
  %s9 = sld [smem:[#allocation0]]
  $region110: #{tpu_custom_call.1} parent=0
    _
  %s11 = ssub.s32 1, %s9
  %s12 = scalar_select 0, %s11, %s9
  $region1: #{tpu_custom_call.1} parent=0
    #allocation5 [shape = 'u8[65536]{0}', space=vmem, size = 0x10000, scoped, tag = 'input window, operand 0, single buffered']
    #allocation6 [shape = 's32[1]{0}', space=sflag, size = 0x4, scoped, tag = 'scoped memory for tpu_custom_call.1']
    #allocation7 [shape = 's32[1]{0}', space=sflag, size = 0x4, scoped, tag = 'scoped memory for tpu_custom_call.1']
    #allocation8 [shape = 'u8[8192]{0}', space=vmem, size = 0x2000, scoped, tag = 'input window, operand 1, single buffered']
    #allocation9 [shape = 's32[1]{0}', space=sflag, size = 0x4, scoped, tag = 'scoped memory for tpu_custom_call.1']
    #allocation10 [shape = 'u8[8192]{0}', space=vmem, size = 0x2000, scoped, tag = 'input window, operand 2, single buffered']
    #allocation11 [shape = 'u8[32768]{0}', space=vmem, size = 0x8000, scoped, tag = 'input window, operand 3, single buffered']
    #allocation12 [shape = 's32[1]{0}', space=sflag, size = 0x4, scoped, tag = 'scoped memory for tpu_custom_call.1']
    #allocation13 [shape = 'u8[262144]{0}', space=vmem, size = 0x40000, scoped, tag = 'input window, operand 4, single buffered']
    #allocation14 [shape = 'u8[65536]{0}', space=vmem, size = 0x10000, scoped, tag = 'output window, operand 0, single buffered']
    #allocation15 [shape = 'u8[8192]{0}', space=vmem, size = 0x2000, scoped, tag = 'output window, operand 1, single buffered']
    #allocation16 [shape = 's32[1]{0}', space=sflag, size = 0x4, scoped, tag = 'scoped memory for tpu_custom_call.1']
    %13 = vsyncpa [#allocation6], 0
    %14 = vsyncpa [#allocation9], 0
    %15 = vsyncpa [#allocation12], 0
    %16 = vsyncpa [#allocation7], 0
    %17 = vsyncpa [#allocation16], 0
    // Predicated region
    $region2: #{tpu_custom_call.1} parent=1 // pred_check
      _
    $region3: #{tpu_custom_call.1} parent=1 // pred_check_branch
      %19 = sbr.rel (0) target = $region5
    $region4: #{tpu_custom_call.1} parent=1 // pred_region
      %s21 = ssub.s32 2048, 2048
      %22 = vsyncadd [#allocation6], %s21
      %s23 = sshll.u32 [#allocation5], 4
      %s24 = int_to_ptr.vmem [resolvable:$true] %s23
      %29 = dma.hbm_to_vmem [thread:$0]  %s0, 2048, %s24, [#allocation6], 128, 128, 8
    $region5: #{tpu_custom_call.1} parent=1 // pred_fallthru
      _
    // Predicated region
    $region6: #{tpu_custom_call.1} parent=1 // pred_check
      _
    $region7: #{tpu_custom_call.1} parent=1 // pred_check_branch
      %31 = sbr.rel (0) target = $region9
    $region8: #{tpu_custom_call.1} parent=1 // pred_region
      %s33 = ssub.s32 256, 256
      %34 = vsyncadd [#allocation9], %s33
      %s35 = sshll.u32 [#allocation8], 4
      %s36 = int_to_ptr.vmem [resolvable:$true] %s35
      %41 = dma.hbm_to_vmem [thread:$0]  %s1, 256, %s36, [#allocation9], 128, 128, 8
    $region9: #{tpu_custom_call.1} parent=1 // pred_fallthru
      _
    // Predicated region
    $region10: #{tpu_custom_call.1} parent=1 // pred_check
      _
    $region11: #{tpu_custom_call.1} parent=1 // pred_check_branch
      %43 = sbr.rel (0) target = $region13
    $region12: #{tpu_custom_call.1} parent=1 // pred_region
      %s45 = ssub.s32 256, 256
      %46 = vsyncadd [#allocation9], %s45
      %s47 = sshll.u32 [#allocation10], 4
      %s48 = int_to_ptr.vmem [resolvable:$true] %s47
      %53 = dma.hbm_to_vmem [thread:$0]  %s2, 256, %s48, [#allocation9], 128, 128, 8
    $region13: #{tpu_custom_call.1} parent=1 // pred_fallthru
      _
    // Predicated region
    $region14: #{tpu_custom_call.1} parent=1 // pred_check
      _
    $region15: #{tpu_custom_call.1} parent=1 // pred_check_branch
      %55 = sbr.rel (0) target = $region17
    $region16: #{tpu_custom_call.1} parent=1 // pred_region
      %s57 = ssub.s32 1024, 1024
      %58 = vsyncadd [#allocation12], %s57
      %s59 = sshll.u32 [#allocation11], 4
      %s60 = int_to_ptr.vmem [resolvable:$true] %s59
      %65 = dma.hbm_to_vmem [thread:$0]  %s3, 1024, %s60, [#allocation12], 512, 512, 32
    $region17: #{tpu_custom_call.1} parent=1 // pred_fallthru
      _
    // Predicated region
    $region18: #{tpu_custom_call.1} parent=1 // pred_check
      _
    $region19: #{tpu_custom_call.1} parent=1 // pred_check_branch
      %67 = sbr.rel (0) target = $region21
    $region20: #{tpu_custom_call.1} parent=1 // pred_region
      %s69 = ssub.s32 8192, 8192
      %70 = vsyncadd [#allocation12], %s69
      %s71 = sshll.u32 [#allocation13], 4
      %s72 = int_to_ptr.vmem [resolvable:$true] %s71
      %77 = dma.hbm_to_vmem [thread:$0]  %s4, 8192, %s72, [#allocation12], 512, 512, 32
    $region21: #{tpu_custom_call.1} parent=1 // pred_fallthru
      _
    // Predicated region
    $region22: #{tpu_custom_call.1} parent=1 // pred_check
      _
    $region23: #{tpu_custom_call.1} parent=1 // pred_check_branch
      %79 = sbr.rel (0) target = $region25
    $region24: #{tpu_custom_call.1} parent=1 // pred_region
      _
    $region25: #{tpu_custom_call.1} parent=1 // pred_fallthru
      _
    // Predicated region
    $region26: #{tpu_custom_call.1} parent=1 // pred_check
      _
    $region27: #{tpu_custom_call.1} parent=1 // pred_check_branch
      %81 = sbr.rel (0) target = $region29
    $region28: #{tpu_custom_call.1} parent=1 // pred_region
      %82 = dma.done [#allocation6], 2048
    $region29: #{tpu_custom_call.1} parent=1 // pred_fallthru
      _
    // Predicated region
    $region30: #{tpu_custom_call.1} parent=1 // pred_check
      _
    $region31: #{tpu_custom_call.1} parent=1 // pred_check_branch
      %84 = sbr.rel (0) target = $region33
    $region32: #{tpu_custom_call.1} parent=1 // pred_region
      %85 = dma.done [#allocation9], 256
    $region33: #{tpu_custom_call.1} parent=1 // pred_fallthru
      _
    // Predicated region
    $region34: #{tpu_custom_call.1} parent=1 // pred_check
      _
    $region35: #{tpu_custom_call.1} parent=1 // pred_check_branch
      %87 = sbr.rel (0) target = $region37
    $region36: #{tpu_custom_call.1} parent=1 // pred_region
      %88 = dma.done [#allocation9], 256
    $region37: #{tpu_custom_call.1} parent=1 // pred_fallthru
      _
    // Predicated region
    $region38: #{tpu_custom_call.1} parent=1 // pred_check
      _
    $region39: #{tpu_custom_call.1} parent=1 // pred_check_branch
      %90 = sbr.rel (0) target = $region41
    $region40: #{tpu_custom_call.1} parent=1 // pred_region
      %91 = dma.done [#allocation12], 1024
    $region41: #{tpu_custom_call.1} parent=1 // pred_fallthru
      _
    // Predicated region
    $region42: #{tpu_custom_call.1} parent=1 // pred_check
      _
    $region43: #{tpu_custom_call.1} parent=1 // pred_check_branch
      %93 = sbr.rel (0) target = $region45
    $region44: #{tpu_custom_call.1} parent=1 // pred_region
      %94 = dma.done [#allocation12], 8192
    $region45: #{tpu_custom_call.1} parent=1 // pred_fallthru
      _
    %p95 = scmp.eq.s32.totalorder 0, 0
    // Predicated region
    $region46: #{tpu_custom_call.1} parent=1 // pred_check
      %p96 = pneg %p95
    $region47: #{tpu_custom_call.1} parent=1 // pred_check_branch
      %98 = sbr.rel (%p96) target = $region49
    $region48: #{tpu_custom_call.1} parent=1 // pred_region
      %v99 = vld [vmem:[#allocation8] sm:$0xff]
      %v100 = vld [vmem:[#allocation8 + $0x8] sm:$0xff]
      %101 = vst [vmem:[#allocation3] sm:$0xff] %v99
      %102 = vst [vmem:[#allocation3 + $0x8] sm:$0xff] %v100
      %v103 = vld [vmem:[#allocation10] sm:$0xff]
      %v104 = vld [vmem:[#allocation10 + $0x8] sm:$0xff]
      %105 = vst [vmem:[#allocation4] sm:$0xff] %v103
      %106 = vst [vmem:[#allocation4 + $0x8] sm:$0xff] %v104
    $region49: #{tpu_custom_call.1} parent=1 // pred_fallthru
      _
    %v107 = vld [vmem:[#allocation5] sm:$0xff]
    %v108 = vld [vmem:[#allocation5 + $0x8] sm:$0xff]
    %v109 = vld [vmem:[#allocation5 + $0x10] sm:$0xff]
    %v110 = vld [vmem:[#allocation5 + $0x18] sm:$0xff]
    %v111 = vld [vmem:[#allocation5 + $0x20] sm:$0xff]
    %v112 = vld [vmem:[#allocation5 + $0x28] sm:$0xff]
    %v113 = vld [vmem:[#allocation5 + $0x30] sm:$0xff]
    %v114 = vld [vmem:[#allocation5 + $0x38] sm:$0xff]
    %v115 = vld [vmem:[#allocation5 + $0x40] sm:$0xff]
    %v116 = vld [vmem:[#allocation5 + $0x48] sm:$0xff]
    %v117 = vld [vmem:[#allocation5 + $0x50] sm:$0xff]
    %v118 = vld [vmem:[#allocation5 + $0x58] sm:$0xff]
    %v119 = vld [vmem:[#allocation5 + $0x60] sm:$0xff]
    %v120 = vld [vmem:[#allocation5 + $0x68] sm:$0xff]
    %v121 = vld [vmem:[#allocation5 + $0x70] sm:$0xff]
    %v122 = vld [vmem:[#allocation5 + $0x78] sm:$0xff]
    %v123 = vld [vmem:[#allocation11] sm:$0xff]
    %v124 = vld [vmem:[#allocation11 + $0x8] sm:$0xff]
    %v125 = vld [vmem:[#allocation11 + $0x10] sm:$0xff]
    %v126 = vld [vmem:[#allocation11 + $0x18] sm:$0xff]
    %v127 = vld [vmem:[#allocation11 + $0x20] sm:$0xff]
    %v128 = vld [vmem:[#allocation11 + $0x28] sm:$0xff]
    %v129 = vld [vmem:[#allocation11 + $0x30] sm:$0xff]
    %v130 = vld [vmem:[#allocation11 + $0x38] sm:$0xff]
    %v131 = vld [vmem:[%s5] sm:$0xf]
    %v133 = vlaneseq
    %v134 = vshrl.u32 %v133, 7
    %v135 = vsub.s32 0, %v134
    %v136 = vrot.slane %v131, %v135
    %v137 = vlaneseq
    %v138 = vshrl.u32 %v137, 7
    %v139 = vsub.s32 1, %v138
    %v140 = vrot.slane %v131, %v139
    %v141 = vlaneseq
    %v142 = vshrl.u32 %v141, 7
    %v143 = vsub.s32 2, %v142
    %v144 = vrot.slane %v131, %v143
    %v145 = vlaneseq
    %v146 = vshrl.u32 %v145, 7
    %v147 = vsub.s32 3, %v146
    %v148 = vrot.slane %v131, %v147
    %vm153 = vcmask 130048
    %v155 = vsel %vm153, %v107, 0
    %v158 = vsel %vm153, %v108, 0
    %v161 = vsel %vm153, %v109, 0
    %v164 = vsel %vm153, %v110, 0
    %v167 = vsel %vm153, %v111, 0
    %v170 = vsel %vm153, %v112, 0
    %v173 = vsel %vm153, %v113, 0
    %v176 = vsel %vm153, %v114, 0
    %v179 = vsel %vm153, %v115, 0
    %v182 = vsel %vm153, %v116, 0
    %v185 = vsel %vm153, %v117, 0
    %v188 = vsel %vm153, %v118, 0
    %v191 = vsel %vm153, %v119, 0
    %v194 = vsel %vm153, %v120, 0
    %v197 = vsel %vm153, %v121, 0
    %v200 = vsel %vm153, %v122, 0
    %202 = vmatprep.subr.mxu0 0.0
    %203 = vmatpush1.msra.mxu0 0.0
    %204 = vmatprep.subr.mxu0 0.0
    %205 = vmatpush1.msra.mxu0 0.0
    %206 = vmatprep.subr.mxu0 0.0
    %207 = vmatpush1.msra.mxu0 0.0
    %208 = vmatprep.subr.mxu0 0.0
    %209 = vmatpush1.msra.mxu0 0.0
    %210 = vmatprep.subr.mxu0 0.0
    %211 = vmatpush1.msra.mxu0 0.0
    %212 = vmatprep.subr.mxu0 0.0
    %213 = vmatpush1.msra.mxu0 0.0
    %214 = vmatprep.subr.mxu0 0.0
    %215 = vmatpush1.msra.mxu0 0.0
    %216 = vmatprep.subr.mxu0 0.0
    %217 = vmatpush1.msra.mxu0 0.0
    %218 = vmatprep.subr.mxu0 0.0
    %219 = vmatpush1.msra.mxu0 0.0
    %220 = vmatprep.subr.mxu0 0.0
    %221 = vmatpush1.msra.mxu0 0.0
    %222 = vmatprep.subr.mxu0 0.0
    %223 = vmatpush1.msra.mxu0 0.0
    %224 = vmatprep.subr.mxu0 0.0
    %225 = vmatpush1.msra.mxu0 0.0
    %226 = vmatprep.subr.mxu0 0.0
    %227 = vmatpush1.msra.mxu0 0.0
    %228 = vmatprep.subr.mxu0 0.0
    %229 = vmatpush1.msra.mxu0 0.0
    %230 = vmatprep.subr.mxu0 %v128
    %231 = vmatpush1.msra.mxu0 %v127
    %232 = vmatprep.subr.mxu0 %v124
    %233 = vmatpush1.msra.mxu0 %v123
    %234 = vmatprep.subr.mxu0 0.0
    %235 = vmatpush2.msra.mxu0 0.0
    %236 = vmatprep.subr.mxu0 0.0
    %237 = vmatpush2.msra.mxu0 0.0
    %238 = vmatprep.subr.mxu0 0.0
    %239 = vmatpush2.msra.mxu0 0.0
    %240 = vmatprep.subr.mxu0 0.0
    %241 = vmatpush2.msra.mxu0 0.0
    %242 = vmatprep.subr.mxu0 0.0
    %243 = vmatpush2.msra.mxu0 0.0
    %244 = vmatprep.subr.mxu0 0.0
    %245 = vmatpush2.msra.mxu0 0.0
    %246 = vmatprep.subr.mxu0 0.0
    %247 = vmatpush2.msra.mxu0 0.0
    %248 = vmatprep.subr.mxu0 0.0
    %249 = vmatpush2.msra.mxu0 0.0
    %250 = vmatprep.subr.mxu0 0.0
    %251 = vmatpush2.msra.mxu0 0.0
    %252 = vmatprep.subr.mxu0 0.0
    %253 = vmatpush2.msra.mxu0 0.0
    %254 = vmatprep.subr.mxu0 0.0
    %255 = vmatpush2.msra.mxu0 0.0
    %256 = vmatprep.subr.mxu0 0.0
    %257 = vmatpush2.msra.mxu0 0.0
    %258 = vmatprep.subr.mxu0 0.0
    %259 = vmatpush2.msra.mxu0 0.0
    %260 = vmatprep.subr.mxu0 0.0
    %261 = vmatpush2.msra.mxu0 0.0
    %262 = vmatprep.subr.mxu0 0.0
    %263 = vmatpush2.msra.mxu0 0.0
    %264 = vmatprep.subr.mxu0 0.0
    %265 = vmatpush2.msra.mxu0 0.0
    %266 = vmatprep.mubr.f32.mxu0 0.0
    %267 = vmatmul.mubr.f32.gmra.mxu0 %v155
    %v268 = vpop.f32.mrf.mxu0
    %v269 = vadd.f32 %v136, %v268
    %v270 = vpop.f32.mrf.mxu0
    %v271 = vadd.f32 %v140, %v270
    %272 = vmatprep.mubr.f32.mxu0 0.0
    %273 = vmatmul.mubr.f32.gmra.mxu0 %v158
    %v274 = vpop.f32.mrf.mxu0
    %v275 = vadd.f32 %v136, %v274
    %v276 = vpop.f32.mrf.mxu0
    %v277 = vadd.f32 %v140, %v276
    %278 = vmatprep.mubr.f32.mxu0 0.0
    %279 = vmatmul.mubr.f32.gmra.mxu0 %v161
    %v280 = vpop.f32.mrf.mxu0
    %v281 = vadd.f32 %v136, %v280
    %v282 = vpop.f32.mrf.mxu0
    %v283 = vadd.f32 %v140, %v282
    %284 = vmatprep.mubr.f32.mxu0 0.0
    %285 = vmatmul.mubr.f32.gmra.mxu0 %v164
    %v286 = vpop.f32.mrf.mxu0
    %v287 = vadd.f32 %v136, %v286
    %v288 = vpop.f32.mrf.mxu0
    %v289 = vadd.f32 %v140, %v288
    %290 = vmatprep.mubr.f32.mxu0 0.0
    %291 = vmatmul.mubr.f32.gmra.mxu0 %v167
    %v292 = vpop.f32.mrf.mxu0
    %v293 = vadd.f32 %v136, %v292
    %v294 = vpop.f32.mrf.mxu0
    %v295 = vadd.f32 %v140, %v294
    %296 = vmatprep.mubr.f32.mxu0 0.0
    %297 = vmatmul.mubr.f32.gmra.mxu0 %v170
    %v298 = vpop.f32.mrf.mxu0
    %v299 = vadd.f32 %v136, %v298
    %v300 = vpop.f32.mrf.mxu0
    %v301 = vadd.f32 %v140, %v300
    %302 = vmatprep.mubr.f32.mxu0 0.0
    %303 = vmatmul.mubr.f32.gmra.mxu0 %v173
    %v304 = vpop.f32.mrf.mxu0
    %v305 = vadd.f32 %v136, %v304
    %v306 = vpop.f32.mrf.mxu0
    %v307 = vadd.f32 %v140, %v306
    %308 = vmatprep.mubr.f32.mxu0 0.0
    %309 = vmatmul.mubr.f32.gmra.mxu0 %v176
    %v310 = vpop.f32.mrf.mxu0
    %v311 = vadd.f32 %v136, %v310
    %v312 = vpop.f32.mrf.mxu0
    %v313 = vadd.f32 %v140, %v312
    %314 = vmatprep.mubr.f32.mxu0 0.0
    %315 = vmatmul.mubr.f32.gmra.mxu0 %v179
    %v316 = vpop.f32.mrf.mxu0
    %v317 = vadd.f32 %v136, %v316
    %v318 = vpop.f32.mrf.mxu0
    %v319 = vadd.f32 %v140, %v318
    %320 = vmatprep.mubr.f32.mxu0 0.0
    %321 = vmatmul.mubr.f32.gmra.mxu0 %v182
    %v322 = vpop.f32.mrf.mxu0
    %v323 = vadd.f32 %v136, %v322
    %v324 = vpop.f32.mrf.mxu0
    %v325 = vadd.f32 %v140, %v324
    %326 = vmatprep.mubr.f32.mxu0 0.0
    %327 = vmatmul.mubr.f32.gmra.mxu0 %v185
    %v328 = vpop.f32.mrf.mxu0
    %v329 = vadd.f32 %v136, %v328
    %v330 = vpop.f32.mrf.mxu0
    %v331 = vadd.f32 %v140, %v330
    %332 = vmatprep.mubr.f32.mxu0 0.0
    %333 = vmatmul.mubr.f32.gmra.mxu0 %v188
    %v334 = vpop.f32.mrf.mxu0
    %v335 = vadd.f32 %v136, %v334
    %v336 = vpop.f32.mrf.mxu0
    %v337 = vadd.f32 %v140, %v336
    %338 = vmatprep.mubr.f32.mxu0 0.0
    %339 = vmatmul.mubr.f32.gmra.mxu0 %v191
    %v340 = vpop.f32.mrf.mxu0
    %v341 = vadd.f32 %v136, %v340
    %v342 = vpop.f32.mrf.mxu0
    %v343 = vadd.f32 %v140, %v342
    %344 = vmatprep.mubr.f32.mxu0 0.0
    %345 = vmatmul.mubr.f32.gmra.mxu0 %v194
    %v346 = vpop.f32.mrf.mxu0
    %v347 = vadd.f32 %v136, %v346
    %v348 = vpop.f32.mrf.mxu0
    %v349 = vadd.f32 %v140, %v348
    %350 = vmatprep.mubr.f32.mxu0 0.0
    %351 = vmatmul.mubr.f32.gmra.mxu0 %v197
    %v352 = vpop.f32.mrf.mxu0
    %v353 = vadd.f32 %v136, %v352
    %v354 = vpop.f32.mrf.mxu0
    %v355 = vadd.f32 %v140, %v354
    %356 = vmatprep.mubr.f32.mxu0 0.0
    %357 = vmatmul.mubr.f32.gmra.mxu0 %v200
    %v358 = vpop.f32.mrf.mxu0
    %v359 = vadd.f32 %v136, %v358
    %v360 = vpop.f32.mrf.mxu0
    %v361 = vadd.f32 %v140, %v360
    %362 = vdwg.mxu0
    %363 = vmatprep.subr.mxu0 0.0
    %364 = vmatpush1.msra.mxu0 0.0
    %365 = vmatprep.subr.mxu0 0.0
    %366 = vmatpush1.msra.mxu0 0.0
    %367 = vmatprep.subr.mxu0 0.0
    %368 = vmatpush1.msra.mxu0 0.0
    %369 = vmatprep.subr.mxu0 0.0
    %370 = vmatpush1.msra.mxu0 0.0
    %371 = vmatprep.subr.mxu0 0.0
    %372 = vmatpush1.msra.mxu0 0.0
    %373 = vmatprep.subr.mxu0 0.0
    %374 = vmatpush1.msra.mxu0 0.0
    %375 = vmatprep.subr.mxu0 0.0
    %376 = vmatpush1.msra.mxu0 0.0
    %377 = vmatprep.subr.mxu0 0.0
    %378 = vmatpush1.msra.mxu0 0.0
    %379 = vmatprep.subr.mxu0 0.0
    %380 = vmatpush1.msra.mxu0 0.0
    %381 = vmatprep.subr.mxu0 0.0
    %382 = vmatpush1.msra.mxu0 0.0
    %383 = vmatprep.subr.mxu0 0.0
    %384 = vmatpush1.msra.mxu0 0.0
    %385 = vmatprep.subr.mxu0 0.0
    %386 = vmatpush1.msra.mxu0 0.0
    %387 = vmatprep.subr.mxu0 0.0
    %388 = vmatpush1.msra.mxu0 0.0
    %389 = vmatprep.subr.mxu0 0.0
    %390 = vmatpush1.msra.mxu0 0.0
    %391 = vmatprep.subr.mxu0 %v130
    %392 = vmatpush1.msra.mxu0 %v129
    %393 = vmatprep.subr.mxu0 %v126
    %394 = vmatpush1.msra.mxu0 %v125
    %395 = vmatprep.subr.mxu0 0.0
    %396 = vmatpush2.msra.mxu0 0.0
    %397 = vmatprep.subr.mxu0 0.0
    %398 = vmatpush2.msra.mxu0 0.0
    %399 = vmatprep.subr.mxu0 0.0
    %400 = vmatpush2.msra.mxu0 0.0
    %401 = vmatprep.subr.mxu0 0.0
    %402 = vmatpush2.msra.mxu0 0.0
    %403 = vmatprep.subr.mxu0 0.0
    %404 = vmatpush2.msra.mxu0 0.0
    %405 = vmatprep.subr.mxu0 0.0
    %406 = vmatpush2.msra.mxu0 0.0
    %407 = vmatprep.subr.mxu0 0.0
    %408 = vmatpush2.msra.mxu0 0.0
    %409 = vmatprep.subr.mxu0 0.0
    %410 = vmatpush2.msra.mxu0 0.0
    %411 = vmatprep.subr.mxu0 0.0
    %412 = vmatpush2.msra.mxu0 0.0
    %413 = vmatprep.subr.mxu0 0.0
    %414 = vmatpush2.msra.mxu0 0.0
    %415 = vmatprep.subr.mxu0 0.0
    %416 = vmatpush2.msra.mxu0 0.0
    %417 = vmatprep.subr.mxu0 0.0
    %418 = vmatpush2.msra.mxu0 0.0
    %419 = vmatprep.subr.mxu0 0.0
    %420 = vmatpush2.msra.mxu0 0.0
    %421 = vmatprep.subr.mxu0 0.0
    %422 = vmatpush2.msra.mxu0 0.0
    %423 = vmatprep.subr.mxu0 0.0
    %424 = vmatpush2.msra.mxu0 0.0
    %425 = vmatprep.subr.mxu0 0.0
    %426 = vmatpush2.msra.mxu0 0.0
    %427 = vmatprep.mubr.f32.mxu0 0.0
    %428 = vmatmul.mubr.f32.gmra.mxu0 %v155
    %v429 = vpop.f32.mrf.mxu0
    %v430 = vadd.f32 %v144, %v429
    %v431 = vpop.f32.mrf.mxu0
    %v432 = vadd.f32 %v148, %v431
    %433 = vmatprep.mubr.f32.mxu0 0.0
    %434 = vmatmul.mubr.f32.gmra.mxu0 %v158
    %v435 = vpop.f32.mrf.mxu0
    %v436 = vadd.f32 %v144, %v435
    %v437 = vpop.f32.mrf.mxu0
    %v438 = vadd.f32 %v148, %v437
    %439 = vmatprep.mubr.f32.mxu0 0.0
    %440 = vmatmul.mubr.f32.gmra.mxu0 %v161
    %v441 = vpop.f32.mrf.mxu0
    %v442 = vadd.f32 %v144, %v441
    %v443 = vpop.f32.mrf.mxu0
    %v444 = vadd.f32 %v148, %v443
    %445 = vmatprep.mubr.f32.mxu0 0.0
    %446 = vmatmul.mubr.f32.gmra.mxu0 %v164
    %v447 = vpop.f32.mrf.mxu0
    %v448 = vadd.f32 %v144, %v447
    %v449 = vpop.f32.mrf.mxu0
    %v450 = vadd.f32 %v148, %v449
    %451 = vmatprep.mubr.f32.mxu0 0.0
    %452 = vmatmul.mubr.f32.gmra.mxu0 %v167
    %v453 = vpop.f32.mrf.mxu0
    %v454 = vadd.f32 %v144, %v453
    %v455 = vpop.f32.mrf.mxu0
    %v456 = vadd.f32 %v148, %v455
    %457 = vmatprep.mubr.f32.mxu0 0.0
    %458 = vmatmul.mubr.f32.gmra.mxu0 %v170
    %v459 = vpop.f32.mrf.mxu0
    %v460 = vadd.f32 %v144, %v459
    %v461 = vpop.f32.mrf.mxu0
    %v462 = vadd.f32 %v148, %v461
    %463 = vmatprep.mubr.f32.mxu0 0.0
    %464 = vmatmul.mubr.f32.gmra.mxu0 %v173
    %v465 = vpop.f32.mrf.mxu0
    %v466 = vadd.f32 %v144, %v465
    %v467 = vpop.f32.mrf.mxu0
    %v468 = vadd.f32 %v148, %v467
    %469 = vmatprep.mubr.f32.mxu0 0.0
    %470 = vmatmul.mubr.f32.gmra.mxu0 %v176
    %v471 = vpop.f32.mrf.mxu0
    %v472 = vadd.f32 %v144, %v471
    %v473 = vpop.f32.mrf.mxu0
    %v474 = vadd.f32 %v148, %v473
    %475 = vmatprep.mubr.f32.mxu0 0.0
    %476 = vmatmul.mubr.f32.gmra.mxu0 %v179
    %v477 = vpop.f32.mrf.mxu0
    %v478 = vadd.f32 %v144, %v477
    %v479 = vpop.f32.mrf.mxu0
    %v480 = vadd.f32 %v148, %v479
    %481 = vmatprep.mubr.f32.mxu0 0.0
    %482 = vmatmul.mubr.f32.gmra.mxu0 %v182
    %v483 = vpop.f32.mrf.mxu0
    %v484 = vadd.f32 %v144, %v483
    %v485 = vpop.f32.mrf.mxu0
    %v486 = vadd.f32 %v148, %v485
    %487 = vmatprep.mubr.f32.mxu0 0.0
    %488 = vmatmul.mubr.f32.gmra.mxu0 %v185
    %v489 = vpop.f32.mrf.mxu0
    %v490 = vadd.f32 %v144, %v489
    %v491 = vpop.f32.mrf.mxu0
    %v492 = vadd.f32 %v148, %v491
    %493 = vmatprep.mubr.f32.mxu0 0.0
    %494 = vmatmul.mubr.f32.gmra.mxu0 %v188
    %v495 = vpop.f32.mrf.mxu0
    %v496 = vadd.f32 %v144, %v495
    %v497 = vpop.f32.mrf.mxu0
    %v498 = vadd.f32 %v148, %v497
    %499 = vmatprep.mubr.f32.mxu0 0.0
    %500 = vmatmul.mubr.f32.gmra.mxu0 %v191
    %v501 = vpop.f32.mrf.mxu0
    %v502 = vadd.f32 %v144, %v501
    %v503 = vpop.f32.mrf.mxu0
    %v504 = vadd.f32 %v148, %v503
    %505 = vmatprep.mubr.f32.mxu0 0.0
    %506 = vmatmul.mubr.f32.gmra.mxu0 %v194
    %v507 = vpop.f32.mrf.mxu0
    %v508 = vadd.f32 %v144, %v507
    %v509 = vpop.f32.mrf.mxu0
    %v510 = vadd.f32 %v148, %v509
    %511 = vmatprep.mubr.f32.mxu0 0.0
    %512 = vmatmul.mubr.f32.gmra.mxu0 %v197
    %v513 = vpop.f32.mrf.mxu0
    %v514 = vadd.f32 %v144, %v513
    %v515 = vpop.f32.mrf.mxu0
    %v516 = vadd.f32 %v148, %v515
    %517 = vmatprep.mubr.f32.mxu0 0.0
    %518 = vmatmul.mubr.f32.gmra.mxu0 %v200
    %v519 = vpop.f32.mrf.mxu0
    %v520 = vadd.f32 %v144, %v519
    %v521 = vpop.f32.mrf.mxu0
    %v522 = vadd.f32 %v148, %v521
    %523 = vdwg.mxu0
    %524 = vst [vmem:[#allocation2] sm:$0xff] %v269
    %525 = vst [vmem:[#allocation2 + $0x8] sm:$0xff] %v271
    %526 = vst [vmem:[#allocation2 + $0x10] sm:$0xff] %v430
    %527 = vst [vmem:[#allocation2 + $0x18] sm:$0xff] %v432
    %528 = vst [vmem:[#allocation2 + $0x20] sm:$0xff] %v275
    %529 = vst [vmem:[#allocation2 + $0x28] sm:$0xff] %v277
    %530 = vst [vmem:[#allocation2 + $0x30] sm:$0xff] %v436
    %531 = vst [vmem:[#allocation2 + $0x38] sm:$0xff] %v438
    %532 = vst [vmem:[#allocation2 + $0x40] sm:$0xff] %v281
    %533 = vst [vmem:[#allocation2 + $0x48] sm:$0xff] %v283
    %534 = vst [vmem:[#allocation2 + $0x50] sm:$0xff] %v442
    %535 = vst [vmem:[#allocation2 + $0x58] sm:$0xff] %v444
    %536 = vst [vmem:[#allocation2 + $0x60] sm:$0xff] %v287
    %537 = vst [vmem:[#allocation2 + $0x68] sm:$0xff] %v289
    %538 = vst [vmem:[#allocation2 + $0x70] sm:$0xff] %v448
    %539 = vst [vmem:[#allocation2 + $0x78] sm:$0xff] %v450
    %540 = vst [vmem:[#allocation2 + $0x80] sm:$0xff] %v293
    %541 = vst [vmem:[#allocation2 + $0x88] sm:$0xff] %v295
    %542 = vst [vmem:[#allocation2 + $0x90] sm:$0xff] %v454
    %543 = vst [vmem:[#allocation2 + $0x98] sm:$0xff] %v456
    %544 = vst [vmem:[#allocation2 + $0xa0] sm:$0xff] %v299
    %545 = vst [vmem:[#allocation2 + $0xa8] sm:$0xff] %v301
    %546 = vst [vmem:[#allocation2 + $0xb0] sm:$0xff] %v460
    %547 = vst [vmem:[#allocation2 + $0xb8] sm:$0xff] %v462
    %548 = vst [vmem:[#allocation2 + $0xc0] sm:$0xff] %v305
    %549 = vst [vmem:[#allocation2 + $0xc8] sm:$0xff] %v307
    %550 = vst [vmem:[#allocation2 + $0xd0] sm:$0xff] %v466
    %551 = vst [vmem:[#allocation2 + $0xd8] sm:$0xff] %v468
    %552 = vst [vmem:[#allocation2 + $0xe0] sm:$0xff] %v311
    %553 = vst [vmem:[#allocation2 + $0xe8] sm:$0xff] %v313
    %554 = vst [vmem:[#allocation2 + $0xf0] sm:$0xff] %v472
    %555 = vst [vmem:[#allocation2 + $0xf8] sm:$0xff] %v474
    %556 = vst [vmem:[#allocation2 + $0x100] sm:$0xff] %v317
    %557 = vst [vmem:[#allocation2 + $0x108] sm:$0xff] %v319
    %558 = vst [vmem:[#allocation2 + $0x110] sm:$0xff] %v478
    %559 = vst [vmem:[#allocation2 + $0x118] sm:$0xff] %v480
    %560 = vst [vmem:[#allocation2 + $0x120] sm:$0xff] %v323
    %561 = vst [vmem:[#allocation2 + $0x128] sm:$0xff] %v325
    %562 = vst [vmem:[#allocation2 + $0x130] sm:$0xff] %v484
    %563 = vst [vmem:[#allocation2 + $0x138] sm:$0xff] %v486
    %564 = vst [vmem:[#allocation2 + $0x140] sm:$0xff] %v329
    %565 = vst [vmem:[#allocation2 + $0x148] sm:$0xff] %v331
    %566 = vst [vmem:[#allocation2 + $0x150] sm:$0xff] %v490
    %567 = vst [vmem:[#allocation2 + $0x158] sm:$0xff] %v492
    %568 = vst [vmem:[#allocation2 + $0x160] sm:$0xff] %v335
    %569 = vst [vmem:[#allocation2 + $0x168] sm:$0xff] %v337
    %570 = vst [vmem:[#allocation2 + $0x170] sm:$0xff] %v496
    %571 = vst [vmem:[#allocation2 + $0x178] sm:$0xff] %v498
    %572 = vst [vmem:[#allocation2 + $0x180] sm:$0xff] %v341
    %573 = vst [vmem:[#allocation2 + $0x188] sm:$0xff] %v343
    %574 = vst [vmem:[#allocation2 + $0x190] sm:$0xff] %v502
    %575 = vst [vmem:[#allocation2 + $0x198] sm:$0xff] %v504
    %576 = vst [vmem:[#allocation2 + $0x1a0] sm:$0xff] %v347
    %577 = vst [vmem:[#allocation2 + $0x1a8] sm:$0xff] %v349
    %578 = vst [vmem:[#allocation2 + $0x1b0] sm:$0xff] %v508
    %579 = vst [vmem:[#allocation2 + $0x1b8] sm:$0xff] %v510
    %580 = vst [vmem:[#allocation2 + $0x1c0] sm:$0xff] %v353
    %581 = vst [vmem:[#allocation2 + $0x1c8] sm:$0xff] %v355
    %582 = vst [vmem:[#allocation2 + $0x1d0] sm:$0xff] %v514
    %583 = vst [vmem:[#allocation2 + $0x1d8] sm:$0xff] %v516
    %584 = vst [vmem:[#allocation2 + $0x1e0] sm:$0xff] %v359
    %585 = vst [vmem:[#allocation2 + $0x1e8] sm:$0xff] %v361
    %586 = vst [vmem:[#allocation2 + $0x1f0] sm:$0xff] %v520
    %587 = vst [vmem:[#allocation2 + $0x1f8] sm:$0xff] %v522
    %s588 = sadd.s32 0, 1
    %s589 = smul.u32 %s588, 8
    %p590 = scmp.le.s32.totalorder %s589, 8
    // Predicated region
    $region50: #{tpu_custom_call.1} parent=1 // pred_check
      %p591 = pneg %p590
    $region51: #{tpu_custom_call.1} parent=1 // pred_check_branch
      %593 = sbr.rel (%p591) target = $region53
    $region52: #{tpu_custom_call.1} parent=1 // pred_region
      %v594 = vld [vmem:[#allocation3] sm:$0xff]
      %v595 = vld [vmem:[#allocation3 + $0x8] sm:$0xff]
      %v596 = vld [vmem:[#allocation4] sm:$0xff]
      %v597 = vld [vmem:[#allocation4 + $0x8] sm:$0xff]
      %v598 = vld [vmem:[#allocation2] sm:$0xff]
      %v599 = vld [vmem:[#allocation2 + $0x8] sm:$0xff]
      %v600 = vld [vmem:[#allocation2 + $0x10] sm:$0xff]
      %v601 = vld [vmem:[#allocation2 + $0x18] sm:$0xff]
      %v602 = vld [vmem:[#allocation2 + $0x20] sm:$0xff]
      %v603 = vld [vmem:[#allocation2 + $0x28] sm:$0xff]
      %v604 = vld [vmem:[#allocation2 + $0x30] sm:$0xff]
      %v605 = vld [vmem:[#allocation2 + $0x38] sm:$0xff]
      %v606 = vld [vmem:[#allocation13] sm:$0xff]
      %v607 = vld [vmem:[#allocation13 + $0x8] sm:$0xff]
      %v608 = vld [vmem:[#allocation13 + $0x10] sm:$0xff]
      %v609 = vld [vmem:[#allocation13 + $0x18] sm:$0xff]
      %v610 = vld [vmem:[#allocation13 + $0x20] sm:$0xff]
      %v611 = vld [vmem:[#allocation13 + $0x28] sm:$0xff]
      %v612 = vld [vmem:[#allocation13 + $0x30] sm:$0xff]
      %v613 = vld [vmem:[#allocation13 + $0x38] sm:$0xff]
      %v614 = vld [vmem:[#allocation13 + $0x40] sm:$0xff]
      %v615 = vld [vmem:[#allocation13 + $0x48] sm:$0xff]
      %v616 = vld [vmem:[#allocation13 + $0x50] sm:$0xff]
      %v617 = vld [vmem:[#allocation13 + $0x58] sm:$0xff]
      %v618 = vld [vmem:[#allocation13 + $0x60] sm:$0xff]
      %v619 = vld [vmem:[#allocation13 + $0x68] sm:$0xff]
      %v620 = vld [vmem:[#allocation13 + $0x70] sm:$0xff]
      %v621 = vld [vmem:[#allocation13 + $0x78] sm:$0xff]
      %v622 = vld [vmem:[#allocation13 + $0x80] sm:$0xff]
      %v623 = vld [vmem:[#allocation13 + $0x88] sm:$0xff]
      %v624 = vld [vmem:[#allocation13 + $0x90] sm:$0xff]
      %v625 = vld [vmem:[#allocation13 + $0x98] sm:$0xff]
      %v626 = vld [vmem:[#allocation13 + $0xa0] sm:$0xff]
      %v627 = vld [vmem:[#allocation13 + $0xa8] sm:$0xff]
      %v628 = vld [vmem:[#allocation13 + $0xb0] sm:$0xff]
      %v629 = vld [vmem:[#allocation13 + $0xb8] sm:$0xff]
      %v630 = vld [vmem:[#allocation13 + $0xc0] sm:$0xff]
      %v631 = vld [vmem:[#allocation13 + $0xc8] sm:$0xff]
      %v632 = vld [vmem:[#allocation13 + $0xd0] sm:$0xff]
      %v633 = vld [vmem:[#allocation13 + $0xd8] sm:$0xff]
      %v634 = vld [vmem:[#allocation13 + $0xe0] sm:$0xff]
      %v635 = vld [vmem:[#allocation13 + $0xe8] sm:$0xff]
      %v636 = vld [vmem:[#allocation13 + $0xf0] sm:$0xff]
      %v637 = vld [vmem:[#allocation13 + $0xf8] sm:$0xff]
      %v638 = vld [vmem:[#allocation13 + $0x100] sm:$0xff]
      %v639 = vld [vmem:[#allocation13 + $0x108] sm:$0xff]
      %v640 = vld [vmem:[#allocation13 + $0x110] sm:$0xff]
      %v641 = vld [vmem:[#allocation13 + $0x118] sm:$0xff]
      %v642 = vld [vmem:[#allocation13 + $0x120] sm:$0xff]
      %v643 = vld [vmem:[#allocation13 + $0x128] sm:$0xff]
      %v644 = vld [vmem:[#allocation13 + $0x130] sm:$0xff]
      %v645 = vld [vmem:[#allocation13 + $0x138] sm:$0xff]
      %v646 = vld [vmem:[#allocation13 + $0x140] sm:$0xff]
      %v647 = vld [vmem:[#allocation13 + $0x148] sm:$0xff]
      %v648 = vld [vmem:[#allocation13 + $0x150] sm:$0xff]
      %v649 = vld [vmem:[#allocation13 + $0x158] sm:$0xff]
      %v650 = vld [vmem:[#allocation13 + $0x160] sm:$0xff]
      %v651 = vld [vmem:[#allocation13 + $0x168] sm:$0xff]
      %v652 = vld [vmem:[#allocation13 + $0x170] sm:$0xff]
      %v653 = vld [vmem:[#allocation13 + $0x178] sm:$0xff]
      %v654 = vld [vmem:[#allocation13 + $0x180] sm:$0xff]
      %v655 = vld [vmem:[#allocation13 + $0x188] sm:$0xff]
      %v656 = vld [vmem:[#allocation13 + $0x190] sm:$0xff]
      %v657 = vld [vmem:[#allocation13 + $0x198] sm:$0xff]
      %v658 = vld [vmem:[#allocation13 + $0x1a0] sm:$0xff]
      %v659 = vld [vmem:[#allocation13 + $0x1a8] sm:$0xff]
      %v660 = vld [vmem:[#allocation13 + $0x1b0] sm:$0xff]
      %v661 = vld [vmem:[#allocation13 + $0x1b8] sm:$0xff]
      %v662 = vld [vmem:[#allocation13 + $0x1c0] sm:$0xff]
      %v663 = vld [vmem:[#allocation13 + $0x1c8] sm:$0xff]
      %v664 = vld [vmem:[#allocation13 + $0x1d0] sm:$0xff]
      %v665 = vld [vmem:[#allocation13 + $0x1d8] sm:$0xff]
      %v666 = vld [vmem:[#allocation13 + $0x1e0] sm:$0xff]
      %v667 = vld [vmem:[#allocation13 + $0x1e8] sm:$0xff]
      %v668 = vld [vmem:[#allocation13 + $0x1f0] sm:$0xff]
      %v669 = vld [vmem:[#allocation13 + $0x1f8] sm:$0xff]
      %670 = vmatprep.subr.mxu0 %v667
      %671 = vmatpush1.msra.mxu0 %v666
      %672 = vmatprep.subr.mxu0 %v663
      %673 = vmatpush1.msra.mxu0 %v662
      %674 = vmatprep.subr.mxu0 %v659
      %675 = vmatpush1.msra.mxu0 %v658
      %676 = vmatprep.subr.mxu0 %v655
      %677 = vmatpush1.msra.mxu0 %v654
      %678 = vmatprep.subr.mxu0 %v651
      %679 = vmatpush1.msra.mxu0 %v650
      %680 = vmatprep.subr.mxu0 %v647
      %681 = vmatpush1.msra.mxu0 %v646
      %682 = vmatprep.subr.mxu0 %v643
      %683 = vmatpush1.msra.mxu0 %v642
      %684 = vmatprep.subr.mxu0 %v639
      %685 = vmatpush1.msra.mxu0 %v638
      %686 = vmatprep.subr.mxu0 %v635
      %687 = vmatpush1.msra.mxu0 %v634
      %688 = vmatprep.subr.mxu0 %v631
      %689 = vmatpush1.msra.mxu0 %v630
      %690 = vmatprep.subr.mxu0 %v627
      %691 = vmatpush1.msra.mxu0 %v626
      %692 = vmatprep.subr.mxu0 %v623
      %693 = vmatpush1.msra.mxu0 %v622
      %694 = vmatprep.subr.mxu0 %v619
      %695 = vmatpush1.msra.mxu0 %v618
      %696 = vmatprep.subr.mxu0 %v615
      %697 = vmatpush1.msra.mxu0 %v614
      %698 = vmatprep.subr.mxu0 %v611
      %699 = vmatpush1.msra.mxu0 %v610
      %700 = vmatprep.subr.mxu0 %v607
      %701 = vmatpush1.msra.mxu0 %v606
      %702 = vmatprep.subr.mxu0 0.0
      %703 = vmatpush2.msra.mxu0 0.0
      %704 = vmatprep.subr.mxu0 0.0
      %705 = vmatpush2.msra.mxu0 0.0
      %706 = vmatprep.subr.mxu0 0.0
      %707 = vmatpush2.msra.mxu0 0.0
      %708 = vmatprep.subr.mxu0 0.0
      %709 = vmatpush2.msra.mxu0 0.0
      %710 = vmatprep.subr.mxu0 0.0
      %711 = vmatpush2.msra.mxu0 0.0
      %712 = vmatprep.subr.mxu0 0.0
      %713 = vmatpush2.msra.mxu0 0.0
      %714 = vmatprep.subr.mxu0 0.0
      %715 = vmatpush2.msra.mxu0 0.0
      %716 = vmatprep.subr.mxu0 0.0
      %717 = vmatpush2.msra.mxu0 0.0
      %718 = vmatprep.subr.mxu0 0.0
      %719 = vmatpush2.msra.mxu0 0.0
      %720 = vmatprep.subr.mxu0 0.0
      %721 = vmatpush2.msra.mxu0 0.0
      %722 = vmatprep.subr.mxu0 0.0
      %723 = vmatpush2.msra.mxu0 0.0
      %724 = vmatprep.subr.mxu0 0.0
      %725 = vmatpush2.msra.mxu0 0.0
      %726 = vmatprep.subr.mxu0 0.0
      %727 = vmatpush2.msra.mxu0 0.0
      %728 = vmatprep.subr.mxu0 0.0
      %729 = vmatpush2.msra.mxu0 0.0
      %730 = vmatprep.subr.mxu0 0.0
      %731 = vmatpush2.msra.mxu0 0.0
      %732 = vmatprep.subr.mxu0 0.0
      %733 = vmatpush2.msra.mxu0 0.0
      %734 = vmatprep.mubr.f32.mxu0 0.0
      %735 = vmatmul.mubr.f32.gmra.mxu0 %v594
      %v736 = vpop.f32.mrf.mxu0
      %v737 = vadd.f32 0.0, %v736
      %v738 = vpop.f32.mrf.mxu0
      %v739 = vadd.f32 0.0, %v738
      %740 = vmatprep.mubr.f32.mxu0 0.0
      %741 = vmatmul.mubr.f32.gmra.mxu0 %v595
      %v742 = vpop.f32.mrf.mxu0
      %v743 = vadd.f32 0.0, %v742
      %v744 = vpop.f32.mrf.mxu0
      %v745 = vadd.f32 0.0, %v744
      %746 = vdwg.mxu0
      %747 = vmatprep.subr.mxu0 %v669
      %748 = vmatpush1.msra.mxu0 %v668
      %749 = vmatprep.subr.mxu0 %v665
      %750 = vmatpush1.msra.mxu0 %v664
      %751 = vmatprep.subr.mxu0 %v661
      %752 = vmatpush1.msra.mxu0 %v660
      %753 = vmatprep.subr.mxu0 %v657
      %754 = vmatpush1.msra.mxu0 %v656
      %755 = vmatprep.subr.mxu0 %v653
      %756 = vmatpush1.msra.mxu0 %v652
      %757 = vmatprep.subr.mxu0 %v649
      %758 = vmatpush1.msra.mxu0 %v648
      %759 = vmatprep.subr.mxu0 %v645
      %760 = vmatpush1.msra.mxu0 %v644
      %761 = vmatprep.subr.mxu0 %v641
      %762 = vmatpush1.msra.mxu0 %v640
      %763 = vmatprep.subr.mxu0 %v637
      %764 = vmatpush1.msra.mxu0 %v636
      %765 = vmatprep.subr.mxu0 %v633
      %766 = vmatpush1.msra.mxu0 %v632
      %767 = vmatprep.subr.mxu0 %v629
      %768 = vmatpush1.msra.mxu0 %v628
      %769 = vmatprep.subr.mxu0 %v625
      %770 = vmatpush1.msra.mxu0 %v624
      %771 = vmatprep.subr.mxu0 %v621
      %772 = vmatpush1.msra.mxu0 %v620
      %773 = vmatprep.subr.mxu0 %v617
      %774 = vmatpush1.msra.mxu0 %v616
      %775 = vmatprep.subr.mxu0 %v613
      %776 = vmatpush1.msra.mxu0 %v612
      %777 = vmatprep.subr.mxu0 %v609
      %778 = vmatpush1.msra.mxu0 %v608
      %779 = vmatprep.subr.mxu0 0.0
      %780 = vmatpush2.msra.mxu0 0.0
      %781 = vmatprep.subr.mxu0 0.0
      %782 = vmatpush2.msra.mxu0 0.0
      %783 = vmatprep.subr.mxu0 0.0
      %784 = vmatpush2.msra.mxu0 0.0
      %785 = vmatprep.subr.mxu0 0.0
      %786 = vmatpush2.msra.mxu0 0.0
      %787 = vmatprep.subr.mxu0 0.0
      %788 = vmatpush2.msra.mxu0 0.0
      %789 = vmatprep.subr.mxu0 0.0
      %790 = vmatpush2.msra.mxu0 0.0
      %791 = vmatprep.subr.mxu0 0.0
      %792 = vmatpush2.msra.mxu0 0.0
      %793 = vmatprep.subr.mxu0 0.0
      %794 = vmatpush2.msra.mxu0 0.0
      %795 = vmatprep.subr.mxu0 0.0
      %796 = vmatpush2.msra.mxu0 0.0
      %797 = vmatprep.subr.mxu0 0.0
      %798 = vmatpush2.msra.mxu0 0.0
      %799 = vmatprep.subr.mxu0 0.0
      %800 = vmatpush2.msra.mxu0 0.0
      %801 = vmatprep.subr.mxu0 0.0
      %802 = vmatpush2.msra.mxu0 0.0
      %803 = vmatprep.subr.mxu0 0.0
      %804 = vmatpush2.msra.mxu0 0.0
      %805 = vmatprep.subr.mxu0 0.0
      %806 = vmatpush2.msra.mxu0 0.0
      %807 = vmatprep.subr.mxu0 0.0
      %808 = vmatpush2.msra.mxu0 0.0
      %809 = vmatprep.subr.mxu0 0.0
      %810 = vmatpush2.msra.mxu0 0.0
      %811 = vmatprep.mubr.f32.mxu0 0.0
      %812 = vmatmul.mubr.f32.gmra.mxu0 %v594
      %v813 = vpop.f32.mrf.mxu0
      %v814 = vadd.f32 0.0, %v813
      %v815 = vpop.f32.mrf.mxu0
      %v816 = vadd.f32 0.0, %v815
      %817 = vmatprep.mubr.f32.mxu0 0.0
      %818 = vmatmul.mubr.f32.gmra.mxu0 %v595
      %v819 = vpop.f32.mrf.mxu0
      %v820 = vadd.f32 0.0, %v819
      %v821 = vpop.f32.mrf.mxu0
      %v822 = vadd.f32 0.0, %v821
      %823 = vdwg.mxu0
      %v824 = vadd.f32 %v598, %v737
      %v825 = vadd.f32 %v599, %v739
      %v826 = vadd.f32 %v600, %v814
      %v827 = vadd.f32 %v601, %v816
      %v828 = vadd.f32 %v602, %v743
      %v829 = vadd.f32 %v603, %v745
      %v830 = vadd.f32 %v604, %v820
      %v831 = vadd.f32 %v605, %v822
      %v832 = vxor.u32 %v824, 2147483648
      %v833 = vxor.u32 %v825, 2147483648
      %v834 = vxor.u32 %v826, 2147483648
      %v835 = vxor.u32 %v828, 2147483648
      %v836 = vxor.u32 %v829, 2147483648
      %v837 = vxor.u32 %v830, 2147483648
      %v838 = vmul.f32 %v832, 1.442695
      %v839 = vpow.pop %v838
      %v840 = vmul.f32 %v833, 1.442695
      %v841 = vpow.pop %v840
      %v842 = vmul.f32 %v834, 1.442695
      %v843 = vpow.pop %v842
      %v844 = vmul.f32 %v835, 1.442695
      %v845 = vpow.pop %v844
      %v846 = vmul.f32 %v836, 1.442695
      %v847 = vpow.pop %v846
      %v848 = vmul.f32 %v837, 1.442695
      %v849 = vpow.pop %v848
      %v850 = vadd.f32 %v839, 1.0
      %v851 = vadd.f32 %v841, 1.0
      %v852 = vadd.f32 %v843, 1.0
      %v853 = vadd.f32 %v845, 1.0
      %v854 = vadd.f32 %v847, 1.0
      %v855 = vadd.f32 %v849, 1.0
      %v856 = vrcp.pop %v850
      %v857 = vmul.f32 1.0, %v856
      %v858 = vrcp.pop %v851
      %v859 = vmul.f32 1.0, %v858
      %v860 = vrcp.pop %v852
      %v861 = vmul.f32 1.0, %v860
      %v862 = vrcp.pop %v853
      %v863 = vmul.f32 1.0, %v862
      %v864 = vrcp.pop %v854
      %v865 = vmul.f32 1.0, %v864
      %v866 = vrcp.pop %v855
      %v867 = vmul.f32 1.0, %v866
      %v868 = vtanh.pop %v827
      %v869 = vtanh.pop %v831
      %v870 = vmul.f32 %v859, %v596
      %v871 = vmul.f32 %v865, %v597
      %v872 = vmul.f32 %v857, %v868
      %v873 = vmul.f32 %v863, %v869
      %v874 = vadd.f32 %v870, %v872
      %v875 = vadd.f32 %v871, %v873
      %v876 = vtanh.pop %v874
      %v877 = vtanh.pop %v875
      %v878 = vmul.f32 %v861, %v876
      %v879 = vmul.f32 %v867, %v877
      %880 = vst [vmem:[#allocation3] sm:$0xff] %v878
      %881 = vst [vmem:[#allocation3 + $0x8] sm:$0xff] %v879
      %882 = vst [vmem:[#allocation4] sm:$0xff] %v874
      %883 = vst [vmem:[#allocation4 + $0x8] sm:$0xff] %v875
      %884 = vst [vmem:[#allocation14] sm:$0xff] %v878
      %885 = vst [vmem:[#allocation14 + $0x8] sm:$0xff] %v879
      %v886 = vld [vmem:[#allocation3] sm:$0xff]
      %v887 = vld [vmem:[#allocation3 + $0x8] sm:$0xff]
      %v888 = vld [vmem:[#allocation4] sm:$0xff]
      %v889 = vld [vmem:[#allocation4 + $0x8] sm:$0xff]
      %s890 = scalar_lea.vmem [#allocation2], 64
      %v891 = vld [vmem:[%s890] sm:$0xff]
      %v892 = vld [vmem:[%s890 + $0x8] sm:$0xff]
      %v893 = vld [vmem:[%s890 + $0x10] sm:$0xff]
      %v894 = vld [vmem:[%s890 + $0x18] sm:$0xff]
      %v895 = vld [vmem:[%s890 + $0x20] sm:$0xff]
      %v896 = vld [vmem:[%s890 + $0x28] sm:$0xff]
      %v897 = vld [vmem:[%s890 + $0x30] sm:$0xff]
      %v898 = vld [vmem:[%s890 + $0x38] sm:$0xff]
      %v899 = vld [vmem:[#allocation13] sm:$0xff]
      %v900 = vld [vmem:[#allocation13 + $0x8] sm:$0xff]
      %v901 = vld [vmem:[#allocation13 + $0x10] sm:$0xff]
      %v902 = vld [vmem:[#allocation13 + $0x18] sm:$0xff]
      %v903 = vld [vmem:[#allocation13 + $0x20] sm:$0xff]
      %v904 = vld [vmem:[#allocation13 + $0x28] sm:$0xff]
      %v905 = vld [vmem:[#allocation13 + $0x30] sm:$0xff]
      %v906 = vld [vmem:[#allocation13 + $0x38] sm:$0xff]
      %v907 = vld [vmem:[#allocation13 + $0x40] sm:$0xff]
      %v908 = vld [vmem:[#allocation13 + $0x48] sm:$0xff]
      %v909 = vld [vmem:[#allocation13 + $0x50] sm:$0xff]
      %v910 = vld [vmem:[#allocation13 + $0x58] sm:$0xff]
      %v911 = vld [vmem:[#allocation13 + $0x60] sm:$0xff]
      %v912 = vld [vmem:[#allocation13 + $0x68] sm:$0xff]
      %v913 = vld [vmem:[#allocation13 + $0x70] sm:$0xff]
      %v914 = vld [vmem:[#allocation13 + $0x78] sm:$0xff]
      %v915 = vld [vmem:[#allocation13 + $0x80] sm:$0xff]
      %v916 = vld [vmem:[#allocation13 + $0x88] sm:$0xff]
      %v917 = vld [vmem:[#allocation13 + $0x90] sm:$0xff]
      %v918 = vld [vmem:[#allocation13 + $0x98] sm:$0xff]
      %v919 = vld [vmem:[#allocation13 + $0xa0] sm:$0xff]
      %v920 = vld [vmem:[#allocation13 + $0xa8] sm:$0xff]
      %v921 = vld [vmem:[#allocation13 + $0xb0] sm:$0xff]
      %v922 = vld [vmem:[#allocation13 + $0xb8] sm:$0xff]
      %v923 = vld [vmem:[#allocation13 + $0xc0] sm:$0xff]
      %v924 = vld [vmem:[#allocation13 + $0xc8] sm:$0xff]
      %v925 = vld [vmem:[#allocation13 + $0xd0] sm:$0xff]
      %v926 = vld [vmem:[#allocation13 + $0xd8] sm:$0xff]
      %v927 = vld [vmem:[#allocation13 + $0xe0] sm:$0xff]
      %v928 = vld [vmem:[#allocation13 + $0xe8] sm:$0xff]
      %v929 = vld [vmem:[#allocation13 + $0xf0] sm:$0xff]
      %v930 = vld [vmem:[#allocation13 + $0xf8] sm:$0xff]
      %v931 = vld [vmem:[#allocation13 + $0x100] sm:$0xff]
      %v932 = vld [vmem:[#allocation13 + $0x108] sm:$0xff]
      %v933 = vld [vmem:[#allocation13 + $0x110] sm:$0xff]
      %v934 = vld [vmem:[#allocation13 + $0x118] sm:$0xff]
      %v935 = vld [vmem:[#allocation13 + $0x120] sm:$0xff]
      %v936 = vld [vmem:[#allocation13 + $0x128] sm:$0xff]
      %v937 = vld [vmem:[#allocation13 + $0x130] sm:$0xff]
      %v938 = vld [vmem:[#allocation13 + $0x138] sm:$0xff]
      %v939 = vld [vmem:[#allocation13 + $0x140] sm:$0xff]
      %v940 = vld [vmem:[#allocation13 + $0x148] sm:$0xff]
      %v941 = vld [vmem:[#allocation13 + $0x150] sm:$0xff]
      %v942 = vld [vmem:[#allocation13 + $0x158] sm:$0xff]
      %v943 = vld [vmem:[#allocation13 + $0x160] sm:$0xff]
      %v944 = vld [vmem:[#allocation13 + $0x168] sm:$0xff]
      %v945 = vld [vmem:[#allocation13 + $0x170] sm:$0xff]
      %v946 = vld [vmem:[#allocation13 + $0x178] sm:$0xff]
      %v947 = vld [vmem:[#allocation13 + $0x180] sm:$0xff]
      %v948 = vld [vmem:[#allocation13 + $0x188] sm:$0xff]
      %v949 = vld [vmem:[#allocation13 + $0x190] sm:$0xff]
      %v950 = vld [vmem:[#allocation13 + $0x198] sm:$0xff]
      %v951 = vld [vmem:[#allocation13 + $0x1a0] sm:$0xff]
      %v952 = vld [vmem:[#allocation13 + $0x1a8] sm:$0xff]
      %v953 = vld [vmem:[#allocation13 + $0x1b0] sm:$0xff]
      %v954 = vld [vmem:[#allocation13 + $0x1b8] sm:$0xff]
      %v955 = vld [vmem:[#allocation13 + $0x1c0] sm:$0xff]
      %v956 = vld [vmem:[#allocation13 + $0x1c8] sm:$0xff]
      %v957 = vld [vmem:[#allocation13 + $0x1d0] sm:$0xff]
      %v958 = vld [vmem:[#allocation13 + $0x1d8] sm:$0xff]
      %v959 = vld [vmem:[#allocation13 + $0x1e0] sm:$0xff]
      %v960 = vld [vmem:[#allocation13 + $0x1e8] sm:$0xff]
      %v961 = vld [vmem:[#allocation13 + $0x1f0] sm:$0xff]
      %v962 = vld [vmem:[#allocation13 + $0x1f8] sm:$0xff]
      %963 = vmatprep.subr.mxu0 %v960
      %964 = vmatpush1.msra.mxu0 %v959
      %965 = vmatprep.subr.mxu0 %v956
      %966 = vmatpush1.msra.mxu0 %v955
      %967 = vmatprep.subr.mxu0 %v952
      %968 = vmatpush1.msra.mxu0 %v951
      %969 = vmatprep.subr.mxu0 %v948
      %970 = vmatpush1.msra.mxu0 %v947
      %971 = vmatprep.subr.mxu0 %v944
      %972 = vmatpush1.msra.mxu0 %v943
      %973 = vmatprep.subr.mxu0 %v940
      %974 = vmatpush1.msra.mxu0 %v939
      %975 = vmatprep.subr.mxu0 %v936
      %976 = vmatpush1.msra.mxu0 %v935
      %977 = vmatprep.subr.mxu0 %v932
      %978 = vmatpush1.msra.mxu0 %v931
      %979 = vmatprep.subr.mxu0 %v928
      %980 = vmatpush1.msra.mxu0 %v927
      %981 = vmatprep.subr.mxu0 %v924
      %982 = vmatpush1.msra.mxu0 %v923
      %983 = vmatprep.subr.mxu0 %v920
      %984 = vmatpush1.msra.mxu0 %v919
      %985 = vmatprep.subr.mxu0 %v916
      %986 = vmatpush1.msra.mxu0 %v915
      %987 = vmatprep.subr.mxu0 %v912
      %988 = vmatpush1.msra.mxu0 %v911
      %989 = vmatprep.subr.mxu0 %v908
      %990 = vmatpush1.msra.mxu0 %v907
      %991 = vmatprep.subr.mxu0 %v904
      %992 = vmatpush1.msra.mxu0 %v903
      %993 = vmatprep.subr.mxu0 %v900
      %994 = vmatpush1.msra.mxu0 %v899
      %995 = vmatprep.subr.mxu0 0.0
      %996 = vmatpush2.msra.mxu0 0.0
      %997 = vmatprep.subr.mxu0 0.0
      %998 = vmatpush2.msra.mxu0 0.0
      %999 = vmatprep.subr.mxu0 0.0
      %1000 = vmatpush2.msra.mxu0 0.0
      %1001 = vmatprep.subr.mxu0 0.0
      %1002 = vmatpush2.msra.mxu0 0.0
      %1003 = vmatprep.subr.mxu0 0.0
      %1004 = vmatpush2.msra.mxu0 0.0
      %1005 = vmatprep.subr.mxu0 0.0
      %1006 = vmatpush2.msra.mxu0 0.0
      %1007 = vmatprep.subr.mxu0 0.0
      %1008 = vmatpush2.msra.mxu0 0.0
      %1009 = vmatprep.subr.mxu0 0.0
      %1010 = vmatpush2.msra.mxu0 0.0
      %1011 = vmatprep.subr.mxu0 0.0
      %1012 = vmatpush2.msra.mxu0 0.0
      %1013 = vmatprep.subr.mxu0 0.0
      %1014 = vmatpush2.msra.mxu0 0.0
      %1015 = vmatprep.subr.mxu0 0.0
      %1016 = vmatpush2.msra.mxu0 0.0
      %1017 = vmatprep.subr.mxu0 0.0
      %1018 = vmatpush2.msra.mxu0 0.0
      %1019 = vmatprep.subr.mxu0 0.0
      %1020 = vmatpush2.msra.mxu0 0.0
      %1021 = vmatprep.subr.mxu0 0.0
      %1022 = vmatpush2.msra.mxu0 0.0
      %1023 = vmatprep.subr.mxu0 0.0
      %1024 = vmatpush2.msra.mxu0 0.0
      %1025 = vmatprep.subr.mxu0 0.0
      %1026 = vmatpush2.msra.mxu0 0.0
      %1027 = vmatprep.mubr.f32.mxu0 0.0
      %1028 = vmatmul.mubr.f32.gmra.mxu0 %v886
      %v1029 = vpop.f32.mrf.mxu0
      %v1030 = vadd.f32 0.0, %v1029
      %v1031 = vpop.f32.mrf.mxu0
      %v1032 = vadd.f32 0.0, %v1031
      %1033 = vmatprep.mubr.f32.mxu0 0.0
      %1034 = vmatmul.mubr.f32.gmra.mxu0 %v887
      %v1035 = vpop.f32.mrf.mxu0
      %v1036 = vadd.f32 0.0, %v1035
      %v1037 = vpop.f32.mrf.mxu0
      %v1038 = vadd.f32 0.0, %v1037
      %1039 = vdwg.mxu0
      %1040 = vmatprep.subr.mxu0 %v962
      %1041 = vmatpush1.msra.mxu0 %v961
      %1042 = vmatprep.subr.mxu0 %v958
      %1043 = vmatpush1.msra.mxu0 %v957
      %1044 = vmatprep.subr.mxu0 %v954
      %1045 = vmatpush1.msra.mxu0 %v953
      %1046 = vmatprep.subr.mxu0 %v950
      %1047 = vmatpush1.msra.mxu0 %v949
      %1048 = vmatprep.subr.mxu0 %v946
      %1049 = vmatpush1.msra.mxu0 %v945
      %1050 = vmatprep.subr.mxu0 %v942
      %1051 = vmatpush1.msra.mxu0 %v941
      %1052 = vmatprep.subr.mxu0 %v938
      %1053 = vmatpush1.msra.mxu0 %v937
      %1054 = vmatprep.subr.mxu0 %v934
      %1055 = vmatpush1.msra.mxu0 %v933
      %1056 = vmatprep.subr.mxu0 %v930
      %1057 = vmatpush1.msra.mxu0 %v929
      %1058 = vmatprep.subr.mxu0 %v926
      %1059 = vmatpush1.msra.mxu0 %v925
      %1060 = vmatprep.subr.mxu0 %v922
      %1061 = vmatpush1.msra.mxu0 %v921
      %1062 = vmatprep.subr.mxu0 %v918
      %1063 = vmatpush1.msra.mxu0 %v917
      %1064 = vmatprep.subr.mxu0 %v914
      %1065 = vmatpush1.msra.mxu0 %v913
      %1066 = vmatprep.subr.mxu0 %v910
      %1067 = vmatpush1.msra.mxu0 %v909
      %1068 = vmatprep.subr.mxu0 %v906
      %1069 = vmatpush1.msra.mxu0 %v905
      %1070 = vmatprep.subr.mxu0 %v902
      %1071 = vmatpush1.msra.mxu0 %v901
      %1072 = vmatprep.subr.mxu0 0.0
      %1073 = vmatpush2.msra.mxu0 0.0
      %1074 = vmatprep.subr.mxu0 0.0
      %1075 = vmatpush2.msra.mxu0 0.0
      %1076 = vmatprep.subr.mxu0 0.0
      %1077 = vmatpush2.msra.mxu0 0.0
      %1078 = vmatprep.subr.mxu0 0.0
      %1079 = vmatpush2.msra.mxu0 0.0
      %1080 = vmatprep.subr.mxu0 0.0
      %1081 = vmatpush2.msra.mxu0 0.0
      %1082 = vmatprep.subr.mxu0 0.0
      %1083 = vmatpush2.msra.mxu0 0.0
      %1084 = vmatprep.subr.mxu0 0.0
      %1085 = vmatpush2.msra.mxu0 0.0
      %1086 = vmatprep.subr.mxu0 0.0
      %1087 = vmatpush2.msra.mxu0 0.0
      %1088 = vmatprep.subr.mxu0 0.0
      %1089 = vmatpush2.msra.mxu0 0.0
      %1090 = vmatprep.subr.mxu0 0.0
      %1091 = vmatpush2.msra.mxu0 0.0
      %1092 = vmatprep.subr.mxu0 0.0
      %1093 = vmatpush2.msra.mxu0 0.0
      %1094 = vmatprep.subr.mxu0 0.0
      %1095 = vmatpush2.msra.mxu0 0.0
      %1096 = vmatprep.subr.mxu0 0.0
      %1097 = vmatpush2.msra.mxu0 0.0
      %1098 = vmatprep.subr.mxu0 0.0
      %1099 = vmatpush2.msra.mxu0 0.0
      %1100 = vmatprep.subr.mxu0 0.0
      %1101 = vmatpush2.msra.mxu0 0.0
      %1102 = vmatprep.subr.mxu0 0.0
      %1103 = vmatpush2.msra.mxu0 0.0
      %1104 = vmatprep.mubr.f32.mxu0 0.0
      %1105 = vmatmul.mubr.f32.gmra.mxu0 %v886
      %v1106 = vpop.f32.mrf.mxu0
      %v1107 = vadd.f32 0.0, %v1106
      %v1108 = vpop.f32.mrf.mxu0
      %v1109 = vadd.f32 0.0, %v1108
      %1110 = vmatprep.mubr.f32.mxu0 0.0
      %1111 = vmatmul.mubr.f32.gmra.mxu0 %v887
      %v1112 = vpop.f32.mrf.mxu0
      %v1113 = vadd.f32 0.0, %v1112
      %v1114 = vpop.f32.mrf.mxu0
      %v1115 = vadd.f32 0.0, %v1114
      %1116 = vdwg.mxu0
      %v1117 = vadd.f32 %v891, %v1030
      %v1118 = vadd.f32 %v892, %v1032
      %v1119 = vadd.f32 %v893, %v1107
      %v1120 = vadd.f32 %v894, %v1109
      %v1121 = vadd.f32 %v895, %v1036
      %v1122 = vadd.f32 %v896, %v1038
      %v1123 = vadd.f32 %v897, %v1113
      %v1124 = vadd.f32 %v898, %v1115
      %v1125 = vxor.u32 %v1117, 2147483648
      %v1126 = vxor.u32 %v1118, 2147483648
      %v1127 = vxor.u32 %v1119, 2147483648
      %v1128 = vxor.u32 %v1121, 2147483648
      %v1129 = vxor.u32 %v1122, 2147483648
      %v1130 = vxor.u32 %v1123, 2147483648
      %v1131 = vmul.f32 %v1125, 1.442695
      %v1132 = vpow.pop %v1131
      %v1133 = vmul.f32 %v1126, 1.442695
      %v1134 = vpow.pop %v1133
      %v1135 = vmul.f32 %v1127, 1.442695
      %v1136 = vpow.pop %v1135
      %v1137 = vmul.f32 %v1128, 1.442695
      %v1138 = vpow.pop %v1137
      %v1139 = vmul.f32 %v1129, 1.442695
      %v1140 = vpow.pop %v1139
      %v1141 = vmul.f32 %v1130, 1.442695
      %v1142 = vpow.pop %v1141
      %v1143 = vadd.f32 %v1132, 1.0
      %v1144 = vadd.f32 %v1134, 1.0
      %v1145 = vadd.f32 %v1136, 1.0
      %v1146 = vadd.f32 %v1138, 1.0
      %v1147 = vadd.f32 %v1140, 1.0
      %v1148 = vadd.f32 %v1142, 1.0
      %v1149 = vrcp.pop %v1143
      %v1150 = vmul.f32 1.0, %v1149
      %v1151 = vrcp.pop %v1144
      %v1152 = vmul.f32 1.0, %v1151
      %v1153 = vrcp.pop %v1145
      %v1154 = vmul.f32 1.0, %v1153
      %v1155 = vrcp.pop %v1146
      %v1156 = vmul.f32 1.0, %v1155
      %v1157 = vrcp.pop %v1147
      %v1158 = vmul.f32 1.0, %v1157
      %v1159 = vrcp.pop %v1148
      %v1160 = vmul.f32 1.0, %v1159
      %v1161 = vtanh.pop %v1120
      %v1162 = vtanh.pop %v1124
      %v1163 = vmul.f32 %v1152, %v888
      %v1164 = vmul.f32 %v1158, %v889
      %v1165 = vmul.f32 %v1150, %v1161
      %v1166 = vmul.f32 %v1156, %v1162
      %v1167 = vadd.f32 %v1163, %v1165
      %v1168 = vadd.f32 %v1164, %v1166
      %v1169 = vtanh.pop %v1167
      %v1170 = vtanh.pop %v1168
      %v1171 = vmul.f32 %v1154, %v1169
      %v1172 = vmul.f32 %v1160, %v1170
      %1173 = vst [vmem:[#allocation3] sm:$0xff] %v1171
      %1174 = vst [vmem:[#allocation3 + $0x8] sm:$0xff] %v1172
      %1175 = vst [vmem:[#allocation4] sm:$0xff] %v1167
      %1176 = vst [vmem:[#allocation4 + $0x8] sm:$0xff] %v1168
      %s1177 = scalar_lea.vmem [#allocation14], 16
      %1178 = vst [vmem:[%s1177] sm:$0xff] %v1171
      %1179 = vst [vmem:[%s1177 + $0x8] sm:$0xff] %v1172
      %v1180 = vld [vmem:[#allocation3] sm:$0xff]
      %v1181 = vld [vmem:[#allocation3 + $0x8] sm:$0xff]
      %v1182 = vld [vmem:[#allocation4] sm:$0xff]
      %v1183 = vld [vmem:[#allocation4 + $0x8] sm:$0xff]
      %s1184 = scalar_lea.vmem [#allocation2], 128
      %v1185 = vld [vmem:[%s1184] sm:$0xff]
      %v1186 = vld [vmem:[%s1184 + $0x8] sm:$0xff]
      %v1187 = vld [vmem:[%s1184 + $0x10] sm:$0xff]
      %v1188 = vld [vmem:[%s1184 + $0x18] sm:$0xff]
      %v1189 = vld [vmem:[%s1184 + $0x20] sm:$0xff]
      %v1190 = vld [vmem:[%s1184 + $0x28] sm:$0xff]
      %v1191 = vld [vmem:[%s1184 + $0x30] sm:$0xff]
      %v1192 = vld [vmem:[%s1184 + $0x38] sm:$0xff]
      %v1193 = vld [vmem:[#allocation13] sm:$0xff]
      %v1194 = vld [vmem:[#allocation13 + $0x8] sm:$0xff]
      %v1195 = vld [vmem:[#allocation13 + $0x10] sm:$0xff]
      %v1196 = vld [vmem:[#allocation13 + $0x18] sm:$0xff]
      %v1197 = vld [vmem:[#allocation13 + $0x20] sm:$0xff]
      %v1198 = vld [vmem:[#allocation13 + $0x28] sm:$0xff]
      %v1199 = vld [vmem:[#allocation13 + $0x30] sm:$0xff]
      %v1200 = vld [vmem:[#allocation13 + $0x38] sm:$0xff]
      %v1201 = vld [vmem:[#allocation13 + $0x40] sm:$0xff]
      %v1202 = vld [vmem:[#allocation13 + $0x48] sm:$0xff]
      %v1203 = vld [vmem:[#allocation13 + $0x50] sm:$0xff]
      %v1204 = vld [vmem:[#allocation13 + $0x58] sm:$0xff]
      %v1205 = vld [vmem:[#allocation13 + $0x60] sm:$0xff]
      %v1206 = vld [vmem:[#allocation13 + $0x68] sm:$0xff]
      %v1207 = vld [vmem:[#allocation13 + $0x70] sm:$0xff]
      %v1208 = vld [vmem:[#allocation13 + $0x78] sm:$0xff]
      %v1209 = vld [vmem:[#allocation13 + $0x80] sm:$0xff]
      %v1210 = vld [vmem:[#allocation13 + $0x88] sm:$0xff]
      %v1211 = vld [vmem:[#allocation13 + $0x90] sm:$0xff]
      %v1212 = vld [vmem:[#allocation13 + $0x98] sm:$0xff]
      %v1213 = vld [vmem:[#allocation13 + $0xa0] sm:$0xff]
      %v1214 = vld [vmem:[#allocation13 + $0xa8] sm:$0xff]
      %v1215 = vld [vmem:[#allocation13 + $0xb0] sm:$0xff]
      %v1216 = vld [vmem:[#allocation13 + $0xb8] sm:$0xff]
      %v1217 = vld [vmem:[#allocation13 + $0xc0] sm:$0xff]
      %v1218 = vld [vmem:[#allocation13 + $0xc8] sm:$0xff]
      %v1219 = vld [vmem:[#allocation13 + $0xd0] sm:$0xff]
      %v1220 = vld [vmem:[#allocation13 + $0xd8] sm:$0xff]
      %v1221 = vld [vmem:[#allocation13 + $0xe0] sm:$0xff]
      %v1222 = vld [vmem:[#allocation13 + $0xe8] sm:$0xff]
      %v1223 = vld [vmem:[#allocation13 + $0xf0] sm:$0xff]
      %v1224 = vld [vmem:[#allocation13 + $0xf8] sm:$0xff]
      %v1225 = vld [vmem:[#allocation13 + $0x100] sm:$0xff]
      %v1226 = vld [vmem:[#allocation13 + $0x108] sm:$0xff]
      %v1227 = vld [vmem:[#allocation13 + $0x110] sm:$0xff]
      %v1228 = vld [vmem:[#allocation13 + $0x118] sm:$0xff]
      %v1229 = vld [vmem:[#allocation13 + $0x120] sm:$0xff]
      %v1230 = vld [vmem:[#allocation13 + $0x128] sm:$0xff]
      %v1231 = vld [vmem:[#allocation13 + $0x130] sm:$0xff]
      %v1232 = vld [vmem:[#allocation13 + $0x138] sm:$0xff]
      %v1233 = vld [vmem:[#allocation13 + $0x140] sm:$0xff]
      %v1234 = vld [vmem:[#allocation13 + $0x148] sm:$0xff]
      %v1235 = vld [vmem:[#allocation13 + $0x150] sm:$0xff]
      %v1236 = vld [vmem:[#allocation13 + $0x158] sm:$0xff]
      %v1237 = vld [vmem:[#allocation13 + $0x160] sm:$0xff]
      %v1238 = vld [vmem:[#allocation13 + $0x168] sm:$0xff]
      %v1239 = vld [vmem:[#allocation13 + $0x170] sm:$0xff]
      %v1240 = vld [vmem:[#allocation13 + $0x178] sm:$0xff]
      %v1241 = vld [vmem:[#allocation13 + $0x180] sm:$0xff]
      %v1242 = vld [vmem:[#allocation13 + $0x188] sm:$0xff]
      %v1243 = vld [vmem:[#allocation13 + $0x190] sm:$0xff]
      %v1244 = vld [vmem:[#allocation13 + $0x198] sm:$0xff]
      %v1245 = vld [vmem:[#allocation13 + $0x1a0] sm:$0xff]
      %v1246 = vld [vmem:[#allocation13 + $0x1a8] sm:$0xff]
      %v1247 = vld [vmem:[#allocation13 + $0x1b0] sm:$0xff]
      %v1248 = vld [vmem:[#allocation13 + $0x1b8] sm:$0xff]
      %v1249 = vld [vmem:[#allocation13 + $0x1c0] sm:$0xff]
      %v1250 = vld [vmem:[#allocation13 + $0x1c8] sm:$0xff]
      %v1251 = vld [vmem:[#allocation13 + $0x1d0] sm:$0xff]
      %v1252 = vld [vmem:[#allocation13 + $0x1d8] sm:$0xff]
      %v1253 = vld [vmem:[#allocation13 + $0x1e0] sm:$0xff]
      %v1254 = vld [vmem:[#allocation13 + $0x1e8] sm:$0xff]
      %v1255 = vld [vmem:[#allocation13 + $0x1f0] sm:$0xff]
      %v1256 = vld [vmem:[#allocation13 + $0x1f8] sm:$0xff]
      %1257 = vmatprep.subr.mxu0 %v1254
      %1258 = vmatpush1.msra.mxu0 %v1253
      %1259 = vmatprep.subr.mxu0 %v1250
      %1260 = vmatpush1.msra.mxu0 %v1249
      %1261 = vmatprep.subr.mxu0 %v1246
      %1262 = vmatpush1.msra.mxu0 %v1245
      %1263 = vmatprep.subr.mxu0 %v1242
      %1264 = vmatpush1.msra.mxu0 %v1241
      %1265 = vmatprep.subr.mxu0 %v1238
      %1266 = vmatpush1.msra.mxu0 %v1237
      %1267 = vmatprep.subr.mxu0 %v1234
      %1268 = vmatpush1.msra.mxu0 %v1233
      %1269 = vmatprep.subr.mxu0 %v1230
      %1270 = vmatpush1.msra.mxu0 %v1229
      %1271 = vmatprep.subr.mxu0 %v1226
      %1272 = vmatpush1.msra.mxu0 %v1225
      %1273 = vmatprep.subr.mxu0 %v1222
      %1274 = vmatpush1.msra.mxu0 %v1221
      %1275 = vmatprep.subr.mxu0 %v1218
      %1276 = vmatpush1.msra.mxu0 %v1217
      %1277 = vmatprep.subr.mxu0 %v1214
      %1278 = vmatpush1.msra.mxu0 %v1213
      %1279 = vmatprep.subr.mxu0 %v1210
      %1280 = vmatpush1.msra.mxu0 %v1209
      %1281 = vmatprep.subr.mxu0 %v1206
      %1282 = vmatpush1.msra.mxu0 %v1205
      %1283 = vmatprep.subr.mxu0 %v1202
      %1284 = vmatpush1.msra.mxu0 %v1201
      %1285 = vmatprep.subr.mxu0 %v1198
      %1286 = vmatpush1.msra.mxu0 %v1197
      %1287 = vmatprep.subr.mxu0 %v1194
      %1288 = vmatpush1.msra.mxu0 %v1193
      %1289 = vmatprep.subr.mxu0 0.0
      %1290 = vmatpush2.msra.mxu0 0.0
      %1291 = vmatprep.subr.mxu0 0.0
      %1292 = vmatpush2.msra.mxu0 0.0
      %1293 = vmatprep.subr.mxu0 0.0
      %1294 = vmatpush2.msra.mxu0 0.0
      %1295 = vmatprep.subr.mxu0 0.0
      %1296 = vmatpush2.msra.mxu0 0.0
      %1297 = vmatprep.subr.mxu0 0.0
      %1298 = vmatpush2.msra.mxu0 0.0
      %1299 = vmatprep.subr.mxu0 0.0
      %1300 = vmatpush2.msra.mxu0 0.0
      %1301 = vmatprep.subr.mxu0 0.0
      %1302 = vmatpush2.msra.mxu0 0.0
      %1303 = vmatprep.subr.mxu0 0.0
      %1304 = vmatpush2.msra.mxu0 0.0
      %1305 = vmatprep.subr.mxu0 0.0
      %1306 = vmatpush2.msra.mxu0 0.0
      %1307 = vmatprep.subr.mxu0 0.0
      %1308 = vmatpush2.msra.mxu0 0.0
      %1309 = vmatprep.subr.mxu0 0.0
      %1310 = vmatpush2.msra.mxu0 0.0
      %1311 = vmatprep.subr.mxu0 0.0
      %1312 = vmatpush2.msra.mxu0 0.0
      %1313 = vmatprep.subr.mxu0 0.0
      %1314 = vmatpush2.msra.mxu0 0.0
      %1315 = vmatprep.subr.mxu0 0.0
      %1316 = vmatpush2.msra.mxu0 0.0
      %1317 = vmatprep.subr.mxu0 0.0
      %1318 = vmatpush2.msra.mxu0 0.0
      %1319 = vmatprep.subr.mxu0 0.0
      %1320 = vmatpush2.msra.mxu0 0.0
      %1321 = vmatprep.mubr.f32.mxu0 0.0
      %1322 = vmatmul.mubr.f32.gmra.mxu0 %v1180
      %v1323 = vpop.f32.mrf.mxu0
      %v1324 = vadd.f32 0.0, %v1323
      %v1325 = vpop.f32.mrf.mxu0
      %v1326 = vadd.f32 0.0, %v1325
      %1327 = vmatprep.mubr.f32.mxu0 0.0
      %1328 = vmatmul.mubr.f32.gmra.mxu0 %v1181
      %v1329 = vpop.f32.mrf.mxu0
      %v1330 = vadd.f32 0.0, %v1329
      %v1331 = vpop.f32.mrf.mxu0
      %v1332 = vadd.f32 0.0, %v1331
      %1333 = vdwg.mxu0
      %1334 = vmatprep.subr.mxu0 %v1256
      %1335 = vmatpush1.msra.mxu0 %v1255
      %1336 = vmatprep.subr.mxu0 %v1252
      %1337 = vmatpush1.msra.mxu0 %v1251
      %1338 = vmatprep.subr.mxu0 %v1248
      %1339 = vmatpush1.msra.mxu0 %v1247
      %1340 = vmatprep.subr.mxu0 %v1244
      %1341 = vmatpush1.msra.mxu0 %v1243
      %1342 = vmatprep.subr.mxu0 %v1240
      %1343 = vmatpush1.msra.mxu0 %v1239
      %1344 = vmatprep.subr.mxu0 %v1236
      %1345 = vmatpush1.msra.mxu0 %v1235
      %1346 = vmatprep.subr.mxu0 %v1232
      %1347 = vmatpush1.msra.mxu0 %v1231
      %1348 = vmatprep.subr.mxu0 %v1228
      %1349 = vmatpush1.msra.mxu0 %v1227
      %1350 = vmatprep.subr.mxu0 %v1224
      %1351 = vmatpush1.msra.mxu0 %v1223
      %1352 = vmatprep.subr.mxu0 %v1220
      %1353 = vmatpush1.msra.mxu0 %v1219
      %1354 = vmatprep.subr.mxu0 %v1216
      %1355 = vmatpush1.msra.mxu0 %v1215
      %1356 = vmatprep.subr.mxu0 %v1212
      %1357 = vmatpush1.msra.mxu0 %v1211
      %1358 = vmatprep.subr.mxu0 %v1208
      %1359 = vmatpush1.msra.mxu0 %v1207
      %1360 = vmatprep.subr.mxu0 %v1204
      %1361 = vmatpush1.msra.mxu0 %v1203
      %1362 = vmatprep.subr.mxu0 %v1200
      %1363 = vmatpush1.msra.mxu0 %v1199
      %1364 = vmatprep.subr.mxu0 %v1196
      %1365 = vmatpush1.msra.mxu0 %v1195
      %1366 = vmatprep.subr.mxu0 0.0
      %1367 = vmatpush2.msra.mxu0 0.0
      %1368 = vmatprep.subr.mxu0 0.0
      %1369 = vmatpush2.msra.mxu0 0.0
      %1370 = vmatprep.subr.mxu0 0.0
      %1371 = vmatpush2.msra.mxu0 0.0
      %1372 = vmatprep.subr.mxu0 0.0
      %1373 = vmatpush2.msra.mxu0 0.0
      %1374 = vmatprep.subr.mxu0 0.0
      %1375 = vmatpush2.msra.mxu0 0.0
      %1376 = vmatprep.subr.mxu0 0.0
      %1377 = vmatpush2.msra.mxu0 0.0
      %1378 = vmatprep.subr.mxu0 0.0
      %1379 = vmatpush2.msra.mxu0 0.0
      %1380 = vmatprep.subr.mxu0 0.0
      %1381 = vmatpush2.msra.mxu0 0.0
      %1382 = vmatprep.subr.mxu0 0.0
      %1383 = vmatpush2.msra.mxu0 0.0
      %1384 = vmatprep.subr.mxu0 0.0
      %1385 = vmatpush2.msra.mxu0 0.0
      %1386 = vmatprep.subr.mxu0 0.0
      %1387 = vmatpush2.msra.mxu0 0.0
      %1388 = vmatprep.subr.mxu0 0.0
      %1389 = vmatpush2.msra.mxu0 0.0
      %1390 = vmatprep.subr.mxu0 0.0
      %1391 = vmatpush2.msra.mxu0 0.0
      %1392 = vmatprep.subr.mxu0 0.0
      %1393 = vmatpush2.msra.mxu0 0.0
      %1394 = vmatprep.subr.mxu0 0.0
      %1395 = vmatpush2.msra.mxu0 0.0
      %1396 = vmatprep.subr.mxu0 0.0
      %1397 = vmatpush2.msra.mxu0 0.0
      %1398 = vmatprep.mubr.f32.mxu0 0.0
      %1399 = vmatmul.mubr.f32.gmra.mxu0 %v1180
      %v1400 = vpop.f32.mrf.mxu0
      %v1401 = vadd.f32 0.0, %v1400
      %v1402 = vpop.f32.mrf.mxu0
      %v1403 = vadd.f32 0.0, %v1402
      %1404 = vmatprep.mubr.f32.mxu0 0.0
      %1405 = vmatmul.mubr.f32.gmra.mxu0 %v1181
      %v1406 = vpop.f32.mrf.mxu0
      %v1407 = vadd.f32 0.0, %v1406
      %v1408 = vpop.f32.mrf.mxu0
      %v1409 = vadd.f32 0.0, %v1408
      %1410 = vdwg.mxu0
      %v1411 = vadd.f32 %v1185, %v1324
      %v1412 = vadd.f32 %v1186, %v1326
      %v1413 = vadd.f32 %v1187, %v1401
      %v1414 = vadd.f32 %v1188, %v1403
      %v1415 = vadd.f32 %v1189, %v1330
      %v1416 = vadd.f32 %v1190, %v1332
      %v1417 = vadd.f32 %v1191, %v1407
      %v1418 = vadd.f32 %v1192, %v1409
      %v1419 = vxor.u32 %v1411, 2147483648
      %v1420 = vxor.u32 %v1412, 2147483648
      %v1421 = vxor.u32 %v1413, 2147483648
      %v1422 = vxor.u32 %v1415, 2147483648
      %v1423 = vxor.u32 %v1416, 2147483648
      %v1424 = vxor.u32 %v1417, 2147483648
      %v1425 = vmul.f32 %v1419, 1.442695
      %v1426 = vpow.pop %v1425
      %v1427 = vmul.f32 %v1420, 1.442695
      %v1428 = vpow.pop %v1427
      %v1429 = vmul.f32 %v1421, 1.442695
      %v1430 = vpow.pop %v1429
      %v1431 = vmul.f32 %v1422, 1.442695
      %v1432 = vpow.pop %v1431
      %v1433 = vmul.f32 %v1423, 1.442695
      %v1434 = vpow.pop %v1433
      %v1435 = vmul.f32 %v1424, 1.442695
      %v1436 = vpow.pop %v1435
      %v1437 = vadd.f32 %v1426, 1.0
      %v1438 = vadd.f32 %v1428, 1.0
      %v1439 = vadd.f32 %v1430, 1.0
      %v1440 = vadd.f32 %v1432, 1.0
      %v1441 = vadd.f32 %v1434, 1.0
      %v1442 = vadd.f32 %v1436, 1.0
      %v1443 = vrcp.pop %v1437
      %v1444 = vmul.f32 1.0, %v1443
      %v1445 = vrcp.pop %v1438
      %v1446 = vmul.f32 1.0, %v1445
      %v1447 = vrcp.pop %v1439
      %v1448 = vmul.f32 1.0, %v1447
      %v1449 = vrcp.pop %v1440
      %v1450 = vmul.f32 1.0, %v1449
      %v1451 = vrcp.pop %v1441
      %v1452 = vmul.f32 1.0, %v1451
      %v1453 = vrcp.pop %v1442
      %v1454 = vmul.f32 1.0, %v1453
      %v1455 = vtanh.pop %v1414
      %v1456 = vtanh.pop %v1418
      %v1457 = vmul.f32 %v1446, %v1182
      %v1458 = vmul.f32 %v1452, %v1183
      %v1459 = vmul.f32 %v1444, %v1455
      %v1460 = vmul.f32 %v1450, %v1456
      %v1461 = vadd.f32 %v1457, %v1459
      %v1462 = vadd.f32 %v1458, %v1460
      %v1463 = vtanh.pop %v1461
      %v1464 = vtanh.pop %v1462
      %v1465 = vmul.f32 %v1448, %v1463
      %v1466 = vmul.f32 %v1454, %v1464
      %1467 = vst [vmem:[#allocation3] sm:$0xff] %v1465
      %1468 = vst [vmem:[#allocation3 + $0x8] sm:$0xff] %v1466
      %1469 = vst [vmem:[#allocation4] sm:$0xff] %v1461
      %1470 = vst [vmem:[#allocation4 + $0x8] sm:$0xff] %v1462
      %s1471 = scalar_lea.vmem [#allocation14], 32
      %1472 = vst [vmem:[%s1471] sm:$0xff] %v1465
      %1473 = vst [vmem:[%s1471 + $0x8] sm:$0xff] %v1466
      %v1474 = vld [vmem:[#allocation3] sm:$0xff]
      %v1475 = vld [vmem:[#allocation3 + $0x8] sm:$0xff]
      %v1476 = vld [vmem:[#allocation4] sm:$0xff]
      %v1477 = vld [vmem:[#allocation4 + $0x8] sm:$0xff]
      %s1478 = scalar_lea.vmem [#allocation2], 192
      %v1479 = vld [vmem:[%s1478] sm:$0xff]
      %v1480 = vld [vmem:[%s1478 + $0x8] sm:$0xff]
      %v1481 = vld [vmem:[%s1478 + $0x10] sm:$0xff]
      %v1482 = vld [vmem:[%s1478 + $0x18] sm:$0xff]
      %v1483 = vld [vmem:[%s1478 + $0x20] sm:$0xff]
      %v1484 = vld [vmem:[%s1478 + $0x28] sm:$0xff]
      %v1485 = vld [vmem:[%s1478 + $0x30] sm:$0xff]
      %v1486 = vld [vmem:[%s1478 + $0x38] sm:$0xff]
      %v1487 = vld [vmem:[#allocation13] sm:$0xff]
      %v1488 = vld [vmem:[#allocation13 + $0x8] sm:$0xff]
      %v1489 = vld [vmem:[#allocation13 + $0x10] sm:$0xff]
      %v1490 = vld [vmem:[#allocation13 + $0x18] sm:$0xff]
      %v1491 = vld [vmem:[#allocation13 + $0x20] sm:$0xff]
      %v1492 = vld [vmem:[#allocation13 + $0x28] sm:$0xff]
      %v1493 = vld [vmem:[#allocation13 + $0x30] sm:$0xff]
      %v1494 = vld [vmem:[#allocation13 + $0x38] sm:$0xff]
      %v1495 = vld [vmem:[#allocation13 + $0x40] sm:$0xff]
      %v1496 = vld [vmem:[#allocation13 + $0x48] sm:$0xff]
      %v1497 = vld [vmem:[#allocation13 + $0x50] sm:$0xff]
      %v1498 = vld [vmem:[#allocation13 + $0x58] sm:$0xff]
      %v1499 = vld [vmem:[#allocation13 + $0x60] sm:$0xff]
      %v1500 = vld [vmem:[#allocation13 + $0x68] sm:$0xff]
      %v1501 = vld [vmem:[#allocation13 + $0x70] sm:$0xff]
      %v1502 = vld [vmem:[#allocation13 + $0x78] sm:$0xff]
      %v1503 = vld [vmem:[#allocation13 + $0x80] sm:$0xff]
      %v1504 = vld [vmem:[#allocation13 + $0x88] sm:$0xff]
      %v1505 = vld [vmem:[#allocation13 + $0x90] sm:$0xff]
      %v1506 = vld [vmem:[#allocation13 + $0x98] sm:$0xff]
      %v1507 = vld [vmem:[#allocation13 + $0xa0] sm:$0xff]
      %v1508 = vld [vmem:[#allocation13 + $0xa8] sm:$0xff]
      %v1509 = vld [vmem:[#allocation13 + $0xb0] sm:$0xff]
      %v1510 = vld [vmem:[#allocation13 + $0xb8] sm:$0xff]
      %v1511 = vld [vmem:[#allocation13 + $0xc0] sm:$0xff]
      %v1512 = vld [vmem:[#allocation13 + $0xc8] sm:$0xff]
      %v1513 = vld [vmem:[#allocation13 + $0xd0] sm:$0xff]
      %v1514 = vld [vmem:[#allocation13 + $0xd8] sm:$0xff]
      %v1515 = vld [vmem:[#allocation13 + $0xe0] sm:$0xff]
      %v1516 = vld [vmem:[#allocation13 + $0xe8] sm:$0xff]
      %v1517 = vld [vmem:[#allocation13 + $0xf0] sm:$0xff]
      %v1518 = vld [vmem:[#allocation13 + $0xf8] sm:$0xff]
      %v1519 = vld [vmem:[#allocation13 + $0x100] sm:$0xff]
      %v1520 = vld [vmem:[#allocation13 + $0x108] sm:$0xff]
      %v1521 = vld [vmem:[#allocation13 + $0x110] sm:$0xff]
      %v1522 = vld [vmem:[#allocation13 + $0x118] sm:$0xff]
      %v1523 = vld [vmem:[#allocation13 + $0x120] sm:$0xff]
      %v1524 = vld [vmem:[#allocation13 + $0x128] sm:$0xff]
      %v1525 = vld [vmem:[#allocation13 + $0x130] sm:$0xff]
      %v1526 = vld [vmem:[#allocation13 + $0x138] sm:$0xff]
      %v1527 = vld [vmem:[#allocation13 + $0x140] sm:$0xff]
      %v1528 = vld [vmem:[#allocation13 + $0x148] sm:$0xff]
      %v1529 = vld [vmem:[#allocation13 + $0x150] sm:$0xff]
      %v1530 = vld [vmem:[#allocation13 + $0x158] sm:$0xff]
      %v1531 = vld [vmem:[#allocation13 + $0x160] sm:$0xff]
      %v1532 = vld [vmem:[#allocation13 + $0x168] sm:$0xff]
      %v1533 = vld [vmem:[#allocation13 + $0x170] sm:$0xff]
      %v1534 = vld [vmem:[#allocation13 + $0x178] sm:$0xff]
      %v1535 = vld [vmem:[#allocation13 + $0x180] sm:$0xff]
      %v1536 = vld [vmem:[#allocation13 + $0x188] sm:$0xff]
      %v1537 = vld [vmem:[#allocation13 + $0x190] sm:$0xff]
      %v1538 = vld [vmem:[#allocation13 + $0x198] sm:$0xff]
      %v1539 = vld [vmem:[#allocation13 + $0x1a0] sm:$0xff]
      %v1540 = vld [vmem:[#allocation13 + $0x1a8] sm:$0xff]
      %v1541 = vld [vmem:[#allocation13 + $0x1b0] sm:$0xff]
      %v1542 = vld [vmem:[#allocation13 + $0x1b8] sm:$0xff]
      %v1543 = vld [vmem:[#allocation13 + $0x1c0] sm:$0xff]
      %v1544 = vld [vmem:[#allocation13 + $0x1c8] sm:$0xff]
      %v1545 = vld [vmem:[#allocation13 + $0x1d0] sm:$0xff]
      %v1546 = vld [vmem:[#allocation13 + $0x1d8] sm:$0xff]
      %v1547 = vld [vmem:[#allocation13 + $0x1e0] sm:$0xff]
      %v1548 = vld [vmem:[#allocation13 + $0x1e8] sm:$0xff]
      %v1549 = vld [vmem:[#allocation13 + $0x1f0] sm:$0xff]
      %v1550 = vld [vmem:[#allocation13 + $0x1f8] sm:$0xff]
      %1551 = vmatprep.subr.mxu0 %v1548
      %1552 = vmatpush1.msra.mxu0 %v1547
      %1553 = vmatprep.subr.mxu0 %v1544
      %1554 = vmatpush1.msra.mxu0 %v1543
      %1555 = vmatprep.subr.mxu0 %v1540
      %1556 = vmatpush1.msra.mxu0 %v1539
      %1557 = vmatprep.subr.mxu0 %v1536
      %1558 = vmatpush1.msra.mxu0 %v1535
      %1559 = vmatprep.subr.mxu0 %v1532
      %1560 = vmatpush1.msra.mxu0 %v1531
      %1561 = vmatprep.subr.mxu0 %v1528
      %1562 = vmatpush1.msra.mxu0 %v1527
      %1563 = vmatprep.subr.mxu0 %v1524
      %1564 = vmatpush1.msra.mxu0 %v1523
      %1565 = vmatprep.subr.mxu0 %v1520
      %1566 = vmatpush1.msra.mxu0 %v1519
      %1567 = vmatprep.subr.mxu0 %v1516
      %1568 = vmatpush1.msra.mxu0 %v1515
      %1569 = vmatprep.subr.mxu0 %v1512
      %1570 = vmatpush1.msra.mxu0 %v1511
      %1571 = vmatprep.subr.mxu0 %v1508
      %1572 = vmatpush1.msra.mxu0 %v1507
      %1573 = vmatprep.subr.mxu0 %v1504
      %1574 = vmatpush1.msra.mxu0 %v1503
      %1575 = vmatprep.subr.mxu0 %v1500
      %1576 = vmatpush1.msra.mxu0 %v1499
      %1577 = vmatprep.subr.mxu0 %v1496
      %1578 = vmatpush1.msra.mxu0 %v1495
      %1579 = vmatprep.subr.mxu0 %v1492
      %1580 = vmatpush1.msra.mxu0 %v1491
      %1581 = vmatprep.subr.mxu0 %v1488
      %1582 = vmatpush1.msra.mxu0 %v1487
      %1583 = vmatprep.subr.mxu0 0.0
      %1584 = vmatpush2.msra.mxu0 0.0
      %1585 = vmatprep.subr.mxu0 0.0
      %1586 = vmatpush2.msra.mxu0 0.0
      %1587 = vmatprep.subr.mxu0 0.0
      %1588 = vmatpush2.msra.mxu0 0.0
      %1589 = vmatprep.subr.mxu0 0.0
      %1590 = vmatpush2.msra.mxu0 0.0
      %1591 = vmatprep.subr.mxu0 0.0
      %1592 = vmatpush2.msra.mxu0 0.0
      %1593 = vmatprep.subr.mxu0 0.0
      %1594 = vmatpush2.msra.mxu0 0.0
      %1595 = vmatprep.subr.mxu0 0.0
      %1596 = vmatpush2.msra.mxu0 0.0
      %1597 = vmatprep.subr.mxu0 0.0
      %1598 = vmatpush2.msra.mxu0 0.0
      %1599 = vmatprep.subr.mxu0 0.0
      %1600 = vmatpush2.msra.mxu0 0.0
      %1601 = vmatprep.subr.mxu0 0.0
      %1602 = vmatpush2.msra.mxu0 0.0
      %1603 = vmatprep.subr.mxu0 0.0
      %1604 = vmatpush2.msra.mxu0 0.0
      %1605 = vmatprep.subr.mxu0 0.0
      %1606 = vmatpush2.msra.mxu0 0.0
      %1607 = vmatprep.subr.mxu0 0.0
      %1608 = vmatpush2.msra.mxu0 0.0
      %1609 = vmatprep.subr.mxu0 0.0
      %1610 = vmatpush2.msra.mxu0 0.0
      %1611 = vmatprep.subr.mxu0 0.0
      %1612 = vmatpush2.msra.mxu0 0.0
      %1613 = vmatprep.subr.mxu0 0.0
      %1614 = vmatpush2.msra.mxu0 0.0
      %1615 = vmatprep.mubr.f32.mxu0 0.0
      %1616 = vmatmul.mubr.f32.gmra.mxu0 %v1474
      %v1617 = vpop.f32.mrf.mxu0
      %v1618 = vadd.f32 0.0, %v1617
      %v1619 = vpop.f32.mrf.mxu0
      %v1620 = vadd.f32 0.0, %v1619
      %1621 = vmatprep.mubr.f32.mxu0 0.0
      %1622 = vmatmul.mubr.f32.gmra.mxu0 %v1475
      %v1623 = vpop.f32.mrf.mxu0
      %v1624 = vadd.f32 0.0, %v1623
      %v1625 = vpop.f32.mrf.mxu0
      %v1626 = vadd.f32 0.0, %v1625
      %1627 = vdwg.mxu0
      %1628 = vmatprep.subr.mxu0 %v1550
      %1629 = vmatpush1.msra.mxu0 %v1549
      %1630 = vmatprep.subr.mxu0 %v1546
      %1631 = vmatpush1.msra.mxu0 %v1545
      %1632 = vmatprep.subr.mxu0 %v1542
      %1633 = vmatpush1.msra.mxu0 %v1541
      %1634 = vmatprep.subr.mxu0 %v1538
      %1635 = vmatpush1.msra.mxu0 %v1537
      %1636 = vmatprep.subr.mxu0 %v1534
      %1637 = vmatpush1.msra.mxu0 %v1533
      %1638 = vmatprep.subr.mxu0 %v1530
      %1639 = vmatpush1.msra.mxu0 %v1529
      %1640 = vmatprep.subr.mxu0 %v1526
      %1641 = vmatpush1.msra.mxu0 %v1525
      %1642 = vmatprep.subr.mxu0 %v1522
      %1643 = vmatpush1.msra.mxu0 %v1521
      %1644 = vmatprep.subr.mxu0 %v1518
      %1645 = vmatpush1.msra.mxu0 %v1517
      %1646 = vmatprep.subr.mxu0 %v1514
      %1647 = vmatpush1.msra.mxu0 %v1513
      %1648 = vmatprep.subr.mxu0 %v1510
      %1649 = vmatpush1.msra.mxu0 %v1509
      %1650 = vmatprep.subr.mxu0 %v1506
      %1651 = vmatpush1.msra.mxu0 %v1505
      %1652 = vmatprep.subr.mxu0 %v1502
      %1653 = vmatpush1.msra.mxu0 %v1501
      %1654 = vmatprep.subr.mxu0 %v1498
      %1655 = vmatpush1.msra.mxu0 %v1497
      %1656 = vmatprep.subr.mxu0 %v1494
      %1657 = vmatpush1.msra.mxu0 %v1493
      %1658 = vmatprep.subr.mxu0 %v1490
      %1659 = vmatpush1.msra.mxu0 %v1489
      %1660 = vmatprep.subr.mxu0 0.0
      %1661 = vmatpush2.msra.mxu0 0.0
      %1662 = vmatprep.subr.mxu0 0.0
      %1663 = vmatpush2.msra.mxu0 0.0
      %1664 = vmatprep.subr.mxu0 0.0
      %1665 = vmatpush2.msra.mxu0 0.0
      %1666 = vmatprep.subr.mxu0 0.0
      %1667 = vmatpush2.msra.mxu0 0.0
      %1668 = vmatprep.subr.mxu0 0.0
      %1669 = vmatpush2.msra.mxu0 0.0
      %1670 = vmatprep.subr.mxu0 0.0
      %1671 = vmatpush2.msra.mxu0 0.0
      %1672 = vmatprep.subr.mxu0 0.0
      %1673 = vmatpush2.msra.mxu0 0.0
      %1674 = vmatprep.subr.mxu0 0.0
      %1675 = vmatpush2.msra.mxu0 0.0
      %1676 = vmatprep.subr.mxu0 0.0
      %1677 = vmatpush2.msra.mxu0 0.0
      %1678 = vmatprep.subr.mxu0 0.0
      %1679 = vmatpush2.msra.mxu0 0.0
      %1680 = vmatprep.subr.mxu0 0.0
      %1681 = vmatpush2.msra.mxu0 0.0
      %1682 = vmatprep.subr.mxu0 0.0
      %1683 = vmatpush2.msra.mxu0 0.0
      %1684 = vmatprep.subr.mxu0 0.0
      %1685 = vmatpush2.msra.mxu0 0.0
      %1686 = vmatprep.subr.mxu0 0.0
      %1687 = vmatpush2.msra.mxu0 0.0
      %1688 = vmatprep.subr.mxu0 0.0
      %1689 = vmatpush2.msra.mxu0 0.0
      %1690 = vmatprep.subr.mxu0 0.0
      %1691 = vmatpush2.msra.mxu0 0.0
      %1692 = vmatprep.mubr.f32.mxu0 0.0
      %1693 = vmatmul.mubr.f32.gmra.mxu0 %v1474
      %v1694 = vpop.f32.mrf.mxu0
      %v1695 = vadd.f32 0.0, %v1694
      %v1696 = vpop.f32.mrf.mxu0
      %v1697 = vadd.f32 0.0, %v1696
      %1698 = vmatprep.mubr.f32.mxu0 0.0
      %1699 = vmatmul.mubr.f32.gmra.mxu0 %v1475
      %v1700 = vpop.f32.mrf.mxu0
      %v1701 = vadd.f32 0.0, %v1700
      %v1702 = vpop.f32.mrf.mxu0
      %v1703 = vadd.f32 0.0, %v1702
      %1704 = vdwg.mxu0
      %v1705 = vadd.f32 %v1479, %v1618
      %v1706 = vadd.f32 %v1480, %v1620
      %v1707 = vadd.f32 %v1481, %v1695
      %v1708 = vadd.f32 %v1482, %v1697
      %v1709 = vadd.f32 %v1483, %v1624
      %v1710 = vadd.f32 %v1484, %v1626
      %v1711 = vadd.f32 %v1485, %v1701
      %v1712 = vadd.f32 %v1486, %v1703
      %v1713 = vxor.u32 %v1705, 2147483648
      %v1714 = vxor.u32 %v1706, 2147483648
      %v1715 = vxor.u32 %v1707, 2147483648
      %v1716 = vxor.u32 %v1709, 2147483648
      %v1717 = vxor.u32 %v1710, 2147483648
      %v1718 = vxor.u32 %v1711, 2147483648
      %v1719 = vmul.f32 %v1713, 1.442695
      %v1720 = vpow.pop %v1719
      %v1721 = vmul.f32 %v1714, 1.442695
      %v1722 = vpow.pop %v1721
      %v1723 = vmul.f32 %v1715, 1.442695
      %v1724 = vpow.pop %v1723
      %v1725 = vmul.f32 %v1716, 1.442695
      %v1726 = vpow.pop %v1725
      %v1727 = vmul.f32 %v1717, 1.442695
      %v1728 = vpow.pop %v1727
      %v1729 = vmul.f32 %v1718, 1.442695
      %v1730 = vpow.pop %v1729
      %v1731 = vadd.f32 %v1720, 1.0
      %v1732 = vadd.f32 %v1722, 1.0
      %v1733 = vadd.f32 %v1724, 1.0
      %v1734 = vadd.f32 %v1726, 1.0
      %v1735 = vadd.f32 %v1728, 1.0
      %v1736 = vadd.f32 %v1730, 1.0
      %v1737 = vrcp.pop %v1731
      %v1738 = vmul.f32 1.0, %v1737
      %v1739 = vrcp.pop %v1732
      %v1740 = vmul.f32 1.0, %v1739
      %v1741 = vrcp.pop %v1733
      %v1742 = vmul.f32 1.0, %v1741
      %v1743 = vrcp.pop %v1734
      %v1744 = vmul.f32 1.0, %v1743
      %v1745 = vrcp.pop %v1735
      %v1746 = vmul.f32 1.0, %v1745
      %v1747 = vrcp.pop %v1736
      %v1748 = vmul.f32 1.0, %v1747
      %v1749 = vtanh.pop %v1708
      %v1750 = vtanh.pop %v1712
      %v1751 = vmul.f32 %v1740, %v1476
      %v1752 = vmul.f32 %v1746, %v1477
      %v1753 = vmul.f32 %v1738, %v1749
      %v1754 = vmul.f32 %v1744, %v1750
      %v1755 = vadd.f32 %v1751, %v1753
      %v1756 = vadd.f32 %v1752, %v1754
      %v1757 = vtanh.pop %v1755
      %v1758 = vtanh.pop %v1756
      %v1759 = vmul.f32 %v1742, %v1757
      %v1760 = vmul.f32 %v1748, %v1758
      %1761 = vst [vmem:[#allocation3] sm:$0xff] %v1759
      %1762 = vst [vmem:[#allocation3 + $0x8] sm:$0xff] %v1760
      %1763 = vst [vmem:[#allocation4] sm:$0xff] %v1755
      %1764 = vst [vmem:[#allocation4 + $0x8] sm:$0xff] %v1756
      %s1765 = scalar_lea.vmem [#allocation14], 48
      %1766 = vst [vmem:[%s1765] sm:$0xff] %v1759
      %1767 = vst [vmem:[%s1765 + $0x8] sm:$0xff] %v1760
      %v1768 = vld [vmem:[#allocation3] sm:$0xff]
      %v1769 = vld [vmem:[#allocation3 + $0x8] sm:$0xff]
      %v1770 = vld [vmem:[#allocation4] sm:$0xff]
      %v1771 = vld [vmem:[#allocation4 + $0x8] sm:$0xff]
      %s1772 = scalar_lea.vmem [#allocation2], 256
      %v1773 = vld [vmem:[%s1772] sm:$0xff]
      %v1774 = vld [vmem:[%s1772 + $0x8] sm:$0xff]
      %v1775 = vld [vmem:[%s1772 + $0x10] sm:$0xff]
      %v1776 = vld [vmem:[%s1772 + $0x18] sm:$0xff]
      %v1777 = vld [vmem:[%s1772 + $0x20] sm:$0xff]
      %v1778 = vld [vmem:[%s1772 + $0x28] sm:$0xff]
      %v1779 = vld [vmem:[%s1772 + $0x30] sm:$0xff]
      %v1780 = vld [vmem:[%s1772 + $0x38] sm:$0xff]
      %v1781 = vld [vmem:[#allocation13] sm:$0xff]
      %v1782 = vld [vmem:[#allocation13 + $0x8] sm:$0xff]
      %v1783 = vld [vmem:[#allocation13 + $0x10] sm:$0xff]
      %v1784 = vld [vmem:[#allocation13 + $0x18] sm:$0xff]
      %v1785 = vld [vmem:[#allocation13 + $0x20] sm:$0xff]
      %v1786 = vld [vmem:[#allocation13 + $0x28] sm:$0xff]
      %v1787 = vld [vmem:[#allocation13 + $0x30] sm:$0xff]
      %v1788 = vld [vmem:[#allocation13 + $0x38] sm:$0xff]
      %v1789 = vld [vmem:[#allocation13 + $0x40] sm:$0xff]
      %v1790 = vld [vmem:[#allocation13 + $0x48] sm:$0xff]
      %v1791 = vld [vmem:[#allocation13 + $0x50] sm:$0xff]
      %v1792 = vld [vmem:[#allocation13 + $0x58] sm:$0xff]
      %v1793 = vld [vmem:[#allocation13 + $0x60] sm:$0xff]
      %v1794 = vld [vmem:[#allocation13 + $0x68] sm:$0xff]
      %v1795 = vld [vmem:[#allocation13 + $0x70] sm:$0xff]
      %v1796 = vld [vmem:[#allocation13 + $0x78] sm:$0xff]
      %v1797 = vld [vmem:[#allocation13 + $0x80] sm:$0xff]
      %v1798 = vld [vmem:[#allocation13 + $0x88] sm:$0xff]
      %v1799 = vld [vmem:[#allocation13 + $0x90] sm:$0xff]
      %v1800 = vld [vmem:[#allocation13 + $0x98] sm:$0xff]
      %v1801 = vld [vmem:[#allocation13 + $0xa0] sm:$0xff]
      %v1802 = vld [vmem:[#allocation13 + $0xa8] sm:$0xff]
      %v1803 = vld [vmem:[#allocation13 + $0xb0] sm:$0xff]
      %v1804 = vld [vmem:[#allocation13 + $0xb8] sm:$0xff]
      %v1805 = vld [vmem:[#allocation13 + $0xc0] sm:$0xff]
      %v1806 = vld [vmem:[#allocation13 + $0xc8] sm:$0xff]
      %v1807 = vld [vmem:[#allocation13 + $0xd0] sm:$0xff]
      %v1808 = vld [vmem:[#allocation13 + $0xd8] sm:$0xff]
      %v1809 = vld [vmem:[#allocation13 + $0xe0] sm:$0xff]
      %v1810 = vld [vmem:[#allocation13 + $0xe8] sm:$0xff]
      %v1811 = vld [vmem:[#allocation13 + $0xf0] sm:$0xff]
      %v1812 = vld [vmem:[#allocation13 + $0xf8] sm:$0xff]
      %v1813 = vld [vmem:[#allocation13 + $0x100] sm:$0xff]
      %v1814 = vld [vmem:[#allocation13 + $0x108] sm:$0xff]
      %v1815 = vld [vmem:[#allocation13 + $0x110] sm:$0xff]
      %v1816 = vld [vmem:[#allocation13 + $0x118] sm:$0xff]
      %v1817 = vld [vmem:[#allocation13 + $0x120] sm:$0xff]
      %v1818 = vld [vmem:[#allocation13 + $0x128] sm:$0xff]
      %v1819 = vld [vmem:[#allocation13 + $0x130] sm:$0xff]
      %v1820 = vld [vmem:[#allocation13 + $0x138] sm:$0xff]
      %v1821 = vld [vmem:[#allocation13 + $0x140] sm:$0xff]
      %v1822 = vld [vmem:[#allocation13 + $0x148] sm:$0xff]
      %v1823 = vld [vmem:[#allocation13 + $0x150] sm:$0xff]
      %v1824 = vld [vmem:[#allocation13 + $0x158] sm:$0xff]
      %v1825 = vld [vmem:[#allocation13 + $0x160] sm:$0xff]
      %v1826 = vld [vmem:[#allocation13 + $0x168] sm:$0xff]
      %v1827 = vld [vmem:[#allocation13 + $0x170] sm:$0xff]
      %v1828 = vld [vmem:[#allocation13 + $0x178] sm:$0xff]
      %v1829 = vld [vmem:[#allocation13 + $0x180] sm:$0xff]
      %v1830 = vld [vmem:[#allocation13 + $0x188] sm:$0xff]
      %v1831 = vld [vmem:[#allocation13 + $0x190] sm:$0xff]
      %v1832 = vld [vmem:[#allocation13 + $0x198] sm:$0xff]
      %v1833 = vld [vmem:[#allocation13 + $0x1a0] sm:$0xff]
      %v1834 = vld [vmem:[#allocation13 + $0x1a8] sm:$0xff]
      %v1835 = vld [vmem:[#allocation13 + $0x1b0] sm:$0xff]
      %v1836 = vld [vmem:[#allocation13 + $0x1b8] sm:$0xff]
      %v1837 = vld [vmem:[#allocation13 + $0x1c0] sm:$0xff]
      %v1838 = vld [vmem:[#allocation13 + $0x1c8] sm:$0xff]
      %v1839 = vld [vmem:[#allocation13 + $0x1d0] sm:$0xff]
      %v1840 = vld [vmem:[#allocation13 + $0x1d8] sm:$0xff]
      %v1841 = vld [vmem:[#allocation13 + $0x1e0] sm:$0xff]
      %v1842 = vld [vmem:[#allocation13 + $0x1e8] sm:$0xff]
      %v1843 = vld [vmem:[#allocation13 + $0x1f0] sm:$0xff]
      %v1844 = vld [vmem:[#allocation13 + $0x1f8] sm:$0xff]
      %1845 = vmatprep.subr.mxu0 %v1842
      %1846 = vmatpush1.msra.mxu0 %v1841
      %1847 = vmatprep.subr.mxu0 %v1838
      %1848 = vmatpush1.msra.mxu0 %v1837
      %1849 = vmatprep.subr.mxu0 %v1834
      %1850 = vmatpush1.msra.mxu0 %v1833
      %1851 = vmatprep.subr.mxu0 %v1830
      %1852 = vmatpush1.msra.mxu0 %v1829
      %1853 = vmatprep.subr.mxu0 %v1826
      %1854 = vmatpush1.msra.mxu0 %v1825
      %1855 = vmatprep.subr.mxu0 %v1822
      %1856 = vmatpush1.msra.mxu0 %v1821
      %1857 = vmatprep.subr.mxu0 %v1818
      %1858 = vmatpush1.msra.mxu0 %v1817
      %1859 = vmatprep.subr.mxu0 %v1814
      %1860 = vmatpush1.msra.mxu0 %v1813
      %1861 = vmatprep.subr.mxu0 %v1810
      %1862 = vmatpush1.msra.mxu0 %v1809
      %1863 = vmatprep.subr.mxu0 %v1806
      %1864 = vmatpush1.msra.mxu0 %v1805
      %1865 = vmatprep.subr.mxu0 %v1802
      %1866 = vmatpush1.msra.mxu0 %v1801
      %1867 = vmatprep.subr.mxu0 %v1798
      %1868 = vmatpush1.msra.mxu0 %v1797
      %1869 = vmatprep.subr.mxu0 %v1794
      %1870 = vmatpush1.msra.mxu0 %v1793
      %1871 = vmatprep.subr.mxu0 %v1790
      %1872 = vmatpush1.msra.mxu0 %v1789
      %1873 = vmatprep.subr.mxu0 %v1786
      %1874 = vmatpush1.msra.mxu0 %v1785
      %1875 = vmatprep.subr.mxu0 %v1782
      %1876 = vmatpush1.msra.mxu0 %v1781
      %1877 = vmatprep.subr.mxu0 0.0
      %1878 = vmatpush2.msra.mxu0 0.0
      %1879 = vmatprep.subr.mxu0 0.0
      %1880 = vmatpush2.msra.mxu0 0.0
      %1881 = vmatprep.subr.mxu0 0.0
      %1882 = vmatpush2.msra.mxu0 0.0
      %1883 = vmatprep.subr.mxu0 0.0
      %1884 = vmatpush2.msra.mxu0 0.0
      %1885 = vmatprep.subr.mxu0 0.0
      %1886 = vmatpush2.msra.mxu0 0.0
      %1887 = vmatprep.subr.mxu0 0.0
      %1888 = vmatpush2.msra.mxu0 0.0
      %1889 = vmatprep.subr.mxu0 0.0
      %1890 = vmatpush2.msra.mxu0 0.0
      %1891 = vmatprep.subr.mxu0 0.0
      %1892 = vmatpush2.msra.mxu0 0.0
      %1893 = vmatprep.subr.mxu0 0.0
      %1894 = vmatpush2.msra.mxu0 0.0
      %1895 = vmatprep.subr.mxu0 0.0
      %1896 = vmatpush2.msra.mxu0 0.0
      %1897 = vmatprep.subr.mxu0 0.0
      %1898 = vmatpush2.msra.mxu0 0.0
      %1899 = vmatprep.subr.mxu0 0.0
      %1900 = vmatpush2.msra.mxu0 0.0
      %1901 = vmatprep.subr.mxu0 0.0
      %1902 = vmatpush2.msra.mxu0 0.0
      %1903 = vmatprep.subr.mxu0 0.0
      %1904 = vmatpush2.msra.mxu0 0.0
      %1905 = vmatprep.subr.mxu0 0.0
      %1906 = vmatpush2.msra.mxu0 0.0
      %1907 = vmatprep.subr.mxu0 0.0
      %1908 = vmatpush2.msra.mxu0 0.0
      %1909 = vmatprep.mubr.f32.mxu0 0.0
      %1910 = vmatmul.mubr.f32.gmra.mxu0 %v1768
      %v1911 = vpop.f32.mrf.mxu0
      %v1912 = vadd.f32 0.0, %v1911
      %v1913 = vpop.f32.mrf.mxu0
      %v1914 = vadd.f32 0.0, %v1913
      %1915 = vmatprep.mubr.f32.mxu0 0.0
      %1916 = vmatmul.mubr.f32.gmra.mxu0 %v1769
      %v1917 = vpop.f32.mrf.mxu0
      %v1918 = vadd.f32 0.0, %v1917
      %v1919 = vpop.f32.mrf.mxu0
      %v1920 = vadd.f32 0.0, %v1919
      %1921 = vdwg.mxu0
      %1922 = vmatprep.subr.mxu0 %v1844
      %1923 = vmatpush1.msra.mxu0 %v1843
      %1924 = vmatprep.subr.mxu0 %v1840
      %1925 = vmatpush1.msra.mxu0 %v1839
      %1926 = vmatprep.subr.mxu0 %v1836
      %1927 = vmatpush1.msra.mxu0 %v1835
      %1928 = vmatprep.subr.mxu0 %v1832
      %1929 = vmatpush1.msra.mxu0 %v1831
      %1930 = vmatprep.subr.mxu0 %v1828
      %1931 = vmatpush1.msra.mxu0 %v1827
      %1932 = vmatprep.subr.mxu0 %v1824
      %1933 = vmatpush1.msra.mxu0 %v1823
      %1934 = vmatprep.subr.mxu0 %v1820
      %1935 = vmatpush1.msra.mxu0 %v1819
      %1936 = vmatprep.subr.mxu0 %v1816
      %1937 = vmatpush1.msra.mxu0 %v1815
      %1938 = vmatprep.subr.mxu0 %v1812
      %1939 = vmatpush1.msra.mxu0 %v1811
      %1940 = vmatprep.subr.mxu0 %v1808
      %1941 = vmatpush1.msra.mxu0 %v1807
      %1942 = vmatprep.subr.mxu0 %v1804
      %1943 = vmatpush1.msra.mxu0 %v1803
      %1944 = vmatprep.subr.mxu0 %v1800
      %1945 = vmatpush1.msra.mxu0 %v1799
      %1946 = vmatprep.subr.mxu0 %v1796
      %1947 = vmatpush1.msra.mxu0 %v1795
      %1948 = vmatprep.subr.mxu0 %v1792
      %1949 = vmatpush1.msra.mxu0 %v1791
      %1950 = vmatprep.subr.mxu0 %v1788
      %1951 = vmatpush1.msra.mxu0 %v1787
      %1952 = vmatprep.subr.mxu0 %v1784
      %1953 = vmatpush1.msra.mxu0 %v1783
      %1954 = vmatprep.subr.mxu0 0.0
      %1955 = vmatpush2.msra.mxu0 0.0
      %1956 = vmatprep.subr.mxu0 0.0
      %1957 = vmatpush2.msra.mxu0 0.0
      %1958 = vmatprep.subr.mxu0 0.0
      %1959 = vmatpush2.msra.mxu0 0.0
      %1960 = vmatprep.subr.mxu0 0.0
      %1961 = vmatpush2.msra.mxu0 0.0
      %1962 = vmatprep.subr.mxu0 0.0
      %1963 = vmatpush2.msra.mxu0 0.0
      %1964 = vmatprep.subr.mxu0 0.0
      %1965 = vmatpush2.msra.mxu0 0.0
      %1966 = vmatprep.subr.mxu0 0.0
      %1967 = vmatpush2.msra.mxu0 0.0
      %1968 = vmatprep.subr.mxu0 0.0
      %1969 = vmatpush2.msra.mxu0 0.0
      %1970 = vmatprep.subr.mxu0 0.0
      %1971 = vmatpush2.msra.mxu0 0.0
      %1972 = vmatprep.subr.mxu0 0.0
      %1973 = vmatpush2.msra.mxu0 0.0
      %1974 = vmatprep.subr.mxu0 0.0
      %1975 = vmatpush2.msra.mxu0 0.0
      %1976 = vmatprep.subr.mxu0 0.0
      %1977 = vmatpush2.msra.mxu0 0.0
      %1978 = vmatprep.subr.mxu0 0.0
      %1979 = vmatpush2.msra.mxu0 0.0
      %1980 = vmatprep.subr.mxu0 0.0
      %1981 = vmatpush2.msra.mxu0 0.0
      %1982 = vmatprep.subr.mxu0 0.0
      %1983 = vmatpush2.msra.mxu0 0.0
      %1984 = vmatprep.subr.mxu0 0.0
      %1985 = vmatpush2.msra.mxu0 0.0
      %1986 = vmatprep.mubr.f32.mxu0 0.0
      %1987 = vmatmul.mubr.f32.gmra.mxu0 %v1768
      %v1988 = vpop.f32.mrf.mxu0
      %v1989 = vadd.f32 0.0, %v1988
      %v1990 = vpop.f32.mrf.mxu0
      %v1991 = vadd.f32 0.0, %v1990
      %1992 = vmatprep.mubr.f32.mxu0 0.0
      %1993 = vmatmul.mubr.f32.gmra.mxu0 %v1769
      %v1994 = vpop.f32.mrf.mxu0
      %v1995 = vadd.f32 0.0, %v1994
      %v1996 = vpop.f32.mrf.mxu0
      %v1997 = vadd.f32 0.0, %v1996
      %1998 = vdwg.mxu0
      %v1999 = vadd.f32 %v1773, %v1912
      %v2000 = vadd.f32 %v1774, %v1914
      %v2001 = vadd.f32 %v1775, %v1989
      %v2002 = vadd.f32 %v1776, %v1991
      %v2003 = vadd.f32 %v1777, %v1918
      %v2004 = vadd.f32 %v1778, %v1920
      %v2005 = vadd.f32 %v1779, %v1995
      %v2006 = vadd.f32 %v1780, %v1997
      %v2007 = vxor.u32 %v1999, 2147483648
      %v2008 = vxor.u32 %v2000, 2147483648
      %v2009 = vxor.u32 %v2001, 2147483648
      %v2010 = vxor.u32 %v2003, 2147483648
      %v2011 = vxor.u32 %v2004, 2147483648
      %v2012 = vxor.u32 %v2005, 2147483648
      %v2013 = vmul.f32 %v2007, 1.442695
      %v2014 = vpow.pop %v2013
      %v2015 = vmul.f32 %v2008, 1.442695
      %v2016 = vpow.pop %v2015
      %v2017 = vmul.f32 %v2009, 1.442695
      %v2018 = vpow.pop %v2017
      %v2019 = vmul.f32 %v2010, 1.442695
      %v2020 = vpow.pop %v2019
      %v2021 = vmul.f32 %v2011, 1.442695
      %v2022 = vpow.pop %v2021
      %v2023 = vmul.f32 %v2012, 1.442695
      %v2024 = vpow.pop %v2023
      %v2025 = vadd.f32 %v2014, 1.0
      %v2026 = vadd.f32 %v2016, 1.0
      %v2027 = vadd.f32 %v2018, 1.0
      %v2028 = vadd.f32 %v2020, 1.0
      %v2029 = vadd.f32 %v2022, 1.0
      %v2030 = vadd.f32 %v2024, 1.0
      %v2031 = vrcp.pop %v2025
      %v2032 = vmul.f32 1.0, %v2031
      %v2033 = vrcp.pop %v2026
      %v2034 = vmul.f32 1.0, %v2033
      %v2035 = vrcp.pop %v2027
      %v2036 = vmul.f32 1.0, %v2035
      %v2037 = vrcp.pop %v2028
      %v2038 = vmul.f32 1.0, %v2037
      %v2039 = vrcp.pop %v2029
      %v2040 = vmul.f32 1.0, %v2039
      %v2041 = vrcp.pop %v2030
      %v2042 = vmul.f32 1.0, %v2041
      %v2043 = vtanh.pop %v2002
      %v2044 = vtanh.pop %v2006
      %v2045 = vmul.f32 %v2034, %v1770
      %v2046 = vmul.f32 %v2040, %v1771
      %v2047 = vmul.f32 %v2032, %v2043
      %v2048 = vmul.f32 %v2038, %v2044
      %v2049 = vadd.f32 %v2045, %v2047
      %v2050 = vadd.f32 %v2046, %v2048
      %v2051 = vtanh.pop %v2049
      %v2052 = vtanh.pop %v2050
      %v2053 = vmul.f32 %v2036, %v2051
      %v2054 = vmul.f32 %v2042, %v2052
      %2055 = vst [vmem:[#allocation3] sm:$0xff] %v2053
      %2056 = vst [vmem:[#allocation3 + $0x8] sm:$0xff] %v2054
      %2057 = vst [vmem:[#allocation4] sm:$0xff] %v2049
      %2058 = vst [vmem:[#allocation4 + $0x8] sm:$0xff] %v2050
      %s2059 = scalar_lea.vmem [#allocation14], 64
      %2060 = vst [vmem:[%s2059] sm:$0xff] %v2053
      %2061 = vst [vmem:[%s2059 + $0x8] sm:$0xff] %v2054
      %v2062 = vld [vmem:[#allocation3] sm:$0xff]
      %v2063 = vld [vmem:[#allocation3 + $0x8] sm:$0xff]
      %v2064 = vld [vmem:[#allocation4] sm:$0xff]
      %v2065 = vld [vmem:[#allocation4 + $0x8] sm:$0xff]
      %s2066 = scalar_lea.vmem [#allocation2], 320
      %v2067 = vld [vmem:[%s2066] sm:$0xff]
      %v2068 = vld [vmem:[%s2066 + $0x8] sm:$0xff]
      %v2069 = vld [vmem:[%s2066 + $0x10] sm:$0xff]
      %v2070 = vld [vmem:[%s2066 + $0x18] sm:$0xff]
      %v2071 = vld [vmem:[%s2066 + $0x20] sm:$0xff]
      %v2072 = vld [vmem:[%s2066 + $0x28] sm:$0xff]
      %v2073 = vld [vmem:[%s2066 + $0x30] sm:$0xff]
      %v2074 = vld [vmem:[%s2066 + $0x38] sm:$0xff]
      %v2075 = vld [vmem:[#allocation13] sm:$0xff]
      %v2076 = vld [vmem:[#allocation13 + $0x8] sm:$0xff]
      %v2077 = vld [vmem:[#allocation13 + $0x10] sm:$0xff]
      %v2078 = vld [vmem:[#allocation13 + $0x18] sm:$0xff]
      %v2079 = vld [vmem:[#allocation13 + $0x20] sm:$0xff]
      %v2080 = vld [vmem:[#allocation13 + $0x28] sm:$0xff]
      %v2081 = vld [vmem:[#allocation13 + $0x30] sm:$0xff]
      %v2082 = vld [vmem:[#allocation13 + $0x38] sm:$0xff]
      %v2083 = vld [vmem:[#allocation13 + $0x40] sm:$0xff]
      %v2084 = vld [vmem:[#allocation13 + $0x48] sm:$0xff]
      %v2085 = vld [vmem:[#allocation13 + $0x50] sm:$0xff]
      %v2086 = vld [vmem:[#allocation13 + $0x58] sm:$0xff]
      %v2087 = vld [vmem:[#allocation13 + $0x60] sm:$0xff]
      %v2088 = vld [vmem:[#allocation13 + $0x68] sm:$0xff]
      %v2089 = vld [vmem:[#allocation13 + $0x70] sm:$0xff]
      %v2090 = vld [vmem:[#allocation13 + $0x78] sm:$0xff]
      %v2091 = vld [vmem:[#allocation13 + $0x80] sm:$0xff]
      %v2092 = vld [vmem:[#allocation13 + $0x88] sm:$0xff]
      %v2093 = vld [vmem:[#allocation13 + $0x90] sm:$0xff]
      %v2094 = vld [vmem:[#allocation13 + $0x98] sm:$0xff]
      %v2095 = vld [vmem:[#allocation13 + $0xa0] sm:$0xff]
      %v2096 = vld [vmem:[#allocation13 + $0xa8] sm:$0xff]
      %v2097 = vld [vmem:[#allocation13 + $0xb0] sm:$0xff]
      %v2098 = vld [vmem:[#allocation13 + $0xb8] sm:$0xff]
      %v2099 = vld [vmem:[#allocation13 + $0xc0] sm:$0xff]
      %v2100 = vld [vmem:[#allocation13 + $0xc8] sm:$0xff]
      %v2101 = vld [vmem:[#allocation13 + $0xd0] sm:$0xff]
      %v2102 = vld [vmem:[#allocation13 + $0xd8] sm:$0xff]
      %v2103 = vld [vmem:[#allocation13 + $0xe0] sm:$0xff]
      %v2104 = vld [vmem:[#allocation13 + $0xe8] sm:$0xff]
      %v2105 = vld [vmem:[#allocation13 + $0xf0] sm:$0xff]
      %v2106 = vld [vmem:[#allocation13 + $0xf8] sm:$0xff]
      %v2107 = vld [vmem:[#allocation13 + $0x100] sm:$0xff]
      %v2108 = vld [vmem:[#allocation13 + $0x108] sm:$0xff]
      %v2109 = vld [vmem:[#allocation13 + $0x110] sm:$0xff]
      %v2110 = vld [vmem:[#allocation13 + $0x118] sm:$0xff]
      %v2111 = vld [vmem:[#allocation13 + $0x120] sm:$0xff]
      %v2112 = vld [vmem:[#allocation13 + $0x128] sm:$0xff]
      %v2113 = vld [vmem:[#allocation13 + $0x130] sm:$0xff]
      %v2114 = vld [vmem:[#allocation13 + $0x138] sm:$0xff]
      %v2115 = vld [vmem:[#allocation13 + $0x140] sm:$0xff]
      %v2116 = vld [vmem:[#allocation13 + $0x148] sm:$0xff]
      %v2117 = vld [vmem:[#allocation13 + $0x150] sm:$0xff]
      %v2118 = vld [vmem:[#allocation13 + $0x158] sm:$0xff]
      %v2119 = vld [vmem:[#allocation13 + $0x160] sm:$0xff]
      %v2120 = vld [vmem:[#allocation13 + $0x168] sm:$0xff]
      %v2121 = vld [vmem:[#allocation13 + $0x170] sm:$0xff]
      %v2122 = vld [vmem:[#allocation13 + $0x178] sm:$0xff]
      %v2123 = vld [vmem:[#allocation13 + $0x180] sm:$0xff]
      %v2124 = vld [vmem:[#allocation13 + $0x188] sm:$0xff]
      %v2125 = vld [vmem:[#allocation13 + $0x190] sm:$0xff]
      %v2126 = vld [vmem:[#allocation13 + $0x198] sm:$0xff]
      %v2127 = vld [vmem:[#allocation13 + $0x1a0] sm:$0xff]
      %v2128 = vld [vmem:[#allocation13 + $0x1a8] sm:$0xff]
      %v2129 = vld [vmem:[#allocation13 + $0x1b0] sm:$0xff]
      %v2130 = vld [vmem:[#allocation13 + $0x1b8] sm:$0xff]
      %v2131 = vld [vmem:[#allocation13 + $0x1c0] sm:$0xff]
      %v2132 = vld [vmem:[#allocation13 + $0x1c8] sm:$0xff]
      %v2133 = vld [vmem:[#allocation13 + $0x1d0] sm:$0xff]
      %v2134 = vld [vmem:[#allocation13 + $0x1d8] sm:$0xff]
      %v2135 = vld [vmem:[#allocation13 + $0x1e0] sm:$0xff]
      %v2136 = vld [vmem:[#allocation13 + $0x1e8] sm:$0xff]
      %v2137 = vld [vmem:[#allocation13 + $0x1f0] sm:$0xff]
      %v2138 = vld [vmem:[#allocation13 + $0x1f8] sm:$0xff]
      %2139 = vmatprep.subr.mxu0 %v2136
      %2140 = vmatpush1.msra.mxu0 %v2135
      %2141 = vmatprep.subr.mxu0 %v2132
      %2142 = vmatpush1.msra.mxu0 %v2131
      %2143 = vmatprep.subr.mxu0 %v2128
      %2144 = vmatpush1.msra.mxu0 %v2127
      %2145 = vmatprep.subr.mxu0 %v2124
      %2146 = vmatpush1.msra.mxu0 %v2123
      %2147 = vmatprep.subr.mxu0 %v2120
      %2148 = vmatpush1.msra.mxu0 %v2119
      %2149 = vmatprep.subr.mxu0 %v2116
      %2150 = vmatpush1.msra.mxu0 %v2115
      %2151 = vmatprep.subr.mxu0 %v2112
      %2152 = vmatpush1.msra.mxu0 %v2111
      %2153 = vmatprep.subr.mxu0 %v2108
      %2154 = vmatpush1.msra.mxu0 %v2107
      %2155 = vmatprep.subr.mxu0 %v2104
      %2156 = vmatpush1.msra.mxu0 %v2103
      %2157 = vmatprep.subr.mxu0 %v2100
      %2158 = vmatpush1.msra.mxu0 %v2099
      %2159 = vmatprep.subr.mxu0 %v2096
      %2160 = vmatpush1.msra.mxu0 %v2095
      %2161 = vmatprep.subr.mxu0 %v2092
      %2162 = vmatpush1.msra.mxu0 %v2091
      %2163 = vmatprep.subr.mxu0 %v2088
      %2164 = vmatpush1.msra.mxu0 %v2087
      %2165 = vmatprep.subr.mxu0 %v2084
      %2166 = vmatpush1.msra.mxu0 %v2083
      %2167 = vmatprep.subr.mxu0 %v2080
      %2168 = vmatpush1.msra.mxu0 %v2079
      %2169 = vmatprep.subr.mxu0 %v2076
      %2170 = vmatpush1.msra.mxu0 %v2075
      %2171 = vmatprep.subr.mxu0 0.0
      %2172 = vmatpush2.msra.mxu0 0.0
      %2173 = vmatprep.subr.mxu0 0.0
      %2174 = vmatpush2.msra.mxu0 0.0
      %2175 = vmatprep.subr.mxu0 0.0
      %2176 = vmatpush2.msra.mxu0 0.0
      %2177 = vmatprep.subr.mxu0 0.0
      %2178 = vmatpush2.msra.mxu0 0.0
      %2179 = vmatprep.subr.mxu0 0.0
      %2180 = vmatpush2.msra.mxu0 0.0
      %2181 = vmatprep.subr.mxu0 0.0
      %2182 = vmatpush2.msra.mxu0 0.0
      %2183 = vmatprep.subr.mxu0 0.0
      %2184 = vmatpush2.msra.mxu0 0.0
      %2185 = vmatprep.subr.mxu0 0.0
      %2186 = vmatpush2.msra.mxu0 0.0
      %2187 = vmatprep.subr.mxu0 0.0
      %2188 = vmatpush2.msra.mxu0 0.0
      %2189 = vmatprep.subr.mxu0 0.0
      %2190 = vmatpush2.msra.mxu0 0.0
      %2191 = vmatprep.subr.mxu0 0.0
      %2192 = vmatpush2.msra.mxu0 0.0
      %2193 = vmatprep.subr.mxu0 0.0
      %2194 = vmatpush2.msra.mxu0 0.0
      %2195 = vmatprep.subr.mxu0 0.0
      %2196 = vmatpush2.msra.mxu0 0.0
      %2197 = vmatprep.subr.mxu0 0.0
      %2198 = vmatpush2.msra.mxu0 0.0
      %2199 = vmatprep.subr.mxu0 0.0
      %2200 = vmatpush2.msra.mxu0 0.0
      %2201 = vmatprep.subr.mxu0 0.0
      %2202 = vmatpush2.msra.mxu0 0.0
      %2203 = vmatprep.mubr.f32.mxu0 0.0
      %2204 = vmatmul.mubr.f32.gmra.mxu0 %v2062
      %v2205 = vpop.f32.mrf.mxu0
      %v2206 = vadd.f32 0.0, %v2205
      %v2207 = vpop.f32.mrf.mxu0
      %v2208 = vadd.f32 0.0, %v2207
      %2209 = vmatprep.mubr.f32.mxu0 0.0
      %2210 = vmatmul.mubr.f32.gmra.mxu0 %v2063
      %v2211 = vpop.f32.mrf.mxu0
      %v2212 = vadd.f32 0.0, %v2211
      %v2213 = vpop.f32.mrf.mxu0
      %v2214 = vadd.f32 0.0, %v2213
      %2215 = vdwg.mxu0
      %2216 = vmatprep.subr.mxu0 %v2138
      %2217 = vmatpush1.msra.mxu0 %v2137
      %2218 = vmatprep.subr.mxu0 %v2134
      %2219 = vmatpush1.msra.mxu0 %v2133
      %2220 = vmatprep.subr.mxu0 %v2130
      %2221 = vmatpush1.msra.mxu0 %v2129
      %2222 = vmatprep.subr.mxu0 %v2126
      %2223 = vmatpush1.msra.mxu0 %v2125
      %2224 = vmatprep.subr.mxu0 %v2122
      %2225 = vmatpush1.msra.mxu0 %v2121
      %2226 = vmatprep.subr.mxu0 %v2118
      %2227 = vmatpush1.msra.mxu0 %v2117
      %2228 = vmatprep.subr.mxu0 %v2114
      %2229 = vmatpush1.msra.mxu0 %v2113
      %2230 = vmatprep.subr.mxu0 %v2110
      %2231 = vmatpush1.msra.mxu0 %v2109
      %2232 = vmatprep.subr.mxu0 %v2106
      %2233 = vmatpush1.msra.mxu0 %v2105
      %2234 = vmatprep.subr.mxu0 %v2102
      %2235 = vmatpush1.msra.mxu0 %v2101
      %2236 = vmatprep.subr.mxu0 %v2098
      %2237 = vmatpush1.msra.mxu0 %v2097
      %2238 = vmatprep.subr.mxu0 %v2094
      %2239 = vmatpush1.msra.mxu0 %v2093
      %2240 = vmatprep.subr.mxu0 %v2090
      %2241 = vmatpush1.msra.mxu0 %v2089
      %2242 = vmatprep.subr.mxu0 %v2086
      %2243 = vmatpush1.msra.mxu0 %v2085
      %2244 = vmatprep.subr.mxu0 %v2082
      %2245 = vmatpush1.msra.mxu0 %v2081
      %2246 = vmatprep.subr.mxu0 %v2078
      %2247 = vmatpush1.msra.mxu0 %v2077
      %2248 = vmatprep.subr.mxu0 0.0
      %2249 = vmatpush2.msra.mxu0 0.0
      %2250 = vmatprep.subr.mxu0 0.0
      %2251 = vmatpush2.msra.mxu0 0.0
      %2252 = vmatprep.subr.mxu0 0.0
      %2253 = vmatpush2.msra.mxu0 0.0
      %2254 = vmatprep.subr.mxu0 0.0
      %2255 = vmatpush2.msra.mxu0 0.0
      %2256 = vmatprep.subr.mxu0 0.0
      %2257 = vmatpush2.msra.mxu0 0.0
      %2258 = vmatprep.subr.mxu0 0.0
      %2259 = vmatpush2.msra.mxu0 0.0
      %2260 = vmatprep.subr.mxu0 0.0
      %2261 = vmatpush2.msra.mxu0 0.0
      %2262 = vmatprep.subr.mxu0 0.0
      %2263 = vmatpush2.msra.mxu0 0.0
      %2264 = vmatprep.subr.mxu0 0.0
      %2265 = vmatpush2.msra.mxu0 0.0
      %2266 = vmatprep.subr.mxu0 0.0
      %2267 = vmatpush2.msra.mxu0 0.0
      %2268 = vmatprep.subr.mxu0 0.0
      %2269 = vmatpush2.msra.mxu0 0.0
      %2270 = vmatprep.subr.mxu0 0.0
      %2271 = vmatpush2.msra.mxu0 0.0
      %2272 = vmatprep.subr.mxu0 0.0
      %2273 = vmatpush2.msra.mxu0 0.0
      %2274 = vmatprep.subr.mxu0 0.0
      %2275 = vmatpush2.msra.mxu0 0.0
      %2276 = vmatprep.subr.mxu0 0.0
      %2277 = vmatpush2.msra.mxu0 0.0
      %2278 = vmatprep.subr.mxu0 0.0
      %2279 = vmatpush2.msra.mxu0 0.0
      %2280 = vmatprep.mubr.f32.mxu0 0.0
      %2281 = vmatmul.mubr.f32.gmra.mxu0 %v2062
      %v2282 = vpop.f32.mrf.mxu0
      %v2283 = vadd.f32 0.0, %v2282
      %v2284 = vpop.f32.mrf.mxu0
      %v2285 = vadd.f32 0.0, %v2284
      %2286 = vmatprep.mubr.f32.mxu0 0.0
      %2287 = vmatmul.mubr.f32.gmra.mxu0 %v2063
      %v2288 = vpop.f32.mrf.mxu0
      %v2289 = vadd.f32 0.0, %v2288
      %v2290 = vpop.f32.mrf.mxu0
      %v2291 = vadd.f32 0.0, %v2290
      %2292 = vdwg.mxu0
      %v2293 = vadd.f32 %v2067, %v2206
      %v2294 = vadd.f32 %v2068, %v2208
      %v2295 = vadd.f32 %v2069, %v2283
      %v2296 = vadd.f32 %v2070, %v2285
      %v2297 = vadd.f32 %v2071, %v2212
      %v2298 = vadd.f32 %v2072, %v2214
      %v2299 = vadd.f32 %v2073, %v2289
      %v2300 = vadd.f32 %v2074, %v2291
      %v2301 = vxor.u32 %v2293, 2147483648
      %v2302 = vxor.u32 %v2294, 2147483648
      %v2303 = vxor.u32 %v2295, 2147483648
      %v2304 = vxor.u32 %v2297, 2147483648
      %v2305 = vxor.u32 %v2298, 2147483648
      %v2306 = vxor.u32 %v2299, 2147483648
      %v2307 = vmul.f32 %v2301, 1.442695
      %v2308 = vpow.pop %v2307
      %v2309 = vmul.f32 %v2302, 1.442695
      %v2310 = vpow.pop %v2309
      %v2311 = vmul.f32 %v2303, 1.442695
      %v2312 = vpow.pop %v2311
      %v2313 = vmul.f32 %v2304, 1.442695
      %v2314 = vpow.pop %v2313
      %v2315 = vmul.f32 %v2305, 1.442695
      %v2316 = vpow.pop %v2315
      %v2317 = vmul.f32 %v2306, 1.442695
      %v2318 = vpow.pop %v2317
      %v2319 = vadd.f32 %v2308, 1.0
      %v2320 = vadd.f32 %v2310, 1.0
      %v2321 = vadd.f32 %v2312, 1.0
      %v2322 = vadd.f32 %v2314, 1.0
      %v2323 = vadd.f32 %v2316, 1.0
      %v2324 = vadd.f32 %v2318, 1.0
      %v2325 = vrcp.pop %v2319
      %v2326 = vmul.f32 1.0, %v2325
      %v2327 = vrcp.pop %v2320
      %v2328 = vmul.f32 1.0, %v2327
      %v2329 = vrcp.pop %v2321
      %v2330 = vmul.f32 1.0, %v2329
      %v2331 = vrcp.pop %v2322
      %v2332 = vmul.f32 1.0, %v2331
      %v2333 = vrcp.pop %v2323
      %v2334 = vmul.f32 1.0, %v2333
      %v2335 = vrcp.pop %v2324
      %v2336 = vmul.f32 1.0, %v2335
      %v2337 = vtanh.pop %v2296
      %v2338 = vtanh.pop %v2300
      %v2339 = vmul.f32 %v2328, %v2064
      %v2340 = vmul.f32 %v2334, %v2065
      %v2341 = vmul.f32 %v2326, %v2337
      %v2342 = vmul.f32 %v2332, %v2338
      %v2343 = vadd.f32 %v2339, %v2341
      %v2344 = vadd.f32 %v2340, %v2342
      %v2345 = vtanh.pop %v2343
      %v2346 = vtanh.pop %v2344
      %v2347 = vmul.f32 %v2330, %v2345
      %v2348 = vmul.f32 %v2336, %v2346
      %2349 = vst [vmem:[#allocation3] sm:$0xff] %v2347
      %2350 = vst [vmem:[#allocation3 + $0x8] sm:$0xff] %v2348
      %2351 = vst [vmem:[#allocation4] sm:$0xff] %v2343
      %2352 = vst [vmem:[#allocation4 + $0x8] sm:$0xff] %v2344
      %s2353 = scalar_lea.vmem [#allocation14], 80
      %2354 = vst [vmem:[%s2353] sm:$0xff] %v2347
      %2355 = vst [vmem:[%s2353 + $0x8] sm:$0xff] %v2348
      %v2356 = vld [vmem:[#allocation3] sm:$0xff]
      %v2357 = vld [vmem:[#allocation3 + $0x8] sm:$0xff]
      %v2358 = vld [vmem:[#allocation4] sm:$0xff]
      %v2359 = vld [vmem:[#allocation4 + $0x8] sm:$0xff]
      %s2360 = scalar_lea.vmem [#allocation2], 384
      %v2361 = vld [vmem:[%s2360] sm:$0xff]
      %v2362 = vld [vmem:[%s2360 + $0x8] sm:$0xff]
      %v2363 = vld [vmem:[%s2360 + $0x10] sm:$0xff]
      %v2364 = vld [vmem:[%s2360 + $0x18] sm:$0xff]
      %v2365 = vld [vmem:[%s2360 + $0x20] sm:$0xff]
      %v2366 = vld [vmem:[%s2360 + $0x28] sm:$0xff]
      %v2367 = vld [vmem:[%s2360 + $0x30] sm:$0xff]
      %v2368 = vld [vmem:[%s2360 + $0x38] sm:$0xff]
      %v2369 = vld [vmem:[#allocation13] sm:$0xff]
      %v2370 = vld [vmem:[#allocation13 + $0x8] sm:$0xff]
      %v2371 = vld [vmem:[#allocation13 + $0x10] sm:$0xff]
      %v2372 = vld [vmem:[#allocation13 + $0x18] sm:$0xff]
      %v2373 = vld [vmem:[#allocation13 + $0x20] sm:$0xff]
      %v2374 = vld [vmem:[#allocation13 + $0x28] sm:$0xff]
      %v2375 = vld [vmem:[#allocation13 + $0x30] sm:$0xff]
      %v2376 = vld [vmem:[#allocation13 + $0x38] sm:$0xff]
      %v2377 = vld [vmem:[#allocation13 + $0x40] sm:$0xff]
      %v2378 = vld [vmem:[#allocation13 + $0x48] sm:$0xff]
      %v2379 = vld [vmem:[#allocation13 + $0x50] sm:$0xff]
      %v2380 = vld [vmem:[#allocation13 + $0x58] sm:$0xff]
      %v2381 = vld [vmem:[#allocation13 + $0x60] sm:$0xff]
      %v2382 = vld [vmem:[#allocation13 + $0x68] sm:$0xff]
      %v2383 = vld [vmem:[#allocation13 + $0x70] sm:$0xff]
      %v2384 = vld [vmem:[#allocation13 + $0x78] sm:$0xff]
      %v2385 = vld [vmem:[#allocation13 + $0x80] sm:$0xff]
      %v2386 = vld [vmem:[#allocation13 + $0x88] sm:$0xff]
      %v2387 = vld [vmem:[#allocation13 + $0x90] sm:$0xff]
      %v2388 = vld [vmem:[#allocation13 + $0x98] sm:$0xff]
      %v2389 = vld [vmem:[#allocation13 + $0xa0] sm:$0xff]
      %v2390 = vld [vmem:[#allocation13 + $0xa8] sm:$0xff]
      %v2391 = vld [vmem:[#allocation13 + $0xb0] sm:$0xff]
      %v2392 = vld [vmem:[#allocation13 + $0xb8] sm:$0xff]
      %v2393 = vld [vmem:[#allocation13 + $0xc0] sm:$0xff]
      %v2394 = vld [vmem:[#allocation13 + $0xc8] sm:$0xff]
      %v2395 = vld [vmem:[#allocation13 + $0xd0] sm:$0xff]
      %v2396 = vld [vmem:[#allocation13 + $0xd8] sm:$0xff]
      %v2397 = vld [vmem:[#allocation13 + $0xe0] sm:$0xff]
      %v2398 = vld [vmem:[#allocation13 + $0xe8] sm:$0xff]
      %v2399 = vld [vmem:[#allocation13 + $0xf0] sm:$0xff]
      %v2400 = vld [vmem:[#allocation13 + $0xf8] sm:$0xff]
      %v2401 = vld [vmem:[#allocation13 + $0x100] sm:$0xff]
      %v2402 = vld [vmem:[#allocation13 + $0x108] sm:$0xff]
      %v2403 = vld [vmem:[#allocation13 + $0x110] sm:$0xff]
      %v2404 = vld [vmem:[#allocation13 + $0x118] sm:$0xff]
      %v2405 = vld [vmem:[#allocation13 + $0x120] sm:$0xff]
      %v2406 = vld [vmem:[#allocation13 + $0x128] sm:$0xff]
      %v2407 = vld [vmem:[#allocation13 + $0x130] sm:$0xff]
      %v2408 = vld [vmem:[#allocation13 + $0x138] sm:$0xff]
      %v2409 = vld [vmem:[#allocation13 + $0x140] sm:$0xff]
      %v2410 = vld [vmem:[#allocation13 + $0x148] sm:$0xff]
      %v2411 = vld [vmem:[#allocation13 + $0x150] sm:$0xff]
      %v2412 = vld [vmem:[#allocation13 + $0x158] sm:$0xff]
      %v2413 = vld [vmem:[#allocation13 + $0x160] sm:$0xff]
      %v2414 = vld [vmem:[#allocation13 + $0x168] sm:$0xff]
      %v2415 = vld [vmem:[#allocation13 + $0x170] sm:$0xff]
      %v2416 = vld [vmem:[#allocation13 + $0x178] sm:$0xff]
      %v2417 = vld [vmem:[#allocation13 + $0x180] sm:$0xff]
      %v2418 = vld [vmem:[#allocation13 + $0x188] sm:$0xff]
      %v2419 = vld [vmem:[#allocation13 + $0x190] sm:$0xff]
      %v2420 = vld [vmem:[#allocation13 + $0x198] sm:$0xff]
      %v2421 = vld [vmem:[#allocation13 + $0x1a0] sm:$0xff]
      %v2422 = vld [vmem:[#allocation13 + $0x1a8] sm:$0xff]
      %v2423 = vld [vmem:[#allocation13 + $0x1b0] sm:$0xff]
      %v2424 = vld [vmem:[#allocation13 + $0x1b8] sm:$0xff]
      %v2425 = vld [vmem:[#allocation13 + $0x1c0] sm:$0xff]
      %v2426 = vld [vmem:[#allocation13 + $0x1c8] sm:$0xff]
      %v2427 = vld [vmem:[#allocation13 + $0x1d0] sm:$0xff]
      %v2428 = vld [vmem:[#allocation13 + $0x1d8] sm:$0xff]
      %v2429 = vld [vmem:[#allocation13 + $0x1e0] sm:$0xff]
      %v2430 = vld [vmem:[#allocation13 + $0x1e8] sm:$0xff]
      %v2431 = vld [vmem:[#allocation13 + $0x1f0] sm:$0xff]
      %v2432 = vld [vmem:[#allocation13 + $0x1f8] sm:$0xff]
      %2433 = vmatprep.subr.mxu0 %v2430
      %2434 = vmatpush1.msra.mxu0 %v2429
      %2435 = vmatprep.subr.mxu0 %v2426
      %2436 = vmatpush1.msra.mxu0 %v2425
      %2437 = vmatprep.subr.mxu0 %v2422
      %2438 = vmatpush1.msra.mxu0 %v2421
      %2439 = vmatprep.subr.mxu0 %v2418
      %2440 = vmatpush1.msra.mxu0 %v2417
      %2441 = vmatprep.subr.mxu0 %v2414
      %2442 = vmatpush1.msra.mxu0 %v2413
      %2443 = vmatprep.subr.mxu0 %v2410
      %2444 = vmatpush1.msra.mxu0 %v2409
      %2445 = vmatprep.subr.mxu0 %v2406
      %2446 = vmatpush1.msra.mxu0 %v2405
      %2447 = vmatprep.subr.mxu0 %v2402
      %2448 = vmatpush1.msra.mxu0 %v2401
      %2449 = vmatprep.subr.mxu0 %v2398
      %2450 = vmatpush1.msra.mxu0 %v2397
      %2451 = vmatprep.subr.mxu0 %v2394
      %2452 = vmatpush1.msra.mxu0 %v2393
      %2453 = vmatprep.subr.mxu0 %v2390
      %2454 = vmatpush1.msra.mxu0 %v2389
      %2455 = vmatprep.subr.mxu0 %v2386
      %2456 = vmatpush1.msra.mxu0 %v2385
      %2457 = vmatprep.subr.mxu0 %v2382
      %2458 = vmatpush1.msra.mxu0 %v2381
      %2459 = vmatprep.subr.mxu0 %v2378
      %2460 = vmatpush1.msra.mxu0 %v2377
      %2461 = vmatprep.subr.mxu0 %v2374
      %2462 = vmatpush1.msra.mxu0 %v2373
      %2463 = vmatprep.subr.mxu0 %v2370
      %2464 = vmatpush1.msra.mxu0 %v2369
      %2465 = vmatprep.subr.mxu0 0.0
      %2466 = vmatpush2.msra.mxu0 0.0
      %2467 = vmatprep.subr.mxu0 0.0
      %2468 = vmatpush2.msra.mxu0 0.0
      %2469 = vmatprep.subr.mxu0 0.0
      %2470 = vmatpush2.msra.mxu0 0.0
      %2471 = vmatprep.subr.mxu0 0.0
      %2472 = vmatpush2.msra.mxu0 0.0
      %2473 = vmatprep.subr.mxu0 0.0
      %2474 = vmatpush2.msra.mxu0 0.0
      %2475 = vmatprep.subr.mxu0 0.0
      %2476 = vmatpush2.msra.mxu0 0.0
      %2477 = vmatprep.subr.mxu0 0.0
      %2478 = vmatpush2.msra.mxu0 0.0
      %2479 = vmatprep.subr.mxu0 0.0
      %2480 = vmatpush2.msra.mxu0 0.0
      %2481 = vmatprep.subr.mxu0 0.0
      %2482 = vmatpush2.msra.mxu0 0.0
      %2483 = vmatprep.subr.mxu0 0.0
      %2484 = vmatpush2.msra.mxu0 0.0
      %2485 = vmatprep.subr.mxu0 0.0
      %2486 = vmatpush2.msra.mxu0 0.0
      %2487 = vmatprep.subr.mxu0 0.0
      %2488 = vmatpush2.msra.mxu0 0.0
      %2489 = vmatprep.subr.mxu0 0.0
      %2490 = vmatpush2.msra.mxu0 0.0
      %2491 = vmatprep.subr.mxu0 0.0
      %2492 = vmatpush2.msra.mxu0 0.0
      %2493 = vmatprep.subr.mxu0 0.0
      %2494 = vmatpush2.msra.mxu0 0.0
      %2495 = vmatprep.subr.mxu0 0.0
      %2496 = vmatpush2.msra.mxu0 0.0
      %2497 = vmatprep.mubr.f32.mxu0 0.0
      %2498 = vmatmul.mubr.f32.gmra.mxu0 %v2356
      %v2499 = vpop.f32.mrf.mxu0
      %v2500 = vadd.f32 0.0, %v2499
      %v2501 = vpop.f32.mrf.mxu0
      %v2502 = vadd.f32 0.0, %v2501
      %2503 = vmatprep.mubr.f32.mxu0 0.0
      %2504 = vmatmul.mubr.f32.gmra.mxu0 %v2357
      %v2505 = vpop.f32.mrf.mxu0
      %v2506 = vadd.f32 0.0, %v2505
      %v2507 = vpop.f32.mrf.mxu0
      %v2508 = vadd.f32 0.0, %v2507
      %2509 = vdwg.mxu0
      %2510 = vmatprep.subr.mxu0 %v2432
      %2511 = vmatpush1.msra.mxu0 %v2431
      %2512 = vmatprep.subr.mxu0 %v2428
      %2513 = vmatpush1.msra.mxu0 %v2427
      %2514 = vmatprep.subr.mxu0 %v2424
      %2515 = vmatpush1.msra.mxu0 %v2423
      %2516 = vmatprep.subr.mxu0 %v2420
      %2517 = vmatpush1.msra.mxu0 %v2419
      %2518 = vmatprep.subr.mxu0 %v2416
      %2519 = vmatpush1.msra.mxu0 %v2415
      %2520 = vmatprep.subr.mxu0 %v2412
      %2521 = vmatpush1.msra.mxu0 %v2411
      %2522 = vmatprep.subr.mxu0 %v2408
      %2523 = vmatpush1.msra.mxu0 %v2407
      %2524 = vmatprep.subr.mxu0 %v2404
      %2525 = vmatpush1.msra.mxu0 %v2403
      %2526 = vmatprep.subr.mxu0 %v2400
      %2527 = vmatpush1.msra.mxu0 %v2399
      %2528 = vmatprep.subr.mxu0 %v2396
      %2529 = vmatpush1.msra.mxu0 %v2395
      %2530 = vmatprep.subr.mxu0 %v2392
      %2531 = vmatpush1.msra.mxu0 %v2391
      %2532 = vmatprep.subr.mxu0 %v2388
      %2533 = vmatpush1.msra.mxu0 %v2387
      %2534 = vmatprep.subr.mxu0 %v2384
      %2535 = vmatpush1.msra.mxu0 %v2383
      %2536 = vmatprep.subr.mxu0 %v2380
      %2537 = vmatpush1.msra.mxu0 %v2379
      %2538 = vmatprep.subr.mxu0 %v2376
      %2539 = vmatpush1.msra.mxu0 %v2375
      %2540 = vmatprep.subr.mxu0 %v2372
      %2541 = vmatpush1.msra.mxu0 %v2371
      %2542 = vmatprep.subr.mxu0 0.0
      %2543 = vmatpush2.msra.mxu0 0.0
      %2544 = vmatprep.subr.mxu0 0.0
      %2545 = vmatpush2.msra.mxu0 0.0
      %2546 = vmatprep.subr.mxu0 0.0
      %2547 = vmatpush2.msra.mxu0 0.0
      %2548 = vmatprep.subr.mxu0 0.0
      %2549 = vmatpush2.msra.mxu0 0.0
      %2550 = vmatprep.subr.mxu0 0.0
      %2551 = vmatpush2.msra.mxu0 0.0
      %2552 = vmatprep.subr.mxu0 0.0
      %2553 = vmatpush2.msra.mxu0 0.0
      %2554 = vmatprep.subr.mxu0 0.0
      %2555 = vmatpush2.msra.mxu0 0.0
      %2556 = vmatprep.subr.mxu0 0.0
      %2557 = vmatpush2.msra.mxu0 0.0
      %2558 = vmatprep.subr.mxu0 0.0
      %2559 = vmatpush2.msra.mxu0 0.0
      %2560 = vmatprep.subr.mxu0 0.0
      %2561 = vmatpush2.msra.mxu0 0.0
      %2562 = vmatprep.subr.mxu0 0.0
      %2563 = vmatpush2.msra.mxu0 0.0
      %2564 = vmatprep.subr.mxu0 0.0
      %2565 = vmatpush2.msra.mxu0 0.0
      %2566 = vmatprep.subr.mxu0 0.0
      %2567 = vmatpush2.msra.mxu0 0.0
      %2568 = vmatprep.subr.mxu0 0.0
      %2569 = vmatpush2.msra.mxu0 0.0
      %2570 = vmatprep.subr.mxu0 0.0
      %2571 = vmatpush2.msra.mxu0 0.0
      %2572 = vmatprep.subr.mxu0 0.0
      %2573 = vmatpush2.msra.mxu0 0.0
      %2574 = vmatprep.mubr.f32.mxu0 0.0
      %2575 = vmatmul.mubr.f32.gmra.mxu0 %v2356
      %v2576 = vpop.f32.mrf.mxu0
      %v2577 = vadd.f32 0.0, %v2576
      %v2578 = vpop.f32.mrf.mxu0
      %v2579 = vadd.f32 0.0, %v2578
      %2580 = vmatprep.mubr.f32.mxu0 0.0
      %2581 = vmatmul.mubr.f32.gmra.mxu0 %v2357
      %v2582 = vpop.f32.mrf.mxu0
      %v2583 = vadd.f32 0.0, %v2582
      %v2584 = vpop.f32.mrf.mxu0
      %v2585 = vadd.f32 0.0, %v2584
      %2586 = vdwg.mxu0
      %v2587 = vadd.f32 %v2361, %v2500
      %v2588 = vadd.f32 %v2362, %v2502
      %v2589 = vadd.f32 %v2363, %v2577
      %v2590 = vadd.f32 %v2364, %v2579
      %v2591 = vadd.f32 %v2365, %v2506
      %v2592 = vadd.f32 %v2366, %v2508
      %v2593 = vadd.f32 %v2367, %v2583
      %v2594 = vadd.f32 %v2368, %v2585
      %v2595 = vxor.u32 %v2587, 2147483648
      %v2596 = vxor.u32 %v2588, 2147483648
      %v2597 = vxor.u32 %v2589, 2147483648
      %v2598 = vxor.u32 %v2591, 2147483648
      %v2599 = vxor.u32 %v2592, 2147483648
      %v2600 = vxor.u32 %v2593, 2147483648
      %v2601 = vmul.f32 %v2595, 1.442695
      %v2602 = vpow.pop %v2601
      %v2603 = vmul.f32 %v2596, 1.442695
      %v2604 = vpow.pop %v2603
      %v2605 = vmul.f32 %v2597, 1.442695
      %v2606 = vpow.pop %v2605
      %v2607 = vmul.f32 %v2598, 1.442695
      %v2608 = vpow.pop %v2607
      %v2609 = vmul.f32 %v2599, 1.442695
      %v2610 = vpow.pop %v2609
      %v2611 = vmul.f32 %v2600, 1.442695
      %v2612 = vpow.pop %v2611
      %v2613 = vadd.f32 %v2602, 1.0
      %v2614 = vadd.f32 %v2604, 1.0
      %v2615 = vadd.f32 %v2606, 1.0
      %v2616 = vadd.f32 %v2608, 1.0
      %v2617 = vadd.f32 %v2610, 1.0
      %v2618 = vadd.f32 %v2612, 1.0
      %v2619 = vrcp.pop %v2613
      %v2620 = vmul.f32 1.0, %v2619
      %v2621 = vrcp.pop %v2614
      %v2622 = vmul.f32 1.0, %v2621
      %v2623 = vrcp.pop %v2615
      %v2624 = vmul.f32 1.0, %v2623
      %v2625 = vrcp.pop %v2616
      %v2626 = vmul.f32 1.0, %v2625
      %v2627 = vrcp.pop %v2617
      %v2628 = vmul.f32 1.0, %v2627
      %v2629 = vrcp.pop %v2618
      %v2630 = vmul.f32 1.0, %v2629
      %v2631 = vtanh.pop %v2590
      %v2632 = vtanh.pop %v2594
      %v2633 = vmul.f32 %v2622, %v2358
      %v2634 = vmul.f32 %v2628, %v2359
      %v2635 = vmul.f32 %v2620, %v2631
      %v2636 = vmul.f32 %v2626, %v2632
      %v2637 = vadd.f32 %v2633, %v2635
      %v2638 = vadd.f32 %v2634, %v2636
      %v2639 = vtanh.pop %v2637
      %v2640 = vtanh.pop %v2638
      %v2641 = vmul.f32 %v2624, %v2639
      %v2642 = vmul.f32 %v2630, %v2640
      %2643 = vst [vmem:[#allocation3] sm:$0xff] %v2641
      %2644 = vst [vmem:[#allocation3 + $0x8] sm:$0xff] %v2642
      %2645 = vst [vmem:[#allocation4] sm:$0xff] %v2637
      %2646 = vst [vmem:[#allocation4 + $0x8] sm:$0xff] %v2638
      %s2647 = scalar_lea.vmem [#allocation14], 96
      %2648 = vst [vmem:[%s2647] sm:$0xff] %v2641
      %2649 = vst [vmem:[%s2647 + $0x8] sm:$0xff] %v2642
      %v2650 = vld [vmem:[#allocation3] sm:$0xff]
      %v2651 = vld [vmem:[#allocation3 + $0x8] sm:$0xff]
      %v2652 = vld [vmem:[#allocation4] sm:$0xff]
      %v2653 = vld [vmem:[#allocation4 + $0x8] sm:$0xff]
      %s2654 = scalar_lea.vmem [#allocation2], 448
      %v2655 = vld [vmem:[%s2654] sm:$0xff]
      %v2656 = vld [vmem:[%s2654 + $0x8] sm:$0xff]
      %v2657 = vld [vmem:[%s2654 + $0x10] sm:$0xff]
      %v2658 = vld [vmem:[%s2654 + $0x18] sm:$0xff]
      %v2659 = vld [vmem:[%s2654 + $0x20] sm:$0xff]
      %v2660 = vld [vmem:[%s2654 + $0x28] sm:$0xff]
      %v2661 = vld [vmem:[%s2654 + $0x30] sm:$0xff]
      %v2662 = vld [vmem:[%s2654 + $0x38] sm:$0xff]
      %v2663 = vld [vmem:[#allocation13] sm:$0xff]
      %v2664 = vld [vmem:[#allocation13 + $0x8] sm:$0xff]
      %v2665 = vld [vmem:[#allocation13 + $0x10] sm:$0xff]
      %v2666 = vld [vmem:[#allocation13 + $0x18] sm:$0xff]
      %v2667 = vld [vmem:[#allocation13 + $0x20] sm:$0xff]
      %v2668 = vld [vmem:[#allocation13 + $0x28] sm:$0xff]
      %v2669 = vld [vmem:[#allocation13 + $0x30] sm:$0xff]
      %v2670 = vld [vmem:[#allocation13 + $0x38] sm:$0xff]
      %v2671 = vld [vmem:[#allocation13 + $0x40] sm:$0xff]
      %v2672 = vld [vmem:[#allocation13 + $0x48] sm:$0xff]
      %v2673 = vld [vmem:[#allocation13 + $0x50] sm:$0xff]
      %v2674 = vld [vmem:[#allocation13 + $0x58] sm:$0xff]
      %v2675 = vld [vmem:[#allocation13 + $0x60] sm:$0xff]
      %v2676 = vld [vmem:[#allocation13 + $0x68] sm:$0xff]
      %v2677 = vld [vmem:[#allocation13 + $0x70] sm:$0xff]
      %v2678 = vld [vmem:[#allocation13 + $0x78] sm:$0xff]
      %v2679 = vld [vmem:[#allocation13 + $0x80] sm:$0xff]
      %v2680 = vld [vmem:[#allocation13 + $0x88] sm:$0xff]
      %v2681 = vld [vmem:[#allocation13 + $0x90] sm:$0xff]
      %v2682 = vld [vmem:[#allocation13 + $0x98] sm:$0xff]
      %v2683 = vld [vmem:[#allocation13 + $0xa0] sm:$0xff]
      %v2684 = vld [vmem:[#allocation13 + $0xa8] sm:$0xff]
      %v2685 = vld [vmem:[#allocation13 + $0xb0] sm:$0xff]
      %v2686 = vld [vmem:[#allocation13 + $0xb8] sm:$0xff]
      %v2687 = vld [vmem:[#allocation13 + $0xc0] sm:$0xff]
      %v2688 = vld [vmem:[#allocation13 + $0xc8] sm:$0xff]
      %v2689 = vld [vmem:[#allocation13 + $0xd0] sm:$0xff]
      %v2690 = vld [vmem:[#allocation13 + $0xd8] sm:$0xff]
      %v2691 = vld [vmem:[#allocation13 + $0xe0] sm:$0xff]
      %v2692 = vld [vmem:[#allocation13 + $0xe8] sm:$0xff]
      %v2693 = vld [vmem:[#allocation13 + $0xf0] sm:$0xff]
      %v2694 = vld [vmem:[#allocation13 + $0xf8] sm:$0xff]
      %v2695 = vld [vmem:[#allocation13 + $0x100] sm:$0xff]
      %v2696 = vld [vmem:[#allocation13 + $0x108] sm:$0xff]
      %v2697 = vld [vmem:[#allocation13 + $0x110] sm:$0xff]
      %v2698 = vld [vmem:[#allocation13 + $0x118] sm:$0xff]
      %v2699 = vld [vmem:[#allocation13 + $0x120] sm:$0xff]
      %v2700 = vld [vmem:[#allocation13 + $0x128] sm:$0xff]
      %v2701 = vld [vmem:[#allocation13 + $0x130] sm:$0xff]
      %v2702 = vld [vmem:[#allocation13 + $0x138] sm:$0xff]
      %v2703 = vld [vmem:[#allocation13 + $0x140] sm:$0xff]
      %v2704 = vld [vmem:[#allocation13 + $0x148] sm:$0xff]
      %v2705 = vld [vmem:[#allocation13 + $0x150] sm:$0xff]
      %v2706 = vld [vmem:[#allocation13 + $0x158] sm:$0xff]
      %v2707 = vld [vmem:[#allocation13 + $0x160] sm:$0xff]
      %v2708 = vld [vmem:[#allocation13 + $0x168] sm:$0xff]
      %v2709 = vld [vmem:[#allocation13 + $0x170] sm:$0xff]
      %v2710 = vld [vmem:[#allocation13 + $0x178] sm:$0xff]
      %v2711 = vld [vmem:[#allocation13 + $0x180] sm:$0xff]
      %v2712 = vld [vmem:[#allocation13 + $0x188] sm:$0xff]
      %v2713 = vld [vmem:[#allocation13 + $0x190] sm:$0xff]
      %v2714 = vld [vmem:[#allocation13 + $0x198] sm:$0xff]
      %v2715 = vld [vmem:[#allocation13 + $0x1a0] sm:$0xff]
      %v2716 = vld [vmem:[#allocation13 + $0x1a8] sm:$0xff]
      %v2717 = vld [vmem:[#allocation13 + $0x1b0] sm:$0xff]
      %v2718 = vld [vmem:[#allocation13 + $0x1b8] sm:$0xff]
      %v2719 = vld [vmem:[#allocation13 + $0x1c0] sm:$0xff]
      %v2720 = vld [vmem:[#allocation13 + $0x1c8] sm:$0xff]
      %v2721 = vld [vmem:[#allocation13 + $0x1d0] sm:$0xff]
      %v2722 = vld [vmem:[#allocation13 + $0x1d8] sm:$0xff]
      %v2723 = vld [vmem:[#allocation13 + $0x1e0] sm:$0xff]
      %v2724 = vld [vmem:[#allocation13 + $0x1e8] sm:$0xff]
      %v2725 = vld [vmem:[#allocation13 + $0x1f0] sm:$0xff]
      %v2726 = vld [vmem:[#allocation13 + $0x1f8] sm:$0xff]
      %2727 = vmatprep.subr.mxu0 %v2724
      %2728 = vmatpush1.msra.mxu0 %v2723
      %2729 = vmatprep.subr.mxu0 %v2720
      %2730 = vmatpush1.msra.mxu0 %v2719
      %2731 = vmatprep.subr.mxu0 %v2716
      %2732 = vmatpush1.msra.mxu0 %v2715
      %2733 = vmatprep.subr.mxu0 %v2712
      %2734 = vmatpush1.msra.mxu0 %v2711
      %2735 = vmatprep.subr.mxu0 %v2708
      %2736 = vmatpush1.msra.mxu0 %v2707
      %2737 = vmatprep.subr.mxu0 %v2704
      %2738 = vmatpush1.msra.mxu0 %v2703
      %2739 = vmatprep.subr.mxu0 %v2700
      %2740 = vmatpush1.msra.mxu0 %v2699
      %2741 = vmatprep.subr.mxu0 %v2696
      %2742 = vmatpush1.msra.mxu0 %v2695
      %2743 = vmatprep.subr.mxu0 %v2692
      %2744 = vmatpush1.msra.mxu0 %v2691
      %2745 = vmatprep.subr.mxu0 %v2688
      %2746 = vmatpush1.msra.mxu0 %v2687
      %2747 = vmatprep.subr.mxu0 %v2684
      %2748 = vmatpush1.msra.mxu0 %v2683
      %2749 = vmatprep.subr.mxu0 %v2680
      %2750 = vmatpush1.msra.mxu0 %v2679
      %2751 = vmatprep.subr.mxu0 %v2676
      %2752 = vmatpush1.msra.mxu0 %v2675
      %2753 = vmatprep.subr.mxu0 %v2672
      %2754 = vmatpush1.msra.mxu0 %v2671
      %2755 = vmatprep.subr.mxu0 %v2668
      %2756 = vmatpush1.msra.mxu0 %v2667
      %2757 = vmatprep.subr.mxu0 %v2664
      %2758 = vmatpush1.msra.mxu0 %v2663
      %2759 = vmatprep.subr.mxu0 0.0
      %2760 = vmatpush2.msra.mxu0 0.0
      %2761 = vmatprep.subr.mxu0 0.0
      %2762 = vmatpush2.msra.mxu0 0.0
      %2763 = vmatprep.subr.mxu0 0.0
      %2764 = vmatpush2.msra.mxu0 0.0
      %2765 = vmatprep.subr.mxu0 0.0
      %2766 = vmatpush2.msra.mxu0 0.0
      %2767 = vmatprep.subr.mxu0 0.0
      %2768 = vmatpush2.msra.mxu0 0.0
      %2769 = vmatprep.subr.mxu0 0.0
      %2770 = vmatpush2.msra.mxu0 0.0
      %2771 = vmatprep.subr.mxu0 0.0
      %2772 = vmatpush2.msra.mxu0 0.0
      %2773 = vmatprep.subr.mxu0 0.0
      %2774 = vmatpush2.msra.mxu0 0.0
      %2775 = vmatprep.subr.mxu0 0.0
      %2776 = vmatpush2.msra.mxu0 0.0
      %2777 = vmatprep.subr.mxu0 0.0
      %2778 = vmatpush2.msra.mxu0 0.0
      %2779 = vmatprep.subr.mxu0 0.0
      %2780 = vmatpush2.msra.mxu0 0.0
      %2781 = vmatprep.subr.mxu0 0.0
      %2782 = vmatpush2.msra.mxu0 0.0
      %2783 = vmatprep.subr.mxu0 0.0
      %2784 = vmatpush2.msra.mxu0 0.0
      %2785 = vmatprep.subr.mxu0 0.0
      %2786 = vmatpush2.msra.mxu0 0.0
      %2787 = vmatprep.subr.mxu0 0.0
      %2788 = vmatpush2.msra.mxu0 0.0
      %2789 = vmatprep.subr.mxu0 0.0
      %2790 = vmatpush2.msra.mxu0 0.0
      %2791 = vmatprep.mubr.f32.mxu0 0.0
      %2792 = vmatmul.mubr.f32.gmra.mxu0 %v2650
      %v2793 = vpop.f32.mrf.mxu0
      %v2794 = vadd.f32 0.0, %v2793
      %v2795 = vpop.f32.mrf.mxu0
      %v2796 = vadd.f32 0.0, %v2795
      %2797 = vmatprep.mubr.f32.mxu0 0.0
      %2798 = vmatmul.mubr.f32.gmra.mxu0 %v2651
      %v2799 = vpop.f32.mrf.mxu0
      %v2800 = vadd.f32 0.0, %v2799
      %v2801 = vpop.f32.mrf.mxu0
      %v2802 = vadd.f32 0.0, %v2801
      %2803 = vdwg.mxu0
      %2804 = vmatprep.subr.mxu0 %v2726
      %2805 = vmatpush1.msra.mxu0 %v2725
      %2806 = vmatprep.subr.mxu0 %v2722
      %2807 = vmatpush1.msra.mxu0 %v2721
      %2808 = vmatprep.subr.mxu0 %v2718
      %2809 = vmatpush1.msra.mxu0 %v2717
      %2810 = vmatprep.subr.mxu0 %v2714
      %2811 = vmatpush1.msra.mxu0 %v2713
      %2812 = vmatprep.subr.mxu0 %v2710
      %2813 = vmatpush1.msra.mxu0 %v2709
      %2814 = vmatprep.subr.mxu0 %v2706
      %2815 = vmatpush1.msra.mxu0 %v2705
      %2816 = vmatprep.subr.mxu0 %v2702
      %2817 = vmatpush1.msra.mxu0 %v2701
      %2818 = vmatprep.subr.mxu0 %v2698
      %2819 = vmatpush1.msra.mxu0 %v2697
      %2820 = vmatprep.subr.mxu0 %v2694
      %2821 = vmatpush1.msra.mxu0 %v2693
      %2822 = vmatprep.subr.mxu0 %v2690
      %2823 = vmatpush1.msra.mxu0 %v2689
      %2824 = vmatprep.subr.mxu0 %v2686
      %2825 = vmatpush1.msra.mxu0 %v2685
      %2826 = vmatprep.subr.mxu0 %v2682
      %2827 = vmatpush1.msra.mxu0 %v2681
      %2828 = vmatprep.subr.mxu0 %v2678
      %2829 = vmatpush1.msra.mxu0 %v2677
      %2830 = vmatprep.subr.mxu0 %v2674
      %2831 = vmatpush1.msra.mxu0 %v2673
      %2832 = vmatprep.subr.mxu0 %v2670
      %2833 = vmatpush1.msra.mxu0 %v2669
      %2834 = vmatprep.subr.mxu0 %v2666
      %2835 = vmatpush1.msra.mxu0 %v2665
      %2836 = vmatprep.subr.mxu0 0.0
      %2837 = vmatpush2.msra.mxu0 0.0
      %2838 = vmatprep.subr.mxu0 0.0
      %2839 = vmatpush2.msra.mxu0 0.0
      %2840 = vmatprep.subr.mxu0 0.0
      %2841 = vmatpush2.msra.mxu0 0.0
      %2842 = vmatprep.subr.mxu0 0.0
      %2843 = vmatpush2.msra.mxu0 0.0
      %2844 = vmatprep.subr.mxu0 0.0
      %2845 = vmatpush2.msra.mxu0 0.0
      %2846 = vmatprep.subr.mxu0 0.0
      %2847 = vmatpush2.msra.mxu0 0.0
      %2848 = vmatprep.subr.mxu0 0.0
      %2849 = vmatpush2.msra.mxu0 0.0
      %2850 = vmatprep.subr.mxu0 0.0
      %2851 = vmatpush2.msra.mxu0 0.0
      %2852 = vmatprep.subr.mxu0 0.0
      %2853 = vmatpush2.msra.mxu0 0.0
      %2854 = vmatprep.subr.mxu0 0.0
      %2855 = vmatpush2.msra.mxu0 0.0
      %2856 = vmatprep.subr.mxu0 0.0
      %2857 = vmatpush2.msra.mxu0 0.0
      %2858 = vmatprep.subr.mxu0 0.0
      %2859 = vmatpush2.msra.mxu0 0.0
      %2860 = vmatprep.subr.mxu0 0.0
      %2861 = vmatpush2.msra.mxu0 0.0
      %2862 = vmatprep.subr.mxu0 0.0
      %2863 = vmatpush2.msra.mxu0 0.0
      %2864 = vmatprep.subr.mxu0 0.0
      %2865 = vmatpush2.msra.mxu0 0.0
      %2866 = vmatprep.subr.mxu0 0.0
      %2867 = vmatpush2.msra.mxu0 0.0
      %2868 = vmatprep.mubr.f32.mxu0 0.0
      %2869 = vmatmul.mubr.f32.gmra.mxu0 %v2650
      %v2870 = vpop.f32.mrf.mxu0
      %v2871 = vadd.f32 0.0, %v2870
      %v2872 = vpop.f32.mrf.mxu0
      %v2873 = vadd.f32 0.0, %v2872
      %2874 = vmatprep.mubr.f32.mxu0 0.0
      %2875 = vmatmul.mubr.f32.gmra.mxu0 %v2651
      %v2876 = vpop.f32.mrf.mxu0
      %v2877 = vadd.f32 0.0, %v2876
      %v2878 = vpop.f32.mrf.mxu0
      %v2879 = vadd.f32 0.0, %v2878
      %2880 = vdwg.mxu0
      %v2881 = vadd.f32 %v2655, %v2794
      %v2882 = vadd.f32 %v2656, %v2796
      %v2883 = vadd.f32 %v2657, %v2871
      %v2884 = vadd.f32 %v2658, %v2873
      %v2885 = vadd.f32 %v2659, %v2800
      %v2886 = vadd.f32 %v2660, %v2802
      %v2887 = vadd.f32 %v2661, %v2877
      %v2888 = vadd.f32 %v2662, %v2879
      %v2889 = vxor.u32 %v2881, 2147483648
      %v2890 = vxor.u32 %v2882, 2147483648
      %v2891 = vxor.u32 %v2883, 2147483648
      %v2892 = vxor.u32 %v2885, 2147483648
      %v2893 = vxor.u32 %v2886, 2147483648
      %v2894 = vxor.u32 %v2887, 2147483648
      %v2895 = vmul.f32 %v2889, 1.442695
      %v2896 = vpow.pop %v2895
      %v2897 = vmul.f32 %v2890, 1.442695
      %v2898 = vpow.pop %v2897
      %v2899 = vmul.f32 %v2891, 1.442695
      %v2900 = vpow.pop %v2899
      %v2901 = vmul.f32 %v2892, 1.442695
      %v2902 = vpow.pop %v2901
      %v2903 = vmul.f32 %v2893, 1.442695
      %v2904 = vpow.pop %v2903
      %v2905 = vmul.f32 %v2894, 1.442695
      %v2906 = vpow.pop %v2905
      %v2907 = vadd.f32 %v2896, 1.0
      %v2908 = vadd.f32 %v2898, 1.0
      %v2909 = vadd.f32 %v2900, 1.0
      %v2910 = vadd.f32 %v2902, 1.0
      %v2911 = vadd.f32 %v2904, 1.0
      %v2912 = vadd.f32 %v2906, 1.0
      %v2913 = vrcp.pop %v2907
      %v2914 = vmul.f32 1.0, %v2913
      %v2915 = vrcp.pop %v2908
      %v2916 = vmul.f32 1.0, %v2915
      %v2917 = vrcp.pop %v2909
      %v2918 = vmul.f32 1.0, %v2917
      %v2919 = vrcp.pop %v2910
      %v2920 = vmul.f32 1.0, %v2919
      %v2921 = vrcp.pop %v2911
      %v2922 = vmul.f32 1.0, %v2921
      %v2923 = vrcp.pop %v2912
      %v2924 = vmul.f32 1.0, %v2923
      %v2925 = vtanh.pop %v2884
      %v2926 = vtanh.pop %v2888
      %v2927 = vmul.f32 %v2916, %v2652
      %v2928 = vmul.f32 %v2922, %v2653
      %v2929 = vmul.f32 %v2914, %v2925
      %v2930 = vmul.f32 %v2920, %v2926
      %v2931 = vadd.f32 %v2927, %v2929
      %v2932 = vadd.f32 %v2928, %v2930
      %v2933 = vtanh.pop %v2931
      %v2934 = vtanh.pop %v2932
      %v2935 = vmul.f32 %v2918, %v2933
      %v2936 = vmul.f32 %v2924, %v2934
      %2937 = vst [vmem:[#allocation3] sm:$0xff] %v2935
      %2938 = vst [vmem:[#allocation3 + $0x8] sm:$0xff] %v2936
      %2939 = vst [vmem:[#allocation4] sm:$0xff] %v2931
      %2940 = vst [vmem:[#allocation4 + $0x8] sm:$0xff] %v2932
      %s2941 = scalar_lea.vmem [#allocation14], 112
      %2942 = vst [vmem:[%s2941] sm:$0xff] %v2935
      %2943 = vst [vmem:[%s2941 + $0x8] sm:$0xff] %v2936
    $region53: #{tpu_custom_call.1} parent=1 // pred_fallthru
      _
    %p2944 = scmp.gt.s32.totalorder %s589, 8
    // Predicated region
    $region54: #{tpu_custom_call.1} parent=1 // pred_check
      %p2945 = pneg %p2944
    $region55: #{tpu_custom_call.1} parent=1 // pred_check_branch
      %2947 = sbr.rel (%p2945) target = $region57
    $region56: #{tpu_custom_call.1} parent=1 // pred_region
      %2948 = vst [vmem:[#allocation14] sm:$0xff] 0.0
      %2949 = vst [vmem:[#allocation14 + $0x8] sm:$0xff] 0.0
      %2950 = vst [vmem:[#allocation14 + $0x10] sm:$0xff] 0.0
      %2951 = vst [vmem:[#allocation14 + $0x18] sm:$0xff] 0.0
      %2952 = vst [vmem:[#allocation14 + $0x20] sm:$0xff] 0.0
      %2953 = vst [vmem:[#allocation14 + $0x28] sm:$0xff] 0.0
      %2954 = vst [vmem:[#allocation14 + $0x30] sm:$0xff] 0.0
      %2955 = vst [vmem:[#allocation14 + $0x38] sm:$0xff] 0.0
      %2956 = vst [vmem:[#allocation14 + $0x40] sm:$0xff] 0.0
      %2957 = vst [vmem:[#allocation14 + $0x48] sm:$0xff] 0.0
      %2958 = vst [vmem:[#allocation14 + $0x50] sm:$0xff] 0.0
      %2959 = vst [vmem:[#allocation14 + $0x58] sm:$0xff] 0.0
      %2960 = vst [vmem:[#allocation14 + $0x60] sm:$0xff] 0.0
      %2961 = vst [vmem:[#allocation14 + $0x68] sm:$0xff] 0.0
      %2962 = vst [vmem:[#allocation14 + $0x70] sm:$0xff] 0.0
      %2963 = vst [vmem:[#allocation14 + $0x78] sm:$0xff] 0.0
      %s2964 = smul.u32 0, 8
      %p2965 = scmp.lt.s32.totalorder %s2964, 8
      // Predicated region
      $region58: #{tpu_custom_call.1} parent=56 // pred_check
        %p2966 = pneg %p2965
      $region59: #{tpu_custom_call.1} parent=56 // pred_check_branch
        %2968 = sbr.rel (%p2966) target = $region61
      $region60: #{tpu_custom_call.1} parent=56 // pred_region
        %v2969 = vld [vmem:[#allocation3] sm:$0xff]
        %v2970 = vld [vmem:[#allocation3 + $0x8] sm:$0xff]
        %v2971 = vld [vmem:[#allocation4] sm:$0xff]
        %v2972 = vld [vmem:[#allocation4 + $0x8] sm:$0xff]
        %v2973 = vld [vmem:[#allocation2] sm:$0xff]
        %v2974 = vld [vmem:[#allocation2 + $0x8] sm:$0xff]
        %v2975 = vld [vmem:[#allocation2 + $0x10] sm:$0xff]
        %v2976 = vld [vmem:[#allocation2 + $0x18] sm:$0xff]
        %v2977 = vld [vmem:[#allocation2 + $0x20] sm:$0xff]
        %v2978 = vld [vmem:[#allocation2 + $0x28] sm:$0xff]
        %v2979 = vld [vmem:[#allocation2 + $0x30] sm:$0xff]
        %v2980 = vld [vmem:[#allocation2 + $0x38] sm:$0xff]
        %v2981 = vld [vmem:[#allocation13] sm:$0xff]
        %v2982 = vld [vmem:[#allocation13 + $0x8] sm:$0xff]
        %v2983 = vld [vmem:[#allocation13 + $0x10] sm:$0xff]
        %v2984 = vld [vmem:[#allocation13 + $0x18] sm:$0xff]
        %v2985 = vld [vmem:[#allocation13 + $0x20] sm:$0xff]
        %v2986 = vld [vmem:[#allocation13 + $0x28] sm:$0xff]
        %v2987 = vld [vmem:[#allocation13 + $0x30] sm:$0xff]
        %v2988 = vld [vmem:[#allocation13 + $0x38] sm:$0xff]
        %v2989 = vld [vmem:[#allocation13 + $0x40] sm:$0xff]
        %v2990 = vld [vmem:[#allocation13 + $0x48] sm:$0xff]
        %v2991 = vld [vmem:[#allocation13 + $0x50] sm:$0xff]
        %v2992 = vld [vmem:[#allocation13 + $0x58] sm:$0xff]
        %v2993 = vld [vmem:[#allocation13 + $0x60] sm:$0xff]
        %v2994 = vld [vmem:[#allocation13 + $0x68] sm:$0xff]
        %v2995 = vld [vmem:[#allocation13 + $0x70] sm:$0xff]
        %v2996 = vld [vmem:[#allocation13 + $0x78] sm:$0xff]
        %v2997 = vld [vmem:[#allocation13 + $0x80] sm:$0xff]
        %v2998 = vld [vmem:[#allocation13 + $0x88] sm:$0xff]
        %v2999 = vld [vmem:[#allocation13 + $0x90] sm:$0xff]
        %v3000 = vld [vmem:[#allocation13 + $0x98] sm:$0xff]
        %v3001 = vld [vmem:[#allocation13 + $0xa0] sm:$0xff]
        %v3002 = vld [vmem:[#allocation13 + $0xa8] sm:$0xff]
        %v3003 = vld [vmem:[#allocation13 + $0xb0] sm:$0xff]
        %v3004 = vld [vmem:[#allocation13 + $0xb8] sm:$0xff]
        %v3005 = vld [vmem:[#allocation13 + $0xc0] sm:$0xff]
        %v3006 = vld [vmem:[#allocation13 + $0xc8] sm:$0xff]
        %v3007 = vld [vmem:[#allocation13 + $0xd0] sm:$0xff]
        %v3008 = vld [vmem:[#allocation13 + $0xd8] sm:$0xff]
        %v3009 = vld [vmem:[#allocation13 + $0xe0] sm:$0xff]
        %v3010 = vld [vmem:[#allocation13 + $0xe8] sm:$0xff]
        %v3011 = vld [vmem:[#allocation13 + $0xf0] sm:$0xff]
        %v3012 = vld [vmem:[#allocation13 + $0xf8] sm:$0xff]
        %v3013 = vld [vmem:[#allocation13 + $0x100] sm:$0xff]
        %v3014 = vld [vmem:[#allocation13 + $0x108] sm:$0xff]
        %v3015 = vld [vmem:[#allocation13 + $0x110] sm:$0xff]
        %v3016 = vld [vmem:[#allocation13 + $0x118] sm:$0xff]
        %v3017 = vld [vmem:[#allocation13 + $0x120] sm:$0xff]
        %v3018 = vld [vmem:[#allocation13 + $0x128] sm:$0xff]
        %v3019 = vld [vmem:[#allocation13 + $0x130] sm:$0xff]
        %v3020 = vld [vmem:[#allocation13 + $0x138] sm:$0xff]
        %v3021 = vld [vmem:[#allocation13 + $0x140] sm:$0xff]
        %v3022 = vld [vmem:[#allocation13 + $0x148] sm:$0xff]
        %v3023 = vld [vmem:[#allocation13 + $0x150] sm:$0xff]
        %v3024 = vld [vmem:[#allocation13 + $0x158] sm:$0xff]
        %v3025 = vld [vmem:[#allocation13 + $0x160] sm:$0xff]
        %v3026 = vld [vmem:[#allocation13 + $0x168] sm:$0xff]
        %v3027 = vld [vmem:[#allocation13 + $0x170] sm:$0xff]
        %v3028 = vld [vmem:[#allocation13 + $0x178] sm:$0xff]
        %v3029 = vld [vmem:[#allocation13 + $0x180] sm:$0xff]
        %v3030 = vld [vmem:[#allocation13 + $0x188] sm:$0xff]
        %v3031 = vld [vmem:[#allocation13 + $0x190] sm:$0xff]
        %v3032 = vld [vmem:[#allocation13 + $0x198] sm:$0xff]
        %v3033 = vld [vmem:[#allocation13 + $0x1a0] sm:$0xff]
        %v3034 = vld [vmem:[#allocation13 + $0x1a8] sm:$0xff]
        %v3035 = vld [vmem:[#allocation13 + $0x1b0] sm:$0xff]
        %v3036 = vld [vmem:[#allocation13 + $0x1b8] sm:$0xff]
        %v3037 = vld [vmem:[#allocation13 + $0x1c0] sm:$0xff]
        %v3038 = vld [vmem:[#allocation13 + $0x1c8] sm:$0xff]
        %v3039 = vld [vmem:[#allocation13 + $0x1d0] sm:$0xff]
        %v3040 = vld [vmem:[#allocation13 + $0x1d8] sm:$0xff]
        %v3041 = vld [vmem:[#allocation13 + $0x1e0] sm:$0xff]
        %v3042 = vld [vmem:[#allocation13 + $0x1e8] sm:$0xff]
        %v3043 = vld [vmem:[#allocation13 + $0x1f0] sm:$0xff]
        %v3044 = vld [vmem:[#allocation13 + $0x1f8] sm:$0xff]
        %3045 = vmatprep.subr.mxu0 %v3042
        %3046 = vmatpush1.msra.mxu0 %v3041
        %3047 = vmatprep.subr.mxu0 %v3038
        %3048 = vmatpush1.msra.mxu0 %v3037
        %3049 = vmatprep.subr.mxu0 %v3034
        %3050 = vmatpush1.msra.mxu0 %v3033
        %3051 = vmatprep.subr.mxu0 %v3030
        %3052 = vmatpush1.msra.mxu0 %v3029
        %3053 = vmatprep.subr.mxu0 %v3026
        %3054 = vmatpush1.msra.mxu0 %v3025
        %3055 = vmatprep.subr.mxu0 %v3022
        %3056 = vmatpush1.msra.mxu0 %v3021
        %3057 = vmatprep.subr.mxu0 %v3018
        %3058 = vmatpush1.msra.mxu0 %v3017
        %3059 = vmatprep.subr.mxu0 %v3014
        %3060 = vmatpush1.msra.mxu0 %v3013
        %3061 = vmatprep.subr.mxu0 %v3010
        %3062 = vmatpush1.msra.mxu0 %v3009
        %3063 = vmatprep.subr.mxu0 %v3006
        %3064 = vmatpush1.msra.mxu0 %v3005
        %3065 = vmatprep.subr.mxu0 %v3002
        %3066 = vmatpush1.msra.mxu0 %v3001
        %3067 = vmatprep.subr.mxu0 %v2998
        %3068 = vmatpush1.msra.mxu0 %v2997
        %3069 = vmatprep.subr.mxu0 %v2994
        %3070 = vmatpush1.msra.mxu0 %v2993
        %3071 = vmatprep.subr.mxu0 %v2990
        %3072 = vmatpush1.msra.mxu0 %v2989
        %3073 = vmatprep.subr.mxu0 %v2986
        %3074 = vmatpush1.msra.mxu0 %v2985
        %3075 = vmatprep.subr.mxu0 %v2982
        %3076 = vmatpush1.msra.mxu0 %v2981
        %3077 = vmatprep.subr.mxu0 0.0
        %3078 = vmatpush2.msra.mxu0 0.0
        %3079 = vmatprep.subr.mxu0 0.0
        %3080 = vmatpush2.msra.mxu0 0.0
        %3081 = vmatprep.subr.mxu0 0.0
        %3082 = vmatpush2.msra.mxu0 0.0
        %3083 = vmatprep.subr.mxu0 0.0
        %3084 = vmatpush2.msra.mxu0 0.0
        %3085 = vmatprep.subr.mxu0 0.0
        %3086 = vmatpush2.msra.mxu0 0.0
        %3087 = vmatprep.subr.mxu0 0.0
        %3088 = vmatpush2.msra.mxu0 0.0
        %3089 = vmatprep.subr.mxu0 0.0
        %3090 = vmatpush2.msra.mxu0 0.0
        %3091 = vmatprep.subr.mxu0 0.0
        %3092 = vmatpush2.msra.mxu0 0.0
        %3093 = vmatprep.subr.mxu0 0.0
        %3094 = vmatpush2.msra.mxu0 0.0
        %3095 = vmatprep.subr.mxu0 0.0
        %3096 = vmatpush2.msra.mxu0 0.0
        %3097 = vmatprep.subr.mxu0 0.0
        %3098 = vmatpush2.msra.mxu0 0.0
        %3099 = vmatprep.subr.mxu0 0.0
        %3100 = vmatpush2.msra.mxu0 0.0
        %3101 = vmatprep.subr.mxu0 0.0
        %3102 = vmatpush2.msra.mxu0 0.0
        %3103 = vmatprep.subr.mxu0 0.0
        %3104 = vmatpush2.msra.mxu0 0.0
        %3105 = vmatprep.subr.mxu0 0.0
        %3106 = vmatpush2.msra.mxu0 0.0
        %3107 = vmatprep.subr.mxu0 0.0
        %3108 = vmatpush2.msra.mxu0 0.0
        %3109 = vmatprep.mubr.f32.mxu0 0.0
        %3110 = vmatmul.mubr.f32.gmra.mxu0 %v2969
        %v3111 = vpop.f32.mrf.mxu0
        %v3112 = vadd.f32 0.0, %v3111
        %v3113 = vpop.f32.mrf.mxu0
        %v3114 = vadd.f32 0.0, %v3113
        %3115 = vmatprep.mubr.f32.mxu0 0.0
        %3116 = vmatmul.mubr.f32.gmra.mxu0 %v2970
        %v3117 = vpop.f32.mrf.mxu0
        %v3118 = vadd.f32 0.0, %v3117
        %v3119 = vpop.f32.mrf.mxu0
        %v3120 = vadd.f32 0.0, %v3119
        %3121 = vdwg.mxu0
        %3122 = vmatprep.subr.mxu0 %v3044
        %3123 = vmatpush1.msra.mxu0 %v3043
        %3124 = vmatprep.subr.mxu0 %v3040
        %3125 = vmatpush1.msra.mxu0 %v3039
        %3126 = vmatprep.subr.mxu0 %v3036
        %3127 = vmatpush1.msra.mxu0 %v3035
        %3128 = vmatprep.subr.mxu0 %v3032
        %3129 = vmatpush1.msra.mxu0 %v3031
        %3130 = vmatprep.subr.mxu0 %v3028
        %3131 = vmatpush1.msra.mxu0 %v3027
        %3132 = vmatprep.subr.mxu0 %v3024
        %3133 = vmatpush1.msra.mxu0 %v3023
        %3134 = vmatprep.subr.mxu0 %v3020
        %3135 = vmatpush1.msra.mxu0 %v3019
        %3136 = vmatprep.subr.mxu0 %v3016
        %3137 = vmatpush1.msra.mxu0 %v3015
        %3138 = vmatprep.subr.mxu0 %v3012
        %3139 = vmatpush1.msra.mxu0 %v3011
        %3140 = vmatprep.subr.mxu0 %v3008
        %3141 = vmatpush1.msra.mxu0 %v3007
        %3142 = vmatprep.subr.mxu0 %v3004
        %3143 = vmatpush1.msra.mxu0 %v3003
        %3144 = vmatprep.subr.mxu0 %v3000
        %3145 = vmatpush1.msra.mxu0 %v2999
        %3146 = vmatprep.subr.mxu0 %v2996
        %3147 = vmatpush1.msra.mxu0 %v2995
        %3148 = vmatprep.subr.mxu0 %v2992
        %3149 = vmatpush1.msra.mxu0 %v2991
        %3150 = vmatprep.subr.mxu0 %v2988
        %3151 = vmatpush1.msra.mxu0 %v2987
        %3152 = vmatprep.subr.mxu0 %v2984
        %3153 = vmatpush1.msra.mxu0 %v2983
        %3154 = vmatprep.subr.mxu0 0.0
        %3155 = vmatpush2.msra.mxu0 0.0
        %3156 = vmatprep.subr.mxu0 0.0
        %3157 = vmatpush2.msra.mxu0 0.0
        %3158 = vmatprep.subr.mxu0 0.0
        %3159 = vmatpush2.msra.mxu0 0.0
        %3160 = vmatprep.subr.mxu0 0.0
        %3161 = vmatpush2.msra.mxu0 0.0
        %3162 = vmatprep.subr.mxu0 0.0
        %3163 = vmatpush2.msra.mxu0 0.0
        %3164 = vmatprep.subr.mxu0 0.0
        %3165 = vmatpush2.msra.mxu0 0.0
        %3166 = vmatprep.subr.mxu0 0.0
        %3167 = vmatpush2.msra.mxu0 0.0
        %3168 = vmatprep.subr.mxu0 0.0
        %3169 = vmatpush2.msra.mxu0 0.0
        %3170 = vmatprep.subr.mxu0 0.0
        %3171 = vmatpush2.msra.mxu0 0.0
        %3172 = vmatprep.subr.mxu0 0.0
        %3173 = vmatpush2.msra.mxu0 0.0
        %3174 = vmatprep.subr.mxu0 0.0
        %3175 = vmatpush2.msra.mxu0 0.0
        %3176 = vmatprep.subr.mxu0 0.0
        %3177 = vmatpush2.msra.mxu0 0.0
        %3178 = vmatprep.subr.mxu0 0.0
        %3179 = vmatpush2.msra.mxu0 0.0
        %3180 = vmatprep.subr.mxu0 0.0
        %3181 = vmatpush2.msra.mxu0 0.0
        %3182 = vmatprep.subr.mxu0 0.0
        %3183 = vmatpush2.msra.mxu0 0.0
        %3184 = vmatprep.subr.mxu0 0.0
        %3185 = vmatpush2.msra.mxu0 0.0
        %3186 = vmatprep.mubr.f32.mxu0 0.0
        %3187 = vmatmul.mubr.f32.gmra.mxu0 %v2969
        %v3188 = vpop.f32.mrf.mxu0
        %v3189 = vadd.f32 0.0, %v3188
        %v3190 = vpop.f32.mrf.mxu0
        %v3191 = vadd.f32 0.0, %v3190
        %3192 = vmatprep.mubr.f32.mxu0 0.0
        %3193 = vmatmul.mubr.f32.gmra.mxu0 %v2970
        %v3194 = vpop.f32.mrf.mxu0
        %v3195 = vadd.f32 0.0, %v3194
        %v3196 = vpop.f32.mrf.mxu0
        %v3197 = vadd.f32 0.0, %v3196
        %3198 = vdwg.mxu0
        %v3199 = vadd.f32 %v2973, %v3112
        %v3200 = vadd.f32 %v2974, %v3114
        %v3201 = vadd.f32 %v2975, %v3189
        %v3202 = vadd.f32 %v2976, %v3191
        %v3203 = vadd.f32 %v2977, %v3118
        %v3204 = vadd.f32 %v2978, %v3120
        %v3205 = vadd.f32 %v2979, %v3195
        %v3206 = vadd.f32 %v2980, %v3197
        %v3207 = vxor.u32 %v3199, 2147483648
        %v3208 = vxor.u32 %v3200, 2147483648
        %v3209 = vxor.u32 %v3201, 2147483648
        %v3210 = vxor.u32 %v3203, 2147483648
        %v3211 = vxor.u32 %v3204, 2147483648
        %v3212 = vxor.u32 %v3205, 2147483648
        %v3213 = vmul.f32 %v3207, 1.442695
        %v3214 = vpow.pop %v3213
        %v3215 = vmul.f32 %v3208, 1.442695
        %v3216 = vpow.pop %v3215
        %v3217 = vmul.f32 %v3209, 1.442695
        %v3218 = vpow.pop %v3217
        %v3219 = vmul.f32 %v3210, 1.442695
        %v3220 = vpow.pop %v3219
        %v3221 = vmul.f32 %v3211, 1.442695
        %v3222 = vpow.pop %v3221
        %v3223 = vmul.f32 %v3212, 1.442695
        %v3224 = vpow.pop %v3223
        %v3225 = vadd.f32 %v3214, 1.0
        %v3226 = vadd.f32 %v3216, 1.0
        %v3227 = vadd.f32 %v3218, 1.0
        %v3228 = vadd.f32 %v3220, 1.0
        %v3229 = vadd.f32 %v3222, 1.0
        %v3230 = vadd.f32 %v3224, 1.0
        %v3231 = vrcp.pop %v3225
        %v3232 = vmul.f32 1.0, %v3231
        %v3233 = vrcp.pop %v3226
        %v3234 = vmul.f32 1.0, %v3233
        %v3235 = vrcp.pop %v3227
        %v3236 = vmul.f32 1.0, %v3235
        %v3237 = vrcp.pop %v3228
        %v3238 = vmul.f32 1.0, %v3237
        %v3239 = vrcp.pop %v3229
        %v3240 = vmul.f32 1.0, %v3239
        %v3241 = vrcp.pop %v3230
        %v3242 = vmul.f32 1.0, %v3241
        %v3243 = vtanh.pop %v3202
        %v3244 = vtanh.pop %v3206
        %v3245 = vmul.f32 %v3234, %v2971
        %v3246 = vmul.f32 %v3240, %v2972
        %v3247 = vmul.f32 %v3232, %v3243
        %v3248 = vmul.f32 %v3238, %v3244
        %v3249 = vadd.f32 %v3245, %v3247
        %v3250 = vadd.f32 %v3246, %v3248
        %v3251 = vtanh.pop %v3249
        %v3252 = vtanh.pop %v3250
        %v3253 = vmul.f32 %v3236, %v3251
        %v3254 = vmul.f32 %v3242, %v3252
        %3255 = vst [vmem:[#allocation3] sm:$0xff] %v3253
        %3256 = vst [vmem:[#allocation3 + $0x8] sm:$0xff] %v3254
        %3257 = vst [vmem:[#allocation4] sm:$0xff] %v3249
        %3258 = vst [vmem:[#allocation4 + $0x8] sm:$0xff] %v3250
        %3259 = vst [vmem:[#allocation14] sm:$0xff] %v3253
        %3260 = vst [vmem:[#allocation14 + $0x8] sm:$0xff] %v3254
      $region61: #{tpu_custom_call.1} parent=56 // pred_fallthru
        _
      %s3261 = sadd.s32 %s2964, 1
      %p3262 = scmp.lt.s32.totalorder %s3261, 8
      // Predicated region
      $region62: #{tpu_custom_call.1} parent=56 // pred_check
        %p3263 = pneg %p3262
      $region63: #{tpu_custom_call.1} parent=56 // pred_check_branch
        %3265 = sbr.rel (%p3263) target = $region65
      $region64: #{tpu_custom_call.1} parent=56 // pred_region
        %v3266 = vld [vmem:[#allocation3] sm:$0xff]
        %v3267 = vld [vmem:[#allocation3 + $0x8] sm:$0xff]
        %v3268 = vld [vmem:[#allocation4] sm:$0xff]
        %v3269 = vld [vmem:[#allocation4 + $0x8] sm:$0xff]
        %s3270 = scalar_lea.vmem [#allocation2], 64
        %v3271 = vld [vmem:[%s3270] sm:$0xff]
        %v3272 = vld [vmem:[%s3270 + $0x8] sm:$0xff]
        %v3273 = vld [vmem:[%s3270 + $0x10] sm:$0xff]
        %v3274 = vld [vmem:[%s3270 + $0x18] sm:$0xff]
        %v3275 = vld [vmem:[%s3270 + $0x20] sm:$0xff]
        %v3276 = vld [vmem:[%s3270 + $0x28] sm:$0xff]
        %v3277 = vld [vmem:[%s3270 + $0x30] sm:$0xff]
        %v3278 = vld [vmem:[%s3270 + $0x38] sm:$0xff]
        %v3279 = vld [vmem:[#allocation13] sm:$0xff]
        %v3280 = vld [vmem:[#allocation13 + $0x8] sm:$0xff]
        %v3281 = vld [vmem:[#allocation13 + $0x10] sm:$0xff]
        %v3282 = vld [vmem:[#allocation13 + $0x18] sm:$0xff]
        %v3283 = vld [vmem:[#allocation13 + $0x20] sm:$0xff]
        %v3284 = vld [vmem:[#allocation13 + $0x28] sm:$0xff]
        %v3285 = vld [vmem:[#allocation13 + $0x30] sm:$0xff]
        %v3286 = vld [vmem:[#allocation13 + $0x38] sm:$0xff]
        %v3287 = vld [vmem:[#allocation13 + $0x40] sm:$0xff]
        %v3288 = vld [vmem:[#allocation13 + $0x48] sm:$0xff]
        %v3289 = vld [vmem:[#allocation13 + $0x50] sm:$0xff]
        %v3290 = vld [vmem:[#allocation13 + $0x58] sm:$0xff]
        %v3291 = vld [vmem:[#allocation13 + $0x60] sm:$0xff]
        %v3292 = vld [vmem:[#allocation13 + $0x68] sm:$0xff]
        %v3293 = vld [vmem:[#allocation13 + $0x70] sm:$0xff]
        %v3294 = vld [vmem:[#allocation13 + $0x78] sm:$0xff]
        %v3295 = vld [vmem:[#allocation13 + $0x80] sm:$0xff]
        %v3296 = vld [vmem:[#allocation13 + $0x88] sm:$0xff]
        %v3297 = vld [vmem:[#allocation13 + $0x90] sm:$0xff]
        %v3298 = vld [vmem:[#allocation13 + $0x98] sm:$0xff]
        %v3299 = vld [vmem:[#allocation13 + $0xa0] sm:$0xff]
        %v3300 = vld [vmem:[#allocation13 + $0xa8] sm:$0xff]
        %v3301 = vld [vmem:[#allocation13 + $0xb0] sm:$0xff]
        %v3302 = vld [vmem:[#allocation13 + $0xb8] sm:$0xff]
        %v3303 = vld [vmem:[#allocation13 + $0xc0] sm:$0xff]
        %v3304 = vld [vmem:[#allocation13 + $0xc8] sm:$0xff]
        %v3305 = vld [vmem:[#allocation13 + $0xd0] sm:$0xff]
        %v3306 = vld [vmem:[#allocation13 + $0xd8] sm:$0xff]
        %v3307 = vld [vmem:[#allocation13 + $0xe0] sm:$0xff]
        %v3308 = vld [vmem:[#allocation13 + $0xe8] sm:$0xff]
        %v3309 = vld [vmem:[#allocation13 + $0xf0] sm:$0xff]
        %v3310 = vld [vmem:[#allocation13 + $0xf8] sm:$0xff]
        %v3311 = vld [vmem:[#allocation13 + $0x100] sm:$0xff]
        %v3312 = vld [vmem:[#allocation13 + $0x108] sm:$0xff]
        %v3313 = vld [vmem:[#allocation13 + $0x110] sm:$0xff]
        %v3314 = vld [vmem:[#allocation13 + $0x118] sm:$0xff]
        %v3315 = vld [vmem:[#allocation13 + $0x120] sm:$0xff]
        %v3316 = vld [vmem:[#allocation13 + $0x128] sm:$0xff]
        %v3317 = vld [vmem:[#allocation13 + $0x130] sm:$0xff]
        %v3318 = vld [vmem:[#allocation13 + $0x138] sm:$0xff]
        %v3319 = vld [vmem:[#allocation13 + $0x140] sm:$0xff]
        %v3320 = vld [vmem:[#allocation13 + $0x148] sm:$0xff]
        %v3321 = vld [vmem:[#allocation13 + $0x150] sm:$0xff]
        %v3322 = vld [vmem:[#allocation13 + $0x158] sm:$0xff]
        %v3323 = vld [vmem:[#allocation13 + $0x160] sm:$0xff]
        %v3324 = vld [vmem:[#allocation13 + $0x168] sm:$0xff]
        %v3325 = vld [vmem:[#allocation13 + $0x170] sm:$0xff]
        %v3326 = vld [vmem:[#allocation13 + $0x178] sm:$0xff]
        %v3327 = vld [vmem:[#allocation13 + $0x180] sm:$0xff]
        %v3328 = vld [vmem:[#allocation13 + $0x188] sm:$0xff]
        %v3329 = vld [vmem:[#allocation13 + $0x190] sm:$0xff]
        %v3330 = vld [vmem:[#allocation13 + $0x198] sm:$0xff]
        %v3331 = vld [vmem:[#allocation13 + $0x1a0] sm:$0xff]
        %v3332 = vld [vmem:[#allocation13 + $0x1a8] sm:$0xff]
        %v3333 = vld [vmem:[#allocation13 + $0x1b0] sm:$0xff]
        %v3334 = vld [vmem:[#allocation13 + $0x1b8] sm:$0xff]
        %v3335 = vld [vmem:[#allocation13 + $0x1c0] sm:$0xff]
        %v3336 = vld [vmem:[#allocation13 + $0x1c8] sm:$0xff]
        %v3337 = vld [vmem:[#allocation13 + $0x1d0] sm:$0xff]
        %v3338 = vld [vmem:[#allocation13 + $0x1d8] sm:$0xff]
        %v3339 = vld [vmem:[#allocation13 + $0x1e0] sm:$0xff]
        %v3340 = vld [vmem:[#allocation13 + $0x1e8] sm:$0xff]
        %v3341 = vld [vmem:[#allocation13 + $0x1f0] sm:$0xff]
        %v3342 = vld [vmem:[#allocation13 + $0x1f8] sm:$0xff]
        %3343 = vmatprep.subr.mxu0 %v3340
        %3344 = vmatpush1.msra.mxu0 %v3339
        %3345 = vmatprep.subr.mxu0 %v3336
        %3346 = vmatpush1.msra.mxu0 %v3335
        %3347 = vmatprep.subr.mxu0 %v3332
        %3348 = vmatpush1.msra.mxu0 %v3331
        %3349 = vmatprep.subr.mxu0 %v3328
        %3350 = vmatpush1.msra.mxu0 %v3327
        %3351 = vmatprep.subr.mxu0 %v3324
        %3352 = vmatpush1.msra.mxu0 %v3323
        %3353 = vmatprep.subr.mxu0 %v3320
        %3354 = vmatpush1.msra.mxu0 %v3319
        %3355 = vmatprep.subr.mxu0 %v3316
        %3356 = vmatpush1.msra.mxu0 %v3315
        %3357 = vmatprep.subr.mxu0 %v3312
        %3358 = vmatpush1.msra.mxu0 %v3311
        %3359 = vmatprep.subr.mxu0 %v3308
        %3360 = vmatpush1.msra.mxu0 %v3307
        %3361 = vmatprep.subr.mxu0 %v3304
        %3362 = vmatpush1.msra.mxu0 %v3303
        %3363 = vmatprep.subr.mxu0 %v3300
        %3364 = vmatpush1.msra.mxu0 %v3299
        %3365 = vmatprep.subr.mxu0 %v3296
        %3366 = vmatpush1.msra.mxu0 %v3295
        %3367 = vmatprep.subr.mxu0 %v3292
        %3368 = vmatpush1.msra.mxu0 %v3291
        %3369 = vmatprep.subr.mxu0 %v3288
        %3370 = vmatpush1.msra.mxu0 %v3287
        %3371 = vmatprep.subr.mxu0 %v3284
        %3372 = vmatpush1.msra.mxu0 %v3283
        %3373 = vmatprep.subr.mxu0 %v3280
        %3374 = vmatpush1.msra.mxu0 %v3279
        %3375 = vmatprep.subr.mxu0 0.0
        %3376 = vmatpush2.msra.mxu0 0.0
        %3377 = vmatprep.subr.mxu0 0.0
        %3378 = vmatpush2.msra.mxu0 0.0
        %3379 = vmatprep.subr.mxu0 0.0
        %3380 = vmatpush2.msra.mxu0 0.0
        %3381 = vmatprep.subr.mxu0 0.0
        %3382 = vmatpush2.msra.mxu0 0.0
        %3383 = vmatprep.subr.mxu0 0.0
        %3384 = vmatpush2.msra.mxu0 0.0
        %3385 = vmatprep.subr.mxu0 0.0
        %3386 = vmatpush2.msra.mxu0 0.0
        %3387 = vmatprep.subr.mxu0 0.0
        %3388 = vmatpush2.msra.mxu0 0.0
        %3389 = vmatprep.subr.mxu0 0.0
        %3390 = vmatpush2.msra.mxu0 0.0
        %3391 = vmatprep.subr.mxu0 0.0
        %3392 = vmatpush2.msra.mxu0 0.0
        %3393 = vmatprep.subr.mxu0 0.0
        %3394 = vmatpush2.msra.mxu0 0.0
        %3395 = vmatprep.subr.mxu0 0.0
        %3396 = vmatpush2.msra.mxu0 0.0
        %3397 = vmatprep.subr.mxu0 0.0
        %3398 = vmatpush2.msra.mxu0 0.0
        %3399 = vmatprep.subr.mxu0 0.0
        %3400 = vmatpush2.msra.mxu0 0.0
        %3401 = vmatprep.subr.mxu0 0.0
        %3402 = vmatpush2.msra.mxu0 0.0
        %3403 = vmatprep.subr.mxu0 0.0
        %3404 = vmatpush2.msra.mxu0 0.0
        %3405 = vmatprep.subr.mxu0 0.0
        %3406 = vmatpush2.msra.mxu0 0.0
        %3407 = vmatprep.mubr.f32.mxu0 0.0
        %3408 = vmatmul.mubr.f32.gmra.mxu0 %v3266
        %v3409 = vpop.f32.mrf.mxu0
        %v3410 = vadd.f32 0.0, %v3409
        %v3411 = vpop.f32.mrf.mxu0
        %v3412 = vadd.f32 0.0, %v3411
        %3413 = vmatprep.mubr.f32.mxu0 0.0
        %3414 = vmatmul.mubr.f32.gmra.mxu0 %v3267
        %v3415 = vpop.f32.mrf.mxu0
        %v3416 = vadd.f32 0.0, %v3415
        %v3417 = vpop.f32.mrf.mxu0
        %v3418 = vadd.f32 0.0, %v3417
        %3419 = vdwg.mxu0
        %3420 = vmatprep.subr.mxu0 %v3342
        %3421 = vmatpush1.msra.mxu0 %v3341
        %3422 = vmatprep.subr.mxu0 %v3338
        %3423 = vmatpush1.msra.mxu0 %v3337
        %3424 = vmatprep.subr.mxu0 %v3334
        %3425 = vmatpush1.msra.mxu0 %v3333
        %3426 = vmatprep.subr.mxu0 %v3330
        %3427 = vmatpush1.msra.mxu0 %v3329
        %3428 = vmatprep.subr.mxu0 %v3326
        %3429 = vmatpush1.msra.mxu0 %v3325
        %3430 = vmatprep.subr.mxu0 %v3322
        %3431 = vmatpush1.msra.mxu0 %v3321
        %3432 = vmatprep.subr.mxu0 %v3318
        %3433 = vmatpush1.msra.mxu0 %v3317
        %3434 = vmatprep.subr.mxu0 %v3314
        %3435 = vmatpush1.msra.mxu0 %v3313
        %3436 = vmatprep.subr.mxu0 %v3310
        %3437 = vmatpush1.msra.mxu0 %v3309
        %3438 = vmatprep.subr.mxu0 %v3306
        %3439 = vmatpush1.msra.mxu0 %v3305
        %3440 = vmatprep.subr.mxu0 %v3302
        %3441 = vmatpush1.msra.mxu0 %v3301
        %3442 = vmatprep.subr.mxu0 %v3298
        %3443 = vmatpush1.msra.mxu0 %v3297
        %3444 = vmatprep.subr.mxu0 %v3294
        %3445 = vmatpush1.msra.mxu0 %v3293
        %3446 = vmatprep.subr.mxu0 %v3290
        %3447 = vmatpush1.msra.mxu0 %v3289
        %3448 = vmatprep.subr.mxu0 %v3286
        %3449 = vmatpush1.msra.mxu0 %v3285
        %3450 = vmatprep.subr.mxu0 %v3282
        %3451 = vmatpush1.msra.mxu0 %v3281
        %3452 = vmatprep.subr.mxu0 0.0
        %3453 = vmatpush2.msra.mxu0 0.0
        %3454 = vmatprep.subr.mxu0 0.0
        %3455 = vmatpush2.msra.mxu0 0.0
        %3456 = vmatprep.subr.mxu0 0.0
        %3457 = vmatpush2.msra.mxu0 0.0
        %3458 = vmatprep.subr.mxu0 0.0
        %3459 = vmatpush2.msra.mxu0 0.0
        %3460 = vmatprep.subr.mxu0 0.0
        %3461 = vmatpush2.msra.mxu0 0.0
        %3462 = vmatprep.subr.mxu0 0.0
        %3463 = vmatpush2.msra.mxu0 0.0
        %3464 = vmatprep.subr.mxu0 0.0
        %3465 = vmatpush2.msra.mxu0 0.0
        %3466 = vmatprep.subr.mxu0 0.0
        %3467 = vmatpush2.msra.mxu0 0.0
        %3468 = vmatprep.subr.mxu0 0.0
        %3469 = vmatpush2.msra.mxu0 0.0
        %3470 = vmatprep.subr.mxu0 0.0
        %3471 = vmatpush2.msra.mxu0 0.0
        %3472 = vmatprep.subr.mxu0 0.0
        %3473 = vmatpush2.msra.mxu0 0.0
        %3474 = vmatprep.subr.mxu0 0.0
        %3475 = vmatpush2.msra.mxu0 0.0
        %3476 = vmatprep.subr.mxu0 0.0
        %3477 = vmatpush2.msra.mxu0 0.0
        %3478 = vmatprep.subr.mxu0 0.0
        %3479 = vmatpush2.msra.mxu0 0.0
        %3480 = vmatprep.subr.mxu0 0.0
        %3481 = vmatpush2.msra.mxu0 0.0
        %3482 = vmatprep.subr.mxu0 0.0
        %3483 = vmatpush2.msra.mxu0 0.0
        %3484 = vmatprep.mubr.f32.mxu0 0.0
        %3485 = vmatmul.mubr.f32.gmra.mxu0 %v3266
        %v3486 = vpop.f32.mrf.mxu0
        %v3487 = vadd.f32 0.0, %v3486
        %v3488 = vpop.f32.mrf.mxu0
        %v3489 = vadd.f32 0.0, %v3488
        %3490 = vmatprep.mubr.f32.mxu0 0.0
        %3491 = vmatmul.mubr.f32.gmra.mxu0 %v3267
        %v3492 = vpop.f32.mrf.mxu0
        %v3493 = vadd.f32 0.0, %v3492
        %v3494 = vpop.f32.mrf.mxu0
        %v3495 = vadd.f32 0.0, %v3494
        %3496 = vdwg.mxu0
        %v3497 = vadd.f32 %v3271, %v3410
        %v3498 = vadd.f32 %v3272, %v3412
        %v3499 = vadd.f32 %v3273, %v3487
        %v3500 = vadd.f32 %v3274, %v3489
        %v3501 = vadd.f32 %v3275, %v3416
        %v3502 = vadd.f32 %v3276, %v3418
        %v3503 = vadd.f32 %v3277, %v3493
        %v3504 = vadd.f32 %v3278, %v3495
        %v3505 = vxor.u32 %v3497, 2147483648
        %v3506 = vxor.u32 %v3498, 2147483648
        %v3507 = vxor.u32 %v3499, 2147483648
        %v3508 = vxor.u32 %v3501, 2147483648
        %v3509 = vxor.u32 %v3502, 2147483648
        %v3510 = vxor.u32 %v3503, 2147483648
        %v3511 = vmul.f32 %v3505, 1.442695
        %v3512 = vpow.pop %v3511
        %v3513 = vmul.f32 %v3506, 1.442695
        %v3514 = vpow.pop %v3513
        %v3515 = vmul.f32 %v3507, 1.442695
        %v3516 = vpow.pop %v3515
        %v3517 = vmul.f32 %v3508, 1.442695
        %v3518 = vpow.pop %v3517
        %v3519 = vmul.f32 %v3509, 1.442695
        %v3520 = vpow.pop %v3519
        %v3521 = vmul.f32 %v3510, 1.442695
        %v3522 = vpow.pop %v3521
        %v3523 = vadd.f32 %v3512, 1.0
        %v3524 = vadd.f32 %v3514, 1.0
        %v3525 = vadd.f32 %v3516, 1.0
        %v3526 = vadd.f32 %v3518, 1.0
        %v3527 = vadd.f32 %v3520, 1.0
        %v3528 = vadd.f32 %v3522, 1.0
        %v3529 = vrcp.pop %v3523
        %v3530 = vmul.f32 1.0, %v3529
        %v3531 = vrcp.pop %v3524
        %v3532 = vmul.f32 1.0, %v3531
        %v3533 = vrcp.pop %v3525
        %v3534 = vmul.f32 1.0, %v3533
        %v3535 = vrcp.pop %v3526
        %v3536 = vmul.f32 1.0, %v3535
        %v3537 = vrcp.pop %v3527
        %v3538 = vmul.f32 1.0, %v3537
        %v3539 = vrcp.pop %v3528
        %v3540 = vmul.f32 1.0, %v3539
        %v3541 = vtanh.pop %v3500
        %v3542 = vtanh.pop %v3504
        %v3543 = vmul.f32 %v3532, %v3268
        %v3544 = vmul.f32 %v3538, %v3269
        %v3545 = vmul.f32 %v3530, %v3541
        %v3546 = vmul.f32 %v3536, %v3542
        %v3547 = vadd.f32 %v3543, %v3545
        %v3548 = vadd.f32 %v3544, %v3546
        %v3549 = vtanh.pop %v3547
        %v3550 = vtanh.pop %v3548
        %v3551 = vmul.f32 %v3534, %v3549
        %v3552 = vmul.f32 %v3540, %v3550
        %3553 = vst [vmem:[#allocation3] sm:$0xff] %v3551
        %3554 = vst [vmem:[#allocation3 + $0x8] sm:$0xff] %v3552
        %3555 = vst [vmem:[#allocation4] sm:$0xff] %v3547
        %3556 = vst [vmem:[#allocation4 + $0x8] sm:$0xff] %v3548
        %s3557 = scalar_lea.vmem [#allocation14], 16
        %3558 = vst [vmem:[%s3557] sm:$0xff] %v3551
        %3559 = vst [vmem:[%s3557 + $0x8] sm:$0xff] %v3552
      $region65: #{tpu_custom_call.1} parent=56 // pred_fallthru
        _
      %s3560 = sadd.s32 %s2964, 2
      %p3561 = scmp.lt.s32.totalorder %s3560, 8
      // Predicated region
      $region66: #{tpu_custom_call.1} parent=56 // pred_check
        %p3562 = pneg %p3561
      $region67: #{tpu_custom_call.1} parent=56 // pred_check_branch
        %3564 = sbr.rel (%p3562) target = $region69
      $region68: #{tpu_custom_call.1} parent=56 // pred_region
        %v3565 = vld [vmem:[#allocation3] sm:$0xff]
        %v3566 = vld [vmem:[#allocation3 + $0x8] sm:$0xff]
        %v3567 = vld [vmem:[#allocation4] sm:$0xff]
        %v3568 = vld [vmem:[#allocation4 + $0x8] sm:$0xff]
        %s3569 = scalar_lea.vmem [#allocation2], 128
        %v3570 = vld [vmem:[%s3569] sm:$0xff]
        %v3571 = vld [vmem:[%s3569 + $0x8] sm:$0xff]
        %v3572 = vld [vmem:[%s3569 + $0x10] sm:$0xff]
        %v3573 = vld [vmem:[%s3569 + $0x18] sm:$0xff]
        %v3574 = vld [vmem:[%s3569 + $0x20] sm:$0xff]
        %v3575 = vld [vmem:[%s3569 + $0x28] sm:$0xff]
        %v3576 = vld [vmem:[%s3569 + $0x30] sm:$0xff]
        %v3577 = vld [vmem:[%s3569 + $0x38] sm:$0xff]
        %v3578 = vld [vmem:[#allocation13] sm:$0xff]
        %v3579 = vld [vmem:[#allocation13 + $0x8] sm:$0xff]
        %v3580 = vld [vmem:[#allocation13 + $0x10] sm:$0xff]
        %v3581 = vld [vmem:[#allocation13 + $0x18] sm:$0xff]
        %v3582 = vld [vmem:[#allocation13 + $0x20] sm:$0xff]
        %v3583 = vld [vmem:[#allocation13 + $0x28] sm:$0xff]
        %v3584 = vld [vmem:[#allocation13 + $0x30] sm:$0xff]
        %v3585 = vld [vmem:[#allocation13 + $0x38] sm:$0xff]
        %v3586 = vld [vmem:[#allocation13 + $0x40] sm:$0xff]
        %v3587 = vld [vmem:[#allocation13 + $0x48] sm:$0xff]
        %v3588 = vld [vmem:[#allocation13 + $0x50] sm:$0xff]
        %v3589 = vld [vmem:[#allocation13 + $0x58] sm:$0xff]
        %v3590 = vld [vmem:[#allocation13 + $0x60] sm:$0xff]
        %v3591 = vld [vmem:[#allocation13 + $0x68] sm:$0xff]
        %v3592 = vld [vmem:[#allocation13 + $0x70] sm:$0xff]
        %v3593 = vld [vmem:[#allocation13 + $0x78] sm:$0xff]
        %v3594 = vld [vmem:[#allocation13 + $0x80] sm:$0xff]
        %v3595 = vld [vmem:[#allocation13 + $0x88] sm:$0xff]
        %v3596 = vld [vmem:[#allocation13 + $0x90] sm:$0xff]
        %v3597 = vld [vmem:[#allocation13 + $0x98] sm:$0xff]
        %v3598 = vld [vmem:[#allocation13 + $0xa0] sm:$0xff]
        %v3599 = vld [vmem:[#allocation13 + $0xa8] sm:$0xff]
        %v3600 = vld [vmem:[#allocation13 + $0xb0] sm:$0xff]
        %v3601 = vld [vmem:[#allocation13 + $0xb8] sm:$0xff]
        %v3602 = vld [vmem:[#allocation13 + $0xc0] sm:$0xff]
        %v3603 = vld [vmem:[#allocation13 + $0xc8] sm:$0xff]
        %v3604 = vld [vmem:[#allocation13 + $0xd0] sm:$0xff]
        %v3605 = vld [vmem:[#allocation13 + $0xd8] sm:$0xff]
        %v3606 = vld [vmem:[#allocation13 + $0xe0] sm:$0xff]
        %v3607 = vld [vmem:[#allocation13 + $0xe8] sm:$0xff]
        %v3608 = vld [vmem:[#allocation13 + $0xf0] sm:$0xff]
        %v3609 = vld [vmem:[#allocation13 + $0xf8] sm:$0xff]
        %v3610 = vld [vmem:[#allocation13 + $0x100] sm:$0xff]
        %v3611 = vld [vmem:[#allocation13 + $0x108] sm:$0xff]
        %v3612 = vld [vmem:[#allocation13 + $0x110] sm:$0xff]
        %v3613 = vld [vmem:[#allocation13 + $0x118] sm:$0xff]
        %v3614 = vld [vmem:[#allocation13 + $0x120] sm:$0xff]
        %v3615 = vld [vmem:[#allocation13 + $0x128] sm:$0xff]
        %v3616 = vld [vmem:[#allocation13 + $0x130] sm:$0xff]
        %v3617 = vld [vmem:[#allocation13 + $0x138] sm:$0xff]
        %v3618 = vld [vmem:[#allocation13 + $0x140] sm:$0xff]
        %v3619 = vld [vmem:[#allocation13 + $0x148] sm:$0xff]
        %v3620 = vld [vmem:[#allocation13 + $0x150] sm:$0xff]
        %v3621 = vld [vmem:[#allocation13 + $0x158] sm:$0xff]
        %v3622 = vld [vmem:[#allocation13 + $0x160] sm:$0xff]
        %v3623 = vld [vmem:[#allocation13 + $0x168] sm:$0xff]
        %v3624 = vld [vmem:[#allocation13 + $0x170] sm:$0xff]
        %v3625 = vld [vmem:[#allocation13 + $0x178] sm:$0xff]
        %v3626 = vld [vmem:[#allocation13 + $0x180] sm:$0xff]
        %v3627 = vld [vmem:[#allocation13 + $0x188] sm:$0xff]
        %v3628 = vld [vmem:[#allocation13 + $0x190] sm:$0xff]
        %v3629 = vld [vmem:[#allocation13 + $0x198] sm:$0xff]
        %v3630 = vld [vmem:[#allocation13 + $0x1a0] sm:$0xff]
        %v3631 = vld [vmem:[#allocation13 + $0x1a8] sm:$0xff]
        %v3632 = vld [vmem:[#allocation13 + $0x1b0] sm:$0xff]
        %v3633 = vld [vmem:[#allocation13 + $0x1b8] sm:$0xff]
        %v3634 = vld [vmem:[#allocation13 + $0x1c0] sm:$0xff]
        %v3635 = vld [vmem:[#allocation13 + $0x1c8] sm:$0xff]
        %v3636 = vld [vmem:[#allocation13 + $0x1d0] sm:$0xff]
        %v3637 = vld [vmem:[#allocation13 + $0x1d8] sm:$0xff]
        %v3638 = vld [vmem:[#allocation13 + $0x1e0] sm:$0xff]
        %v3639 = vld [vmem:[#allocation13 + $0x1e8] sm:$0xff]
        %v3640 = vld [vmem:[#allocation13 + $0x1f0] sm:$0xff]
        %v3641 = vld [vmem:[#allocation13 + $0x1f8] sm:$0xff]
        %3642 = vmatprep.subr.mxu0 %v3639
        %3643 = vmatpush1.msra.mxu0 %v3638
        %3644 = vmatprep.subr.mxu0 %v3635
        %3645 = vmatpush1.msra.mxu0 %v3634
        %3646 = vmatprep.subr.mxu0 %v3631
        %3647 = vmatpush1.msra.mxu0 %v3630
        %3648 = vmatprep.subr.mxu0 %v3627
        %3649 = vmatpush1.msra.mxu0 %v3626
        %3650 = vmatprep.subr.mxu0 %v3623
        %3651 = vmatpush1.msra.mxu0 %v3622
        %3652 = vmatprep.subr.mxu0 %v3619
        %3653 = vmatpush1.msra.mxu0 %v3618
        %3654 = vmatprep.subr.mxu0 %v3615
        %3655 = vmatpush1.msra.mxu0 %v3614
        %3656 = vmatprep.subr.mxu0 %v3611
        %3657 = vmatpush1.msra.mxu0 %v3610
        %3658 = vmatprep.subr.mxu0 %v3607
        %3659 = vmatpush1.msra.mxu0 %v3606
        %3660 = vmatprep.subr.mxu0 %v3603
        %3661 = vmatpush1.msra.mxu0 %v3602
        %3662 = vmatprep.subr.mxu0 %v3599
        %3663 = vmatpush1.msra.mxu0 %v3598
        %3664 = vmatprep.subr.mxu0 %v3595
        %3665 = vmatpush1.msra.mxu0 %v3594
        %3666 = vmatprep.subr.mxu0 %v3591
        %3667 = vmatpush1.msra.mxu0 %v3590
        %3668 = vmatprep.subr.mxu0 %v3587
        %3669 = vmatpush1.msra.mxu0 %v3586
        %3670 = vmatprep.subr.mxu0 %v3583
        %3671 = vmatpush1.msra.mxu0 %v3582
        %3672 = vmatprep.subr.mxu0 %v3579
        %3673 = vmatpush1.msra.mxu0 %v3578
        %3674 = vmatprep.subr.mxu0 0.0
        %3675 = vmatpush2.msra.mxu0 0.0
        %3676 = vmatprep.subr.mxu0 0.0
        %3677 = vmatpush2.msra.mxu0 0.0
        %3678 = vmatprep.subr.mxu0 0.0
        %3679 = vmatpush2.msra.mxu0 0.0
        %3680 = vmatprep.subr.mxu0 0.0
        %3681 = vmatpush2.msra.mxu0 0.0
        %3682 = vmatprep.subr.mxu0 0.0
        %3683 = vmatpush2.msra.mxu0 0.0
        %3684 = vmatprep.subr.mxu0 0.0
        %3685 = vmatpush2.msra.mxu0 0.0
        %3686 = vmatprep.subr.mxu0 0.0
        %3687 = vmatpush2.msra.mxu0 0.0
        %3688 = vmatprep.subr.mxu0 0.0
        %3689 = vmatpush2.msra.mxu0 0.0
        %3690 = vmatprep.subr.mxu0 0.0
        %3691 = vmatpush2.msra.mxu0 0.0
        %3692 = vmatprep.subr.mxu0 0.0
        %3693 = vmatpush2.msra.mxu0 0.0
        %3694 = vmatprep.subr.mxu0 0.0
        %3695 = vmatpush2.msra.mxu0 0.0
        %3696 = vmatprep.subr.mxu0 0.0
        %3697 = vmatpush2.msra.mxu0 0.0
        %3698 = vmatprep.subr.mxu0 0.0
        %3699 = vmatpush2.msra.mxu0 0.0
        %3700 = vmatprep.subr.mxu0 0.0
        %3701 = vmatpush2.msra.mxu0 0.0
        %3702 = vmatprep.subr.mxu0 0.0
        %3703 = vmatpush2.msra.mxu0 0.0
        %3704 = vmatprep.subr.mxu0 0.0
        %3705 = vmatpush2.msra.mxu0 0.0
        %3706 = vmatprep.mubr.f32.mxu0 0.0
        %3707 = vmatmul.mubr.f32.gmra.mxu0 %v3565
        %v3708 = vpop.f32.mrf.mxu0
        %v3709 = vadd.f32 0.0, %v3708
        %v3710 = vpop.f32.mrf.mxu0
        %v3711 = vadd.f32 0.0, %v3710
        %3712 = vmatprep.mubr.f32.mxu0 0.0
        %3713 = vmatmul.mubr.f32.gmra.mxu0 %v3566
        %v3714 = vpop.f32.mrf.mxu0
        %v3715 = vadd.f32 0.0, %v3714
        %v3716 = vpop.f32.mrf.mxu0
        %v3717 = vadd.f32 0.0, %v3716
        %3718 = vdwg.mxu0
        %3719 = vmatprep.subr.mxu0 %v3641
        %3720 = vmatpush1.msra.mxu0 %v3640
        %3721 = vmatprep.subr.mxu0 %v3637
        %3722 = vmatpush1.msra.mxu0 %v3636
        %3723 = vmatprep.subr.mxu0 %v3633
        %3724 = vmatpush1.msra.mxu0 %v3632
        %3725 = vmatprep.subr.mxu0 %v3629
        %3726 = vmatpush1.msra.mxu0 %v3628
        %3727 = vmatprep.subr.mxu0 %v3625
        %3728 = vmatpush1.msra.mxu0 %v3624
        %3729 = vmatprep.subr.mxu0 %v3621
        %3730 = vmatpush1.msra.mxu0 %v3620
        %3731 = vmatprep.subr.mxu0 %v3617
        %3732 = vmatpush1.msra.mxu0 %v3616
        %3733 = vmatprep.subr.mxu0 %v3613
        %3734 = vmatpush1.msra.mxu0 %v3612
        %3735 = vmatprep.subr.mxu0 %v3609
        %3736 = vmatpush1.msra.mxu0 %v3608
        %3737 = vmatprep.subr.mxu0 %v3605
        %3738 = vmatpush1.msra.mxu0 %v3604
        %3739 = vmatprep.subr.mxu0 %v3601
        %3740 = vmatpush1.msra.mxu0 %v3600
        %3741 = vmatprep.subr.mxu0 %v3597
        %3742 = vmatpush1.msra.mxu0 %v3596
        %3743 = vmatprep.subr.mxu0 %v3593
        %3744 = vmatpush1.msra.mxu0 %v3592
        %3745 = vmatprep.subr.mxu0 %v3589
        %3746 = vmatpush1.msra.mxu0 %v3588
        %3747 = vmatprep.subr.mxu0 %v3585
        %3748 = vmatpush1.msra.mxu0 %v3584
        %3749 = vmatprep.subr.mxu0 %v3581
        %3750 = vmatpush1.msra.mxu0 %v3580
        %3751 = vmatprep.subr.mxu0 0.0
        %3752 = vmatpush2.msra.mxu0 0.0
        %3753 = vmatprep.subr.mxu0 0.0
        %3754 = vmatpush2.msra.mxu0 0.0
        %3755 = vmatprep.subr.mxu0 0.0
        %3756 = vmatpush2.msra.mxu0 0.0
        %3757 = vmatprep.subr.mxu0 0.0
        %3758 = vmatpush2.msra.mxu0 0.0
        %3759 = vmatprep.subr.mxu0 0.0
        %3760 = vmatpush2.msra.mxu0 0.0
        %3761 = vmatprep.subr.mxu0 0.0
        %3762 = vmatpush2.msra.mxu0 0.0
        %3763 = vmatprep.subr.mxu0 0.0
        %3764 = vmatpush2.msra.mxu0 0.0
        %3765 = vmatprep.subr.mxu0 0.0
        %3766 = vmatpush2.msra.mxu0 0.0
        %3767 = vmatprep.subr.mxu0 0.0
        %3768 = vmatpush2.msra.mxu0 0.0
        %3769 = vmatprep.subr.mxu0 0.0
        %3770 = vmatpush2.msra.mxu0 0.0
        %3771 = vmatprep.subr.mxu0 0.0
        %3772 = vmatpush2.msra.mxu0 0.0
        %3773 = vmatprep.subr.mxu0 0.0
        %3774 = vmatpush2.msra.mxu0 0.0
        %3775 = vmatprep.subr.mxu0 0.0
        %3776 = vmatpush2.msra.mxu0 0.0
        %3777 = vmatprep.subr.mxu0 0.0
        %3778 = vmatpush2.msra.mxu0 0.0
        %3779 = vmatprep.subr.mxu0 0.0
        %3780 = vmatpush2.msra.mxu0 0.0
        %3781 = vmatprep.subr.mxu0 0.0
        %3782 = vmatpush2.msra.mxu0 0.0
        %3783 = vmatprep.mubr.f32.mxu0 0.0
        %3784 = vmatmul.mubr.f32.gmra.mxu0 %v3565
        %v3785 = vpop.f32.mrf.mxu0
        %v3786 = vadd.f32 0.0, %v3785
        %v3787 = vpop.f32.mrf.mxu0
        %v3788 = vadd.f32 0.0, %v3787
        %3789 = vmatprep.mubr.f32.mxu0 0.0
        %3790 = vmatmul.mubr.f32.gmra.mxu0 %v3566
        %v3791 = vpop.f32.mrf.mxu0
        %v3792 = vadd.f32 0.0, %v3791
        %v3793 = vpop.f32.mrf.mxu0
        %v3794 = vadd.f32 0.0, %v3793
        %3795 = vdwg.mxu0
        %v3796 = vadd.f32 %v3570, %v3709
        %v3797 = vadd.f32 %v3571, %v3711
        %v3798 = vadd.f32 %v3572, %v3786
        %v3799 = vadd.f32 %v3573, %v3788
        %v3800 = vadd.f32 %v3574, %v3715
        %v3801 = vadd.f32 %v3575, %v3717
        %v3802 = vadd.f32 %v3576, %v3792
        %v3803 = vadd.f32 %v3577, %v3794
        %v3804 = vxor.u32 %v3796, 2147483648
        %v3805 = vxor.u32 %v3797, 2147483648
        %v3806 = vxor.u32 %v3798, 2147483648
        %v3807 = vxor.u32 %v3800, 2147483648
        %v3808 = vxor.u32 %v3801, 2147483648
        %v3809 = vxor.u32 %v3802, 2147483648
        %v3810 = vmul.f32 %v3804, 1.442695
        %v3811 = vpow.pop %v3810
        %v3812 = vmul.f32 %v3805, 1.442695
        %v3813 = vpow.pop %v3812
        %v3814 = vmul.f32 %v3806, 1.442695
        %v3815 = vpow.pop %v3814
        %v3816 = vmul.f32 %v3807, 1.442695
        %v3817 = vpow.pop %v3816
        %v3818 = vmul.f32 %v3808, 1.442695
        %v3819 = vpow.pop %v3818
        %v3820 = vmul.f32 %v3809, 1.442695
        %v3821 = vpow.pop %v3820
        %v3822 = vadd.f32 %v3811, 1.0
        %v3823 = vadd.f32 %v3813, 1.0
        %v3824 = vadd.f32 %v3815, 1.0
        %v3825 = vadd.f32 %v3817, 1.0
        %v3826 = vadd.f32 %v3819, 1.0
        %v3827 = vadd.f32 %v3821, 1.0
        %v3828 = vrcp.pop %v3822
        %v3829 = vmul.f32 1.0, %v3828
        %v3830 = vrcp.pop %v3823
        %v3831 = vmul.f32 1.0, %v3830
        %v3832 = vrcp.pop %v3824
        %v3833 = vmul.f32 1.0, %v3832
        %v3834 = vrcp.pop %v3825
        %v3835 = vmul.f32 1.0, %v3834
        %v3836 = vrcp.pop %v3826
        %v3837 = vmul.f32 1.0, %v3836
        %v3838 = vrcp.pop %v3827
        %v3839 = vmul.f32 1.0, %v3838
        %v3840 = vtanh.pop %v3799
        %v3841 = vtanh.pop %v3803
        %v3842 = vmul.f32 %v3831, %v3567
        %v3843 = vmul.f32 %v3837, %v3568
        %v3844 = vmul.f32 %v3829, %v3840
        %v3845 = vmul.f32 %v3835, %v3841
        %v3846 = vadd.f32 %v3842, %v3844
        %v3847 = vadd.f32 %v3843, %v3845
        %v3848 = vtanh.pop %v3846
        %v3849 = vtanh.pop %v3847
        %v3850 = vmul.f32 %v3833, %v3848
        %v3851 = vmul.f32 %v3839, %v3849
        %3852 = vst [vmem:[#allocation3] sm:$0xff] %v3850
        %3853 = vst [vmem:[#allocation3 + $0x8] sm:$0xff] %v3851
        %3854 = vst [vmem:[#allocation4] sm:$0xff] %v3846
        %3855 = vst [vmem:[#allocation4 + $0x8] sm:$0xff] %v3847
        %s3856 = scalar_lea.vmem [#allocation14], 32
        %3857 = vst [vmem:[%s3856] sm:$0xff] %v3850
        %3858 = vst [vmem:[%s3856 + $0x8] sm:$0xff] %v3851
      $region69: #{tpu_custom_call.1} parent=56 // pred_fallthru
        _
      %s3859 = sadd.s32 %s2964, 3
      %p3860 = scmp.lt.s32.totalorder %s3859, 8
      // Predicated region
      $region70: #{tpu_custom_call.1} parent=56 // pred_check
        %p3861 = pneg %p3860
      $region71: #{tpu_custom_call.1} parent=56 // pred_check_branch
        %3863 = sbr.rel (%p3861) target = $region73
      $region72: #{tpu_custom_call.1} parent=56 // pred_region
        %v3864 = vld [vmem:[#allocation3] sm:$0xff]
        %v3865 = vld [vmem:[#allocation3 + $0x8] sm:$0xff]
        %v3866 = vld [vmem:[#allocation4] sm:$0xff]
        %v3867 = vld [vmem:[#allocation4 + $0x8] sm:$0xff]
        %s3868 = scalar_lea.vmem [#allocation2], 192
        %v3869 = vld [vmem:[%s3868] sm:$0xff]
        %v3870 = vld [vmem:[%s3868 + $0x8] sm:$0xff]
        %v3871 = vld [vmem:[%s3868 + $0x10] sm:$0xff]
        %v3872 = vld [vmem:[%s3868 + $0x18] sm:$0xff]
        %v3873 = vld [vmem:[%s3868 + $0x20] sm:$0xff]
        %v3874 = vld [vmem:[%s3868 + $0x28] sm:$0xff]
        %v3875 = vld [vmem:[%s3868 + $0x30] sm:$0xff]
        %v3876 = vld [vmem:[%s3868 + $0x38] sm:$0xff]
        %v3877 = vld [vmem:[#allocation13] sm:$0xff]
        %v3878 = vld [vmem:[#allocation13 + $0x8] sm:$0xff]
        %v3879 = vld [vmem:[#allocation13 + $0x10] sm:$0xff]
        %v3880 = vld [vmem:[#allocation13 + $0x18] sm:$0xff]
        %v3881 = vld [vmem:[#allocation13 + $0x20] sm:$0xff]
        %v3882 = vld [vmem:[#allocation13 + $0x28] sm:$0xff]
        %v3883 = vld [vmem:[#allocation13 + $0x30] sm:$0xff]
        %v3884 = vld [vmem:[#allocation13 + $0x38] sm:$0xff]
        %v3885 = vld [vmem:[#allocation13 + $0x40] sm:$0xff]
        %v3886 = vld [vmem:[#allocation13 + $0x48] sm:$0xff]
        %v3887 = vld [vmem:[#allocation13 + $0x50] sm:$0xff]
        %v3888 = vld [vmem:[#allocation13 + $0x58] sm:$0xff]
        %v3889 = vld [vmem:[#allocation13 + $0x60] sm:$0xff]
        %v3890 = vld [vmem:[#allocation13 + $0x68] sm:$0xff]
        %v3891 = vld [vmem:[#allocation13 + $0x70] sm:$0xff]
        %v3892 = vld [vmem:[#allocation13 + $0x78] sm:$0xff]
        %v3893 = vld [vmem:[#allocation13 + $0x80] sm:$0xff]
        %v3894 = vld [vmem:[#allocation13 + $0x88] sm:$0xff]
        %v3895 = vld [vmem:[#allocation13 + $0x90] sm:$0xff]
        %v3896 = vld [vmem:[#allocation13 + $0x98] sm:$0xff]
        %v3897 = vld [vmem:[#allocation13 + $0xa0] sm:$0xff]
        %v3898 = vld [vmem:[#allocation13 + $0xa8] sm:$0xff]
        %v3899 = vld [vmem:[#allocation13 + $0xb0] sm:$0xff]
        %v3900 = vld [vmem:[#allocation13 + $0xb8] sm:$0xff]
        %v3901 = vld [vmem:[#allocation13 + $0xc0] sm:$0xff]
        %v3902 = vld [vmem:[#allocation13 + $0xc8] sm:$0xff]
        %v3903 = vld [vmem:[#allocation13 + $0xd0] sm:$0xff]
        %v3904 = vld [vmem:[#allocation13 + $0xd8] sm:$0xff]
        %v3905 = vld [vmem:[#allocation13 + $0xe0] sm:$0xff]
        %v3906 = vld [vmem:[#allocation13 + $0xe8] sm:$0xff]
        %v3907 = vld [vmem:[#allocation13 + $0xf0] sm:$0xff]
        %v3908 = vld [vmem:[#allocation13 + $0xf8] sm:$0xff]
        %v3909 = vld [vmem:[#allocation13 + $0x100] sm:$0xff]
        %v3910 = vld [vmem:[#allocation13 + $0x108] sm:$0xff]
        %v3911 = vld [vmem:[#allocation13 + $0x110] sm:$0xff]
        %v3912 = vld [vmem:[#allocation13 + $0x118] sm:$0xff]
        %v3913 = vld [vmem:[#allocation13 + $0x120] sm:$0xff]
        %v3914 = vld [vmem:[#allocation13 + $0x128] sm:$0xff]
        %v3915 = vld [vmem:[#allocation13 + $0x130] sm:$0xff]
        %v3916 = vld [vmem:[#allocation13 + $0x138] sm:$0xff]
        %v3917 = vld [vmem:[#allocation13 + $0x140] sm:$0xff]
        %v3918 = vld [vmem:[#allocation13 + $0x148] sm:$0xff]
        %v3919 = vld [vmem:[#allocation13 + $0x150] sm:$0xff]
        %v3920 = vld [vmem:[#allocation13 + $0x158] sm:$0xff]
        %v3921 = vld [vmem:[#allocation13 + $0x160] sm:$0xff]
        %v3922 = vld [vmem:[#allocation13 + $0x168] sm:$0xff]
        %v3923 = vld [vmem:[#allocation13 + $0x170] sm:$0xff]
        %v3924 = vld [vmem:[#allocation13 + $0x178] sm:$0xff]
        %v3925 = vld [vmem:[#allocation13 + $0x180] sm:$0xff]
        %v3926 = vld [vmem:[#allocation13 + $0x188] sm:$0xff]
        %v3927 = vld [vmem:[#allocation13 + $0x190] sm:$0xff]
        %v3928 = vld [vmem:[#allocation13 + $0x198] sm:$0xff]
        %v3929 = vld [vmem:[#allocation13 + $0x1a0] sm:$0xff]
        %v3930 = vld [vmem:[#allocation13 + $0x1a8] sm:$0xff]
        %v3931 = vld [vmem:[#allocation13 + $0x1b0] sm:$0xff]
        %v3932 = vld [vmem:[#allocation13 + $0x1b8] sm:$0xff]
        %v3933 = vld [vmem:[#allocation13 + $0x1c0] sm:$0xff]
        %v3934 = vld [vmem:[#allocation13 + $0x1c8] sm:$0xff]
        %v3935 = vld [vmem:[#allocation13 + $0x1d0] sm:$0xff]
        %v3936 = vld [vmem:[#allocation13 + $0x1d8] sm:$0xff]
        %v3937 = vld [vmem:[#allocation13 + $0x1e0] sm:$0xff]
        %v3938 = vld [vmem:[#allocation13 + $0x1e8] sm:$0xff]
        %v3939 = vld [vmem:[#allocation13 + $0x1f0] sm:$0xff]
        %v3940 = vld [vmem:[#allocation13 + $0x1f8] sm:$0xff]
        %3941 = vmatprep.subr.mxu0 %v3938
        %3942 = vmatpush1.msra.mxu0 %v3937
        %3943 = vmatprep.subr.mxu0 %v3934
        %3944 = vmatpush1.msra.mxu0 %v3933
        %3945 = vmatprep.subr.mxu0 %v3930
        %3946 = vmatpush1.msra.mxu0 %v3929
        %3947 = vmatprep.subr.mxu0 %v3926
        %3948 = vmatpush1.msra.mxu0 %v3925
        %3949 = vmatprep.subr.mxu0 %v3922
        %3950 = vmatpush1.msra.mxu0 %v3921
        %3951 = vmatprep.subr.mxu0 %v3918
        %3952 = vmatpush1.msra.mxu0 %v3917
        %3953 = vmatprep.subr.mxu0 %v3914
        %3954 = vmatpush1.msra.mxu0 %v3913
        %3955 = vmatprep.subr.mxu0 %v3910
        %3956 = vmatpush1.msra.mxu0 %v3909
        %3957 = vmatprep.subr.mxu0 %v3906
        %3958 = vmatpush1.msra.mxu0 %v3905
        %3959 = vmatprep.subr.mxu0 %v3902
        %3960 = vmatpush1.msra.mxu0 %v3901
        %3961 = vmatprep.subr.mxu0 %v3898
        %3962 = vmatpush1.msra.mxu0 %v3897
        %3963 = vmatprep.subr.mxu0 %v3894
        %3964 = vmatpush1.msra.mxu0 %v3893
        %3965 = vmatprep.subr.mxu0 %v3890
        %3966 = vmatpush1.msra.mxu0 %v3889
        %3967 = vmatprep.subr.mxu0 %v3886
        %3968 = vmatpush1.msra.mxu0 %v3885
        %3969 = vmatprep.subr.mxu0 %v3882
        %3970 = vmatpush1.msra.mxu0 %v3881
        %3971 = vmatprep.subr.mxu0 %v3878
        %3972 = vmatpush1.msra.mxu0 %v3877
        %3973 = vmatprep.subr.mxu0 0.0
        %3974 = vmatpush2.msra.mxu0 0.0
        %3975 = vmatprep.subr.mxu0 0.0
        %3976 = vmatpush2.msra.mxu0 0.0
        %3977 = vmatprep.subr.mxu0 0.0
        %3978 = vmatpush2.msra.mxu0 0.0
        %3979 = vmatprep.subr.mxu0 0.0
        %3980 = vmatpush2.msra.mxu0 0.0
        %3981 = vmatprep.subr.mxu0 0.0
        %3982 = vmatpush2.msra.mxu0 0.0
        %3983 = vmatprep.subr.mxu0 0.0
        %3984 = vmatpush2.msra.mxu0 0.0
        %3985 = vmatprep.subr.mxu0 0.0
        %3986 = vmatpush2.msra.mxu0 0.0
        %3987 = vmatprep.subr.mxu0 0.0
        %3988 = vmatpush2.msra.mxu0 0.0
        %3989 = vmatprep.subr.mxu0 0.0
        %3990 = vmatpush2.msra.mxu0 0.0
        %3991 = vmatprep.subr.mxu0 0.0
        %3992 = vmatpush2.msra.mxu0 0.0
        %3993 = vmatprep.subr.mxu0 0.0
        %3994 = vmatpush2.msra.mxu0 0.0
        %3995 = vmatprep.subr.mxu0 0.0
        %3996 = vmatpush2.msra.mxu0 0.0
        %3997 = vmatprep.subr.mxu0 0.0
        %3998 = vmatpush2.msra.mxu0 0.0
        %3999 = vmatprep.subr.mxu0 0.0
        %4000 = vmatpush2.msra.mxu0 0.0
        %4001 = vmatprep.subr.mxu0 0.0
        %4002 = vmatpush2.msra.mxu0 0.0
        %4003 = vmatprep.subr.mxu0 0.0
        %4004 = vmatpush2.msra.mxu0 0.0
        %4005 = vmatprep.mubr.f32.mxu0 0.0
        %4006 = vmatmul.mubr.f32.gmra.mxu0 %v3864
        %v4007 = vpop.f32.mrf.mxu0
        %v4008 = vadd.f32 0.0, %v4007
        %v4009 = vpop.f32.mrf.mxu0
        %v4010 = vadd.f32 0.0, %v4009
        %4011 = vmatprep.mubr.f32.mxu0 0.0
        %4012 = vmatmul.mubr.f32.gmra.mxu0 %v3865
        %v4013 = vpop.f32.mrf.mxu0
        %v4014 = vadd.f32 0.0, %v4013
        %v4015 = vpop.f32.mrf.mxu0
        %v4016 = vadd.f32 0.0, %v4015
        %4017 = vdwg.mxu0
        %4018 = vmatprep.subr.mxu0 %v3940
        %4019 = vmatpush1.msra.mxu0 %v3939
        %4020 = vmatprep.subr.mxu0 %v3936
        %4021 = vmatpush1.msra.mxu0 %v3935
        %4022 = vmatprep.subr.mxu0 %v3932
        %4023 = vmatpush1.msra.mxu0 %v3931
        %4024 = vmatprep.subr.mxu0 %v3928
        %4025 = vmatpush1.msra.mxu0 %v3927
        %4026 = vmatprep.subr.mxu0 %v3924
        %4027 = vmatpush1.msra.mxu0 %v3923
        %4028 = vmatprep.subr.mxu0 %v3920
        %4029 = vmatpush1.msra.mxu0 %v3919
        %4030 = vmatprep.subr.mxu0 %v3916
        %4031 = vmatpush1.msra.mxu0 %v3915
        %4032 = vmatprep.subr.mxu0 %v3912
        %4033 = vmatpush1.msra.mxu0 %v3911
        %4034 = vmatprep.subr.mxu0 %v3908
        %4035 = vmatpush1.msra.mxu0 %v3907
        %4036 = vmatprep.subr.mxu0 %v3904
        %4037 = vmatpush1.msra.mxu0 %v3903
        %4038 = vmatprep.subr.mxu0 %v3900
        %4039 = vmatpush1.msra.mxu0 %v3899
        %4040 = vmatprep.subr.mxu0 %v3896
        %4041 = vmatpush1.msra.mxu0 %v3895
        %4042 = vmatprep.subr.mxu0 %v3892
        %4043 = vmatpush1.msra.mxu0 %v3891
        %4044 = vmatprep.subr.mxu0 %v3888
        %4045 = vmatpush1.msra.mxu0 %v3887
        %4046 = vmatprep.subr.mxu0 %v3884
        %4047 = vmatpush1.msra.mxu0 %v3883
        %4048 = vmatprep.subr.mxu0 %v3880
        %4049 = vmatpush1.msra.mxu0 %v3879
        %4050 = vmatprep.subr.mxu0 0.0
        %4051 = vmatpush2.msra.mxu0 0.0
        %4052 = vmatprep.subr.mxu0 0.0
        %4053 = vmatpush2.msra.mxu0 0.0
        %4054 = vmatprep.subr.mxu0 0.0
        %4055 = vmatpush2.msra.mxu0 0.0
        %4056 = vmatprep.subr.mxu0 0.0
        %4057 = vmatpush2.msra.mxu0 0.0
        %4058 = vmatprep.subr.mxu0 0.0
        %4059 = vmatpush2.msra.mxu0 0.0
        %4060 = vmatprep.subr.mxu0 0.0
        %4061 = vmatpush2.msra.mxu0 0.0
        %4062 = vmatprep.subr.mxu0 0.0
        %4063 = vmatpush2.msra.mxu0 0.0
        %4064 = vmatprep.subr.mxu0 0.0
        %4065 = vmatpush2.msra.mxu0 0.0
        %4066 = vmatprep.subr.mxu0 0.0
        %4067 = vmatpush2.msra.mxu0 0.0
        %4068 = vmatprep.subr.mxu0 0.0
        %4069 = vmatpush2.msra.mxu0 0.0
        %4070 = vmatprep.subr.mxu0 0.0
        %4071 = vmatpush2.msra.mxu0 0.0
        %4072 = vmatprep.subr.mxu0 0.0
        %4073 = vmatpush2.msra.mxu0 0.0
        %4074 = vmatprep.subr.mxu0 0.0
        %4075 = vmatpush2.msra.mxu0 0.0
        %4076 = vmatprep.subr.mxu0 0.0
        %4077 = vmatpush2.msra.mxu0 0.0
        %4078 = vmatprep.subr.mxu0 0.0
        %4079 = vmatpush2.msra.mxu0 0.0
        %4080 = vmatprep.subr.mxu0 0.0
        %4081 = vmatpush2.msra.mxu0 0.0
        %4082 = vmatprep.mubr.f32.mxu0 0.0
        %4083 = vmatmul.mubr.f32.gmra.mxu0 %v3864
        %v4084 = vpop.f32.mrf.mxu0
        %v4085 = vadd.f32 0.0, %v4084
        %v4086 = vpop.f32.mrf.mxu0
        %v4087 = vadd.f32 0.0, %v4086
        %4088 = vmatprep.mubr.f32.mxu0 0.0
        %4089 = vmatmul.mubr.f32.gmra.mxu0 %v3865
        %v4090 = vpop.f32.mrf.mxu0
        %v4091 = vadd.f32 0.0, %v4090
        %v4092 = vpop.f32.mrf.mxu0
        %v4093 = vadd.f32 0.0, %v4092
        %4094 = vdwg.mxu0
        %v4095 = vadd.f32 %v3869, %v4008
        %v4096 = vadd.f32 %v3870, %v4010
        %v4097 = vadd.f32 %v3871, %v4085
        %v4098 = vadd.f32 %v3872, %v4087
        %v4099 = vadd.f32 %v3873, %v4014
        %v4100 = vadd.f32 %v3874, %v4016
        %v4101 = vadd.f32 %v3875, %v4091
        %v4102 = vadd.f32 %v3876, %v4093
        %v4103 = vxor.u32 %v4095, 2147483648
        %v4104 = vxor.u32 %v4096, 2147483648
        %v4105 = vxor.u32 %v4097, 2147483648
        %v4106 = vxor.u32 %v4099, 2147483648
        %v4107 = vxor.u32 %v4100, 2147483648
        %v4108 = vxor.u32 %v4101, 2147483648
        %v4109 = vmul.f32 %v4103, 1.442695
        %v4110 = vpow.pop %v4109
        %v4111 = vmul.f32 %v4104, 1.442695
        %v4112 = vpow.pop %v4111
        %v4113 = vmul.f32 %v4105, 1.442695
        %v4114 = vpow.pop %v4113
        %v4115 = vmul.f32 %v4106, 1.442695
        %v4116 = vpow.pop %v4115
        %v4117 = vmul.f32 %v4107, 1.442695
        %v4118 = vpow.pop %v4117
        %v4119 = vmul.f32 %v4108, 1.442695
        %v4120 = vpow.pop %v4119
        %v4121 = vadd.f32 %v4110, 1.0
        %v4122 = vadd.f32 %v4112, 1.0
        %v4123 = vadd.f32 %v4114, 1.0
        %v4124 = vadd.f32 %v4116, 1.0
        %v4125 = vadd.f32 %v4118, 1.0
        %v4126 = vadd.f32 %v4120, 1.0
        %v4127 = vrcp.pop %v4121
        %v4128 = vmul.f32 1.0, %v4127
        %v4129 = vrcp.pop %v4122
        %v4130 = vmul.f32 1.0, %v4129
        %v4131 = vrcp.pop %v4123
        %v4132 = vmul.f32 1.0, %v4131
        %v4133 = vrcp.pop %v4124
        %v4134 = vmul.f32 1.0, %v4133
        %v4135 = vrcp.pop %v4125
        %v4136 = vmul.f32 1.0, %v4135
        %v4137 = vrcp.pop %v4126
        %v4138 = vmul.f32 1.0, %v4137
        %v4139 = vtanh.pop %v4098
        %v4140 = vtanh.pop %v4102
        %v4141 = vmul.f32 %v4130, %v3866
        %v4142 = vmul.f32 %v4136, %v3867
        %v4143 = vmul.f32 %v4128, %v4139
        %v4144 = vmul.f32 %v4134, %v4140
        %v4145 = vadd.f32 %v4141, %v4143
        %v4146 = vadd.f32 %v4142, %v4144
        %v4147 = vtanh.pop %v4145
        %v4148 = vtanh.pop %v4146
        %v4149 = vmul.f32 %v4132, %v4147
        %v4150 = vmul.f32 %v4138, %v4148
        %4151 = vst [vmem:[#allocation3] sm:$0xff] %v4149
        %4152 = vst [vmem:[#allocation3 + $0x8] sm:$0xff] %v4150
        %4153 = vst [vmem:[#allocation4] sm:$0xff] %v4145
        %4154 = vst [vmem:[#allocation4 + $0x8] sm:$0xff] %v4146
        %s4155 = scalar_lea.vmem [#allocation14], 48
        %4156 = vst [vmem:[%s4155] sm:$0xff] %v4149
        %4157 = vst [vmem:[%s4155 + $0x8] sm:$0xff] %v4150
      $region73: #{tpu_custom_call.1} parent=56 // pred_fallthru
        _
      %s4158 = sadd.s32 %s2964, 4
      %p4159 = scmp.lt.s32.totalorder %s4158, 8
      // Predicated region
      $region74: #{tpu_custom_call.1} parent=56 // pred_check
        %p4160 = pneg %p4159
      $region75: #{tpu_custom_call.1} parent=56 // pred_check_branch
        %4162 = sbr.rel (%p4160) target = $region77
      $region76: #{tpu_custom_call.1} parent=56 // pred_region
        %v4163 = vld [vmem:[#allocation3] sm:$0xff]
        %v4164 = vld [vmem:[#allocation3 + $0x8] sm:$0xff]
        %v4165 = vld [vmem:[#allocation4] sm:$0xff]
        %v4166 = vld [vmem:[#allocation4 + $0x8] sm:$0xff]
        %s4167 = scalar_lea.vmem [#allocation2], 256
        %v4168 = vld [vmem:[%s4167] sm:$0xff]
        %v4169 = vld [vmem:[%s4167 + $0x8] sm:$0xff]
        %v4170 = vld [vmem:[%s4167 + $0x10] sm:$0xff]
        %v4171 = vld [vmem:[%s4167 + $0x18] sm:$0xff]
        %v4172 = vld [vmem:[%s4167 + $0x20] sm:$0xff]
        %v4173 = vld [vmem:[%s4167 + $0x28] sm:$0xff]
        %v4174 = vld [vmem:[%s4167 + $0x30] sm:$0xff]
        %v4175 = vld [vmem:[%s4167 + $0x38] sm:$0xff]
        %v4176 = vld [vmem:[#allocation13] sm:$0xff]
        %v4177 = vld [vmem:[#allocation13 + $0x8] sm:$0xff]
        %v4178 = vld [vmem:[#allocation13 + $0x10] sm:$0xff]
        %v4179 = vld [vmem:[#allocation13 + $0x18] sm:$0xff]
        %v4180 = vld [vmem:[#allocation13 + $0x20] sm:$0xff]
        %v4181 = vld [vmem:[#allocation13 + $0x28] sm:$0xff]
        %v4182 = vld [vmem:[#allocation13 + $0x30] sm:$0xff]
        %v4183 = vld [vmem:[#allocation13 + $0x38] sm:$0xff]
        %v4184 = vld [vmem:[#allocation13 + $0x40] sm:$0xff]
        %v4185 = vld [vmem:[#allocation13 + $0x48] sm:$0xff]
        %v4186 = vld [vmem:[#allocation13 + $0x50] sm:$0xff]
        %v4187 = vld [vmem:[#allocation13 + $0x58] sm:$0xff]
        %v4188 = vld [vmem:[#allocation13 + $0x60] sm:$0xff]
        %v4189 = vld [vmem:[#allocation13 + $0x68] sm:$0xff]
        %v4190 = vld [vmem:[#allocation13 + $0x70] sm:$0xff]
        %v4191 = vld [vmem:[#allocation13 + $0x78] sm:$0xff]
        %v4192 = vld [vmem:[#allocation13 + $0x80] sm:$0xff]
        %v4193 = vld [vmem:[#allocation13 + $0x88] sm:$0xff]
        %v4194 = vld [vmem:[#allocation13 + $0x90] sm:$0xff]
        %v4195 = vld [vmem:[#allocation13 + $0x98] sm:$0xff]
        %v4196 = vld [vmem:[#allocation13 + $0xa0] sm:$0xff]
        %v4197 = vld [vmem:[#allocation13 + $0xa8] sm:$0xff]
        %v4198 = vld [vmem:[#allocation13 + $0xb0] sm:$0xff]
        %v4199 = vld [vmem:[#allocation13 + $0xb8] sm:$0xff]
        %v4200 = vld [vmem:[#allocation13 + $0xc0] sm:$0xff]
        %v4201 = vld [vmem:[#allocation13 + $0xc8] sm:$0xff]
        %v4202 = vld [vmem:[#allocation13 + $0xd0] sm:$0xff]
        %v4203 = vld [vmem:[#allocation13 + $0xd8] sm:$0xff]
        %v4204 = vld [vmem:[#allocation13 + $0xe0] sm:$0xff]
        %v4205 = vld [vmem:[#allocation13 + $0xe8] sm:$0xff]
        %v4206 = vld [vmem:[#allocation13 + $0xf0] sm:$0xff]
        %v4207 = vld [vmem:[#allocation13 + $0xf8] sm:$0xff]
        %v4208 = vld [vmem:[#allocation13 + $0x100] sm:$0xff]
        %v4209 = vld [vmem:[#allocation13 + $0x108] sm:$0xff]
        %v4210 = vld [vmem:[#allocation13 + $0x110] sm:$0xff]
        %v4211 = vld [vmem:[#allocation13 + $0x118] sm:$0xff]
        %v4212 = vld [vmem:[#allocation13 + $0x120] sm:$0xff]
        %v4213 = vld [vmem:[#allocation13 + $0x128] sm:$0xff]
        %v4214 = vld [vmem:[#allocation13 + $0x130] sm:$0xff]
        %v4215 = vld [vmem:[#allocation13 + $0x138] sm:$0xff]
        %v4216 = vld [vmem:[#allocation13 + $0x140] sm:$0xff]
        %v4217 = vld [vmem:[#allocation13 + $0x148] sm:$0xff]
        %v4218 = vld [vmem:[#allocation13 + $0x150] sm:$0xff]
        %v4219 = vld [vmem:[#allocation13 + $0x158] sm:$0xff]
        %v4220 = vld [vmem:[#allocation13 + $0x160] sm:$0xff]
        %v4221 = vld [vmem:[#allocation13 + $0x168] sm:$0xff]
        %v4222 = vld [vmem:[#allocation13 + $0x170] sm:$0xff]
        %v4223 = vld [vmem:[#allocation13 + $0x178] sm:$0xff]
        %v4224 = vld [vmem:[#allocation13 + $0x180] sm:$0xff]
        %v4225 = vld [vmem:[#allocation13 + $0x188] sm:$0xff]
        %v4226 = vld [vmem:[#allocation13 + $0x190] sm:$0xff]
        %v4227 = vld [vmem:[#allocation13 + $0x198] sm:$0xff]
        %v4228 = vld [vmem:[#allocation13 + $0x1a0] sm:$0xff]
        %v4229 = vld [vmem:[#allocation13 + $0x1a8] sm:$0xff]
        %v4230 = vld [vmem:[#allocation13 + $0x1b0] sm:$0xff]
        %v4231 = vld [vmem:[#allocation13 + $0x1b8] sm:$0xff]
        %v4232 = vld [vmem:[#allocation13 + $0x1c0] sm:$0xff]
        %v4233 = vld [vmem:[#allocation13 + $0x1c8] sm:$0xff]
        %v4234 = vld [vmem:[#allocation13 + $0x1d0] sm:$0xff]
        %v4235 = vld [vmem:[#allocation13 + $0x1d8] sm:$0xff]
        %v4236 = vld [vmem:[#allocation13 + $0x1e0] sm:$0xff]
        %v4237 = vld [vmem:[#allocation13 + $0x1e8] sm:$0xff]
        %v4238 = vld [vmem:[#allocation13 + $0x1f0] sm:$0xff]
        %v4239 = vld [vmem:[#allocation13 + $0x1f8] sm:$0xff]
        %4240 = vmatprep.subr.mxu0 %v4237
        %4241 = vmatpush1.msra.mxu0 %v4236
        %4242 = vmatprep.subr.mxu0 %v4233
        %4243 = vmatpush1.msra.mxu0 %v4232
        %4244 = vmatprep.subr.mxu0 %v4229
        %4245 = vmatpush1.msra.mxu0 %v4228
        %4246 = vmatprep.subr.mxu0 %v4225
        %4247 = vmatpush1.msra.mxu0 %v4224
        %4248 = vmatprep.subr.mxu0 %v4221
        %4249 = vmatpush1.msra.mxu0 %v4220
        %4250 = vmatprep.subr.mxu0 %v4217
        %4251 = vmatpush1.msra.mxu0 %v4216
        %4252 = vmatprep.subr.mxu0 %v4213
        %4253 = vmatpush1.msra.mxu0 %v4212
        %4254 = vmatprep.subr.mxu0 %v4209
        %4255 = vmatpush1.msra.mxu0 %v4208
        %4256 = vmatprep.subr.mxu0 %v4205
        %4257 = vmatpush1.msra.mxu0 %v4204
        %4258 = vmatprep.subr.mxu0 %v4201
        %4259 = vmatpush1.msra.mxu0 %v4200
        %4260 = vmatprep.subr.mxu0 %v4197
        %4261 = vmatpush1.msra.mxu0 %v4196
        %4262 = vmatprep.subr.mxu0 %v4193
        %4263 = vmatpush1.msra.mxu0 %v4192
        %4264 = vmatprep.subr.mxu0 %v4189
        %4265 = vmatpush1.msra.mxu0 %v4188
        %4266 = vmatprep.subr.mxu0 %v4185
        %4267 = vmatpush1.msra.mxu0 %v4184
        %4268 = vmatprep.subr.mxu0 %v4181
        %4269 = vmatpush1.msra.mxu0 %v4180
        %4270 = vmatprep.subr.mxu0 %v4177
        %4271 = vmatpush1.msra.mxu0 %v4176
        %4272 = vmatprep.subr.mxu0 0.0
        %4273 = vmatpush2.msra.mxu0 0.0
        %4274 = vmatprep.subr.mxu0 0.0
        %4275 = vmatpush2.msra.mxu0 0.0
        %4276 = vmatprep.subr.mxu0 0.0
        %4277 = vmatpush2.msra.mxu0 0.0
        %4278 = vmatprep.subr.mxu0 0.0
        %4279 = vmatpush2.msra.mxu0 0.0
        %4280 = vmatprep.subr.mxu0 0.0
        %4281 = vmatpush2.msra.mxu0 0.0
        %4282 = vmatprep.subr.mxu0 0.0
        %4283 = vmatpush2.msra.mxu0 0.0
        %4284 = vmatprep.subr.mxu0 0.0
        %4285 = vmatpush2.msra.mxu0 0.0
        %4286 = vmatprep.subr.mxu0 0.0
        %4287 = vmatpush2.msra.mxu0 0.0
        %4288 = vmatprep.subr.mxu0 0.0
        %4289 = vmatpush2.msra.mxu0 0.0
        %4290 = vmatprep.subr.mxu0 0.0
        %4291 = vmatpush2.msra.mxu0 0.0
        %4292 = vmatprep.subr.mxu0 0.0
        %4293 = vmatpush2.msra.mxu0 0.0
        %4294 = vmatprep.subr.mxu0 0.0
        %4295 = vmatpush2.msra.mxu0 0.0
        %4296 = vmatprep.subr.mxu0 0.0
        %4297 = vmatpush2.msra.mxu0 0.0
        %4298 = vmatprep.subr.mxu0 0.0
        %4299 = vmatpush2.msra.mxu0 0.0
        %4300 = vmatprep.subr.mxu0 0.0
        %4301 = vmatpush2.msra.mxu0 0.0
        %4302 = vmatprep.subr.mxu0 0.0
        %4303 = vmatpush2.msra.mxu0 0.0
        %4304 = vmatprep.mubr.f32.mxu0 0.0
        %4305 = vmatmul.mubr.f32.gmra.mxu0 %v4163
        %v4306 = vpop.f32.mrf.mxu0
        %v4307 = vadd.f32 0.0, %v4306
        %v4308 = vpop.f32.mrf.mxu0
        %v4309 = vadd.f32 0.0, %v4308
        %4310 = vmatprep.mubr.f32.mxu0 0.0
        %4311 = vmatmul.mubr.f32.gmra.mxu0 %v4164
        %v4312 = vpop.f32.mrf.mxu0
        %v4313 = vadd.f32 0.0, %v4312
        %v4314 = vpop.f32.mrf.mxu0
        %v4315 = vadd.f32 0.0, %v4314
        %4316 = vdwg.mxu0
        %4317 = vmatprep.subr.mxu0 %v4239
        %4318 = vmatpush1.msra.mxu0 %v4238
        %4319 = vmatprep.subr.mxu0 %v4235
        %4320 = vmatpush1.msra.mxu0 %v4234
        %4321 = vmatprep.subr.mxu0 %v4231
        %4322 = vmatpush1.msra.mxu0 %v4230
        %4323 = vmatprep.subr.mxu0 %v4227
        %4324 = vmatpush1.msra.mxu0 %v4226
        %4325 = vmatprep.subr.mxu0 %v4223
        %4326 = vmatpush1.msra.mxu0 %v4222
        %4327 = vmatprep.subr.mxu0 %v4219
        %4328 = vmatpush1.msra.mxu0 %v4218
        %4329 = vmatprep.subr.mxu0 %v4215
        %4330 = vmatpush1.msra.mxu0 %v4214
        %4331 = vmatprep.subr.mxu0 %v4211
        %4332 = vmatpush1.msra.mxu0 %v4210
        %4333 = vmatprep.subr.mxu0 %v4207
        %4334 = vmatpush1.msra.mxu0 %v4206
        %4335 = vmatprep.subr.mxu0 %v4203
        %4336 = vmatpush1.msra.mxu0 %v4202
        %4337 = vmatprep.subr.mxu0 %v4199
        %4338 = vmatpush1.msra.mxu0 %v4198
        %4339 = vmatprep.subr.mxu0 %v4195
        %4340 = vmatpush1.msra.mxu0 %v4194
        %4341 = vmatprep.subr.mxu0 %v4191
        %4342 = vmatpush1.msra.mxu0 %v4190
        %4343 = vmatprep.subr.mxu0 %v4187
        %4344 = vmatpush1.msra.mxu0 %v4186
        %4345 = vmatprep.subr.mxu0 %v4183
        %4346 = vmatpush1.msra.mxu0 %v4182
        %4347 = vmatprep.subr.mxu0 %v4179
        %4348 = vmatpush1.msra.mxu0 %v4178
        %4349 = vmatprep.subr.mxu0 0.0
        %4350 = vmatpush2.msra.mxu0 0.0
        %4351 = vmatprep.subr.mxu0 0.0
        %4352 = vmatpush2.msra.mxu0 0.0
        %4353 = vmatprep.subr.mxu0 0.0
        %4354 = vmatpush2.msra.mxu0 0.0
        %4355 = vmatprep.subr.mxu0 0.0
        %4356 = vmatpush2.msra.mxu0 0.0
        %4357 = vmatprep.subr.mxu0 0.0
        %4358 = vmatpush2.msra.mxu0 0.0
        %4359 = vmatprep.subr.mxu0 0.0
        %4360 = vmatpush2.msra.mxu0 0.0
        %4361 = vmatprep.subr.mxu0 0.0
        %4362 = vmatpush2.msra.mxu0 0.0
        %4363 = vmatprep.subr.mxu0 0.0
        %4364 = vmatpush2.msra.mxu0 0.0
        %4365 = vmatprep.subr.mxu0 0.0
        %4366 = vmatpush2.msra.mxu0 0.0
        %4367 = vmatprep.subr.mxu0 0.0
        %4368 = vmatpush2.msra.mxu0 0.0
        %4369 = vmatprep.subr.mxu0 0.0
        %4370 = vmatpush2.msra.mxu0 0.0
        %4371 = vmatprep.subr.mxu0 0.0
        %4372 = vmatpush2.msra.mxu0 0.0
        %4373 = vmatprep.subr.mxu0 0.0
        %4374 = vmatpush2.msra.mxu0 0.0
        %4375 = vmatprep.subr.mxu0 0.0
        %4376 = vmatpush2.msra.mxu0 0.0
        %4377 = vmatprep.subr.mxu0 0.0
        %4378 = vmatpush2.msra.mxu0 0.0
        %4379 = vmatprep.subr.mxu0 0.0
        %4380 = vmatpush2.msra.mxu0 0.0
        %4381 = vmatprep.mubr.f32.mxu0 0.0
        %4382 = vmatmul.mubr.f32.gmra.mxu0 %v4163
        %v4383 = vpop.f32.mrf.mxu0
        %v4384 = vadd.f32 0.0, %v4383
        %v4385 = vpop.f32.mrf.mxu0
        %v4386 = vadd.f32 0.0, %v4385
        %4387 = vmatprep.mubr.f32.mxu0 0.0
        %4388 = vmatmul.mubr.f32.gmra.mxu0 %v4164
        %v4389 = vpop.f32.mrf.mxu0
        %v4390 = vadd.f32 0.0, %v4389
        %v4391 = vpop.f32.mrf.mxu0
        %v4392 = vadd.f32 0.0, %v4391
        %4393 = vdwg.mxu0
        %v4394 = vadd.f32 %v4168, %v4307
        %v4395 = vadd.f32 %v4169, %v4309
        %v4396 = vadd.f32 %v4170, %v4384
        %v4397 = vadd.f32 %v4171, %v4386
        %v4398 = vadd.f32 %v4172, %v4313
        %v4399 = vadd.f32 %v4173, %v4315
        %v4400 = vadd.f32 %v4174, %v4390
        %v4401 = vadd.f32 %v4175, %v4392
        %v4402 = vxor.u32 %v4394, 2147483648
        %v4403 = vxor.u32 %v4395, 2147483648
        %v4404 = vxor.u32 %v4396, 2147483648
        %v4405 = vxor.u32 %v4398, 2147483648
        %v4406 = vxor.u32 %v4399, 2147483648
        %v4407 = vxor.u32 %v4400, 2147483648
        %v4408 = vmul.f32 %v4402, 1.442695
        %v4409 = vpow.pop %v4408
        %v4410 = vmul.f32 %v4403, 1.442695
        %v4411 = vpow.pop %v4410
        %v4412 = vmul.f32 %v4404, 1.442695
        %v4413 = vpow.pop %v4412
        %v4414 = vmul.f32 %v4405, 1.442695
        %v4415 = vpow.pop %v4414
        %v4416 = vmul.f32 %v4406, 1.442695
        %v4417 = vpow.pop %v4416
        %v4418 = vmul.f32 %v4407, 1.442695
        %v4419 = vpow.pop %v4418
        %v4420 = vadd.f32 %v4409, 1.0
        %v4421 = vadd.f32 %v4411, 1.0
        %v4422 = vadd.f32 %v4413, 1.0
        %v4423 = vadd.f32 %v4415, 1.0
        %v4424 = vadd.f32 %v4417, 1.0
        %v4425 = vadd.f32 %v4419, 1.0
        %v4426 = vrcp.pop %v4420
        %v4427 = vmul.f32 1.0, %v4426
        %v4428 = vrcp.pop %v4421
        %v4429 = vmul.f32 1.0, %v4428
        %v4430 = vrcp.pop %v4422
        %v4431 = vmul.f32 1.0, %v4430
        %v4432 = vrcp.pop %v4423
        %v4433 = vmul.f32 1.0, %v4432
        %v4434 = vrcp.pop %v4424
        %v4435 = vmul.f32 1.0, %v4434
        %v4436 = vrcp.pop %v4425
        %v4437 = vmul.f32 1.0, %v4436
        %v4438 = vtanh.pop %v4397
        %v4439 = vtanh.pop %v4401
        %v4440 = vmul.f32 %v4429, %v4165
        %v4441 = vmul.f32 %v4435, %v4166
        %v4442 = vmul.f32 %v4427, %v4438
        %v4443 = vmul.f32 %v4433, %v4439
        %v4444 = vadd.f32 %v4440, %v4442
        %v4445 = vadd.f32 %v4441, %v4443
        %v4446 = vtanh.pop %v4444
        %v4447 = vtanh.pop %v4445
        %v4448 = vmul.f32 %v4431, %v4446
        %v4449 = vmul.f32 %v4437, %v4447
        %4450 = vst [vmem:[#allocation3] sm:$0xff] %v4448
        %4451 = vst [vmem:[#allocation3 + $0x8] sm:$0xff] %v4449
        %4452 = vst [vmem:[#allocation4] sm:$0xff] %v4444
        %4453 = vst [vmem:[#allocation4 + $0x8] sm:$0xff] %v4445
        %s4454 = scalar_lea.vmem [#allocation14], 64
        %4455 = vst [vmem:[%s4454] sm:$0xff] %v4448
        %4456 = vst [vmem:[%s4454 + $0x8] sm:$0xff] %v4449
      $region77: #{tpu_custom_call.1} parent=56 // pred_fallthru
        _
      %s4457 = sadd.s32 %s2964, 5
      %p4458 = scmp.lt.s32.totalorder %s4457, 8
      // Predicated region
      $region78: #{tpu_custom_call.1} parent=56 // pred_check
        %p4459 = pneg %p4458
      $region79: #{tpu_custom_call.1} parent=56 // pred_check_branch
        %4461 = sbr.rel (%p4459) target = $region81
      $region80: #{tpu_custom_call.1} parent=56 // pred_region
        %v4462 = vld [vmem:[#allocation3] sm:$0xff]
        %v4463 = vld [vmem:[#allocation3 + $0x8] sm:$0xff]
        %v4464 = vld [vmem:[#allocation4] sm:$0xff]
        %v4465 = vld [vmem:[#allocation4 + $0x8] sm:$0xff]
        %s4466 = scalar_lea.vmem [#allocation2], 320
        %v4467 = vld [vmem:[%s4466] sm:$0xff]
        %v4468 = vld [vmem:[%s4466 + $0x8] sm:$0xff]
        %v4469 = vld [vmem:[%s4466 + $0x10] sm:$0xff]
        %v4470 = vld [vmem:[%s4466 + $0x18] sm:$0xff]
        %v4471 = vld [vmem:[%s4466 + $0x20] sm:$0xff]
        %v4472 = vld [vmem:[%s4466 + $0x28] sm:$0xff]
        %v4473 = vld [vmem:[%s4466 + $0x30] sm:$0xff]
        %v4474 = vld [vmem:[%s4466 + $0x38] sm:$0xff]
        %v4475 = vld [vmem:[#allocation13] sm:$0xff]
        %v4476 = vld [vmem:[#allocation13 + $0x8] sm:$0xff]
        %v4477 = vld [vmem:[#allocation13 + $0x10] sm:$0xff]
        %v4478 = vld [vmem:[#allocation13 + $0x18] sm:$0xff]
        %v4479 = vld [vmem:[#allocation13 + $0x20] sm:$0xff]
        %v4480 = vld [vmem:[#allocation13 + $0x28] sm:$0xff]
        %v4481 = vld [vmem:[#allocation13 + $0x30] sm:$0xff]
        %v4482 = vld [vmem:[#allocation13 + $0x38] sm:$0xff]
        %v4483 = vld [vmem:[#allocation13 + $0x40] sm:$0xff]
        %v4484 = vld [vmem:[#allocation13 + $0x48] sm:$0xff]
        %v4485 = vld [vmem:[#allocation13 + $0x50] sm:$0xff]
        %v4486 = vld [vmem:[#allocation13 + $0x58] sm:$0xff]
        %v4487 = vld [vmem:[#allocation13 + $0x60] sm:$0xff]
        %v4488 = vld [vmem:[#allocation13 + $0x68] sm:$0xff]
        %v4489 = vld [vmem:[#allocation13 + $0x70] sm:$0xff]
        %v4490 = vld [vmem:[#allocation13 + $0x78] sm:$0xff]
        %v4491 = vld [vmem:[#allocation13 + $0x80] sm:$0xff]
        %v4492 = vld [vmem:[#allocation13 + $0x88] sm:$0xff]
        %v4493 = vld [vmem:[#allocation13 + $0x90] sm:$0xff]
        %v4494 = vld [vmem:[#allocation13 + $0x98] sm:$0xff]
        %v4495 = vld [vmem:[#allocation13 + $0xa0] sm:$0xff]
        %v4496 = vld [vmem:[#allocation13 + $0xa8] sm:$0xff]
        %v4497 = vld [vmem:[#allocation13 + $0xb0] sm:$0xff]
        %v4498 = vld [vmem:[#allocation13 + $0xb8] sm:$0xff]
        %v4499 = vld [vmem:[#allocation13 + $0xc0] sm:$0xff]
        %v4500 = vld [vmem:[#allocation13 + $0xc8] sm:$0xff]
        %v4501 = vld [vmem:[#allocation13 + $0xd0] sm:$0xff]
        %v4502 = vld [vmem:[#allocation13 + $0xd8] sm:$0xff]
        %v4503 = vld [vmem:[#allocation13 + $0xe0] sm:$0xff]
        %v4504 = vld [vmem:[#allocation13 + $0xe8] sm:$0xff]
        %v4505 = vld [vmem:[#allocation13 + $0xf0] sm:$0xff]
        %v4506 = vld [vmem:[#allocation13 + $0xf8] sm:$0xff]
        %v4507 = vld [vmem:[#allocation13 + $0x100] sm:$0xff]
        %v4508 = vld [vmem:[#allocation13 + $0x108] sm:$0xff]
        %v4509 = vld [vmem:[#allocation13 + $0x110] sm:$0xff]
        %v4510 = vld [vmem:[#allocation13 + $0x118] sm:$0xff]
        %v4511 = vld [vmem:[#allocation13 + $0x120] sm:$0xff]
        %v4512 = vld [vmem:[#allocation13 + $0x128] sm:$0xff]
        %v4513 = vld [vmem:[#allocation13 + $0x130] sm:$0xff]
        %v4514 = vld [vmem:[#allocation13 + $0x138] sm:$0xff]
        %v4515 = vld [vmem:[#allocation13 + $0x140] sm:$0xff]
        %v4516 = vld [vmem:[#allocation13 + $0x148] sm:$0xff]
        %v4517 = vld [vmem:[#allocation13 + $0x150] sm:$0xff]
        %v4518 = vld [vmem:[#allocation13 + $0x158] sm:$0xff]
        %v4519 = vld [vmem:[#allocation13 + $0x160] sm:$0xff]
        %v4520 = vld [vmem:[#allocation13 + $0x168] sm:$0xff]
        %v4521 = vld [vmem:[#allocation13 + $0x170] sm:$0xff]
        %v4522 = vld [vmem:[#allocation13 + $0x178] sm:$0xff]
        %v4523 = vld [vmem:[#allocation13 + $0x180] sm:$0xff]
        %v4524 = vld [vmem:[#allocation13 + $0x188] sm:$0xff]
        %v4525 = vld [vmem:[#allocation13 + $0x190] sm:$0xff]
        %v4526 = vld [vmem:[#allocation13 + $0x198] sm:$0xff]
        %v4527 = vld [vmem:[#allocation13 + $0x1a0] sm:$0xff]
        %v4528 = vld [vmem:[#allocation13 + $0x1a8] sm:$0xff]
        %v4529 = vld [vmem:[#allocation13 + $0x1b0] sm:$0xff]
        %v4530 = vld [vmem:[#allocation13 + $0x1b8] sm:$0xff]
        %v4531 = vld [vmem:[#allocation13 + $0x1c0] sm:$0xff]
        %v4532 = vld [vmem:[#allocation13 + $0x1c8] sm:$0xff]
        %v4533 = vld [vmem:[#allocation13 + $0x1d0] sm:$0xff]
        %v4534 = vld [vmem:[#allocation13 + $0x1d8] sm:$0xff]
        %v4535 = vld [vmem:[#allocation13 + $0x1e0] sm:$0xff]
        %v4536 = vld [vmem:[#allocation13 + $0x1e8] sm:$0xff]
        %v4537 = vld [vmem:[#allocation13 + $0x1f0] sm:$0xff]
        %v4538 = vld [vmem:[#allocation13 + $0x1f8] sm:$0xff]
        %4539 = vmatprep.subr.mxu0 %v4536
        %4540 = vmatpush1.msra.mxu0 %v4535
        %4541 = vmatprep.subr.mxu0 %v4532
        %4542 = vmatpush1.msra.mxu0 %v4531
        %4543 = vmatprep.subr.mxu0 %v4528
        %4544 = vmatpush1.msra.mxu0 %v4527
        %4545 = vmatprep.subr.mxu0 %v4524
        %4546 = vmatpush1.msra.mxu0 %v4523
        %4547 = vmatprep.subr.mxu0 %v4520
        %4548 = vmatpush1.msra.mxu0 %v4519
        %4549 = vmatprep.subr.mxu0 %v4516
        %4550 = vmatpush1.msra.mxu0 %v4515
        %4551 = vmatprep.subr.mxu0 %v4512
        %4552 = vmatpush1.msra.mxu0 %v4511
        %4553 = vmatprep.subr.mxu0 %v4508
        %4554 = vmatpush1.msra.mxu0 %v4507
        %4555 = vmatprep.subr.mxu0 %v4504
        %4556 = vmatpush1.msra.mxu0 %v4503
        %4557 = vmatprep.subr.mxu0 %v4500
        %4558 = vmatpush1.msra.mxu0 %v4499
        %4559 = vmatprep.subr.mxu0 %v4496
        %4560 = vmatpush1.msra.mxu0 %v4495
        %4561 = vmatprep.subr.mxu0 %v4492
        %4562 = vmatpush1.msra.mxu0 %v4491
        %4563 = vmatprep.subr.mxu0 %v4488
        %4564 = vmatpush1.msra.mxu0 %v4487
        %4565 = vmatprep.subr.mxu0 %v4484
        %4566 = vmatpush1.msra.mxu0 %v4483
        %4567 = vmatprep.subr.mxu0 %v4480
        %4568 = vmatpush1.msra.mxu0 %v4479
        %4569 = vmatprep.subr.mxu0 %v4476
        %4570 = vmatpush1.msra.mxu0 %v4475
        %4571 = vmatprep.subr.mxu0 0.0
        %4572 = vmatpush2.msra.mxu0 0.0
        %4573 = vmatprep.subr.mxu0 0.0
        %4574 = vmatpush2.msra.mxu0 0.0
        %4575 = vmatprep.subr.mxu0 0.0
        %4576 = vmatpush2.msra.mxu0 0.0
        %4577 = vmatprep.subr.mxu0 0.0
        %4578 = vmatpush2.msra.mxu0 0.0
        %4579 = vmatprep.subr.mxu0 0.0
        %4580 = vmatpush2.msra.mxu0 0.0
        %4581 = vmatprep.subr.mxu0 0.0
        %4582 = vmatpush2.msra.mxu0 0.0
        %4583 = vmatprep.subr.mxu0 0.0
        %4584 = vmatpush2.msra.mxu0 0.0
        %4585 = vmatprep.subr.mxu0 0.0
        %4586 = vmatpush2.msra.mxu0 0.0
        %4587 = vmatprep.subr.mxu0 0.0
        %4588 = vmatpush2.msra.mxu0 0.0
        %4589 = vmatprep.subr.mxu0 0.0
        %4590 = vmatpush2.msra.mxu0 0.0
        %4591 = vmatprep.subr.mxu0 0.0
        %4592 = vmatpush2.msra.mxu0 0.0
        %4593 = vmatprep.subr.mxu0 0.0
        %4594 = vmatpush2.msra.mxu0 0.0
        %4595 = vmatprep.subr.mxu0 0.0
        %4596 = vmatpush2.msra.mxu0 0.0
        %4597 = vmatprep.subr.mxu0 0.0
        %4598 = vmatpush2.msra.mxu0 0.0
        %4599 = vmatprep.subr.mxu0 0.0
        %4600 = vmatpush2.msra.mxu0 0.0
        %4601 = vmatprep.subr.mxu0 0.0
        %4602 = vmatpush2.msra.mxu0 0.0
        %4603 = vmatprep.mubr.f32.mxu0 0.0
        %4604 = vmatmul.mubr.f32.gmra.mxu0 %v4462
        %v4605 = vpop.f32.mrf.mxu0
        %v4606 = vadd.f32 0.0, %v4605
        %v4607 = vpop.f32.mrf.mxu0
        %v4608 = vadd.f32 0.0, %v4607
        %4609 = vmatprep.mubr.f32.mxu0 0.0
        %4610 = vmatmul.mubr.f32.gmra.mxu0 %v4463
        %v4611 = vpop.f32.mrf.mxu0
        %v4612 = vadd.f32 0.0, %v4611
        %v4613 = vpop.f32.mrf.mxu0
        %v4614 = vadd.f32 0.0, %v4613
        %4615 = vdwg.mxu0
        %4616 = vmatprep.subr.mxu0 %v4538
        %4617 = vmatpush1.msra.mxu0 %v4537
        %4618 = vmatprep.subr.mxu0 %v4534
        %4619 = vmatpush1.msra.mxu0 %v4533
        %4620 = vmatprep.subr.mxu0 %v4530
        %4621 = vmatpush1.msra.mxu0 %v4529
        %4622 = vmatprep.subr.mxu0 %v4526
        %4623 = vmatpush1.msra.mxu0 %v4525
        %4624 = vmatprep.subr.mxu0 %v4522
        %4625 = vmatpush1.msra.mxu0 %v4521
        %4626 = vmatprep.subr.mxu0 %v4518
        %4627 = vmatpush1.msra.mxu0 %v4517
        %4628 = vmatprep.subr.mxu0 %v4514
        %4629 = vmatpush1.msra.mxu0 %v4513
        %4630 = vmatprep.subr.mxu0 %v4510
        %4631 = vmatpush1.msra.mxu0 %v4509
        %4632 = vmatprep.subr.mxu0 %v4506
        %4633 = vmatpush1.msra.mxu0 %v4505
        %4634 = vmatprep.subr.mxu0 %v4502
        %4635 = vmatpush1.msra.mxu0 %v4501
        %4636 = vmatprep.subr.mxu0 %v4498
        %4637 = vmatpush1.msra.mxu0 %v4497
        %4638 = vmatprep.subr.mxu0 %v4494
        %4639 = vmatpush1.msra.mxu0 %v4493
        %4640 = vmatprep.subr.mxu0 %v4490
        %4641 = vmatpush1.msra.mxu0 %v4489
        %4642 = vmatprep.subr.mxu0 %v4486
        %4643 = vmatpush1.msra.mxu0 %v4485
        %4644 = vmatprep.subr.mxu0 %v4482
        %4645 = vmatpush1.msra.mxu0 %v4481
        %4646 = vmatprep.subr.mxu0 %v4478
        %4647 = vmatpush1.msra.mxu0 %v4477
        %4648 = vmatprep.subr.mxu0 0.0
        %4649 = vmatpush2.msra.mxu0 0.0
        %4650 = vmatprep.subr.mxu0 0.0
        %4651 = vmatpush2.msra.mxu0 0.0
        %4652 = vmatprep.subr.mxu0 0.0
        %4653 = vmatpush2.msra.mxu0 0.0
        %4654 = vmatprep.subr.mxu0 0.0
        %4655 = vmatpush2.msra.mxu0 0.0
        %4656 = vmatprep.subr.mxu0 0.0
        %4657 = vmatpush2.msra.mxu0 0.0
        %4658 = vmatprep.subr.mxu0 0.0
        %4659 = vmatpush2.msra.mxu0 0.0
        %4660 = vmatprep.subr.mxu0 0.0
        %4661 = vmatpush2.msra.mxu0 0.0
        %4662 = vmatprep.subr.mxu0 0.0
        %4663 = vmatpush2.msra.mxu0 0.0
        %4664 = vmatprep.subr.mxu0 0.0
        %4665 = vmatpush2.msra.mxu0 0.0
        %4666 = vmatprep.subr.mxu0 0.0
        %4667 = vmatpush2.msra.mxu0 0.0
        %4668 = vmatprep.subr.mxu0 0.0
        %4669 = vmatpush2.msra.mxu0 0.0
        %4670 = vmatprep.subr.mxu0 0.0
        %4671 = vmatpush2.msra.mxu0 0.0
        %4672 = vmatprep.subr.mxu0 0.0
        %4673 = vmatpush2.msra.mxu0 0.0
        %4674 = vmatprep.subr.mxu0 0.0
        %4675 = vmatpush2.msra.mxu0 0.0
        %4676 = vmatprep.subr.mxu0 0.0
        %4677 = vmatpush2.msra.mxu0 0.0
        %4678 = vmatprep.subr.mxu0 0.0
        %4679 = vmatpush2.msra.mxu0 0.0
        %4680 = vmatprep.mubr.f32.mxu0 0.0
        %4681 = vmatmul.mubr.f32.gmra.mxu0 %v4462
        %v4682 = vpop.f32.mrf.mxu0
        %v4683 = vadd.f32 0.0, %v4682
        %v4684 = vpop.f32.mrf.mxu0
        %v4685 = vadd.f32 0.0, %v4684
        %4686 = vmatprep.mubr.f32.mxu0 0.0
        %4687 = vmatmul.mubr.f32.gmra.mxu0 %v4463
        %v4688 = vpop.f32.mrf.mxu0
        %v4689 = vadd.f32 0.0, %v4688
        %v4690 = vpop.f32.mrf.mxu0
        %v4691 = vadd.f32 0.0, %v4690
        %4692 = vdwg.mxu0
        %v4693 = vadd.f32 %v4467, %v4606
        %v4694 = vadd.f32 %v4468, %v4608
        %v4695 = vadd.f32 %v4469, %v4683
        %v4696 = vadd.f32 %v4470, %v4685
        %v4697 = vadd.f32 %v4471, %v4612
        %v4698 = vadd.f32 %v4472, %v4614
        %v4699 = vadd.f32 %v4473, %v4689
        %v4700 = vadd.f32 %v4474, %v4691
        %v4701 = vxor.u32 %v4693, 2147483648
        %v4702 = vxor.u32 %v4694, 2147483648
        %v4703 = vxor.u32 %v4695, 2147483648
        %v4704 = vxor.u32 %v4697, 2147483648
        %v4705 = vxor.u32 %v4698, 2147483648
        %v4706 = vxor.u32 %v4699, 2147483648
        %v4707 = vmul.f32 %v4701, 1.442695
        %v4708 = vpow.pop %v4707
        %v4709 = vmul.f32 %v4702, 1.442695
        %v4710 = vpow.pop %v4709
        %v4711 = vmul.f32 %v4703, 1.442695
        %v4712 = vpow.pop %v4711
        %v4713 = vmul.f32 %v4704, 1.442695
        %v4714 = vpow.pop %v4713
        %v4715 = vmul.f32 %v4705, 1.442695
        %v4716 = vpow.pop %v4715
        %v4717 = vmul.f32 %v4706, 1.442695
        %v4718 = vpow.pop %v4717
        %v4719 = vadd.f32 %v4708, 1.0
        %v4720 = vadd.f32 %v4710, 1.0
        %v4721 = vadd.f32 %v4712, 1.0
        %v4722 = vadd.f32 %v4714, 1.0
        %v4723 = vadd.f32 %v4716, 1.0
        %v4724 = vadd.f32 %v4718, 1.0
        %v4725 = vrcp.pop %v4719
        %v4726 = vmul.f32 1.0, %v4725
        %v4727 = vrcp.pop %v4720
        %v4728 = vmul.f32 1.0, %v4727
        %v4729 = vrcp.pop %v4721
        %v4730 = vmul.f32 1.0, %v4729
        %v4731 = vrcp.pop %v4722
        %v4732 = vmul.f32 1.0, %v4731
        %v4733 = vrcp.pop %v4723
        %v4734 = vmul.f32 1.0, %v4733
        %v4735 = vrcp.pop %v4724
        %v4736 = vmul.f32 1.0, %v4735
        %v4737 = vtanh.pop %v4696
        %v4738 = vtanh.pop %v4700
        %v4739 = vmul.f32 %v4728, %v4464
        %v4740 = vmul.f32 %v4734, %v4465
        %v4741 = vmul.f32 %v4726, %v4737
        %v4742 = vmul.f32 %v4732, %v4738
        %v4743 = vadd.f32 %v4739, %v4741
        %v4744 = vadd.f32 %v4740, %v4742
        %v4745 = vtanh.pop %v4743
        %v4746 = vtanh.pop %v4744
        %v4747 = vmul.f32 %v4730, %v4745
        %v4748 = vmul.f32 %v4736, %v4746
        %4749 = vst [vmem:[#allocation3] sm:$0xff] %v4747
        %4750 = vst [vmem:[#allocation3 + $0x8] sm:$0xff] %v4748
        %4751 = vst [vmem:[#allocation4] sm:$0xff] %v4743
        %4752 = vst [vmem:[#allocation4 + $0x8] sm:$0xff] %v4744
        %s4753 = scalar_lea.vmem [#allocation14], 80
        %4754 = vst [vmem:[%s4753] sm:$0xff] %v4747
        %4755 = vst [vmem:[%s4753 + $0x8] sm:$0xff] %v4748
      $region81: #{tpu_custom_call.1} parent=56 // pred_fallthru
        _
      %s4756 = sadd.s32 %s2964, 6
      %p4757 = scmp.lt.s32.totalorder %s4756, 8
      // Predicated region
      $region82: #{tpu_custom_call.1} parent=56 // pred_check
        %p4758 = pneg %p4757
      $region83: #{tpu_custom_call.1} parent=56 // pred_check_branch
        %4760 = sbr.rel (%p4758) target = $region85
      $region84: #{tpu_custom_call.1} parent=56 // pred_region
        %v4761 = vld [vmem:[#allocation3] sm:$0xff]
        %v4762 = vld [vmem:[#allocation3 + $0x8] sm:$0xff]
        %v4763 = vld [vmem:[#allocation4] sm:$0xff]
        %v4764 = vld [vmem:[#allocation4 + $0x8] sm:$0xff]
        %s4765 = scalar_lea.vmem [#allocation2], 384
        %v4766 = vld [vmem:[%s4765] sm:$0xff]
        %v4767 = vld [vmem:[%s4765 + $0x8] sm:$0xff]
        %v4768 = vld [vmem:[%s4765 + $0x10] sm:$0xff]
        %v4769 = vld [vmem:[%s4765 + $0x18] sm:$0xff]
        %v4770 = vld [vmem:[%s4765 + $0x20] sm:$0xff]
        %v4771 = vld [vmem:[%s4765 + $0x28] sm:$0xff]
        %v4772 = vld [vmem:[%s4765 + $0x30] sm:$0xff]
        %v4773 = vld [vmem:[%s4765 + $0x38] sm:$0xff]
        %v4774 = vld [vmem:[#allocation13] sm:$0xff]
        %v4775 = vld [vmem:[#allocation13 + $0x8] sm:$0xff]
        %v4776 = vld [vmem:[#allocation13 + $0x10] sm:$0xff]
        %v4777 = vld [vmem:[#allocation13 + $0x18] sm:$0xff]
        %v4778 = vld [vmem:[#allocation13 + $0x20] sm:$0xff]
        %v4779 = vld [vmem:[#allocation13 + $0x28] sm:$0xff]
        %v4780 = vld [vmem:[#allocation13 + $0x30] sm:$0xff]
        %v4781 = vld [vmem:[#allocation13 + $0x38] sm:$0xff]
        %v4782 = vld [vmem:[#allocation13 + $0x40] sm:$0xff]
        %v4783 = vld [vmem:[#allocation13 + $0x48] sm:$0xff]
        %v4784 = vld [vmem:[#allocation13 + $0x50] sm:$0xff]
        %v4785 = vld [vmem:[#allocation13 + $0x58] sm:$0xff]
        %v4786 = vld [vmem:[#allocation13 + $0x60] sm:$0xff]
        %v4787 = vld [vmem:[#allocation13 + $0x68] sm:$0xff]
        %v4788 = vld [vmem:[#allocation13 + $0x70] sm:$0xff]
        %v4789 = vld [vmem:[#allocation13 + $0x78] sm:$0xff]
        %v4790 = vld [vmem:[#allocation13 + $0x80] sm:$0xff]
        %v4791 = vld [vmem:[#allocation13 + $0x88] sm:$0xff]
        %v4792 = vld [vmem:[#allocation13 + $0x90] sm:$0xff]
        %v4793 = vld [vmem:[#allocation13 + $0x98] sm:$0xff]
        %v4794 = vld [vmem:[#allocation13 + $0xa0] sm:$0xff]
        %v4795 = vld [vmem:[#allocation13 + $0xa8] sm:$0xff]
        %v4796 = vld [vmem:[#allocation13 + $0xb0] sm:$0xff]
        %v4797 = vld [vmem:[#allocation13 + $0xb8] sm:$0xff]
        %v4798 = vld [vmem:[#allocation13 + $0xc0] sm:$0xff]
        %v4799 = vld [vmem:[#allocation13 + $0xc8] sm:$0xff]
        %v4800 = vld [vmem:[#allocation13 + $0xd0] sm:$0xff]
        %v4801 = vld [vmem:[#allocation13 + $0xd8] sm:$0xff]
        %v4802 = vld [vmem:[#allocation13 + $0xe0] sm:$0xff]
        %v4803 = vld [vmem:[#allocation13 + $0xe8] sm:$0xff]
        %v4804 = vld [vmem:[#allocation13 + $0xf0] sm:$0xff]
        %v4805 = vld [vmem:[#allocation13 + $0xf8] sm:$0xff]
        %v4806 = vld [vmem:[#allocation13 + $0x100] sm:$0xff]
        %v4807 = vld [vmem:[#allocation13 + $0x108] sm:$0xff]
        %v4808 = vld [vmem:[#allocation13 + $0x110] sm:$0xff]
        %v4809 = vld [vmem:[#allocation13 + $0x118] sm:$0xff]
        %v4810 = vld [vmem:[#allocation13 + $0x120] sm:$0xff]
        %v4811 = vld [vmem:[#allocation13 + $0x128] sm:$0xff]
        %v4812 = vld [vmem:[#allocation13 + $0x130] sm:$0xff]
        %v4813 = vld [vmem:[#allocation13 + $0x138] sm:$0xff]
        %v4814 = vld [vmem:[#allocation13 + $0x140] sm:$0xff]
        %v4815 = vld [vmem:[#allocation13 + $0x148] sm:$0xff]
        %v4816 = vld [vmem:[#allocation13 + $0x150] sm:$0xff]
        %v4817 = vld [vmem:[#allocation13 + $0x158] sm:$0xff]
        %v4818 = vld [vmem:[#allocation13 + $0x160] sm:$0xff]
        %v4819 = vld [vmem:[#allocation13 + $0x168] sm:$0xff]
        %v4820 = vld [vmem:[#allocation13 + $0x170] sm:$0xff]
        %v4821 = vld [vmem:[#allocation13 + $0x178] sm:$0xff]
        %v4822 = vld [vmem:[#allocation13 + $0x180] sm:$0xff]
        %v4823 = vld [vmem:[#allocation13 + $0x188] sm:$0xff]
        %v4824 = vld [vmem:[#allocation13 + $0x190] sm:$0xff]
        %v4825 = vld [vmem:[#allocation13 + $0x198] sm:$0xff]
        %v4826 = vld [vmem:[#allocation13 + $0x1a0] sm:$0xff]
        %v4827 = vld [vmem:[#allocation13 + $0x1a8] sm:$0xff]
        %v4828 = vld [vmem:[#allocation13 + $0x1b0] sm:$0xff]
        %v4829 = vld [vmem:[#allocation13 + $0x1b8] sm:$0xff]
        %v4830 = vld [vmem:[#allocation13 + $0x1c0] sm:$0xff]
        %v4831 = vld [vmem:[#allocation13 + $0x1c8] sm:$0xff]
        %v4832 = vld [vmem:[#allocation13 + $0x1d0] sm:$0xff]
        %v4833 = vld [vmem:[#allocation13 + $0x1d8] sm:$0xff]
        %v4834 = vld [vmem:[#allocation13 + $0x1e0] sm:$0xff]
        %v4835 = vld [vmem:[#allocation13 + $0x1e8] sm:$0xff]
        %v4836 = vld [vmem:[#allocation13 + $0x1f0] sm:$0xff]
        %v4837 = vld [vmem:[#allocation13 + $0x1f8] sm:$0xff]
        %4838 = vmatprep.subr.mxu0 %v4835
        %4839 = vmatpush1.msra.mxu0 %v4834
        %4840 = vmatprep.subr.mxu0 %v4831
        %4841 = vmatpush1.msra.mxu0 %v4830
        %4842 = vmatprep.subr.mxu0 %v4827
        %4843 = vmatpush1.msra.mxu0 %v4826
        %4844 = vmatprep.subr.mxu0 %v4823
        %4845 = vmatpush1.msra.mxu0 %v4822
        %4846 = vmatprep.subr.mxu0 %v4819
        %4847 = vmatpush1.msra.mxu0 %v4818
        %4848 = vmatprep.subr.mxu0 %v4815
        %4849 = vmatpush1.msra.mxu0 %v4814
        %4850 = vmatprep.subr.mxu0 %v4811
        %4851 = vmatpush1.msra.mxu0 %v4810
        %4852 = vmatprep.subr.mxu0 %v4807
        %4853 = vmatpush1.msra.mxu0 %v4806
        %4854 = vmatprep.subr.mxu0 %v4803
        %4855 = vmatpush1.msra.mxu0 %v4802
        %4856 = vmatprep.subr.mxu0 %v4799
        %4857 = vmatpush1.msra.mxu0 %v4798
        %4858 = vmatprep.subr.mxu0 %v4795
        %4859 = vmatpush1.msra.mxu0 %v4794
        %4860 = vmatprep.subr.mxu0 %v4791
        %4861 = vmatpush1.msra.mxu0 %v4790
        %4862 = vmatprep.subr.mxu0 %v4787
        %4863 = vmatpush1.msra.mxu0 %v4786
        %4864 = vmatprep.subr.mxu0 %v4783
        %4865 = vmatpush1.msra.mxu0 %v4782
        %4866 = vmatprep.subr.mxu0 %v4779
        %4867 = vmatpush1.msra.mxu0 %v4778
        %4868 = vmatprep.subr.mxu0 %v4775
        %4869 = vmatpush1.msra.mxu0 %v4774
        %4870 = vmatprep.subr.mxu0 0.0
        %4871 = vmatpush2.msra.mxu0 0.0
        %4872 = vmatprep.subr.mxu0 0.0
        %4873 = vmatpush2.msra.mxu0 0.0
        %4874 = vmatprep.subr.mxu0 0.0
        %4875 = vmatpush2.msra.mxu0 0.0
        %4876 = vmatprep.subr.mxu0 0.0
        %4877 = vmatpush2.msra.mxu0 0.0
        %4878 = vmatprep.subr.mxu0 0.0
        %4879 = vmatpush2.msra.mxu0 0.0
        %4880 = vmatprep.subr.mxu0 0.0
        %4881 = vmatpush2.msra.mxu0 0.0
        %4882 = vmatprep.subr.mxu0 0.0
        %4883 = vmatpush2.msra.mxu0 0.0
        %4884 = vmatprep.subr.mxu0 0.0
        %4885 = vmatpush2.msra.mxu0 0.0
        %4886 = vmatprep.subr.mxu0 0.0
        %4887 = vmatpush2.msra.mxu0 0.0
        %4888 = vmatprep.subr.mxu0 0.0
        %4889 = vmatpush2.msra.mxu0 0.0
        %4890 = vmatprep.subr.mxu0 0.0
        %4891 = vmatpush2.msra.mxu0 0.0
        %4892 = vmatprep.subr.mxu0 0.0
        %4893 = vmatpush2.msra.mxu0 0.0
        %4894 = vmatprep.subr.mxu0 0.0
        %4895 = vmatpush2.msra.mxu0 0.0
        %4896 = vmatprep.subr.mxu0 0.0
        %4897 = vmatpush2.msra.mxu0 0.0
        %4898 = vmatprep.subr.mxu0 0.0
        %4899 = vmatpush2.msra.mxu0 0.0
        %4900 = vmatprep.subr.mxu0 0.0
        %4901 = vmatpush2.msra.mxu0 0.0
        %4902 = vmatprep.mubr.f32.mxu0 0.0
        %4903 = vmatmul.mubr.f32.gmra.mxu0 %v4761
        %v4904 = vpop.f32.mrf.mxu0
        %v4905 = vadd.f32 0.0, %v4904
        %v4906 = vpop.f32.mrf.mxu0
        %v4907 = vadd.f32 0.0, %v4906
        %4908 = vmatprep.mubr.f32.mxu0 0.0
        %4909 = vmatmul.mubr.f32.gmra.mxu0 %v4762
        %v4910 = vpop.f32.mrf.mxu0
        %v4911 = vadd.f32 0.0, %v4910
        %v4912 = vpop.f32.mrf.mxu0
        %v4913 = vadd.f32 0.0, %v4912
        %4914 = vdwg.mxu0
        %4915 = vmatprep.subr.mxu0 %v4837
        %4916 = vmatpush1.msra.mxu0 %v4836
        %4917 = vmatprep.subr.mxu0 %v4833
        %4918 = vmatpush1.msra.mxu0 %v4832
        %4919 = vmatprep.subr.mxu0 %v4829
        %4920 = vmatpush1.msra.mxu0 %v4828
        %4921 = vmatprep.subr.mxu0 %v4825
        %4922 = vmatpush1.msra.mxu0 %v4824
        %4923 = vmatprep.subr.mxu0 %v4821
        %4924 = vmatpush1.msra.mxu0 %v4820
        %4925 = vmatprep.subr.mxu0 %v4817
        %4926 = vmatpush1.msra.mxu0 %v4816
        %4927 = vmatprep.subr.mxu0 %v4813
        %4928 = vmatpush1.msra.mxu0 %v4812
        %4929 = vmatprep.subr.mxu0 %v4809
        %4930 = vmatpush1.msra.mxu0 %v4808
        %4931 = vmatprep.subr.mxu0 %v4805
        %4932 = vmatpush1.msra.mxu0 %v4804
        %4933 = vmatprep.subr.mxu0 %v4801
        %4934 = vmatpush1.msra.mxu0 %v4800
        %4935 = vmatprep.subr.mxu0 %v4797
        %4936 = vmatpush1.msra.mxu0 %v4796
        %4937 = vmatprep.subr.mxu0 %v4793
        %4938 = vmatpush1.msra.mxu0 %v4792
        %4939 = vmatprep.subr.mxu0 %v4789
        %4940 = vmatpush1.msra.mxu0 %v4788
        %4941 = vmatprep.subr.mxu0 %v4785
        %4942 = vmatpush1.msra.mxu0 %v4784
        %4943 = vmatprep.subr.mxu0 %v4781
        %4944 = vmatpush1.msra.mxu0 %v4780
        %4945 = vmatprep.subr.mxu0 %v4777
        %4946 = vmatpush1.msra.mxu0 %v4776
        %4947 = vmatprep.subr.mxu0 0.0
        %4948 = vmatpush2.msra.mxu0 0.0
        %4949 = vmatprep.subr.mxu0 0.0
        %4950 = vmatpush2.msra.mxu0 0.0
        %4951 = vmatprep.subr.mxu0 0.0
        %4952 = vmatpush2.msra.mxu0 0.0
        %4953 = vmatprep.subr.mxu0 0.0
        %4954 = vmatpush2.msra.mxu0 0.0
        %4955 = vmatprep.subr.mxu0 0.0
        %4956 = vmatpush2.msra.mxu0 0.0
        %4957 = vmatprep.subr.mxu0 0.0
        %4958 = vmatpush2.msra.mxu0 0.0
        %4959 = vmatprep.subr.mxu0 0.0
        %4960 = vmatpush2.msra.mxu0 0.0
        %4961 = vmatprep.subr.mxu0 0.0
        %4962 = vmatpush2.msra.mxu0 0.0
        %4963 = vmatprep.subr.mxu0 0.0
        %4964 = vmatpush2.msra.mxu0 0.0
        %4965 = vmatprep.subr.mxu0 0.0
        %4966 = vmatpush2.msra.mxu0 0.0
        %4967 = vmatprep.subr.mxu0 0.0
        %4968 = vmatpush2.msra.mxu0 0.0
        %4969 = vmatprep.subr.mxu0 0.0
        %4970 = vmatpush2.msra.mxu0 0.0
        %4971 = vmatprep.subr.mxu0 0.0
        %4972 = vmatpush2.msra.mxu0 0.0
        %4973 = vmatprep.subr.mxu0 0.0
        %4974 = vmatpush2.msra.mxu0 0.0
        %4975 = vmatprep.subr.mxu0 0.0
        %4976 = vmatpush2.msra.mxu0 0.0
        %4977 = vmatprep.subr.mxu0 0.0
        %4978 = vmatpush2.msra.mxu0 0.0
        %4979 = vmatprep.mubr.f32.mxu0 0.0
        %4980 = vmatmul.mubr.f32.gmra.mxu0 %v4761
        %v4981 = vpop.f32.mrf.mxu0
        %v4982 = vadd.f32 0.0, %v4981
        %v4983 = vpop.f32.mrf.mxu0
        %v4984 = vadd.f32 0.0, %v4983
        %4985 = vmatprep.mubr.f32.mxu0 0.0
        %4986 = vmatmul.mubr.f32.gmra.mxu0 %v4762
        %v4987 = vpop.f32.mrf.mxu0
        %v4988 = vadd.f32 0.0, %v4987
        %v4989 = vpop.f32.mrf.mxu0
        %v4990 = vadd.f32 0.0, %v4989
        %4991 = vdwg.mxu0
        %v4992 = vadd.f32 %v4766, %v4905
        %v4993 = vadd.f32 %v4767, %v4907
        %v4994 = vadd.f32 %v4768, %v4982
        %v4995 = vadd.f32 %v4769, %v4984
        %v4996 = vadd.f32 %v4770, %v4911
        %v4997 = vadd.f32 %v4771, %v4913
        %v4998 = vadd.f32 %v4772, %v4988
        %v4999 = vadd.f32 %v4773, %v4990
        %v5000 = vxor.u32 %v4992, 2147483648
        %v5001 = vxor.u32 %v4993, 2147483648
        %v5002 = vxor.u32 %v4994, 2147483648
        %v5003 = vxor.u32 %v4996, 2147483648
        %v5004 = vxor.u32 %v4997, 2147483648
        %v5005 = vxor.u32 %v4998, 2147483648
        %v5006 = vmul.f32 %v5000, 1.442695
        %v5007 = vpow.pop %v5006
        %v5008 = vmul.f32 %v5001, 1.442695
        %v5009 = vpow.pop %v5008
        %v5010 = vmul.f32 %v5002, 1.442695
        %v5011 = vpow.pop %v5010
        %v5012 = vmul.f32 %v5003, 1.442695
        %v5013 = vpow.pop %v5012
        %v5014 = vmul.f32 %v5004, 1.442695
        %v5015 = vpow.pop %v5014
        %v5016 = vmul.f32 %v5005, 1.442695
        %v5017 = vpow.pop %v5016
        %v5018 = vadd.f32 %v5007, 1.0
        %v5019 = vadd.f32 %v5009, 1.0
        %v5020 = vadd.f32 %v5011, 1.0
        %v5021 = vadd.f32 %v5013, 1.0
        %v5022 = vadd.f32 %v5015, 1.0
        %v5023 = vadd.f32 %v5017, 1.0
        %v5024 = vrcp.pop %v5018
        %v5025 = vmul.f32 1.0, %v5024
        %v5026 = vrcp.pop %v5019
        %v5027 = vmul.f32 1.0, %v5026
        %v5028 = vrcp.pop %v5020
        %v5029 = vmul.f32 1.0, %v5028
        %v5030 = vrcp.pop %v5021
        %v5031 = vmul.f32 1.0, %v5030
        %v5032 = vrcp.pop %v5022
        %v5033 = vmul.f32 1.0, %v5032
        %v5034 = vrcp.pop %v5023
        %v5035 = vmul.f32 1.0, %v5034
        %v5036 = vtanh.pop %v4995
        %v5037 = vtanh.pop %v4999
        %v5038 = vmul.f32 %v5027, %v4763
        %v5039 = vmul.f32 %v5033, %v4764
        %v5040 = vmul.f32 %v5025, %v5036
        %v5041 = vmul.f32 %v5031, %v5037
        %v5042 = vadd.f32 %v5038, %v5040
        %v5043 = vadd.f32 %v5039, %v5041
        %v5044 = vtanh.pop %v5042
        %v5045 = vtanh.pop %v5043
        %v5046 = vmul.f32 %v5029, %v5044
        %v5047 = vmul.f32 %v5035, %v5045
        %5048 = vst [vmem:[#allocation3] sm:$0xff] %v5046
        %5049 = vst [vmem:[#allocation3 + $0x8] sm:$0xff] %v5047
        %5050 = vst [vmem:[#allocation4] sm:$0xff] %v5042
        %5051 = vst [vmem:[#allocation4 + $0x8] sm:$0xff] %v5043
        %s5052 = scalar_lea.vmem [#allocation14], 96
        %5053 = vst [vmem:[%s5052] sm:$0xff] %v5046
        %5054 = vst [vmem:[%s5052 + $0x8] sm:$0xff] %v5047
      $region85: #{tpu_custom_call.1} parent=56 // pred_fallthru
        _
      %s5055 = sadd.s32 %s2964, 7
      %p5056 = scmp.lt.s32.totalorder %s5055, 8
      // Predicated region
      $region86: #{tpu_custom_call.1} parent=56 // pred_check
        %p5057 = pneg %p5056
      $region87: #{tpu_custom_call.1} parent=56 // pred_check_branch
        %5059 = sbr.rel (%p5057) target = $region89
      $region88: #{tpu_custom_call.1} parent=56 // pred_region
        %v5060 = vld [vmem:[#allocation3] sm:$0xff]
        %v5061 = vld [vmem:[#allocation3 + $0x8] sm:$0xff]
        %v5062 = vld [vmem:[#allocation4] sm:$0xff]
        %v5063 = vld [vmem:[#allocation4 + $0x8] sm:$0xff]
        %s5064 = scalar_lea.vmem [#allocation2], 448
        %v5065 = vld [vmem:[%s5064] sm:$0xff]
        %v5066 = vld [vmem:[%s5064 + $0x8] sm:$0xff]
        %v5067 = vld [vmem:[%s5064 + $0x10] sm:$0xff]
        %v5068 = vld [vmem:[%s5064 + $0x18] sm:$0xff]
        %v5069 = vld [vmem:[%s5064 + $0x20] sm:$0xff]
        %v5070 = vld [vmem:[%s5064 + $0x28] sm:$0xff]
        %v5071 = vld [vmem:[%s5064 + $0x30] sm:$0xff]
        %v5072 = vld [vmem:[%s5064 + $0x38] sm:$0xff]
        %v5073 = vld [vmem:[#allocation13] sm:$0xff]
        %v5074 = vld [vmem:[#allocation13 + $0x8] sm:$0xff]
        %v5075 = vld [vmem:[#allocation13 + $0x10] sm:$0xff]
        %v5076 = vld [vmem:[#allocation13 + $0x18] sm:$0xff]
        %v5077 = vld [vmem:[#allocation13 + $0x20] sm:$0xff]
        %v5078 = vld [vmem:[#allocation13 + $0x28] sm:$0xff]
        %v5079 = vld [vmem:[#allocation13 + $0x30] sm:$0xff]
        %v5080 = vld [vmem:[#allocation13 + $0x38] sm:$0xff]
        %v5081 = vld [vmem:[#allocation13 + $0x40] sm:$0xff]
        %v5082 = vld [vmem:[#allocation13 + $0x48] sm:$0xff]
        %v5083 = vld [vmem:[#allocation13 + $0x50] sm:$0xff]
        %v5084 = vld [vmem:[#allocation13 + $0x58] sm:$0xff]
        %v5085 = vld [vmem:[#allocation13 + $0x60] sm:$0xff]
        %v5086 = vld [vmem:[#allocation13 + $0x68] sm:$0xff]
        %v5087 = vld [vmem:[#allocation13 + $0x70] sm:$0xff]
        %v5088 = vld [vmem:[#allocation13 + $0x78] sm:$0xff]
        %v5089 = vld [vmem:[#allocation13 + $0x80] sm:$0xff]
        %v5090 = vld [vmem:[#allocation13 + $0x88] sm:$0xff]
        %v5091 = vld [vmem:[#allocation13 + $0x90] sm:$0xff]
        %v5092 = vld [vmem:[#allocation13 + $0x98] sm:$0xff]
        %v5093 = vld [vmem:[#allocation13 + $0xa0] sm:$0xff]
        %v5094 = vld [vmem:[#allocation13 + $0xa8] sm:$0xff]
        %v5095 = vld [vmem:[#allocation13 + $0xb0] sm:$0xff]
        %v5096 = vld [vmem:[#allocation13 + $0xb8] sm:$0xff]
        %v5097 = vld [vmem:[#allocation13 + $0xc0] sm:$0xff]
        %v5098 = vld [vmem:[#allocation13 + $0xc8] sm:$0xff]
        %v5099 = vld [vmem:[#allocation13 + $0xd0] sm:$0xff]
        %v5100 = vld [vmem:[#allocation13 + $0xd8] sm:$0xff]
        %v5101 = vld [vmem:[#allocation13 + $0xe0] sm:$0xff]
        %v5102 = vld [vmem:[#allocation13 + $0xe8] sm:$0xff]
        %v5103 = vld [vmem:[#allocation13 + $0xf0] sm:$0xff]
        %v5104 = vld [vmem:[#allocation13 + $0xf8] sm:$0xff]
        %v5105 = vld [vmem:[#allocation13 + $0x100] sm:$0xff]
        %v5106 = vld [vmem:[#allocation13 + $0x108] sm:$0xff]
        %v5107 = vld [vmem:[#allocation13 + $0x110] sm:$0xff]
        %v5108 = vld [vmem:[#allocation13 + $0x118] sm:$0xff]
        %v5109 = vld [vmem:[#allocation13 + $0x120] sm:$0xff]
        %v5110 = vld [vmem:[#allocation13 + $0x128] sm:$0xff]
        %v5111 = vld [vmem:[#allocation13 + $0x130] sm:$0xff]
        %v5112 = vld [vmem:[#allocation13 + $0x138] sm:$0xff]
        %v5113 = vld [vmem:[#allocation13 + $0x140] sm:$0xff]
        %v5114 = vld [vmem:[#allocation13 + $0x148] sm:$0xff]
        %v5115 = vld [vmem:[#allocation13 + $0x150] sm:$0xff]
        %v5116 = vld [vmem:[#allocation13 + $0x158] sm:$0xff]
        %v5117 = vld [vmem:[#allocation13 + $0x160] sm:$0xff]
        %v5118 = vld [vmem:[#allocation13 + $0x168] sm:$0xff]
        %v5119 = vld [vmem:[#allocation13 + $0x170] sm:$0xff]
        %v5120 = vld [vmem:[#allocation13 + $0x178] sm:$0xff]
        %v5121 = vld [vmem:[#allocation13 + $0x180] sm:$0xff]
        %v5122 = vld [vmem:[#allocation13 + $0x188] sm:$0xff]
        %v5123 = vld [vmem:[#allocation13 + $0x190] sm:$0xff]
        %v5124 = vld [vmem:[#allocation13 + $0x198] sm:$0xff]
        %v5125 = vld [vmem:[#allocation13 + $0x1a0] sm:$0xff]
        %v5126 = vld [vmem:[#allocation13 + $0x1a8] sm:$0xff]
        %v5127 = vld [vmem:[#allocation13 + $0x1b0] sm:$0xff]
        %v5128 = vld [vmem:[#allocation13 + $0x1b8] sm:$0xff]
        %v5129 = vld [vmem:[#allocation13 + $0x1c0] sm:$0xff]
        %v5130 = vld [vmem:[#allocation13 + $0x1c8] sm:$0xff]
        %v5131 = vld [vmem:[#allocation13 + $0x1d0] sm:$0xff]
        %v5132 = vld [vmem:[#allocation13 + $0x1d8] sm:$0xff]
        %v5133 = vld [vmem:[#allocation13 + $0x1e0] sm:$0xff]
        %v5134 = vld [vmem:[#allocation13 + $0x1e8] sm:$0xff]
        %v5135 = vld [vmem:[#allocation13 + $0x1f0] sm:$0xff]
        %v5136 = vld [vmem:[#allocation13 + $0x1f8] sm:$0xff]
        %5137 = vmatprep.subr.mxu0 %v5134
        %5138 = vmatpush1.msra.mxu0 %v5133
        %5139 = vmatprep.subr.mxu0 %v5130
        %5140 = vmatpush1.msra.mxu0 %v5129
        %5141 = vmatprep.subr.mxu0 %v5126
        %5142 = vmatpush1.msra.mxu0 %v5125
        %5143 = vmatprep.subr.mxu0 %v5122
        %5144 = vmatpush1.msra.mxu0 %v5121
        %5145 = vmatprep.subr.mxu0 %v5118
        %5146 = vmatpush1.msra.mxu0 %v5117
        %5147 = vmatprep.subr.mxu0 %v5114
        %5148 = vmatpush1.msra.mxu0 %v5113
        %5149 = vmatprep.subr.mxu0 %v5110
        %5150 = vmatpush1.msra.mxu0 %v5109
        %5151 = vmatprep.subr.mxu0 %v5106
        %5152 = vmatpush1.msra.mxu0 %v5105
        %5153 = vmatprep.subr.mxu0 %v5102
        %5154 = vmatpush1.msra.mxu0 %v5101
        %5155 = vmatprep.subr.mxu0 %v5098
        %5156 = vmatpush1.msra.mxu0 %v5097
        %5157 = vmatprep.subr.mxu0 %v5094
        %5158 = vmatpush1.msra.mxu0 %v5093
        %5159 = vmatprep.subr.mxu0 %v5090
        %5160 = vmatpush1.msra.mxu0 %v5089
        %5161 = vmatprep.subr.mxu0 %v5086
        %5162 = vmatpush1.msra.mxu0 %v5085
        %5163 = vmatprep.subr.mxu0 %v5082
        %5164 = vmatpush1.msra.mxu0 %v5081
        %5165 = vmatprep.subr.mxu0 %v5078
        %5166 = vmatpush1.msra.mxu0 %v5077
        %5167 = vmatprep.subr.mxu0 %v5074
        %5168 = vmatpush1.msra.mxu0 %v5073
        %5169 = vmatprep.subr.mxu0 0.0
        %5170 = vmatpush2.msra.mxu0 0.0
        %5171 = vmatprep.subr.mxu0 0.0
        %5172 = vmatpush2.msra.mxu0 0.0
        %5173 = vmatprep.subr.mxu0 0.0
        %5174 = vmatpush2.msra.mxu0 0.0
        %5175 = vmatprep.subr.mxu0 0.0
        %5176 = vmatpush2.msra.mxu0 0.0
        %5177 = vmatprep.subr.mxu0 0.0
        %5178 = vmatpush2.msra.mxu0 0.0
        %5179 = vmatprep.subr.mxu0 0.0
        %5180 = vmatpush2.msra.mxu0 0.0
        %5181 = vmatprep.subr.mxu0 0.0
        %5182 = vmatpush2.msra.mxu0 0.0
        %5183 = vmatprep.subr.mxu0 0.0
        %5184 = vmatpush2.msra.mxu0 0.0
        %5185 = vmatprep.subr.mxu0 0.0
        %5186 = vmatpush2.msra.mxu0 0.0
        %5187 = vmatprep.subr.mxu0 0.0
        %5188 = vmatpush2.msra.mxu0 0.0
        %5189 = vmatprep.subr.mxu0 0.0
        %5190 = vmatpush2.msra.mxu0 0.0
        %5191 = vmatprep.subr.mxu0 0.0
        %5192 = vmatpush2.msra.mxu0 0.0
        %5193 = vmatprep.subr.mxu0 0.0
        %5194 = vmatpush2.msra.mxu0 0.0
        %5195 = vmatprep.subr.mxu0 0.0
        %5196 = vmatpush2.msra.mxu0 0.0
        %5197 = vmatprep.subr.mxu0 0.0
        %5198 = vmatpush2.msra.mxu0 0.0
        %5199 = vmatprep.subr.mxu0 0.0
        %5200 = vmatpush2.msra.mxu0 0.0
        %5201 = vmatprep.mubr.f32.mxu0 0.0
        %5202 = vmatmul.mubr.f32.gmra.mxu0 %v5060
        %v5203 = vpop.f32.mrf.mxu0
        %v5204 = vadd.f32 0.0, %v5203
        %v5205 = vpop.f32.mrf.mxu0
        %v5206 = vadd.f32 0.0, %v5205
        %5207 = vmatprep.mubr.f32.mxu0 0.0
        %5208 = vmatmul.mubr.f32.gmra.mxu0 %v5061
        %v5209 = vpop.f32.mrf.mxu0
        %v5210 = vadd.f32 0.0, %v5209
        %v5211 = vpop.f32.mrf.mxu0
        %v5212 = vadd.f32 0.0, %v5211
        %5213 = vdwg.mxu0
        %5214 = vmatprep.subr.mxu0 %v5136
        %5215 = vmatpush1.msra.mxu0 %v5135
        %5216 = vmatprep.subr.mxu0 %v5132
        %5217 = vmatpush1.msra.mxu0 %v5131
        %5218 = vmatprep.subr.mxu0 %v5128
        %5219 = vmatpush1.msra.mxu0 %v5127
        %5220 = vmatprep.subr.mxu0 %v5124
        %5221 = vmatpush1.msra.mxu0 %v5123
        %5222 = vmatprep.subr.mxu0 %v5120
        %5223 = vmatpush1.msra.mxu0 %v5119
        %5224 = vmatprep.subr.mxu0 %v5116
        %5225 = vmatpush1.msra.mxu0 %v5115
        %5226 = vmatprep.subr.mxu0 %v5112
        %5227 = vmatpush1.msra.mxu0 %v5111
        %5228 = vmatprep.subr.mxu0 %v5108
        %5229 = vmatpush1.msra.mxu0 %v5107
        %5230 = vmatprep.subr.mxu0 %v5104
        %5231 = vmatpush1.msra.mxu0 %v5103
        %5232 = vmatprep.subr.mxu0 %v5100
        %5233 = vmatpush1.msra.mxu0 %v5099
        %5234 = vmatprep.subr.mxu0 %v5096
        %5235 = vmatpush1.msra.mxu0 %v5095
        %5236 = vmatprep.subr.mxu0 %v5092
        %5237 = vmatpush1.msra.mxu0 %v5091
        %5238 = vmatprep.subr.mxu0 %v5088
        %5239 = vmatpush1.msra.mxu0 %v5087
        %5240 = vmatprep.subr.mxu0 %v5084
        %5241 = vmatpush1.msra.mxu0 %v5083
        %5242 = vmatprep.subr.mxu0 %v5080
        %5243 = vmatpush1.msra.mxu0 %v5079
        %5244 = vmatprep.subr.mxu0 %v5076
        %5245 = vmatpush1.msra.mxu0 %v5075
        %5246 = vmatprep.subr.mxu0 0.0
        %5247 = vmatpush2.msra.mxu0 0.0
        %5248 = vmatprep.subr.mxu0 0.0
        %5249 = vmatpush2.msra.mxu0 0.0
        %5250 = vmatprep.subr.mxu0 0.0
        %5251 = vmatpush2.msra.mxu0 0.0
        %5252 = vmatprep.subr.mxu0 0.0
        %5253 = vmatpush2.msra.mxu0 0.0
        %5254 = vmatprep.subr.mxu0 0.0
        %5255 = vmatpush2.msra.mxu0 0.0
        %5256 = vmatprep.subr.mxu0 0.0
        %5257 = vmatpush2.msra.mxu0 0.0
        %5258 = vmatprep.subr.mxu0 0.0
        %5259 = vmatpush2.msra.mxu0 0.0
        %5260 = vmatprep.subr.mxu0 0.0
        %5261 = vmatpush2.msra.mxu0 0.0
        %5262 = vmatprep.subr.mxu0 0.0
        %5263 = vmatpush2.msra.mxu0 0.0
        %5264 = vmatprep.subr.mxu0 0.0
        %5265 = vmatpush2.msra.mxu0 0.0
        %5266 = vmatprep.subr.mxu0 0.0
        %5267 = vmatpush2.msra.mxu0 0.0
        %5268 = vmatprep.subr.mxu0 0.0
        %5269 = vmatpush2.msra.mxu0 0.0
        %5270 = vmatprep.subr.mxu0 0.0
        %5271 = vmatpush2.msra.mxu0 0.0
        %5272 = vmatprep.subr.mxu0 0.0
        %5273 = vmatpush2.msra.mxu0 0.0
        %5274 = vmatprep.subr.mxu0 0.0
        %5275 = vmatpush2.msra.mxu0 0.0
        %5276 = vmatprep.subr.mxu0 0.0
        %5277 = vmatpush2.msra.mxu0 0.0
        %5278 = vmatprep.mubr.f32.mxu0 0.0
        %5279 = vmatmul.mubr.f32.gmra.mxu0 %v5060
        %v5280 = vpop.f32.mrf.mxu0
        %v5281 = vadd.f32 0.0, %v5280
        %v5282 = vpop.f32.mrf.mxu0
        %v5283 = vadd.f32 0.0, %v5282
        %5284 = vmatprep.mubr.f32.mxu0 0.0
        %5285 = vmatmul.mubr.f32.gmra.mxu0 %v5061
        %v5286 = vpop.f32.mrf.mxu0
        %v5287 = vadd.f32 0.0, %v5286
        %v5288 = vpop.f32.mrf.mxu0
        %v5289 = vadd.f32 0.0, %v5288
        %5290 = vdwg.mxu0
        %v5291 = vadd.f32 %v5065, %v5204
        %v5292 = vadd.f32 %v5066, %v5206
        %v5293 = vadd.f32 %v5067, %v5281
        %v5294 = vadd.f32 %v5068, %v5283
        %v5295 = vadd.f32 %v5069, %v5210
        %v5296 = vadd.f32 %v5070, %v5212
        %v5297 = vadd.f32 %v5071, %v5287
        %v5298 = vadd.f32 %v5072, %v5289
        %v5299 = vxor.u32 %v5291, 2147483648
        %v5300 = vxor.u32 %v5292, 2147483648
        %v5301 = vxor.u32 %v5293, 2147483648
        %v5302 = vxor.u32 %v5295, 2147483648
        %v5303 = vxor.u32 %v5296, 2147483648
        %v5304 = vxor.u32 %v5297, 2147483648
        %v5305 = vmul.f32 %v5299, 1.442695
        %v5306 = vpow.pop %v5305
        %v5307 = vmul.f32 %v5300, 1.442695
        %v5308 = vpow.pop %v5307
        %v5309 = vmul.f32 %v5301, 1.442695
        %v5310 = vpow.pop %v5309
        %v5311 = vmul.f32 %v5302, 1.442695
        %v5312 = vpow.pop %v5311
        %v5313 = vmul.f32 %v5303, 1.442695
        %v5314 = vpow.pop %v5313
        %v5315 = vmul.f32 %v5304, 1.442695
        %v5316 = vpow.pop %v5315
        %v5317 = vadd.f32 %v5306, 1.0
        %v5318 = vadd.f32 %v5308, 1.0
        %v5319 = vadd.f32 %v5310, 1.0
        %v5320 = vadd.f32 %v5312, 1.0
        %v5321 = vadd.f32 %v5314, 1.0
        %v5322 = vadd.f32 %v5316, 1.0
        %v5323 = vrcp.pop %v5317
        %v5324 = vmul.f32 1.0, %v5323
        %v5325 = vrcp.pop %v5318
        %v5326 = vmul.f32 1.0, %v5325
        %v5327 = vrcp.pop %v5319
        %v5328 = vmul.f32 1.0, %v5327
        %v5329 = vrcp.pop %v5320
        %v5330 = vmul.f32 1.0, %v5329
        %v5331 = vrcp.pop %v5321
        %v5332 = vmul.f32 1.0, %v5331
        %v5333 = vrcp.pop %v5322
        %v5334 = vmul.f32 1.0, %v5333
        %v5335 = vtanh.pop %v5294
        %v5336 = vtanh.pop %v5298
        %v5337 = vmul.f32 %v5326, %v5062
        %v5338 = vmul.f32 %v5332, %v5063
        %v5339 = vmul.f32 %v5324, %v5335
        %v5340 = vmul.f32 %v5330, %v5336
        %v5341 = vadd.f32 %v5337, %v5339
        %v5342 = vadd.f32 %v5338, %v5340
        %v5343 = vtanh.pop %v5341
        %v5344 = vtanh.pop %v5342
        %v5345 = vmul.f32 %v5328, %v5343
        %v5346 = vmul.f32 %v5334, %v5344
        %5347 = vst [vmem:[#allocation3] sm:$0xff] %v5345
        %5348 = vst [vmem:[#allocation3 + $0x8] sm:$0xff] %v5346
        %5349 = vst [vmem:[#allocation4] sm:$0xff] %v5341
        %5350 = vst [vmem:[#allocation4 + $0x8] sm:$0xff] %v5342
        %s5351 = scalar_lea.vmem [#allocation14], 112
        %5352 = vst [vmem:[%s5351] sm:$0xff] %v5345
        %5353 = vst [vmem:[%s5351 + $0x8] sm:$0xff] %v5346
      $region89: #{tpu_custom_call.1} parent=56 // pred_fallthru
        _
    $region57: #{tpu_custom_call.1} parent=1 // pred_fallthru
      _
    // Predicated region
    $region90: #{tpu_custom_call.1} parent=1 // pred_check
      %p5354 = pneg %p95
    $region91: #{tpu_custom_call.1} parent=1 // pred_check_branch
      %5356 = sbr.rel (%p5354) target = $region93
    $region92: #{tpu_custom_call.1} parent=1 // pred_region
      %v5357 = vld [vmem:[#allocation4] sm:$0xff]
      %v5358 = vld [vmem:[#allocation4 + $0x8] sm:$0xff]
      %5359 = vst [vmem:[#allocation15] sm:$0xff] %v5357
      %5360 = vst [vmem:[#allocation15 + $0x8] sm:$0xff] %v5358
    $region93: #{tpu_custom_call.1} parent=1 // pred_fallthru
      _
    // Predicated region
    $region94: #{tpu_custom_call.1} parent=1 // pred_check
      _
    $region95: #{tpu_custom_call.1} parent=1 // pred_check_branch
      %5362 = sbr.rel (0) target = $region97
    $region96: #{tpu_custom_call.1} parent=1 // pred_region
      %s5364 = ssub.s32 2048, 2048
      %5365 = vsyncadd [#allocation7], %s5364
      %s5366 = sshll.u32 [#allocation14], 4
      %s5367 = int_to_ptr.vmem [resolvable:$true] %s5366
      %5372 = dma.vmem_to_hbm [thread:$0]  %s5367, 2048, %s6, [#allocation7], 128, 128, 8
    $region97: #{tpu_custom_call.1} parent=1 // pred_fallthru
      _
    // Predicated region
    $region98: #{tpu_custom_call.1} parent=1 // pred_check
      _
    $region99: #{tpu_custom_call.1} parent=1 // pred_check_branch
      %5374 = sbr.rel (0) target = $region101
    $region100: #{tpu_custom_call.1} parent=1 // pred_region
      %s5376 = ssub.s32 256, 256
      %5377 = vsyncadd [#allocation16], %s5376
      %s5378 = sshll.u32 [#allocation15], 4
      %s5379 = int_to_ptr.vmem [resolvable:$true] %s5378
      %5384 = dma.vmem_to_hbm [thread:$0]  %s5379, 256, %s7, [#allocation16], 128, 128, 8
    $region101: #{tpu_custom_call.1} parent=1 // pred_fallthru
      _
    // Predicated region
    $region102: #{tpu_custom_call.1} parent=1 // pred_check
      _
    $region103: #{tpu_custom_call.1} parent=1 // pred_check_branch
      %5386 = sbr.rel (0) target = $region105
    $region104: #{tpu_custom_call.1} parent=1 // pred_region
      %5387 = dma.done [#allocation7], 2048
    $region105: #{tpu_custom_call.1} parent=1 // pred_fallthru
      _
    // Predicated region
    $region106: #{tpu_custom_call.1} parent=1 // pred_check
      _
    $region107: #{tpu_custom_call.1} parent=1 // pred_check_branch
      %5389 = sbr.rel (0) target = $region109
    $region108: #{tpu_custom_call.1} parent=1 // pred_region
      %5390 = dma.done [#allocation16], 256
    $region109: #{tpu_custom_call.1} parent=1 // pred_fallthru
      _
    %5391 = vsyncpa [#allocation6], 1
    %5392 = vsyncpa [#allocation9], 1
    %5393 = vsyncpa [#allocation12], 1
    %5394 = vsyncpa [#allocation7], 1
    %5395 = vsyncpa [#allocation16], 1

</llo_original>
